<compile_context>
chip_gen: v7x
topology: tpu7x:2x2x1
jax: 0.10.0
libtpu: 0.0.40
codegen_flags: <defaults>
</compile_context>

<pallas_src>
import jax
import jax.numpy as jnp
from jax import lax
from jax.experimental import pallas as pl
from jax.experimental.pallas import tpu as pltpu


def basic_block_kernel(x_ref, w1_ref, w2_ref, s1_ref, b1_ref, s2_ref, b2_ref,
                       out_ref):
    # x_ref:   (Nb, H, W, Cin) bf16 NHWC activations (Nb images per grid step)
    # w1_ref:  (3, 3*Cin, C)   bf16 conv1 weights, dy-major, lane groups = dx
    # w2_ref:  (3, 3*C, C)     bf16 conv2 weights
    # s*/b*:   (1, C)          f32 folded BatchNorm scale / bias
    # out_ref: (Nb, H, W, C)   bf16 NHWC output
    Nb, H, W, Cin = x_ref.shape
    C = w1_ref.shape[-1]
    M = H * W
    # Front/back row pad (flattened h*W+w order); multiple of 16 and >= W so
    # every dy slice offset P + (dy-1)*W is sublane-aligned and in range.
    P = ((W + 15) // 16) * 16

    # Column masks (built once, shared by both convs): a tap reading column
    # w-1 must not see column W-1 wrapped in from the previous flattened row,
    # and symmetrically for w+1 / column 0.
    col = lax.broadcasted_iota(jnp.int32, (H, W, 1), 1).reshape(M, 1)
    not_last = col < (W - 1)     # mask for the "reads w-1" lane group
    not_first = col > 0          # mask for the "reads w+1" lane group

    def conv3x3(src_bf, w_ref):
        """3x3 / stride-1 / pad-1 conv as 3 MXU matmuls with K = 3*Cin.

        src_bf: (M, K) bf16 flattened source.  The three dx taps live in lane
        groups [0:K]=w-1, [K:2K]=w, [2K:3K]=w+1 of one padded buffer; the +-1
        horizontal shift is absorbed into the pad lengths so all dy slices are
        aligned (offset = P + (dy-1)*W, a multiple of 16).
        """
        K = src_bf.shape[-1]
        Co = w_ref.shape[-1]
        z = lambda n: jnp.zeros((n, K), jnp.bfloat16)
        left = jnp.where(not_last, src_bf, 0.0)    # source for taps reading w-1
        right = jnp.where(not_first, src_bf, 0.0)  # source for taps reading w+1
        g = jnp.concatenate(
            [jnp.concatenate([z(P + 1), left, z(P - 1)], axis=0),
             jnp.concatenate([z(P), src_bf, z(P)], axis=0),
             jnp.concatenate([z(P - 1), right, z(P + 1)], axis=0)],
            axis=1)                                # (2P + M, 3K) bf16
        acc = jnp.zeros((M, Co), jnp.float32)
        for dy in range(3):
            ofs = P + (dy - 1) * W                 # multiple of 16 -> aligned view
            acc = acc + jnp.dot(g[ofs:ofs + M, :], w_ref[dy],
                                preferred_element_type=jnp.float32)
        return acc

    for n in range(Nb):
        x_bf = x_ref[n].reshape(M, Cin)            # bf16, no cast needed

        # conv1 -> bn1 -> relu  (BN folded; elementwise math stays f32 on VPU)
        y = conv3x3(x_bf, w1_ref)
        y = jnp.maximum(y * s1_ref[...] + b1_ref[...], 0.0)

        # conv2 -> bn2 (single f32->bf16 cast of the intermediate)
        y = conv3x3(y.astype(jnp.bfloat16), w2_ref)
        y = y * s2_ref[...] + b2_ref[...]

        # residual add (downsample is None) + relu; identity re-read from the
        # resident input block right before the add (short live range).
        identity = x_ref[n].reshape(M, Cin).astype(jnp.float32)
        out = jnp.maximum(y + identity, 0.0)
        out_ref[n] = out.astype(out_ref.dtype).reshape(H, W, C)


def fold_bn(gamma, beta, mean, var, eps=1e-5):
    scale = gamma / jnp.sqrt(var + eps)
    bias = beta - mean * scale
    return (scale.reshape(1, -1).astype(jnp.float32),
            bias.reshape(1, -1).astype(jnp.float32))


def prepare_params(params):
    """Fold BN stats and reshape conv weights to the fused (dy, 3*Cin, C) form."""
    Cin, C = params["w1"].shape[2], params["w1"].shape[3]
    w1f = params["w1"].reshape(3, 3 * Cin, C).astype(jnp.bfloat16)
    w2f = params["w2"].reshape(3, 3 * C, C).astype(jnp.bfloat16)
    s1, b1 = fold_bn(*params["bn1"])
    s2, b2 = fold_bn(*params["bn2"])
    return {"w1f": w1f, "w2f": w2f, "s1": s1, "b1": b1, "s2": s2, "b2": b2}


def basic_block_forward_nhwc(x_nhwc, prep, images_per_step=2):
    """NHWC-native hot path: bf16 in / bf16 out, no layout transposes."""
    N, H, W, Cin = x_nhwc.shape
    C = prep["w1f"].shape[-1]
    # stride=1, downsample=None => the residual add needs inplanes == planes.
    assert Cin == C, "BasicBlock with downsample=None requires inplanes == planes"
    nb = images_per_step if (N % images_per_step == 0) else 1

    x = x_nhwc.astype(jnp.bfloat16)
    return pl.pallas_call(
        basic_block_kernel,
        out_shape=jax.ShapeDtypeStruct((N, H, W, C), jnp.bfloat16),
        grid=(N // nb,),
        in_specs=[
            pl.BlockSpec((nb, H, W, Cin), lambda n: (n, 0, 0, 0)),
            pl.BlockSpec((3, 3 * Cin, C), lambda n: (0, 0, 0)),
            pl.BlockSpec((3, 3 * C, C), lambda n: (0, 0, 0)),
            pl.BlockSpec((1, C), lambda n: (0, 0)),
            pl.BlockSpec((1, C), lambda n: (0, 0)),
            pl.BlockSpec((1, C), lambda n: (0, 0)),
            pl.BlockSpec((1, C), lambda n: (0, 0)),
        ],
        out_specs=pl.BlockSpec((nb, H, W, C), lambda n: (n, 0, 0, 0)),
        compiler_params=pltpu.CompilerParams(
            dimension_semantics=("parallel",),   # megacore split / pipelining
        ),
    )(x, prep["w1f"], prep["w2f"], prep["s1"], prep["b1"], prep["s2"], prep["b2"])


def basic_block_forward_nchw(x_nchw, params):
    """PyTorch-interface (NCHW) convenience wrapper.

    # TODO(synk): in a full NHWC-native ResNet pipeline these two transposes
    # disappear; they are kept only for NCHW interface parity and are not the
    # benchmarked hot path.
    """
    x = jnp.transpose(x_nchw, (0, 2, 3, 1))
    out = basic_block_forward_nhwc(x, prepare_params(params))
    return jnp.transpose(out, (0, 3, 1, 2))


def reference_forward_nhwc(x_nhwc, params):
    """Pure-JAX NHWC reference (eval-mode BN, bf16 conv operands, f32 accum)."""
    dn = ("NHWC", "HWIO", "NHWC")

    def conv(x, w_hwio):
        return lax.conv_general_dilated(
            x.astype(jnp.bfloat16), w_hwio.astype(jnp.bfloat16),
            window_strides=(1, 1), padding=((1, 1), (1, 1)),
            dimension_numbers=dn, preferred_element_type=jnp.float32)

    def bn(y, p):
        gamma, beta, mean, var = p
        s = gamma / jnp.sqrt(var + 1e-5)
        b = beta - mean * s
        return y * s + b

    xf = x_nhwc.astype(jnp.float32)
    out = jax.nn.relu(bn(conv(xf, params["w1"]), params["bn1"]))
    out = bn(conv(out, params["w2"]), params["bn2"])
    return jax.nn.relu(out + xf)


def init_params(key, inplanes, planes):
    ks = jax.random.split(key, 4)

    def bn_p(k, c):
        k1, k2, k3, k4 = jax.random.split(k, 4)
        return (1.0 + 0.1 * jax.random.normal(k1, (c,), jnp.float32),
                0.1 * jax.random.normal(k2, (c,), jnp.float32),
                0.1 * jax.random.normal(k3, (c,), jnp.float32),
                0.5 + jnp.abs(jax.random.normal(k4, (c,), jnp.float32)))

    return {
        "w1": 0.05 * jax.random.normal(ks[0], (3, 3, inplanes, planes), jnp.float32),
        "w2": 0.05 * jax.random.normal(ks[1], (3, 3, planes, planes), jnp.float32),
        "bn1": bn_p(ks[2], planes),
        "bn2": bn_p(ks[3], planes),
    }


if __name__ == "__main__":
    # BasicBlock(inplanes=128, planes=128), stride=1, 16x16 spatial.
    # Batch 8 with 2 images per grid step -> 4 grid steps, so each TensorCore
    # gets multiple steps and the DMA pipeline actually overlaps compute.
    N, C, H, W = 8, 128, 16, 16

    key = jax.random.PRNGKey(0)
    kx, kp = jax.random.split(key)
    # bf16 activations end-to-end (channels on the 128-lane axis).
    x_nhwc = jax.random.normal(kx, (N, H, W, C), jnp.float32).astype(jnp.bfloat16)
    params = init_params(kp, C, C)
    prep = prepare_params(params)

    fwd = jax.jit(basic_block_forward_nhwc)
    out = jax.block_until_ready(fwd(x_nhwc, prep))
    ref = jax.block_until_ready(reference_forward_nhwc(x_nhwc, params))

    assert out.shape == (N, H, W, C) and out.dtype == jnp.bfloat16
    out_f32 = out.astype(jnp.float32)
    err = float(jnp.max(jnp.abs(out_f32 - ref)))
    assert jnp.allclose(out_f32, ref, atol=3e-2, rtol=3e-2), f"max abs err {err}"
    print("KERNEL_OK")
</pallas_src>

<mosaic_0001>
module attributes {stable_mosaic.version = 11 : i64} {
  func.func @basic_block_kernel(%arg0: i32, %arg1: memref<2x16x16x128xbf16, #tpu.memory_space<vmem>>, %arg2: memref<3x384x128xbf16, #tpu.memory_space<vmem>>, %arg3: memref<3x384x128xbf16, #tpu.memory_space<vmem>>, %arg4: memref<1x128xf32, #tpu.memory_space<vmem>>, %arg5: memref<1x128xf32, #tpu.memory_space<vmem>>, %arg6: memref<1x128xf32, #tpu.memory_space<vmem>>, %arg7: memref<1x128xf32, #tpu.memory_space<vmem>>, %arg8: memref<2x16x16x128xbf16, #tpu.memory_space<vmem>>) attributes {dimension_semantics = [#tpu.dimension_semantics<parallel>], iteration_bounds = array<i64: 4>, scalar_prefetch = 0 : i64, scratch_operands = 0 : i64, tpu.core_type = #tpu.core_type<tc>, window_params = [{transform_indices = @transform_0, window_bounds = array<i64: 2, 16, 16, 128>}, {pipeline_mode = #tpu.pipeline_mode<synchronous>, transform_indices = @transform_1, window_bounds = array<i64: 3, 384, 128>}, {pipeline_mode = #tpu.pipeline_mode<synchronous>, transform_indices = @transform_2, window_bounds = array<i64: 3, 384, 128>}, {pipeline_mode = #tpu.pipeline_mode<synchronous>, transform_indices = @transform_3, window_bounds = array<i64: 1, 128>}, {pipeline_mode = #tpu.pipeline_mode<synchronous>, transform_indices = @transform_4, window_bounds = array<i64: 1, 128>}, {pipeline_mode = #tpu.pipeline_mode<synchronous>, transform_indices = @transform_5, window_bounds = array<i64: 1, 128>}, {pipeline_mode = #tpu.pipeline_mode<synchronous>, transform_indices = @transform_6, window_bounds = array<i64: 1, 128>}, {transform_indices = @transform_7, window_bounds = array<i64: 2, 16, 16, 128>}]} {
    %0 = tpu.iota {dimensions = array<i32: 1>} : vector<16x16x1xi32>
    %1 = vector.shape_cast %0 : vector<16x16x1xi32> to vector<256x1xi32>
    %c15_i32 = arith.constant 15 : i32
    %2 = vector.broadcast %c15_i32 : i32 to vector<256x1xi32>
    %3 = arith.cmpi slt, %1, %2 : vector<256x1xi32>
    %c0_i32 = arith.constant 0 : i32
    %4 = vector.broadcast %c0_i32 : i32 to vector<256x1xi32>
    %5 = arith.cmpi sgt, %1, %4 : vector<256x1xi32>
    %c0 = arith.constant 0 : index
    %c0_0 = arith.constant 0 : index
    %c0_1 = arith.constant 0 : index
    %c0_2 = arith.constant 0 : index
    %6 = vector.load %arg1[%c0, %c0_0, %c0_1, %c0_2] : memref<2x16x16x128xbf16, #tpu.memory_space<vmem>>, vector<1x16x16x128xbf16>
    %7 = vector.shape_cast %6 : vector<1x16x16x128xbf16> to vector<16x16x128xbf16>
    %8 = vector.shape_cast %7 : vector<16x16x128xbf16> to vector<256x128xbf16>
    %cst = arith.constant 0.000000e+00 : f32
    %9 = arith.truncf %cst : f32 to bf16
    %10 = vector.shape_cast %3 : vector<256x1xi1> to vector<256x1xi1>
    %11 = vector.broadcast %10 : vector<256x1xi1> to vector<256x128xi1>
    %12 = vector.broadcast %9 : bf16 to vector<256x128xbf16>
    %13 = arith.select %11, %8, %12 : vector<256x128xi1>, vector<256x128xbf16>
    %cst_3 = arith.constant 0.000000e+00 : f32
    %14 = arith.truncf %cst_3 : f32 to bf16
    %15 = vector.shape_cast %5 : vector<256x1xi1> to vector<256x1xi1>
    %16 = vector.broadcast %15 : vector<256x1xi1> to vector<256x128xi1>
    %17 = vector.broadcast %14 : bf16 to vector<256x128xbf16>
    %18 = arith.select %16, %8, %17 : vector<256x128xi1>, vector<256x128xbf16>
    %cst_4 = arith.constant 0.000000e+00 : bf16
    %19 = vector.broadcast %cst_4 : bf16 to vector<17x128xbf16>
    %cst_5 = arith.constant 0.000000e+00 : bf16
    %20 = vector.broadcast %cst_5 : bf16 to vector<15x128xbf16>
    %21 = tpu.concatenate %19, %13, %20 in 0 : vector<17x128xbf16>, vector<256x128xbf16>, vector<15x128xbf16> -> vector<288x128xbf16>
    %cst_6 = arith.constant 0.000000e+00 : bf16
    %22 = vector.broadcast %cst_6 : bf16 to vector<16x128xbf16>
    %cst_7 = arith.constant 0.000000e+00 : bf16
    %23 = vector.broadcast %cst_7 : bf16 to vector<16x128xbf16>
    %24 = tpu.concatenate %22, %8, %23 in 0 : vector<16x128xbf16>, vector<256x128xbf16>, vector<16x128xbf16> -> vector<288x128xbf16>
    %cst_8 = arith.constant 0.000000e+00 : bf16
    %25 = vector.broadcast %cst_8 : bf16 to vector<15x128xbf16>
    %cst_9 = arith.constant 0.000000e+00 : bf16
    %26 = vector.broadcast %cst_9 : bf16 to vector<17x128xbf16>
    %27 = tpu.concatenate %25, %18, %26 in 0 : vector<15x128xbf16>, vector<256x128xbf16>, vector<17x128xbf16> -> vector<288x128xbf16>
    %28 = tpu.concatenate %21, %24, %27 in 1 : vector<288x128xbf16>, vector<288x128xbf16>, vector<288x128xbf16> -> vector<288x384xbf16>
    %cst_10 = arith.constant 0.000000e+00 : f32
    %29 = vector.broadcast %cst_10 : f32 to vector<256x128xf32>
    %30 = vector.extract_strided_slice %28 {offsets = [0, 0], sizes = [256, 384], strides = [1, 1]} : vector<288x384xbf16> to vector<256x384xbf16>
    %c0_11 = arith.constant 0 : index
    %c0_12 = arith.constant 0 : index
    %c0_13 = arith.constant 0 : index
    %31 = vector.load %arg2[%c0_11, %c0_12, %c0_13] : memref<3x384x128xbf16, #tpu.memory_space<vmem>>, vector<1x384x128xbf16>
    %32 = vector.shape_cast %31 : vector<1x384x128xbf16> to vector<384x128xbf16>
    %cst_14 = arith.constant dense<0.000000e+00> : vector<256x128xf32>
    %33 = tpu.matmul %30, %32, %cst_14 {dimension_numbers = #tpu.dot_dimension_numbers<[1], [0], [0], [1], [0, 0, 1, 1], [], []>} : vector<256x384xbf16>, vector<384x128xbf16>, vector<256x128xf32> -> vector<256x128xf32>
    %34 = arith.addf %29, %33 : vector<256x128xf32>
    %35 = vector.extract_strided_slice %28 {offsets = [16, 0], sizes = [256, 384], strides = [1, 1]} : vector<288x384xbf16> to vector<256x384xbf16>
    %c1 = arith.constant 1 : index
    %c0_15 = arith.constant 0 : index
    %c0_16 = arith.constant 0 : index
    %36 = vector.load %arg2[%c1, %c0_15, %c0_16] : memref<3x384x128xbf16, #tpu.memory_space<vmem>>, vector<1x384x128xbf16>
    %37 = vector.shape_cast %36 : vector<1x384x128xbf16> to vector<384x128xbf16>
    %cst_17 = arith.constant dense<0.000000e+00> : vector<256x128xf32>
    %38 = tpu.matmul %35, %37, %cst_17 {dimension_numbers = #tpu.dot_dimension_numbers<[1], [0], [0], [1], [0, 0, 1, 1], [], []>} : vector<256x384xbf16>, vector<384x128xbf16>, vector<256x128xf32> -> vector<256x128xf32>
    %39 = arith.addf %34, %38 : vector<256x128xf32>
    %40 = vector.extract_strided_slice %28 {offsets = [32, 0], sizes = [256, 384], strides = [1, 1]} : vector<288x384xbf16> to vector<256x384xbf16>
    %c2 = arith.constant 2 : index
    %c0_18 = arith.constant 0 : index
    %c0_19 = arith.constant 0 : index
    %41 = vector.load %arg2[%c2, %c0_18, %c0_19] : memref<3x384x128xbf16, #tpu.memory_space<vmem>>, vector<1x384x128xbf16>
    %42 = vector.shape_cast %41 : vector<1x384x128xbf16> to vector<384x128xbf16>
    %cst_20 = arith.constant dense<0.000000e+00> : vector<256x128xf32>
    %43 = tpu.matmul %40, %42, %cst_20 {dimension_numbers = #tpu.dot_dimension_numbers<[1], [0], [0], [1], [0, 0, 1, 1], [], []>} : vector<256x384xbf16>, vector<384x128xbf16>, vector<256x128xf32> -> vector<256x128xf32>
    %44 = arith.addf %39, %43 : vector<256x128xf32>
    %c0_21 = arith.constant 0 : index
    %c0_22 = arith.constant 0 : index
    %45 = vector.load %arg4[%c0_21, %c0_22] : memref<1x128xf32, #tpu.memory_space<vmem>>, vector<1x128xf32>
    %46 = vector.broadcast %45 : vector<1x128xf32> to vector<256x128xf32>
    %47 = arith.mulf %44, %46 : vector<256x128xf32>
    %c0_23 = arith.constant 0 : index
    %c0_24 = arith.constant 0 : index
    %48 = vector.load %arg5[%c0_23, %c0_24] : memref<1x128xf32, #tpu.memory_space<vmem>>, vector<1x128xf32>
    %49 = vector.broadcast %48 : vector<1x128xf32> to vector<256x128xf32>
    %50 = arith.addf %47, %49 : vector<256x128xf32>
    %cst_25 = arith.constant 0.000000e+00 : f32
    %51 = vector.broadcast %cst_25 : f32 to vector<256x128xf32>
    %52 = arith.maximumf %50, %51 : vector<256x128xf32>
    %53 = arith.truncf %52 : vector<256x128xf32> to vector<256x128xbf16>
    %cst_26 = arith.constant 0.000000e+00 : f32
    %54 = arith.truncf %cst_26 : f32 to bf16
    %55 = vector.shape_cast %3 : vector<256x1xi1> to vector<256x1xi1>
    %56 = vector.broadcast %55 : vector<256x1xi1> to vector<256x128xi1>
    %57 = vector.broadcast %54 : bf16 to vector<256x128xbf16>
    %58 = arith.select %56, %53, %57 : vector<256x128xi1>, vector<256x128xbf16>
    %cst_27 = arith.constant 0.000000e+00 : f32
    %59 = arith.truncf %cst_27 : f32 to bf16
    %60 = vector.shape_cast %5 : vector<256x1xi1> to vector<256x1xi1>
    %61 = vector.broadcast %60 : vector<256x1xi1> to vector<256x128xi1>
    %62 = vector.broadcast %59 : bf16 to vector<256x128xbf16>
    %63 = arith.select %61, %53, %62 : vector<256x128xi1>, vector<256x128xbf16>
    %cst_28 = arith.constant 0.000000e+00 : bf16
    %64 = vector.broadcast %cst_28 : bf16 to vector<17x128xbf16>
    %cst_29 = arith.constant 0.000000e+00 : bf16
    %65 = vector.broadcast %cst_29 : bf16 to vector<15x128xbf16>
    %66 = tpu.concatenate %64, %58, %65 in 0 : vector<17x128xbf16>, vector<256x128xbf16>, vector<15x128xbf16> -> vector<288x128xbf16>
    %cst_30 = arith.constant 0.000000e+00 : bf16
    %67 = vector.broadcast %cst_30 : bf16 to vector<16x128xbf16>
    %cst_31 = arith.constant 0.000000e+00 : bf16
    %68 = vector.broadcast %cst_31 : bf16 to vector<16x128xbf16>
    %69 = tpu.concatenate %67, %53, %68 in 0 : vector<16x128xbf16>, vector<256x128xbf16>, vector<16x128xbf16> -> vector<288x128xbf16>
    %cst_32 = arith.constant 0.000000e+00 : bf16
    %70 = vector.broadcast %cst_32 : bf16 to vector<15x128xbf16>
    %cst_33 = arith.constant 0.000000e+00 : bf16
    %71 = vector.broadcast %cst_33 : bf16 to vector<17x128xbf16>
    %72 = tpu.concatenate %70, %63, %71 in 0 : vector<15x128xbf16>, vector<256x128xbf16>, vector<17x128xbf16> -> vector<288x128xbf16>
    %73 = tpu.concatenate %66, %69, %72 in 1 : vector<288x128xbf16>, vector<288x128xbf16>, vector<288x128xbf16> -> vector<288x384xbf16>
    %cst_34 = arith.constant 0.000000e+00 : f32
    %74 = vector.broadcast %cst_34 : f32 to vector<256x128xf32>
    %75 = vector.extract_strided_slice %73 {offsets = [0, 0], sizes = [256, 384], strides = [1, 1]} : vector<288x384xbf16> to vector<256x384xbf16>
    %c0_35 = arith.constant 0 : index
    %c0_36 = arith.constant 0 : index
    %c0_37 = arith.constant 0 : index
    %76 = vector.load %arg3[%c0_35, %c0_36, %c0_37] : memref<3x384x128xbf16, #tpu.memory_space<vmem>>, vector<1x384x128xbf16>
    %77 = vector.shape_cast %76 : vector<1x384x128xbf16> to vector<384x128xbf16>
    %cst_38 = arith.constant dense<0.000000e+00> : vector<256x128xf32>
    %78 = tpu.matmul %75, %77, %cst_38 {dimension_numbers = #tpu.dot_dimension_numbers<[1], [0], [0], [1], [0, 0, 1, 1], [], []>} : vector<256x384xbf16>, vector<384x128xbf16>, vector<256x128xf32> -> vector<256x128xf32>
    %79 = arith.addf %74, %78 : vector<256x128xf32>
    %80 = vector.extract_strided_slice %73 {offsets = [16, 0], sizes = [256, 384], strides = [1, 1]} : vector<288x384xbf16> to vector<256x384xbf16>
    %c1_39 = arith.constant 1 : index
    %c0_40 = arith.constant 0 : index
    %c0_41 = arith.constant 0 : index
    %81 = vector.load %arg3[%c1_39, %c0_40, %c0_41] : memref<3x384x128xbf16, #tpu.memory_space<vmem>>, vector<1x384x128xbf16>
    %82 = vector.shape_cast %81 : vector<1x384x128xbf16> to vector<384x128xbf16>
    %cst_42 = arith.constant dense<0.000000e+00> : vector<256x128xf32>
    %83 = tpu.matmul %80, %82, %cst_42 {dimension_numbers = #tpu.dot_dimension_numbers<[1], [0], [0], [1], [0, 0, 1, 1], [], []>} : vector<256x384xbf16>, vector<384x128xbf16>, vector<256x128xf32> -> vector<256x128xf32>
    %84 = arith.addf %79, %83 : vector<256x128xf32>
    %85 = vector.extract_strided_slice %73 {offsets = [32, 0], sizes = [256, 384], strides = [1, 1]} : vector<288x384xbf16> to vector<256x384xbf16>
    %c2_43 = arith.constant 2 : index
    %c0_44 = arith.constant 0 : index
    %c0_45 = arith.constant 0 : index
    %86 = vector.load %arg3[%c2_43, %c0_44, %c0_45] : memref<3x384x128xbf16, #tpu.memory_space<vmem>>, vector<1x384x128xbf16>
    %87 = vector.shape_cast %86 : vector<1x384x128xbf16> to vector<384x128xbf16>
    %cst_46 = arith.constant dense<0.000000e+00> : vector<256x128xf32>
    %88 = tpu.matmul %85, %87, %cst_46 {dimension_numbers = #tpu.dot_dimension_numbers<[1], [0], [0], [1], [0, 0, 1, 1], [], []>} : vector<256x384xbf16>, vector<384x128xbf16>, vector<256x128xf32> -> vector<256x128xf32>
    %89 = arith.addf %84, %88 : vector<256x128xf32>
    %c0_47 = arith.constant 0 : index
    %c0_48 = arith.constant 0 : index
    %90 = vector.load %arg6[%c0_47, %c0_48] : memref<1x128xf32, #tpu.memory_space<vmem>>, vector<1x128xf32>
    %91 = vector.broadcast %90 : vector<1x128xf32> to vector<256x128xf32>
    %92 = arith.mulf %89, %91 : vector<256x128xf32>
    %c0_49 = arith.constant 0 : index
    %c0_50 = arith.constant 0 : index
    %93 = vector.load %arg7[%c0_49, %c0_50] : memref<1x128xf32, #tpu.memory_space<vmem>>, vector<1x128xf32>
    %94 = vector.broadcast %93 : vector<1x128xf32> to vector<256x128xf32>
    %95 = arith.addf %92, %94 : vector<256x128xf32>
    %c0_51 = arith.constant 0 : index
    %c0_52 = arith.constant 0 : index
    %c0_53 = arith.constant 0 : index
    %c0_54 = arith.constant 0 : index
    %96 = vector.load %arg1[%c0_51, %c0_52, %c0_53, %c0_54] : memref<2x16x16x128xbf16, #tpu.memory_space<vmem>>, vector<1x16x16x128xbf16>
    %97 = vector.shape_cast %96 : vector<1x16x16x128xbf16> to vector<16x16x128xbf16>
    %98 = vector.shape_cast %97 : vector<16x16x128xbf16> to vector<256x128xbf16>
    %99 = arith.extf %98 : vector<256x128xbf16> to vector<256x128xf32>
    %100 = arith.addf %95, %99 : vector<256x128xf32>
    %cst_55 = arith.constant 0.000000e+00 : f32
    %101 = vector.broadcast %cst_55 : f32 to vector<256x128xf32>
    %102 = arith.maximumf %100, %101 : vector<256x128xf32>
    %103 = arith.truncf %102 : vector<256x128xf32> to vector<256x128xbf16>
    %104 = vector.shape_cast %103 : vector<256x128xbf16> to vector<16x16x128xbf16>
    %c0_56 = arith.constant 0 : index
    %c0_57 = arith.constant 0 : index
    %c0_58 = arith.constant 0 : index
    %c0_59 = arith.constant 0 : index
    %105 = vector.load %arg8[%c0_56, %c0_57, %c0_58, %c0_59] : memref<2x16x16x128xbf16, #tpu.memory_space<vmem>>, vector<1x16x16x128xbf16>
    %106 = vector.shape_cast %105 : vector<1x16x16x128xbf16> to vector<16x16x128xbf16>
    %107 = vector.shape_cast %104 : vector<16x16x128xbf16> to vector<1x16x16x128xbf16>
    tpu.vector_store %arg8[%c0_56, %c0_57, %c0_58, %c0_59], %107 {strides = array<i32>} : memref<2x16x16x128xbf16, #tpu.memory_space<vmem>>, vector<1x16x16x128xbf16>,
    %c1_60 = arith.constant 1 : index
    %c0_61 = arith.constant 0 : index
    %c0_62 = arith.constant 0 : index
    %c0_63 = arith.constant 0 : index
    %108 = vector.load %arg1[%c1_60, %c0_61, %c0_62, %c0_63] : memref<2x16x16x128xbf16, #tpu.memory_space<vmem>>, vector<1x16x16x128xbf16>
    %109 = vector.shape_cast %108 : vector<1x16x16x128xbf16> to vector<16x16x128xbf16>
    %110 = vector.shape_cast %109 : vector<16x16x128xbf16> to vector<256x128xbf16>
    %cst_64 = arith.constant 0.000000e+00 : f32
    %111 = arith.truncf %cst_64 : f32 to bf16
    %112 = vector.shape_cast %3 : vector<256x1xi1> to vector<256x1xi1>
    %113 = vector.broadcast %112 : vector<256x1xi1> to vector<256x128xi1>
    %114 = vector.broadcast %111 : bf16 to vector<256x128xbf16>
    %115 = arith.select %113, %110, %114 : vector<256x128xi1>, vector<256x128xbf16>
    %cst_65 = arith.constant 0.000000e+00 : f32
    %116 = arith.truncf %cst_65 : f32 to bf16
    %117 = vector.shape_cast %5 : vector<256x1xi1> to vector<256x1xi1>
    %118 = vector.broadcast %117 : vector<256x1xi1> to vector<256x128xi1>
    %119 = vector.broadcast %116 : bf16 to vector<256x128xbf16>
    %120 = arith.select %118, %110, %119 : vector<256x128xi1>, vector<256x128xbf16>
    %cst_66 = arith.constant 0.000000e+00 : bf16
    %121 = vector.broadcast %cst_66 : bf16 to vector<17x128xbf16>
    %cst_67 = arith.constant 0.000000e+00 : bf16
    %122 = vector.broadcast %cst_67 : bf16 to vector<15x128xbf16>
    %123 = tpu.concatenate %121, %115, %122 in 0 : vector<17x128xbf16>, vector<256x128xbf16>, vector<15x128xbf16> -> vector<288x128xbf16>
    %cst_68 = arith.constant 0.000000e+00 : bf16
    %124 = vector.broadcast %cst_68 : bf16 to vector<16x128xbf16>
    %cst_69 = arith.constant 0.000000e+00 : bf16
    %125 = vector.broadcast %cst_69 : bf16 to vector<16x128xbf16>
    %126 = tpu.concatenate %124, %110, %125 in 0 : vector<16x128xbf16>, vector<256x128xbf16>, vector<16x128xbf16> -> vector<288x128xbf16>
    %cst_70 = arith.constant 0.000000e+00 : bf16
    %127 = vector.broadcast %cst_70 : bf16 to vector<15x128xbf16>
    %cst_71 = arith.constant 0.000000e+00 : bf16
    %128 = vector.broadcast %cst_71 : bf16 to vector<17x128xbf16>
    %129 = tpu.concatenate %127, %120, %128 in 0 : vector<15x128xbf16>, vector<256x128xbf16>, vector<17x128xbf16> -> vector<288x128xbf16>
    %130 = tpu.concatenate %123, %126, %129 in 1 : vector<288x128xbf16>, vector<288x128xbf16>, vector<288x128xbf16> -> vector<288x384xbf16>
    %cst_72 = arith.constant 0.000000e+00 : f32
    %131 = vector.broadcast %cst_72 : f32 to vector<256x128xf32>
    %132 = vector.extract_strided_slice %130 {offsets = [0, 0], sizes = [256, 384], strides = [1, 1]} : vector<288x384xbf16> to vector<256x384xbf16>
    %c0_73 = arith.constant 0 : index
    %c0_74 = arith.constant 0 : index
    %c0_75 = arith.constant 0 : index
    %133 = vector.load %arg2[%c0_73, %c0_74, %c0_75] : memref<3x384x128xbf16, #tpu.memory_space<vmem>>, vector<1x384x128xbf16>
    %134 = vector.shape_cast %133 : vector<1x384x128xbf16> to vector<384x128xbf16>
    %cst_76 = arith.constant dense<0.000000e+00> : vector<256x128xf32>
    %135 = tpu.matmul %132, %134, %cst_76 {dimension_numbers = #tpu.dot_dimension_numbers<[1], [0], [0], [1], [0, 0, 1, 1], [], []>} : vector<256x384xbf16>, vector<384x128xbf16>, vector<256x128xf32> -> vector<256x128xf32>
    %136 = arith.addf %131, %135 : vector<256x128xf32>
    %137 = vector.extract_strided_slice %130 {offsets = [16, 0], sizes = [256, 384], strides = [1, 1]} : vector<288x384xbf16> to vector<256x384xbf16>
    %c1_77 = arith.constant 1 : index
    %c0_78 = arith.constant 0 : index
    %c0_79 = arith.constant 0 : index
    %138 = vector.load %arg2[%c1_77, %c0_78, %c0_79] : memref<3x384x128xbf16, #tpu.memory_space<vmem>>, vector<1x384x128xbf16>
    %139 = vector.shape_cast %138 : vector<1x384x128xbf16> to vector<384x128xbf16>
    %cst_80 = arith.constant dense<0.000000e+00> : vector<256x128xf32>
    %140 = tpu.matmul %137, %139, %cst_80 {dimension_numbers = #tpu.dot_dimension_numbers<[1], [0], [0], [1], [0, 0, 1, 1], [], []>} : vector<256x384xbf16>, vector<384x128xbf16>, vector<256x128xf32> -> vector<256x128xf32>
    %141 = arith.addf %136, %140 : vector<256x128xf32>
    %142 = vector.extract_strided_slice %130 {offsets = [32, 0], sizes = [256, 384], strides = [1, 1]} : vector<288x384xbf16> to vector<256x384xbf16>
    %c2_81 = arith.constant 2 : index
    %c0_82 = arith.constant 0 : index
    %c0_83 = arith.constant 0 : index
    %143 = vector.load %arg2[%c2_81, %c0_82, %c0_83] : memref<3x384x128xbf16, #tpu.memory_space<vmem>>, vector<1x384x128xbf16>
    %144 = vector.shape_cast %143 : vector<1x384x128xbf16> to vector<384x128xbf16>
    %cst_84 = arith.constant dense<0.000000e+00> : vector<256x128xf32>
    %145 = tpu.matmul %142, %144, %cst_84 {dimension_numbers = #tpu.dot_dimension_numbers<[1], [0], [0], [1], [0, 0, 1, 1], [], []>} : vector<256x384xbf16>, vector<384x128xbf16>, vector<256x128xf32> -> vector<256x128xf32>
    %146 = arith.addf %141, %145 : vector<256x128xf32>
    %c0_85 = arith.constant 0 : index
    %c0_86 = arith.constant 0 : index
    %147 = vector.load %arg4[%c0_85, %c0_86] : memref<1x128xf32, #tpu.memory_space<vmem>>, vector<1x128xf32>
    %148 = vector.broadcast %147 : vector<1x128xf32> to vector<256x128xf32>
    %149 = arith.mulf %146, %148 : vector<256x128xf32>
    %c0_87 = arith.constant 0 : index
    %c0_88 = arith.constant 0 : index
    %150 = vector.load %arg5[%c0_87, %c0_88] : memref<1x128xf32, #tpu.memory_space<vmem>>, vector<1x128xf32>
    %151 = vector.broadcast %150 : vector<1x128xf32> to vector<256x128xf32>
    %152 = arith.addf %149, %151 : vector<256x128xf32>
    %cst_89 = arith.constant 0.000000e+00 : f32
    %153 = vector.broadcast %cst_89 : f32 to vector<256x128xf32>
    %154 = arith.maximumf %152, %153 : vector<256x128xf32>
    %155 = arith.truncf %154 : vector<256x128xf32> to vector<256x128xbf16>
    %cst_90 = arith.constant 0.000000e+00 : f32
    %156 = arith.truncf %cst_90 : f32 to bf16
    %157 = vector.shape_cast %3 : vector<256x1xi1> to vector<256x1xi1>
    %158 = vector.broadcast %157 : vector<256x1xi1> to vector<256x128xi1>
    %159 = vector.broadcast %156 : bf16 to vector<256x128xbf16>
    %160 = arith.select %158, %155, %159 : vector<256x128xi1>, vector<256x128xbf16>
    %cst_91 = arith.constant 0.000000e+00 : f32
    %161 = arith.truncf %cst_91 : f32 to bf16
    %162 = vector.shape_cast %5 : vector<256x1xi1> to vector<256x1xi1>
    %163 = vector.broadcast %162 : vector<256x1xi1> to vector<256x128xi1>
    %164 = vector.broadcast %161 : bf16 to vector<256x128xbf16>
    %165 = arith.select %163, %155, %164 : vector<256x128xi1>, vector<256x128xbf16>
    %cst_92 = arith.constant 0.000000e+00 : bf16
    %166 = vector.broadcast %cst_92 : bf16 to vector<17x128xbf16>
    %cst_93 = arith.constant 0.000000e+00 : bf16
    %167 = vector.broadcast %cst_93 : bf16 to vector<15x128xbf16>
    %168 = tpu.concatenate %166, %160, %167 in 0 : vector<17x128xbf16>, vector<256x128xbf16>, vector<15x128xbf16> -> vector<288x128xbf16>
    %cst_94 = arith.constant 0.000000e+00 : bf16
    %169 = vector.broadcast %cst_94 : bf16 to vector<16x128xbf16>
    %cst_95 = arith.constant 0.000000e+00 : bf16
    %170 = vector.broadcast %cst_95 : bf16 to vector<16x128xbf16>
    %171 = tpu.concatenate %169, %155, %170 in 0 : vector<16x128xbf16>, vector<256x128xbf16>, vector<16x128xbf16> -> vector<288x128xbf16>
    %cst_96 = arith.constant 0.000000e+00 : bf16
    %172 = vector.broadcast %cst_96 : bf16 to vector<15x128xbf16>
    %cst_97 = arith.constant 0.000000e+00 : bf16
    %173 = vector.broadcast %cst_97 : bf16 to vector<17x128xbf16>
    %174 = tpu.concatenate %172, %165, %173 in 0 : vector<15x128xbf16>, vector<256x128xbf16>, vector<17x128xbf16> -> vector<288x128xbf16>
    %175 = tpu.concatenate %168, %171, %174 in 1 : vector<288x128xbf16>, vector<288x128xbf16>, vector<288x128xbf16> -> vector<288x384xbf16>
    %cst_98 = arith.constant 0.000000e+00 : f32
    %176 = vector.broadcast %cst_98 : f32 to vector<256x128xf32>
    %177 = vector.extract_strided_slice %175 {offsets = [0, 0], sizes = [256, 384], strides = [1, 1]} : vector<288x384xbf16> to vector<256x384xbf16>
    %c0_99 = arith.constant 0 : index
    %c0_100 = arith.constant 0 : index
    %c0_101 = arith.constant 0 : index
    %178 = vector.load %arg3[%c0_99, %c0_100, %c0_101] : memref<3x384x128xbf16, #tpu.memory_space<vmem>>, vector<1x384x128xbf16>
    %179 = vector.shape_cast %178 : vector<1x384x128xbf16> to vector<384x128xbf16>
    %cst_102 = arith.constant dense<0.000000e+00> : vector<256x128xf32>
    %180 = tpu.matmul %177, %179, %cst_102 {dimension_numbers = #tpu.dot_dimension_numbers<[1], [0], [0], [1], [0, 0, 1, 1], [], []>} : vector<256x384xbf16>, vector<384x128xbf16>, vector<256x128xf32> -> vector<256x128xf32>
    %181 = arith.addf %176, %180 : vector<256x128xf32>
    %182 = vector.extract_strided_slice %175 {offsets = [16, 0], sizes = [256, 384], strides = [1, 1]} : vector<288x384xbf16> to vector<256x384xbf16>
    %c1_103 = arith.constant 1 : index
    %c0_104 = arith.constant 0 : index
    %c0_105 = arith.constant 0 : index
    %183 = vector.load %arg3[%c1_103, %c0_104, %c0_105] : memref<3x384x128xbf16, #tpu.memory_space<vmem>>, vector<1x384x128xbf16>
    %184 = vector.shape_cast %183 : vector<1x384x128xbf16> to vector<384x128xbf16>
    %cst_106 = arith.constant dense<0.000000e+00> : vector<256x128xf32>
    %185 = tpu.matmul %182, %184, %cst_106 {dimension_numbers = #tpu.dot_dimension_numbers<[1], [0], [0], [1], [0, 0, 1, 1], [], []>} : vector<256x384xbf16>, vector<384x128xbf16>, vector<256x128xf32> -> vector<256x128xf32>
    %186 = arith.addf %181, %185 : vector<256x128xf32>
    %187 = vector.extract_strided_slice %175 {offsets = [32, 0], sizes = [256, 384], strides = [1, 1]} : vector<288x384xbf16> to vector<256x384xbf16>
    %c2_107 = arith.constant 2 : index
    %c0_108 = arith.constant 0 : index
    %c0_109 = arith.constant 0 : index
    %188 = vector.load %arg3[%c2_107, %c0_108, %c0_109] : memref<3x384x128xbf16, #tpu.memory_space<vmem>>, vector<1x384x128xbf16>
    %189 = vector.shape_cast %188 : vector<1x384x128xbf16> to vector<384x128xbf16>
    %cst_110 = arith.constant dense<0.000000e+00> : vector<256x128xf32>
    %190 = tpu.matmul %187, %189, %cst_110 {dimension_numbers = #tpu.dot_dimension_numbers<[1], [0], [0], [1], [0, 0, 1, 1], [], []>} : vector<256x384xbf16>, vector<384x128xbf16>, vector<256x128xf32> -> vector<256x128xf32>
    %191 = arith.addf %186, %190 : vector<256x128xf32>
    %c0_111 = arith.constant 0 : index
    %c0_112 = arith.constant 0 : index
    %192 = vector.load %arg6[%c0_111, %c0_112] : memref<1x128xf32, #tpu.memory_space<vmem>>, vector<1x128xf32>
    %193 = vector.broadcast %192 : vector<1x128xf32> to vector<256x128xf32>
    %194 = arith.mulf %191, %193 : vector<256x128xf32>
    %c0_113 = arith.constant 0 : index
    %c0_114 = arith.constant 0 : index
    %195 = vector.load %arg7[%c0_113, %c0_114] : memref<1x128xf32, #tpu.memory_space<vmem>>, vector<1x128xf32>
    %196 = vector.broadcast %195 : vector<1x128xf32> to vector<256x128xf32>
    %197 = arith.addf %194, %196 : vector<256x128xf32>
    %c1_115 = arith.constant 1 : index
    %c0_116 = arith.constant 0 : index
    %c0_117 = arith.constant 0 : index
    %c0_118 = arith.constant 0 : index
    %198 = vector.load %arg1[%c1_115, %c0_116, %c0_117, %c0_118] : memref<2x16x16x128xbf16, #tpu.memory_space<vmem>>, vector<1x16x16x128xbf16>
    %199 = vector.shape_cast %198 : vector<1x16x16x128xbf16> to vector<16x16x128xbf16>
    %200 = vector.shape_cast %199 : vector<16x16x128xbf16> to vector<256x128xbf16>
    %201 = arith.extf %200 : vector<256x128xbf16> to vector<256x128xf32>
    %202 = arith.addf %197, %201 : vector<256x128xf32>
    %cst_119 = arith.constant 0.000000e+00 : f32
    %203 = vector.broadcast %cst_119 : f32 to vector<256x128xf32>
    %204 = arith.maximumf %202, %203 : vector<256x128xf32>
    %205 = arith.truncf %204 : vector<256x128xf32> to vector<256x128xbf16>
    %206 = vector.shape_cast %205 : vector<256x128xbf16> to vector<16x16x128xbf16>
    %c1_120 = arith.constant 1 : index
    %c0_121 = arith.constant 0 : index
    %c0_122 = arith.constant 0 : index
    %c0_123 = arith.constant 0 : index
    %207 = vector.load %arg8[%c1_120, %c0_121, %c0_122, %c0_123] : memref<2x16x16x128xbf16, #tpu.memory_space<vmem>>, vector<1x16x16x128xbf16>
    %208 = vector.shape_cast %207 : vector<1x16x16x128xbf16> to vector<16x16x128xbf16>
    %209 = vector.shape_cast %206 : vector<16x16x128xbf16> to vector<1x16x16x128xbf16>
    tpu.vector_store %arg8[%c1_120, %c0_121, %c0_122, %c0_123], %209 {strides = array<i32>} : memref<2x16x16x128xbf16, #tpu.memory_space<vmem>>, vector<1x16x16x128xbf16>,
    return
  }
  func.func @transform_0(%arg0: i32) -> (i32, i32, i32, i32) {
    %c0_i32 = arith.constant 0 : i32
    %c0_i32_0 = arith.constant 0 : i32
    %c0_i32_1 = arith.constant 0 : i32
    %c0_i32_2 = arith.constant 0 : i32
    return %arg0, %c0_i32, %c0_i32_0, %c0_i32_1 : i32, i32, i32, i32
  }
  func.func @transform_1(%arg0: i32) -> (i32, i32, i32) {
    %c0_i32 = arith.constant 0 : i32
    %c0_i32_0 = arith.constant 0 : i32
    %c0_i32_1 = arith.constant 0 : i32
    %c0_i32_2 = arith.constant 0 : i32
    return %c0_i32, %c0_i32_0, %c0_i32_1 : i32, i32, i32
  }
  func.func @transform_2(%arg0: i32) -> (i32, i32, i32) {
    %c0_i32 = arith.constant 0 : i32
    %c0_i32_0 = arith.constant 0 : i32
    %c0_i32_1 = arith.constant 0 : i32
    %c0_i32_2 = arith.constant 0 : i32
    return %c0_i32, %c0_i32_0, %c0_i32_1 : i32, i32, i32
  }
  func.func @transform_3(%arg0: i32) -> (i32, i32) {
    %c0_i32 = arith.constant 0 : i32
    %c0_i32_0 = arith.constant 0 : i32
    %c0_i32_1 = arith.constant 0 : i32
    return %c0_i32, %c0_i32_0 : i32, i32
  }
  func.func @transform_4(%arg0: i32) -> (i32, i32) {
    %c0_i32 = arith.constant 0 : i32
    %c0_i32_0 = arith.constant 0 : i32
    %c0_i32_1 = arith.constant 0 : i32
    return %c0_i32, %c0_i32_0 : i32, i32
  }
  func.func @transform_5(%arg0: i32) -> (i32, i32) {
    %c0_i32 = arith.constant 0 : i32
    %c0_i32_0 = arith.constant 0 : i32
    %c0_i32_1 = arith.constant 0 : i32
    return %c0_i32, %c0_i32_0 : i32, i32
  }
  func.func @transform_6(%arg0: i32) -> (i32, i32) {
    %c0_i32 = arith.constant 0 : i32
    %c0_i32_0 = arith.constant 0 : i32
    %c0_i32_1 = arith.constant 0 : i32
    return %c0_i32, %c0_i32_0 : i32, i32
  }
  func.func @transform_7(%arg0: i32) -> (i32, i32, i32, i32) {
    %c0_i32 = arith.constant 0 : i32
    %c0_i32_0 = arith.constant 0 : i32
    %c0_i32_1 = arith.constant 0 : i32
    %c0_i32_2 = arith.constant 0 : i32
    return %arg0, %c0_i32, %c0_i32_0, %c0_i32_1 : i32, i32, i32, i32
  }
}

</mosaic_0001>

<llo_original>
// kernel: basic_block_forward_nhwc.1
$region0: #{basic_block_forward_nhwc.1}
  #allocation0 [shape = 'u32[]', space=smem, size = 0x4, offset = 0x4, fixed_abs, tag = 'smem constant byte address 0x4 - core index']
  #allocation1 [shape = 'u32[144,128]{1,0:T(1,128)}', space=vmem, size = 0x12000, scoped, tag = 'internal scratch']
  %s0 = inlined_call_operand.hbm [shape: bf16[8,16,16,128], index: 0, kind: input, shape index: {}]
  %s1 = inlined_call_operand.hbm [shape: bf16[3,384,128], index: 1, kind: input, shape index: {}]
  %s2 = inlined_call_operand.hbm [shape: bf16[3,384,128], index: 2, kind: input, shape index: {}]
  %s3 = inlined_call_operand.vmem [shape: f32[1,128], index: 3, kind: input, shape index: {}]
  %s4 = inlined_call_operand.vmem [shape: f32[1,128], index: 4, kind: input, shape index: {}]
  %s5 = inlined_call_operand.vmem [shape: f32[1,128], index: 5, kind: input, shape index: {}]
  %s6 = inlined_call_operand.vmem [shape: f32[1,128], index: 6, kind: input, shape index: {}]
  %s7 = inlined_call_operand.hbm [shape: bf16[8,16,16,128], index: 7, kind: output, shape index: {}]
  %s8 = sld [smem:[#allocation0]]
  $region73: #{basic_block_forward_nhwc.1} parent=0
    _
  %s10 = ssub.s32 1, %s8
  %s11 = scalar_select 0, %s10, %s8
  $region1: #{basic_block_forward_nhwc.1} parent=0
    #allocation2 [shape = 'u8[262144]{0}', space=vmem, size = 0x40000, scoped, tag = 'input window, operand 0']
    #allocation3 [shape = 's32[2]{0}', space=sflag, size = 0x8, scoped, tag = 'scoped memory for basic_block_forward_nhwc.1']
    #allocation4 [shape = 's32[2]{0}', space=sflag, size = 0x8, scoped, tag = 'scoped memory for basic_block_forward_nhwc.1']
    #allocation5 [shape = 'u8[294912]{0}', space=vmem, size = 0x48000, scoped, tag = 'input window, operand 1, single buffered']
    #allocation6 [shape = 's32[1]{0}', space=sflag, size = 0x4, scoped, tag = 'scoped memory for basic_block_forward_nhwc.1']
    #allocation7 [shape = 'u8[294912]{0}', space=vmem, size = 0x48000, scoped, tag = 'input window, operand 2, single buffered']
    #allocation8 [shape = 'u8[262144]{0}', space=vmem, size = 0x40000, scoped, tag = 'output window, operand 0']
    %12 = vsyncpa [#allocation3], 0
    %s13 = scalar_lea.sflag [#allocation3], 1
    %14 = vsyncpa %s13, 0
    %15 = vsyncpa [#allocation6], 0
    %16 = vsyncpa [#allocation4], 0
    %s17 = scalar_lea.sflag [#allocation4], 1
    %18 = vsyncpa %s17, 0
    loop: start=0, step=1, limit=6
    $region2: #{basic_block_forward_nhwc.1} parent=1 // loop_pre_header
      _
    $region3: #{basic_block_forward_nhwc.1} parent=1 // loop_header
      %s20 = sphi 0, %s24
      %p21 = scmp.ge.s32.totalorder %s20, 6
      %s30 = sphi 0, %s32
      %s33 = sphi 0, %s30
      %s34 = sphi 0, %s33
      %s50 = sphi 0, %s34
      %s54 = sphi 0, %s54
      %s56 = sphi 0, %s54
      %s57 = sphi 0, %s56
      %s71 = sphi 0, %s57
      %s75 = sphi 0, %s75
      %s77 = sphi 0, %s75
      %s78 = sphi 0, %s77
      %s92 = sphi 0, %s78
      %s96 = sphi 0, %s96
      %s98 = sphi 0, %s96
      %s99 = sphi 0, %s98
      %s113 = sphi 0, %s99
      %s117 = sphi 0, %s117
      %s119 = sphi 0, %s117
      %s120 = sphi 0, %s119
      %s134 = sphi 0, %s120
      %s138 = sphi 0, %s138
      %s140 = sphi 0, %s138
      %s141 = sphi 0, %s140
      %s155 = sphi 0, %s141
      %s159 = sphi 0, %s159
      %s161 = sphi 0, %s159
      %s162 = sphi 0, %s161
      %s176 = sphi 0, %s162
      %s182 = sphi 0, %s184
      %s185 = sphi 0, %s182
      %s186 = sphi 0, %s185
      %s202 = sphi 0, %s186
    $region4: #{basic_block_forward_nhwc.1} parent=1 // loop_header_branch
      %23 = sbr.rel (%p21) target = $region8
    $region5: #{basic_block_forward_nhwc.1} parent=1 // loop_body
      %s25 = ssub.s32 %s20, 1
      %s26 = ssub.s32 %s20, 2
      %s27 = sadd.s32 %s20, 1
      %s28 = ssub.s32 %s20, %s27
      %p29 = scmp.eq.s32.totalorder %s28, 0
      %s31 = sadd.s32 %s30, 1
      %s32 = scalar_select %p29, %s30, %s31
      %p35 = pneg %p29
      %p36 = scmp.eq.s32.totalorder %s20, 3
      %p37 = por %p35, %p36
      %p38 = scmp.ne.s32.totalorder %s30, %s33
      %p39 = scmp.eq.s32.totalorder %s20, 0
      %p40 = por %p38, %p39
      %p41 = scmp.ne.s32.totalorder %s30, %s33
      %p42 = scmp.eq.s32.totalorder %s25, 3
      %p43 = por %p41, %p42
      %p44 = scmp.ne.s32.totalorder %s33, %s34
      %p45 = scmp.eq.s32.totalorder %s25, 0
      %p46 = por %p44, %p45
      %p47 = scmp.ne.s32.totalorder %s33, %s34
      %p48 = scmp.eq.s32.totalorder %s26, 3
      %p49 = por %p47, %p48
      %p51 = scmp.ne.s32.totalorder %s34, %s50
      %p52 = scmp.eq.s32.totalorder %s26, 0
      %p53 = por %p51, %p52
      %s55 = sadd.s32 %s54, 1
      %p58 = scmp.eq.s32.totalorder %s20, 3
      %p59 = scmp.ne.s32.totalorder %s54, %s56
      %p60 = scmp.eq.s32.totalorder %s20, 0
      %p61 = por %p59, %p60
      %p62 = scmp.ne.s32.totalorder %s54, %s56
      %p63 = scmp.eq.s32.totalorder %s25, 3
      %p64 = por %p62, %p63
      %p65 = scmp.ne.s32.totalorder %s56, %s57
      %p66 = scmp.eq.s32.totalorder %s25, 0
      %p67 = por %p65, %p66
      %p68 = scmp.ne.s32.totalorder %s56, %s57
      %p69 = scmp.eq.s32.totalorder %s26, 3
      %p70 = por %p68, %p69
      %p72 = scmp.ne.s32.totalorder %s57, %s71
      %p73 = scmp.eq.s32.totalorder %s26, 0
      %p74 = por %p72, %p73
      %s76 = sadd.s32 %s75, 1
      %p79 = scmp.eq.s32.totalorder %s20, 3
      %p80 = scmp.ne.s32.totalorder %s75, %s77
      %p81 = scmp.eq.s32.totalorder %s20, 0
      %p82 = por %p80, %p81
      %p83 = scmp.ne.s32.totalorder %s75, %s77
      %p84 = scmp.eq.s32.totalorder %s25, 3
      %p85 = por %p83, %p84
      %p86 = scmp.ne.s32.totalorder %s77, %s78
      %p87 = scmp.eq.s32.totalorder %s25, 0
      %p88 = por %p86, %p87
      %p89 = scmp.ne.s32.totalorder %s77, %s78
      %p90 = scmp.eq.s32.totalorder %s26, 3
      %p91 = por %p89, %p90
      %p93 = scmp.ne.s32.totalorder %s78, %s92
      %p94 = scmp.eq.s32.totalorder %s26, 0
      %p95 = por %p93, %p94
      %s97 = sadd.s32 %s96, 1
      %p100 = scmp.eq.s32.totalorder %s20, 3
      %p101 = scmp.ne.s32.totalorder %s96, %s98
      %p102 = scmp.eq.s32.totalorder %s20, 0
      %p103 = por %p101, %p102
      %p104 = scmp.ne.s32.totalorder %s96, %s98
      %p105 = scmp.eq.s32.totalorder %s25, 3
      %p106 = por %p104, %p105
      %p107 = scmp.ne.s32.totalorder %s98, %s99
      %p108 = scmp.eq.s32.totalorder %s25, 0
      %p109 = por %p107, %p108
      %p110 = scmp.ne.s32.totalorder %s98, %s99
      %p111 = scmp.eq.s32.totalorder %s26, 3
      %p112 = por %p110, %p111
      %p114 = scmp.ne.s32.totalorder %s99, %s113
      %p115 = scmp.eq.s32.totalorder %s26, 0
      %p116 = por %p114, %p115
      %s118 = sadd.s32 %s117, 1
      %p121 = scmp.eq.s32.totalorder %s20, 3
      %p122 = scmp.ne.s32.totalorder %s117, %s119
      %p123 = scmp.eq.s32.totalorder %s20, 0
      %p124 = por %p122, %p123
      %p125 = scmp.ne.s32.totalorder %s117, %s119
      %p126 = scmp.eq.s32.totalorder %s25, 3
      %p127 = por %p125, %p126
      %p128 = scmp.ne.s32.totalorder %s119, %s120
      %p129 = scmp.eq.s32.totalorder %s25, 0
      %p130 = por %p128, %p129
      %p131 = scmp.ne.s32.totalorder %s119, %s120
      %p132 = scmp.eq.s32.totalorder %s26, 3
      %p133 = por %p131, %p132
      %p135 = scmp.ne.s32.totalorder %s120, %s134
      %p136 = scmp.eq.s32.totalorder %s26, 0
      %p137 = por %p135, %p136
      %s139 = sadd.s32 %s138, 1
      %p142 = scmp.eq.s32.totalorder %s20, 3
      %p143 = scmp.ne.s32.totalorder %s138, %s140
      %p144 = scmp.eq.s32.totalorder %s20, 0
      %p145 = por %p143, %p144
      %p146 = scmp.ne.s32.totalorder %s138, %s140
      %p147 = scmp.eq.s32.totalorder %s25, 3
      %p148 = por %p146, %p147
      %p149 = scmp.ne.s32.totalorder %s140, %s141
      %p150 = scmp.eq.s32.totalorder %s25, 0
      %p151 = por %p149, %p150
      %p152 = scmp.ne.s32.totalorder %s140, %s141
      %p153 = scmp.eq.s32.totalorder %s26, 3
      %p154 = por %p152, %p153
      %p156 = scmp.ne.s32.totalorder %s141, %s155
      %p157 = scmp.eq.s32.totalorder %s26, 0
      %p158 = por %p156, %p157
      %s160 = sadd.s32 %s159, 1
      %p163 = scmp.eq.s32.totalorder %s20, 3
      %p164 = scmp.ne.s32.totalorder %s159, %s161
      %p165 = scmp.eq.s32.totalorder %s20, 0
      %p166 = por %p164, %p165
      %p167 = scmp.ne.s32.totalorder %s159, %s161
      %p168 = scmp.eq.s32.totalorder %s25, 3
      %p169 = por %p167, %p168
      %p170 = scmp.ne.s32.totalorder %s161, %s162
      %p171 = scmp.eq.s32.totalorder %s25, 0
      %p172 = por %p170, %p171
      %p173 = scmp.ne.s32.totalorder %s161, %s162
      %p174 = scmp.eq.s32.totalorder %s26, 3
      %p175 = por %p173, %p174
      %p177 = scmp.ne.s32.totalorder %s162, %s176
      %p178 = scmp.eq.s32.totalorder %s26, 0
      %p179 = por %p177, %p178
      %s180 = ssub.s32 %s20, %s27
      %p181 = scmp.eq.s32.totalorder %s180, 0
      %s183 = sadd.s32 %s182, 1
      %s184 = scalar_select %p181, %s182, %s183
      %p187 = pneg %p181
      %p188 = scmp.eq.s32.totalorder %s20, 3
      %p189 = por %p187, %p188
      %p190 = scmp.ne.s32.totalorder %s182, %s185
      %p191 = scmp.eq.s32.totalorder %s20, 0
      %p192 = por %p190, %p191
      %p193 = scmp.ne.s32.totalorder %s182, %s185
      %p194 = scmp.eq.s32.totalorder %s25, 3
      %p195 = por %p193, %p194
      %p196 = scmp.ne.s32.totalorder %s185, %s186
      %p197 = scmp.eq.s32.totalorder %s25, 0
      %p198 = por %p196, %p197
      %p199 = scmp.ne.s32.totalorder %s185, %s186
      %p200 = scmp.eq.s32.totalorder %s26, 3
      %p201 = por %p199, %p200
      %p203 = scmp.ne.s32.totalorder %s186, %s202
      %p204 = scmp.eq.s32.totalorder %s26, 0
      %p205 = por %p203, %p204
      %p206 = scmp.le.s32.totalorder 1, %s20
      %p207 = scmp.lt.s32.totalorder %s20, 5
      %p208 = pnand %p206, %p207
      %p209 = pneg %p208
      // Predicated region
      $region9: #{basic_block_forward_nhwc.1} parent=5 // pred_check
        _
      $region10: #{basic_block_forward_nhwc.1} parent=5 // pred_check_branch
        %211 = sbr.rel (%p208) target = $region12
      $region11: #{basic_block_forward_nhwc.1} parent=5 // pred_region
        %s212 = ssub.s32 %s20, 1
        // Predicated region
        $region13: #{basic_block_forward_nhwc.1} parent=11 // pred_check
          %p213 = pneg %p67
        $region14: #{basic_block_forward_nhwc.1} parent=11 // pred_check_branch
          %215 = sbr.rel (%p213) target = $region16
        $region15: #{basic_block_forward_nhwc.1} parent=11 // pred_region
          %s217 = ssub.s32 9216, 9216
          %218 = vsyncadd [#allocation6], %s217
          %s219 = sshll.u32 [#allocation5], 4
          %s220 = int_to_ptr.vmem [resolvable:$true] %s219
          %225 = dma.hbm_to_vmem [thread:$0]  %s1, 9216, %s220, [#allocation6], 64, 64, 4
        $region16: #{basic_block_forward_nhwc.1} parent=11 // pred_fallthru
          _
        // Predicated region
        $region17: #{basic_block_forward_nhwc.1} parent=11 // pred_check
          %p226 = pneg %p88
        $region18: #{basic_block_forward_nhwc.1} parent=11 // pred_check_branch
          %228 = sbr.rel (%p226) target = $region20
        $region19: #{basic_block_forward_nhwc.1} parent=11 // pred_region
          %s230 = ssub.s32 9216, 9216
          %231 = vsyncadd [#allocation6], %s230
          %s232 = sshll.u32 [#allocation7], 4
          %s233 = int_to_ptr.vmem [resolvable:$true] %s232
          %238 = dma.hbm_to_vmem [thread:$0]  %s2, 9216, %s233, [#allocation6], 64, 64, 4
        $region20: #{basic_block_forward_nhwc.1} parent=11 // pred_fallthru
          _
        // Predicated region
        $region21: #{basic_block_forward_nhwc.1} parent=11 // pred_check
          %p239 = pneg %p109
        $region22: #{basic_block_forward_nhwc.1} parent=11 // pred_check_branch
          %241 = sbr.rel (%p239) target = $region24
        $region23: #{basic_block_forward_nhwc.1} parent=11 // pred_region
          _
        $region24: #{basic_block_forward_nhwc.1} parent=11 // pred_fallthru
          _
        // Predicated region
        $region25: #{basic_block_forward_nhwc.1} parent=11 // pred_check
          %p242 = pneg %p130
        $region26: #{basic_block_forward_nhwc.1} parent=11 // pred_check_branch
          %244 = sbr.rel (%p242) target = $region28
        $region27: #{basic_block_forward_nhwc.1} parent=11 // pred_region
          _
        $region28: #{basic_block_forward_nhwc.1} parent=11 // pred_fallthru
          _
        // Predicated region
        $region29: #{basic_block_forward_nhwc.1} parent=11 // pred_check
          %p245 = pneg %p151
        $region30: #{basic_block_forward_nhwc.1} parent=11 // pred_check_branch
          %247 = sbr.rel (%p245) target = $region32
        $region31: #{basic_block_forward_nhwc.1} parent=11 // pred_region
          _
        $region32: #{basic_block_forward_nhwc.1} parent=11 // pred_fallthru
          _
        // Predicated region
        $region33: #{basic_block_forward_nhwc.1} parent=11 // pred_check
          %p248 = pneg %p172
        $region34: #{basic_block_forward_nhwc.1} parent=11 // pred_check_branch
          %250 = sbr.rel (%p248) target = $region36
        $region35: #{basic_block_forward_nhwc.1} parent=11 // pred_region
          _
        $region36: #{basic_block_forward_nhwc.1} parent=11 // pred_fallthru
          _
      $region12: #{basic_block_forward_nhwc.1} parent=5 // pred_fallthru
        _
      %p251 = scmp.lt.s32.totalorder %s20, 4
      // Predicated region
      $region37: #{basic_block_forward_nhwc.1} parent=5 // pred_check
        %p252 = pneg %p251
      $region38: #{basic_block_forward_nhwc.1} parent=5 // pred_check_branch
        %254 = sbr.rel (%p252) target = $region40
      $region39: #{basic_block_forward_nhwc.1} parent=5 // pred_region
        // Predicated region
        $region41: #{basic_block_forward_nhwc.1} parent=39 // pred_check
          %p255 = pneg %p40
        $region42: #{basic_block_forward_nhwc.1} parent=39 // pred_check_branch
          %257 = sbr.rel (%p255) target = $region44
        $region43: #{basic_block_forward_nhwc.1} parent=39 // pred_region
          %s258 = sand.u32 %s30, 1
          %s259 = scalar_lea.sflag [#allocation3], %s258
          %s260 = sand.u32 %s30, 1
          %s261 = smul.addr %s260, 256
          %s262 = scalar_lea.vmem [#allocation2], %s261
          %s263 = smul.u32 2, %s20
          %s265 = ssub.s32 4096, 4096
          %266 = vsyncadd %s259, %s265
          %s267 = smul.addr %s263, 32
          %s268 = smul.addr %s267, 64
          %s269 = scalar_lea.hbm %s0, %s268
          %s270 = sshll.u32 %s262, 4
          %s271 = int_to_ptr.vmem [resolvable:$true] %s270
          %276 = dma.hbm_to_vmem [thread:$0]  %s269, 4096, %s271, %s259, 64, 64, 4
        $region44: #{basic_block_forward_nhwc.1} parent=39 // pred_fallthru
          _
      $region40: #{basic_block_forward_nhwc.1} parent=5 // pred_fallthru
        _
      %p277 = scmp.le.s32.totalorder 1, %s20
      %p278 = scmp.lt.s32.totalorder %s20, 5
      %p279 = pnand %p277, %p278
      %p280 = pneg %p279
      // Predicated region
      $region45: #{basic_block_forward_nhwc.1} parent=5 // pred_check
        _
      $region46: #{basic_block_forward_nhwc.1} parent=5 // pred_check_branch
        %282 = sbr.rel (%p279) target = $region48
      $region47: #{basic_block_forward_nhwc.1} parent=5 // pred_region
        %s283 = ssub.s32 %s20, 1
        %s284 = sand.u32 %s33, 1
        %s285 = scalar_lea.sflag [#allocation3], %s284
        %s286 = sand.u32 %s33, 1
        %s287 = smul.addr %s286, 256
        %s288 = scalar_lea.vmem [#allocation2], %s287
        // Predicated region
        $region49: #{basic_block_forward_nhwc.1} parent=47 // pred_check
          %p289 = pneg %p46
        $region50: #{basic_block_forward_nhwc.1} parent=47 // pred_check_branch
          %291 = sbr.rel (%p289) target = $region52
        $region51: #{basic_block_forward_nhwc.1} parent=47 // pred_region
          %292 = dma.done %s285, 4096
        $region52: #{basic_block_forward_nhwc.1} parent=47 // pred_fallthru
          _
        // Predicated region
        $region53: #{basic_block_forward_nhwc.1} parent=47 // pred_check
          %p293 = pneg %p67
        $region54: #{basic_block_forward_nhwc.1} parent=47 // pred_check_branch
          %295 = sbr.rel (%p293) target = $region56
        $region55: #{basic_block_forward_nhwc.1} parent=47 // pred_region
          %296 = dma.done [#allocation6], 9216
        $region56: #{basic_block_forward_nhwc.1} parent=47 // pred_fallthru
          _
        // Predicated region
        $region57: #{basic_block_forward_nhwc.1} parent=47 // pred_check
          %p297 = pneg %p88
        $region58: #{basic_block_forward_nhwc.1} parent=47 // pred_check_branch
          %299 = sbr.rel (%p297) target = $region60
        $region59: #{basic_block_forward_nhwc.1} parent=47 // pred_region
          %300 = dma.done [#allocation6], 9216
        $region60: #{basic_block_forward_nhwc.1} parent=47 // pred_fallthru
          _
        %s301 = sand.u32 %s33, 1
        %s302 = scalar_lea.sflag [#allocation3], %s301
        %s303 = sand.u32 %s33, 1
        %s304 = smul.addr %s303, 256
        %s305 = scalar_lea.vmem [#allocation2], %s304
        %p306 = pneg %p46
        %p307 = pneg %p43
        %p308 = pneg %p67
        %p309 = pneg %p64
        %p310 = pneg %p88
        %p311 = pneg %p85
        %p312 = pneg %p109
        %p313 = pneg %p106
        %p314 = pneg %p130
        %p315 = pneg %p127
        %p316 = pneg %p151
        %p317 = pneg %p148
        %p318 = pneg %p172
        %p319 = pneg %p169
        %p320 = pneg %p198
        %p321 = pneg %p195
        %s322 = sand.u32 %s185, 1
        %s323 = scalar_lea.sflag [#allocation4], %s322
        %s324 = sand.u32 %s185, 1
        %s325 = smul.addr %s324, 256
        %s326 = scalar_lea.vmem [#allocation8], %s325
        %s327 = smul.u32 2, %s25
        %s328 = smul.u32 2, %s25
        %v332 = vlaneseq
        %v333 = vshrl.u32 %v332, 7
        %v334 = vadd.s32 %v333, 8
        %vm335 = vcmp.lt.s32.totalorder %v333, 15
        %vm336 = vcmp.lt.s32.totalorder %v334, 15
        %vm337 = vcmp.gt.s32.totalorder %v333, 0
        %vm338 = vcmp.gt.s32.totalorder %v334, 0
        %v339 = vld [vmem:[%s288] sm:$0xf]
        %v340 = vld [vmem:[%s288 + $0x4] sm:$0xf]
        %v341 = vld [vmem:[%s288 + $0x8] sm:$0xf]
        %v342 = vld [vmem:[%s288 + $0xc] sm:$0xf]
        %v343 = vld [vmem:[%s288 + $0x10] sm:$0xf]
        %v344 = vld [vmem:[%s288 + $0x14] sm:$0xf]
        %v345 = vld [vmem:[%s288 + $0x18] sm:$0xf]
        %v346 = vld [vmem:[%s288 + $0x1c] sm:$0xf]
        %v347 = vld [vmem:[%s288 + $0x20] sm:$0xf]
        %v348 = vld [vmem:[%s288 + $0x24] sm:$0xf]
        %v349 = vld [vmem:[%s288 + $0x28] sm:$0xf]
        %v350 = vld [vmem:[%s288 + $0x2c] sm:$0xf]
        %v351 = vld [vmem:[%s288 + $0x30] sm:$0xf]
        %v352 = vld [vmem:[%s288 + $0x34] sm:$0xf]
        %v353 = vld [vmem:[%s288 + $0x38] sm:$0xf]
        %v354 = vld [vmem:[%s288 + $0x3c] sm:$0xf]
        %v355 = vld [vmem:[%s288 + $0x40] sm:$0xf]
        %v356 = vld [vmem:[%s288 + $0x44] sm:$0xf]
        %v357 = vld [vmem:[%s288 + $0x48] sm:$0xf]
        %v358 = vld [vmem:[%s288 + $0x4c] sm:$0xf]
        %v359 = vld [vmem:[%s288 + $0x50] sm:$0xf]
        %v360 = vld [vmem:[%s288 + $0x54] sm:$0xf]
        %v361 = vld [vmem:[%s288 + $0x58] sm:$0xf]
        %v362 = vld [vmem:[%s288 + $0x5c] sm:$0xf]
        %v363 = vld [vmem:[%s288 + $0x60] sm:$0xf]
        %v364 = vld [vmem:[%s288 + $0x64] sm:$0xf]
        %v365 = vld [vmem:[%s288 + $0x68] sm:$0xf]
        %v366 = vld [vmem:[%s288 + $0x6c] sm:$0xf]
        %v367 = vld [vmem:[%s288 + $0x70] sm:$0xf]
        %v368 = vld [vmem:[%s288 + $0x74] sm:$0xf]
        %v369 = vld [vmem:[%s288 + $0x78] sm:$0xf]
        %v370 = vld [vmem:[%s288 + $0x7c] sm:$0xf]
        %v371 = vsel %vm335, 1, 0
        %v372 = vsel %vm336, 1, 0
        %vm373 = vcmp.eq.s32.totalorder %v371, 1
        %vm374 = vcmp.eq.s32.totalorder %v372, 1
        %vm375 = vmpackc.low %vm373, %vm373
        %vm376 = vmpackc.low %vm374, %vm374
        %v377 = vsel %vm375, %v339, 0
        %v378 = vsel %vm376, %v340, 0
        %v379 = vsel %vm375, %v341, 0
        %v380 = vsel %vm376, %v342, 0
        %v381 = vsel %vm375, %v343, 0
        %v382 = vsel %vm376, %v344, 0
        %v383 = vsel %vm375, %v345, 0
        %v384 = vsel %vm376, %v346, 0
        %v385 = vsel %vm375, %v347, 0
        %v386 = vsel %vm376, %v348, 0
        %v387 = vsel %vm375, %v349, 0
        %v388 = vsel %vm376, %v350, 0
        %v389 = vsel %vm375, %v351, 0
        %v390 = vsel %vm376, %v352, 0
        %v391 = vsel %vm375, %v353, 0
        %v392 = vsel %vm376, %v354, 0
        %v393 = vsel %vm375, %v355, 0
        %v394 = vsel %vm376, %v356, 0
        %v395 = vsel %vm375, %v357, 0
        %v396 = vsel %vm376, %v358, 0
        %v397 = vsel %vm375, %v359, 0
        %v398 = vsel %vm376, %v360, 0
        %v399 = vsel %vm375, %v361, 0
        %v400 = vsel %vm376, %v362, 0
        %v401 = vsel %vm375, %v363, 0
        %v402 = vsel %vm376, %v364, 0
        %v403 = vsel %vm375, %v365, 0
        %v404 = vsel %vm376, %v366, 0
        %v405 = vsel %vm375, %v367, 0
        %v406 = vsel %vm376, %v368, 0
        %v407 = vsel %vm375, %v369, 0
        %v408 = vsel %vm376, %v370, 0
        %v409 = vsel %vm337, 1, 0
        %v410 = vsel %vm338, 1, 0
        %vm411 = vcmp.eq.s32.totalorder %v409, 1
        %vm412 = vcmp.eq.s32.totalorder %v410, 1
        %vm413 = vmpackc.low %vm411, %vm411
        %vm414 = vmpackc.low %vm412, %vm412
        %v415 = vsel %vm413, %v339, 0
        %v416 = vsel %vm414, %v340, 0
        %v417 = vsel %vm413, %v341, 0
        %v418 = vsel %vm414, %v342, 0
        %v419 = vsel %vm413, %v343, 0
        %v420 = vsel %vm414, %v344, 0
        %v421 = vsel %vm413, %v345, 0
        %v422 = vsel %vm414, %v346, 0
        %v423 = vsel %vm413, %v347, 0
        %v424 = vsel %vm414, %v348, 0
        %v425 = vsel %vm413, %v349, 0
        %v426 = vsel %vm414, %v350, 0
        %v427 = vsel %vm413, %v351, 0
        %v428 = vsel %vm414, %v352, 0
        %v429 = vsel %vm413, %v353, 0
        %v430 = vsel %vm414, %v354, 0
        %v431 = vsel %vm413, %v355, 0
        %v432 = vsel %vm414, %v356, 0
        %v433 = vsel %vm413, %v357, 0
        %v434 = vsel %vm414, %v358, 0
        %v435 = vsel %vm413, %v359, 0
        %v436 = vsel %vm414, %v360, 0
        %v437 = vsel %vm413, %v361, 0
        %v438 = vsel %vm414, %v362, 0
        %v439 = vsel %vm413, %v363, 0
        %v440 = vsel %vm414, %v364, 0
        %v441 = vsel %vm413, %v365, 0
        %v442 = vsel %vm414, %v366, 0
        %v443 = vsel %vm413, %v367, 0
        %v444 = vsel %vm414, %v368, 0
        %v445 = vsel %vm413, %v369, 0
        %v446 = vsel %vm414, %v370, 0
        %v479 = vunpack.c.l.b16 %v377
        %v480 = vunpack.c.l.b16 %v378
        %v481 = vunpack.c.l.b16 %v379
        %v482 = vunpack.c.l.b16 %v380
        %v483 = vunpack.c.l.b16 %v381
        %v484 = vunpack.c.l.b16 %v382
        %v485 = vunpack.c.l.b16 %v383
        %v486 = vunpack.c.l.b16 %v384
        %v487 = vunpack.c.l.b16 %v385
        %v488 = vunpack.c.l.b16 %v386
        %v489 = vunpack.c.l.b16 %v387
        %v490 = vunpack.c.l.b16 %v388
        %v491 = vunpack.c.l.b16 %v389
        %v492 = vunpack.c.l.b16 %v390
        %v493 = vunpack.c.l.b16 %v391
        %v494 = vunpack.c.l.b16 %v392
        %v495 = vunpack.c.l.b16 %v393
        %v496 = vunpack.c.l.b16 %v394
        %v497 = vunpack.c.l.b16 %v395
        %v498 = vunpack.c.l.b16 %v396
        %v499 = vunpack.c.l.b16 %v397
        %v500 = vunpack.c.l.b16 %v398
        %v501 = vunpack.c.l.b16 %v399
        %v502 = vunpack.c.l.b16 %v400
        %v503 = vunpack.c.l.b16 %v401
        %v504 = vunpack.c.l.b16 %v402
        %v505 = vunpack.c.l.b16 %v403
        %v506 = vunpack.c.l.b16 %v404
        %v507 = vunpack.c.l.b16 %v405
        %v508 = vunpack.c.l.b16 %v406
        %v509 = vunpack.c.l.b16 %v407
        %v510 = vunpack.c.l.b16 %v408
        %v511 = vpack.c.b16 %v480, %v479
        %v512 = vpack.c.b16 %v482, %v481
        %v513 = vpack.c.b16 %v484, %v483
        %v514 = vpack.c.b16 %v486, %v485
        %v515 = vpack.c.b16 %v488, %v487
        %v516 = vpack.c.b16 %v490, %v489
        %v517 = vpack.c.b16 %v492, %v491
        %v518 = vpack.c.b16 %v494, %v493
        %v519 = vpack.c.b16 %v496, %v495
        %v520 = vpack.c.b16 %v498, %v497
        %v521 = vpack.c.b16 %v500, %v499
        %v522 = vpack.c.b16 %v502, %v501
        %v523 = vpack.c.b16 %v504, %v503
        %v524 = vpack.c.b16 %v506, %v505
        %v525 = vpack.c.b16 %v508, %v507
        %v526 = vpack.c.b16 %v510, %v509
        %vm527 = vsmask.f32 256
        %v529 = vshrl.u32 %v511, 16
        %v531 = vrot.slane %v529, 7
        %v532 = vshll.u32 %v511, 16
        %v534 = vor.u32 %v531, %v532
        %v536 = vshrl.u32 %v512, 16
        %v538 = vrot.slane %v536, 7
        %v539 = vshll.u32 %v512, 16
        %v541 = vor.u32 %v538, %v539
        %v542 = vsel %vm527, %v531, %v541
        %v544 = vshrl.u32 %v513, 16
        %v546 = vrot.slane %v544, 7
        %v547 = vshll.u32 %v513, 16
        %v549 = vor.u32 %v546, %v547
        %v550 = vsel %vm527, %v538, %v549
        %v552 = vshrl.u32 %v514, 16
        %v554 = vrot.slane %v552, 7
        %v555 = vshll.u32 %v514, 16
        %v557 = vor.u32 %v554, %v555
        %v558 = vsel %vm527, %v546, %v557
        %v560 = vshrl.u32 %v515, 16
        %v562 = vrot.slane %v560, 7
        %v563 = vshll.u32 %v515, 16
        %v565 = vor.u32 %v562, %v563
        %v566 = vsel %vm527, %v554, %v565
        %v568 = vshrl.u32 %v516, 16
        %v570 = vrot.slane %v568, 7
        %v571 = vshll.u32 %v516, 16
        %v573 = vor.u32 %v570, %v571
        %v574 = vsel %vm527, %v562, %v573
        %v576 = vshrl.u32 %v517, 16
        %v578 = vrot.slane %v576, 7
        %v579 = vshll.u32 %v517, 16
        %v581 = vor.u32 %v578, %v579
        %v582 = vsel %vm527, %v570, %v581
        %v584 = vshrl.u32 %v518, 16
        %v586 = vrot.slane %v584, 7
        %v587 = vshll.u32 %v518, 16
        %v589 = vor.u32 %v586, %v587
        %v590 = vsel %vm527, %v578, %v589
        %v592 = vshrl.u32 %v519, 16
        %v594 = vrot.slane %v592, 7
        %v595 = vshll.u32 %v519, 16
        %v597 = vor.u32 %v594, %v595
        %v598 = vsel %vm527, %v586, %v597
        %v600 = vshrl.u32 %v520, 16
        %v602 = vrot.slane %v600, 7
        %v603 = vshll.u32 %v520, 16
        %v605 = vor.u32 %v602, %v603
        %v606 = vsel %vm527, %v594, %v605
        %v608 = vshrl.u32 %v521, 16
        %v610 = vrot.slane %v608, 7
        %v611 = vshll.u32 %v521, 16
        %v613 = vor.u32 %v610, %v611
        %v614 = vsel %vm527, %v602, %v613
        %v616 = vshrl.u32 %v522, 16
        %v618 = vrot.slane %v616, 7
        %v619 = vshll.u32 %v522, 16
        %v621 = vor.u32 %v618, %v619
        %v622 = vsel %vm527, %v610, %v621
        %v624 = vshrl.u32 %v523, 16
        %v626 = vrot.slane %v624, 7
        %v627 = vshll.u32 %v523, 16
        %v629 = vor.u32 %v626, %v627
        %v630 = vsel %vm527, %v618, %v629
        %v632 = vshrl.u32 %v524, 16
        %v634 = vrot.slane %v632, 7
        %v635 = vshll.u32 %v524, 16
        %v637 = vor.u32 %v634, %v635
        %v638 = vsel %vm527, %v626, %v637
        %v640 = vshrl.u32 %v525, 16
        %v642 = vrot.slane %v640, 7
        %v643 = vshll.u32 %v525, 16
        %v645 = vor.u32 %v642, %v643
        %v646 = vsel %vm527, %v634, %v645
        %v648 = vshrl.u32 %v526, 16
        %v650 = vrot.slane %v648, 7
        %v651 = vshll.u32 %v526, 16
        %v653 = vor.u32 %v650, %v651
        %v654 = vsel %vm527, %v642, %v653
        %vm672 = vcmask 1040384
        %vm673 = vmand %vm672, %vm527
        %v674 = vsel %vm673, 0, %v534
        %v675 = vsel %vm673, %v650, 0
        %v708 = vunpack.c.l.b16 %v339
        %v709 = vunpack.c.l.b16 %v340
        %v710 = vunpack.c.l.b16 %v341
        %v711 = vunpack.c.l.b16 %v342
        %v712 = vunpack.c.l.b16 %v343
        %v713 = vunpack.c.l.b16 %v344
        %v714 = vunpack.c.l.b16 %v345
        %v715 = vunpack.c.l.b16 %v346
        %v716 = vunpack.c.l.b16 %v347
        %v717 = vunpack.c.l.b16 %v348
        %v718 = vunpack.c.l.b16 %v349
        %v719 = vunpack.c.l.b16 %v350
        %v720 = vunpack.c.l.b16 %v351
        %v721 = vunpack.c.l.b16 %v352
        %v722 = vunpack.c.l.b16 %v353
        %v723 = vunpack.c.l.b16 %v354
        %v724 = vunpack.c.l.b16 %v355
        %v725 = vunpack.c.l.b16 %v356
        %v726 = vunpack.c.l.b16 %v357
        %v727 = vunpack.c.l.b16 %v358
        %v728 = vunpack.c.l.b16 %v359
        %v729 = vunpack.c.l.b16 %v360
        %v730 = vunpack.c.l.b16 %v361
        %v731 = vunpack.c.l.b16 %v362
        %v732 = vunpack.c.l.b16 %v363
        %v733 = vunpack.c.l.b16 %v364
        %v734 = vunpack.c.l.b16 %v365
        %v735 = vunpack.c.l.b16 %v366
        %v736 = vunpack.c.l.b16 %v367
        %v737 = vunpack.c.l.b16 %v368
        %v738 = vunpack.c.l.b16 %v369
        %v739 = vunpack.c.l.b16 %v370
        %v740 = vpack.c.b16 %v709, %v708
        %v741 = vpack.c.b16 %v711, %v710
        %v742 = vpack.c.b16 %v713, %v712
        %v743 = vpack.c.b16 %v715, %v714
        %v744 = vpack.c.b16 %v717, %v716
        %v745 = vpack.c.b16 %v719, %v718
        %v746 = vpack.c.b16 %v721, %v720
        %v747 = vpack.c.b16 %v723, %v722
        %v748 = vpack.c.b16 %v725, %v724
        %v749 = vpack.c.b16 %v727, %v726
        %v750 = vpack.c.b16 %v729, %v728
        %v751 = vpack.c.b16 %v731, %v730
        %v752 = vpack.c.b16 %v733, %v732
        %v753 = vpack.c.b16 %v735, %v734
        %v754 = vpack.c.b16 %v737, %v736
        %v755 = vpack.c.b16 %v739, %v738
        %v804 = vunpack.c.l.b16 %v415
        %v805 = vunpack.c.l.b16 %v416
        %v806 = vunpack.c.l.b16 %v417
        %v807 = vunpack.c.l.b16 %v418
        %v808 = vunpack.c.l.b16 %v419
        %v809 = vunpack.c.l.b16 %v420
        %v810 = vunpack.c.l.b16 %v421
        %v811 = vunpack.c.l.b16 %v422
        %v812 = vunpack.c.l.b16 %v423
        %v813 = vunpack.c.l.b16 %v424
        %v814 = vunpack.c.l.b16 %v425
        %v815 = vunpack.c.l.b16 %v426
        %v816 = vunpack.c.l.b16 %v427
        %v817 = vunpack.c.l.b16 %v428
        %v818 = vunpack.c.l.b16 %v429
        %v819 = vunpack.c.l.b16 %v430
        %v820 = vunpack.c.l.b16 %v431
        %v821 = vunpack.c.l.b16 %v432
        %v822 = vunpack.c.l.b16 %v433
        %v823 = vunpack.c.l.b16 %v434
        %v824 = vunpack.c.l.b16 %v435
        %v825 = vunpack.c.l.b16 %v436
        %v826 = vunpack.c.l.b16 %v437
        %v827 = vunpack.c.l.b16 %v438
        %v828 = vunpack.c.l.b16 %v439
        %v829 = vunpack.c.l.b16 %v440
        %v830 = vunpack.c.l.b16 %v441
        %v831 = vunpack.c.l.b16 %v442
        %v832 = vunpack.c.l.b16 %v443
        %v833 = vunpack.c.l.b16 %v444
        %v834 = vunpack.c.l.b16 %v445
        %v835 = vunpack.c.l.b16 %v446
        %v836 = vpack.c.b16 %v805, %v804
        %v837 = vpack.c.b16 %v807, %v806
        %v838 = vpack.c.b16 %v809, %v808
        %v839 = vpack.c.b16 %v811, %v810
        %v840 = vpack.c.b16 %v813, %v812
        %v841 = vpack.c.b16 %v815, %v814
        %v842 = vpack.c.b16 %v817, %v816
        %v843 = vpack.c.b16 %v819, %v818
        %v844 = vpack.c.b16 %v821, %v820
        %v845 = vpack.c.b16 %v823, %v822
        %v846 = vpack.c.b16 %v825, %v824
        %v847 = vpack.c.b16 %v827, %v826
        %v848 = vpack.c.b16 %v829, %v828
        %v849 = vpack.c.b16 %v831, %v830
        %v850 = vpack.c.b16 %v833, %v832
        %v851 = vpack.c.b16 %v835, %v834
        %vm852 = vsmask.f32 7424
        %v854 = vshll.u32 %v836, 16
        %v856 = vrot.slane %v854, 1
        %v857 = vshrl.u32 %v836, 16
        %v859 = vor.u32 %v857, %v856
        %v861 = vshll.u32 %v837, 16
        %v863 = vrot.slane %v861, 1
        %v864 = vsel %vm852, %v859, %v863
        %v865 = vshrl.u32 %v837, 16
        %v867 = vor.u32 %v865, %v863
        %v869 = vshll.u32 %v838, 16
        %v871 = vrot.slane %v869, 1
        %v872 = vsel %vm852, %v867, %v871
        %v873 = vshrl.u32 %v838, 16
        %v875 = vor.u32 %v873, %v871
        %v877 = vshll.u32 %v839, 16
        %v879 = vrot.slane %v877, 1
        %v880 = vsel %vm852, %v875, %v879
        %v881 = vshrl.u32 %v839, 16
        %v883 = vor.u32 %v881, %v879
        %v885 = vshll.u32 %v840, 16
        %v887 = vrot.slane %v885, 1
        %v888 = vsel %vm852, %v883, %v887
        %v889 = vshrl.u32 %v840, 16
        %v891 = vor.u32 %v889, %v887
        %v893 = vshll.u32 %v841, 16
        %v895 = vrot.slane %v893, 1
        %v896 = vsel %vm852, %v891, %v895
        %v897 = vshrl.u32 %v841, 16
        %v899 = vor.u32 %v897, %v895
        %v901 = vshll.u32 %v842, 16
        %v903 = vrot.slane %v901, 1
        %v904 = vsel %vm852, %v899, %v903
        %v905 = vshrl.u32 %v842, 16
        %v907 = vor.u32 %v905, %v903
        %v909 = vshll.u32 %v843, 16
        %v911 = vrot.slane %v909, 1
        %v912 = vsel %vm852, %v907, %v911
        %v913 = vshrl.u32 %v843, 16
        %v915 = vor.u32 %v913, %v911
        %v917 = vshll.u32 %v844, 16
        %v919 = vrot.slane %v917, 1
        %v920 = vsel %vm852, %v915, %v919
        %v921 = vshrl.u32 %v844, 16
        %v923 = vor.u32 %v921, %v919
        %v925 = vshll.u32 %v845, 16
        %v927 = vrot.slane %v925, 1
        %v928 = vsel %vm852, %v923, %v927
        %v929 = vshrl.u32 %v845, 16
        %v931 = vor.u32 %v929, %v927
        %v933 = vshll.u32 %v846, 16
        %v935 = vrot.slane %v933, 1
        %v936 = vsel %vm852, %v931, %v935
        %v937 = vshrl.u32 %v846, 16
        %v939 = vor.u32 %v937, %v935
        %v941 = vshll.u32 %v847, 16
        %v943 = vrot.slane %v941, 1
        %v944 = vsel %vm852, %v939, %v943
        %v945 = vshrl.u32 %v847, 16
        %v947 = vor.u32 %v945, %v943
        %v949 = vshll.u32 %v848, 16
        %v951 = vrot.slane %v949, 1
        %v952 = vsel %vm852, %v947, %v951
        %v953 = vshrl.u32 %v848, 16
        %v955 = vor.u32 %v953, %v951
        %v957 = vshll.u32 %v849, 16
        %v959 = vrot.slane %v957, 1
        %v960 = vsel %vm852, %v955, %v959
        %v961 = vshrl.u32 %v849, 16
        %v963 = vor.u32 %v961, %v959
        %v965 = vshll.u32 %v850, 16
        %v967 = vrot.slane %v965, 1
        %v968 = vsel %vm852, %v963, %v967
        %v969 = vshrl.u32 %v850, 16
        %v971 = vor.u32 %v969, %v967
        %v973 = vshll.u32 %v851, 16
        %v975 = vrot.slane %v973, 1
        %v976 = vsel %vm852, %v971, %v975
        %v977 = vshrl.u32 %v851, 16
        %v979 = vor.u32 %v977, %v975
        %vm997 = vcmask 1047552
        %vm998 = vmand %vm997, %vm852
        %v999 = vsel %vm998, 0, %v856
        %v1000 = vsel %vm998, %v979, 0
        %v1001 = vld [vmem:[#allocation5] sm:$0xf]
        %v1002 = vld [vmem:[#allocation5 + $0x4] sm:$0xf]
        %v1003 = vld [vmem:[#allocation5 + $0x8] sm:$0xf]
        %v1004 = vld [vmem:[#allocation5 + $0xc] sm:$0xf]
        %v1005 = vld [vmem:[#allocation5 + $0x10] sm:$0xf]
        %v1006 = vld [vmem:[#allocation5 + $0x14] sm:$0xf]
        %v1007 = vld [vmem:[#allocation5 + $0x18] sm:$0xf]
        %v1008 = vld [vmem:[#allocation5 + $0x1c] sm:$0xf]
        %v1009 = vld [vmem:[#allocation5 + $0x20] sm:$0xf]
        %v1010 = vld [vmem:[#allocation5 + $0x24] sm:$0xf]
        %v1011 = vld [vmem:[#allocation5 + $0x28] sm:$0xf]
        %v1012 = vld [vmem:[#allocation5 + $0x2c] sm:$0xf]
        %v1013 = vld [vmem:[#allocation5 + $0x30] sm:$0xf]
        %v1014 = vld [vmem:[#allocation5 + $0x34] sm:$0xf]
        %v1015 = vld [vmem:[#allocation5 + $0x38] sm:$0xf]
        %v1016 = vld [vmem:[#allocation5 + $0x3c] sm:$0xf]
        %v1017 = vld [vmem:[#allocation5 + $0x40] sm:$0xf]
        %v1018 = vld [vmem:[#allocation5 + $0x44] sm:$0xf]
        %v1019 = vld [vmem:[#allocation5 + $0x48] sm:$0xf]
        %v1020 = vld [vmem:[#allocation5 + $0x4c] sm:$0xf]
        %v1021 = vld [vmem:[#allocation5 + $0x50] sm:$0xf]
        %v1022 = vld [vmem:[#allocation5 + $0x54] sm:$0xf]
        %v1023 = vld [vmem:[#allocation5 + $0x58] sm:$0xf]
        %v1024 = vld [vmem:[#allocation5 + $0x5c] sm:$0xf]
        %v1025 = vld [vmem:[#allocation5 + $0x60] sm:$0xf]
        %v1026 = vld [vmem:[#allocation5 + $0x64] sm:$0xf]
        %v1027 = vld [vmem:[#allocation5 + $0x68] sm:$0xf]
        %v1028 = vld [vmem:[#allocation5 + $0x6c] sm:$0xf]
        %v1029 = vld [vmem:[#allocation5 + $0x70] sm:$0xf]
        %v1030 = vld [vmem:[#allocation5 + $0x74] sm:$0xf]
        %v1031 = vld [vmem:[#allocation5 + $0x78] sm:$0xf]
        %v1032 = vld [vmem:[#allocation5 + $0x7c] sm:$0xf]
        %v1033 = vld [vmem:[#allocation5 + $0x80] sm:$0xf]
        %v1034 = vld [vmem:[#allocation5 + $0x84] sm:$0xf]
        %v1035 = vld [vmem:[#allocation5 + $0x88] sm:$0xf]
        %v1036 = vld [vmem:[#allocation5 + $0x8c] sm:$0xf]
        %v1037 = vld [vmem:[#allocation5 + $0x90] sm:$0xf]
        %v1038 = vld [vmem:[#allocation5 + $0x94] sm:$0xf]
        %v1039 = vld [vmem:[#allocation5 + $0x98] sm:$0xf]
        %v1040 = vld [vmem:[#allocation5 + $0x9c] sm:$0xf]
        %v1041 = vld [vmem:[#allocation5 + $0xa0] sm:$0xf]
        %v1042 = vld [vmem:[#allocation5 + $0xa4] sm:$0xf]
        %v1043 = vld [vmem:[#allocation5 + $0xa8] sm:$0xf]
        %v1044 = vld [vmem:[#allocation5 + $0xac] sm:$0xf]
        %v1045 = vld [vmem:[#allocation5 + $0xb0] sm:$0xf]
        %v1046 = vld [vmem:[#allocation5 + $0xb4] sm:$0xf]
        %v1047 = vld [vmem:[#allocation5 + $0xb8] sm:$0xf]
        %v1048 = vld [vmem:[#allocation5 + $0xbc] sm:$0xf]
        %s1049 = scalar_lea.vmem [#allocation5], 192
        %v1050 = vld [vmem:[%s1049] sm:$0xf]
        %v1051 = vld [vmem:[%s1049 + $0x4] sm:$0xf]
        %v1052 = vld [vmem:[%s1049 + $0x8] sm:$0xf]
        %v1053 = vld [vmem:[%s1049 + $0xc] sm:$0xf]
        %v1054 = vld [vmem:[%s1049 + $0x10] sm:$0xf]
        %v1055 = vld [vmem:[%s1049 + $0x14] sm:$0xf]
        %v1056 = vld [vmem:[%s1049 + $0x18] sm:$0xf]
        %v1057 = vld [vmem:[%s1049 + $0x1c] sm:$0xf]
        %v1058 = vld [vmem:[%s1049 + $0x20] sm:$0xf]
        %v1059 = vld [vmem:[%s1049 + $0x24] sm:$0xf]
        %v1060 = vld [vmem:[%s1049 + $0x28] sm:$0xf]
        %v1061 = vld [vmem:[%s1049 + $0x2c] sm:$0xf]
        %v1062 = vld [vmem:[%s1049 + $0x30] sm:$0xf]
        %v1063 = vld [vmem:[%s1049 + $0x34] sm:$0xf]
        %v1064 = vld [vmem:[%s1049 + $0x38] sm:$0xf]
        %v1065 = vld [vmem:[%s1049 + $0x3c] sm:$0xf]
        %v1066 = vld [vmem:[%s1049 + $0x40] sm:$0xf]
        %v1067 = vld [vmem:[%s1049 + $0x44] sm:$0xf]
        %v1068 = vld [vmem:[%s1049 + $0x48] sm:$0xf]
        %v1069 = vld [vmem:[%s1049 + $0x4c] sm:$0xf]
        %v1070 = vld [vmem:[%s1049 + $0x50] sm:$0xf]
        %v1071 = vld [vmem:[%s1049 + $0x54] sm:$0xf]
        %v1072 = vld [vmem:[%s1049 + $0x58] sm:$0xf]
        %v1073 = vld [vmem:[%s1049 + $0x5c] sm:$0xf]
        %v1074 = vld [vmem:[%s1049 + $0x60] sm:$0xf]
        %v1075 = vld [vmem:[%s1049 + $0x64] sm:$0xf]
        %v1076 = vld [vmem:[%s1049 + $0x68] sm:$0xf]
        %v1077 = vld [vmem:[%s1049 + $0x6c] sm:$0xf]
        %v1078 = vld [vmem:[%s1049 + $0x70] sm:$0xf]
        %v1079 = vld [vmem:[%s1049 + $0x74] sm:$0xf]
        %v1080 = vld [vmem:[%s1049 + $0x78] sm:$0xf]
        %v1081 = vld [vmem:[%s1049 + $0x7c] sm:$0xf]
        %v1082 = vld [vmem:[%s1049 + $0x80] sm:$0xf]
        %v1083 = vld [vmem:[%s1049 + $0x84] sm:$0xf]
        %v1084 = vld [vmem:[%s1049 + $0x88] sm:$0xf]
        %v1085 = vld [vmem:[%s1049 + $0x8c] sm:$0xf]
        %v1086 = vld [vmem:[%s1049 + $0x90] sm:$0xf]
        %v1087 = vld [vmem:[%s1049 + $0x94] sm:$0xf]
        %v1088 = vld [vmem:[%s1049 + $0x98] sm:$0xf]
        %v1089 = vld [vmem:[%s1049 + $0x9c] sm:$0xf]
        %v1090 = vld [vmem:[%s1049 + $0xa0] sm:$0xf]
        %v1091 = vld [vmem:[%s1049 + $0xa4] sm:$0xf]
        %v1092 = vld [vmem:[%s1049 + $0xa8] sm:$0xf]
        %v1093 = vld [vmem:[%s1049 + $0xac] sm:$0xf]
        %v1094 = vld [vmem:[%s1049 + $0xb0] sm:$0xf]
        %v1095 = vld [vmem:[%s1049 + $0xb4] sm:$0xf]
        %v1096 = vld [vmem:[%s1049 + $0xb8] sm:$0xf]
        %v1097 = vld [vmem:[%s1049 + $0xbc] sm:$0xf]
        %v1146 = vunpack.c.l.b16 %v1050
        %v1147 = vunpack.c.l.b16 %v1051
        %v1148 = vunpack.c.l.b16 %v1052
        %v1149 = vunpack.c.l.b16 %v1053
        %v1150 = vunpack.c.l.b16 %v1054
        %v1151 = vunpack.c.l.b16 %v1055
        %v1152 = vunpack.c.l.b16 %v1056
        %v1153 = vunpack.c.l.b16 %v1057
        %v1154 = vunpack.c.l.b16 %v1058
        %v1155 = vunpack.c.l.b16 %v1059
        %v1156 = vunpack.c.l.b16 %v1060
        %v1157 = vunpack.c.l.b16 %v1061
        %v1158 = vunpack.c.l.b16 %v1062
        %v1159 = vunpack.c.l.b16 %v1063
        %v1160 = vunpack.c.l.b16 %v1064
        %v1161 = vunpack.c.l.b16 %v1065
        %v1162 = vunpack.c.l.b16 %v1066
        %v1163 = vunpack.c.l.b16 %v1067
        %v1164 = vunpack.c.l.b16 %v1068
        %v1165 = vunpack.c.l.b16 %v1069
        %v1166 = vunpack.c.l.b16 %v1070
        %v1167 = vunpack.c.l.b16 %v1071
        %v1168 = vunpack.c.l.b16 %v1072
        %v1169 = vunpack.c.l.b16 %v1073
        %v1170 = vunpack.c.l.b16 %v1074
        %v1171 = vunpack.c.l.b16 %v1075
        %v1172 = vunpack.c.l.b16 %v1076
        %v1173 = vunpack.c.l.b16 %v1077
        %v1174 = vunpack.c.l.b16 %v1078
        %v1175 = vunpack.c.l.b16 %v1079
        %v1176 = vunpack.c.l.b16 %v1080
        %v1177 = vunpack.c.l.b16 %v1081
        %v1178 = vunpack.c.l.b16 %v1082
        %v1179 = vunpack.c.l.b16 %v1083
        %v1180 = vunpack.c.l.b16 %v1084
        %v1181 = vunpack.c.l.b16 %v1085
        %v1182 = vunpack.c.l.b16 %v1086
        %v1183 = vunpack.c.l.b16 %v1087
        %v1184 = vunpack.c.l.b16 %v1088
        %v1185 = vunpack.c.l.b16 %v1089
        %v1186 = vunpack.c.l.b16 %v1090
        %v1187 = vunpack.c.l.b16 %v1091
        %v1188 = vunpack.c.l.b16 %v1092
        %v1189 = vunpack.c.l.b16 %v1093
        %v1190 = vunpack.c.l.b16 %v1094
        %v1191 = vunpack.c.l.b16 %v1095
        %v1192 = vunpack.c.l.b16 %v1096
        %v1193 = vunpack.c.l.b16 %v1097
        %v1194 = vpack.c.b16 %v1147, %v1146
        %v1195 = vpack.c.b16 %v1149, %v1148
        %v1196 = vpack.c.b16 %v1151, %v1150
        %v1197 = vpack.c.b16 %v1153, %v1152
        %v1198 = vpack.c.b16 %v1155, %v1154
        %v1199 = vpack.c.b16 %v1157, %v1156
        %v1200 = vpack.c.b16 %v1159, %v1158
        %v1201 = vpack.c.b16 %v1161, %v1160
        %v1202 = vpack.c.b16 %v1163, %v1162
        %v1203 = vpack.c.b16 %v1165, %v1164
        %v1204 = vpack.c.b16 %v1167, %v1166
        %v1205 = vpack.c.b16 %v1169, %v1168
        %v1206 = vpack.c.b16 %v1171, %v1170
        %v1207 = vpack.c.b16 %v1173, %v1172
        %v1208 = vpack.c.b16 %v1175, %v1174
        %v1209 = vpack.c.b16 %v1177, %v1176
        %v1210 = vpack.c.b16 %v1179, %v1178
        %v1211 = vpack.c.b16 %v1181, %v1180
        %v1212 = vpack.c.b16 %v1183, %v1182
        %v1213 = vpack.c.b16 %v1185, %v1184
        %v1214 = vpack.c.b16 %v1187, %v1186
        %v1215 = vpack.c.b16 %v1189, %v1188
        %v1216 = vpack.c.b16 %v1191, %v1190
        %v1217 = vpack.c.b16 %v1193, %v1192
        %1242 = vmatprep.subr.bf16.mxu0 0
        %1243 = vmatpush1.bf16.msra.mxu0 %v1194
        %1244 = vmatprep.subr.bf16.mxu0 0
        %1245 = vmatpush1.bf16.msra.mxu0 %v1195
        %1246 = vmatprep.subr.bf16.mxu0 0
        %1247 = vmatpush1.bf16.msra.mxu0 %v1196
        %1248 = vmatprep.subr.bf16.mxu0 0
        %1249 = vmatpush1.bf16.msra.mxu0 %v1197
        %1250 = vmatprep.subr.bf16.mxu0 0
        %1251 = vmatpush1.bf16.msra.mxu0 %v1198
        %1252 = vmatprep.subr.bf16.mxu0 0
        %1253 = vmatpush1.bf16.msra.mxu0 %v1199
        %1254 = vmatprep.subr.bf16.mxu0 0
        %1255 = vmatpush1.bf16.msra.mxu0 %v1200
        %1256 = vmatprep.subr.bf16.mxu0 0
        %1257 = vmatpush1.bf16.msra.mxu0 %v1201
        %1258 = vmatprep.subr.bf16.mxu0 0
        %1259 = vmatpush1.bf16.msra.mxu0 %v1202
        %1260 = vmatprep.subr.bf16.mxu0 0
        %1261 = vmatpush1.bf16.msra.mxu0 %v1203
        %1262 = vmatprep.subr.bf16.mxu0 0
        %1263 = vmatpush1.bf16.msra.mxu0 %v1204
        %1264 = vmatprep.subr.bf16.mxu0 0
        %1265 = vmatpush1.bf16.msra.mxu0 %v1205
        %1266 = vmatprep.subr.bf16.mxu0 0
        %1267 = vmatpush1.bf16.msra.mxu0 %v1206
        %1268 = vmatprep.subr.bf16.mxu0 0
        %1269 = vmatpush1.bf16.msra.mxu0 %v1207
        %1270 = vmatprep.subr.bf16.mxu0 0
        %1271 = vmatpush1.bf16.msra.mxu0 %v1208
        %1272 = vmatprep.subr.bf16.mxu0 0
        %1273 = vmatpush1.bf16.msra.mxu0 %v1209
        %1274 = vmatprep.mubr.bf16.mxu0 %v740
        %1275 = vmatmul.mubr.bf16.gmra.mrb[0].mxu0 %v674
        %v1276 = vpop.f32.mrb[0].mxu0
        %v1277 = vadd.f32 0.0, %v1276
        %v1278 = vpop.f32.mrb[0].mxu0
        %v1279 = vpop.f32.mrb[0].mxu0
        %v1280 = vadd.f32 0.0, %v1279
        %v1281 = vpop.f32.mrb[0].mxu0
        %1282 = vmatprep.mubr.bf16.mxu0 %v741
        %1283 = vmatmul.mubr.bf16.gmra.mrb[0].mxu0 %v542
        %v1284 = vpop.f32.mrb[0].mxu0
        %v1285 = vadd.f32 0.0, %v1284
        %v1286 = vpop.f32.mrb[0].mxu0
        %v1287 = vpop.f32.mrb[0].mxu0
        %v1288 = vadd.f32 0.0, %v1287
        %v1289 = vpop.f32.mrb[0].mxu0
        %1290 = vmatprep.mubr.bf16.mxu0 %v742
        %1291 = vmatmul.mubr.bf16.gmra.mrb[0].mxu0 %v550
        %v1292 = vpop.f32.mrb[0].mxu0
        %v1293 = vadd.f32 0.0, %v1292
        %v1294 = vpop.f32.mrb[0].mxu0
        %v1295 = vpop.f32.mrb[0].mxu0
        %v1296 = vadd.f32 0.0, %v1295
        %v1297 = vpop.f32.mrb[0].mxu0
        %1298 = vmatprep.mubr.bf16.mxu0 %v743
        %1299 = vmatmul.mubr.bf16.gmra.mrb[0].mxu0 %v558
        %v1300 = vpop.f32.mrb[0].mxu0
        %v1301 = vadd.f32 0.0, %v1300
        %v1302 = vpop.f32.mrb[0].mxu0
        %v1303 = vpop.f32.mrb[0].mxu0
        %v1304 = vadd.f32 0.0, %v1303
        %v1305 = vpop.f32.mrb[0].mxu0
        %1306 = vmatprep.mubr.bf16.mxu0 %v744
        %1307 = vmatmul.mubr.bf16.gmra.mrb[0].mxu0 %v566
        %v1308 = vpop.f32.mrb[0].mxu0
        %v1309 = vadd.f32 0.0, %v1308
        %v1310 = vpop.f32.mrb[0].mxu0
        %v1311 = vpop.f32.mrb[0].mxu0
        %v1312 = vadd.f32 0.0, %v1311
        %v1313 = vpop.f32.mrb[0].mxu0
        %1314 = vmatprep.mubr.bf16.mxu0 %v745
        %1315 = vmatmul.mubr.bf16.gmra.mrb[0].mxu0 %v574
        %v1316 = vpop.f32.mrb[0].mxu0
        %v1317 = vadd.f32 0.0, %v1316
        %v1318 = vpop.f32.mrb[0].mxu0
        %v1319 = vpop.f32.mrb[0].mxu0
        %v1320 = vadd.f32 0.0, %v1319
        %v1321 = vpop.f32.mrb[0].mxu0
        %1322 = vmatprep.mubr.bf16.mxu0 %v746
        %1323 = vmatmul.mubr.bf16.gmra.mrb[0].mxu0 %v582
        %v1324 = vpop.f32.mrb[0].mxu0
        %v1325 = vadd.f32 0.0, %v1324
        %v1326 = vpop.f32.mrb[0].mxu0
        %v1327 = vpop.f32.mrb[0].mxu0
        %v1328 = vadd.f32 0.0, %v1327
        %v1329 = vpop.f32.mrb[0].mxu0
        %1330 = vmatprep.mubr.bf16.mxu0 %v747
        %1331 = vmatmul.mubr.bf16.gmra.mrb[0].mxu0 %v590
        %v1332 = vpop.f32.mrb[0].mxu0
        %v1333 = vadd.f32 0.0, %v1332
        %v1334 = vpop.f32.mrb[0].mxu0
        %v1335 = vpop.f32.mrb[0].mxu0
        %v1336 = vadd.f32 0.0, %v1335
        %v1337 = vpop.f32.mrb[0].mxu0
        %1338 = vmatprep.mubr.bf16.mxu0 %v748
        %1339 = vmatmul.mubr.bf16.gmra.mrb[0].mxu0 %v598
        %v1340 = vpop.f32.mrb[0].mxu0
        %v1341 = vadd.f32 0.0, %v1340
        %v1342 = vpop.f32.mrb[0].mxu0
        %v1343 = vpop.f32.mrb[0].mxu0
        %v1344 = vadd.f32 0.0, %v1343
        %v1345 = vpop.f32.mrb[0].mxu0
        %1346 = vmatprep.mubr.bf16.mxu0 %v749
        %1347 = vmatmul.mubr.bf16.gmra.mrb[0].mxu0 %v606
        %v1348 = vpop.f32.mrb[0].mxu0
        %v1349 = vadd.f32 0.0, %v1348
        %v1350 = vpop.f32.mrb[0].mxu0
        %v1351 = vpop.f32.mrb[0].mxu0
        %v1352 = vadd.f32 0.0, %v1351
        %v1353 = vpop.f32.mrb[0].mxu0
        %1354 = vmatprep.mubr.bf16.mxu0 %v750
        %1355 = vmatmul.mubr.bf16.gmra.mrb[0].mxu0 %v614
        %v1356 = vpop.f32.mrb[0].mxu0
        %v1357 = vadd.f32 0.0, %v1356
        %v1358 = vpop.f32.mrb[0].mxu0
        %v1359 = vpop.f32.mrb[0].mxu0
        %v1360 = vadd.f32 0.0, %v1359
        %v1361 = vpop.f32.mrb[0].mxu0
        %1362 = vmatprep.mubr.bf16.mxu0 %v751
        %1363 = vmatmul.mubr.bf16.gmra.mrb[0].mxu0 %v622
        %v1364 = vpop.f32.mrb[0].mxu0
        %v1365 = vadd.f32 0.0, %v1364
        %v1366 = vpop.f32.mrb[0].mxu0
        %v1367 = vpop.f32.mrb[0].mxu0
        %v1368 = vadd.f32 0.0, %v1367
        %v1369 = vpop.f32.mrb[0].mxu0
        %1370 = vmatprep.mubr.bf16.mxu0 %v752
        %1371 = vmatmul.mubr.bf16.gmra.mrb[0].mxu0 %v630
        %v1372 = vpop.f32.mrb[0].mxu0
        %v1373 = vadd.f32 0.0, %v1372
        %v1374 = vpop.f32.mrb[0].mxu0
        %v1375 = vpop.f32.mrb[0].mxu0
        %v1376 = vadd.f32 0.0, %v1375
        %v1377 = vpop.f32.mrb[0].mxu0
        %1378 = vmatprep.mubr.bf16.mxu0 %v753
        %1379 = vmatmul.mubr.bf16.gmra.mrb[0].mxu0 %v638
        %v1380 = vpop.f32.mrb[0].mxu0
        %v1381 = vadd.f32 0.0, %v1380
        %v1382 = vpop.f32.mrb[0].mxu0
        %v1383 = vpop.f32.mrb[0].mxu0
        %v1384 = vadd.f32 0.0, %v1383
        %v1385 = vpop.f32.mrb[0].mxu0
        %1386 = vmatprep.mubr.bf16.mxu0 %v754
        %1387 = vmatmul.mubr.bf16.gmra.mrb[0].mxu0 %v646
        %v1388 = vpop.f32.mrb[0].mxu0
        %v1389 = vadd.f32 0.0, %v1388
        %v1390 = vpop.f32.mrb[0].mxu0
        %v1391 = vpop.f32.mrb[0].mxu0
        %v1392 = vadd.f32 0.0, %v1391
        %v1393 = vpop.f32.mrb[0].mxu0
        %1394 = vmatprep.mubr.bf16.mxu0 %v755
        %1395 = vmatmul.mubr.bf16.gmra.mrb[0].mxu0 %v654
        %v1396 = vpop.f32.mrb[0].mxu0
        %v1397 = vadd.f32 0.0, %v1396
        %v1398 = vpop.f32.mrb[0].mxu0
        %v1399 = vpop.f32.mrb[0].mxu0
        %v1400 = vadd.f32 0.0, %v1399
        %v1401 = vpop.f32.mrb[0].mxu0
        %1402 = vdwg.mxu0
        %1403 = vmatprep.subr.bf16.mxu0 0
        %1404 = vmatpush1.bf16.msra.mxu0 %v1210
        %1405 = vmatprep.subr.bf16.mxu0 0
        %1406 = vmatpush1.bf16.msra.mxu0 %v1211
        %1407 = vmatprep.subr.bf16.mxu0 0
        %1408 = vmatpush1.bf16.msra.mxu0 %v1212
        %1409 = vmatprep.subr.bf16.mxu0 0
        %1410 = vmatpush1.bf16.msra.mxu0 %v1213
        %1411 = vmatprep.subr.bf16.mxu0 0
        %1412 = vmatpush1.bf16.msra.mxu0 %v1214
        %1413 = vmatprep.subr.bf16.mxu0 0
        %1414 = vmatpush1.bf16.msra.mxu0 %v1215
        %1415 = vmatprep.subr.bf16.mxu0 0
        %1416 = vmatpush1.bf16.msra.mxu0 %v1216
        %1417 = vmatprep.subr.bf16.mxu0 0
        %1418 = vmatpush1.bf16.msra.mxu0 %v1217
        %1419 = vmatprep.subr.bf16.mxu0 0
        %1420 = vmatpush1.bf16.msra.mxu0 0
        %1421 = vmatprep.subr.bf16.mxu0 0
        %1422 = vmatpush1.bf16.msra.mxu0 0
        %1423 = vmatprep.subr.bf16.mxu0 0
        %1424 = vmatpush1.bf16.msra.mxu0 0
        %1425 = vmatprep.subr.bf16.mxu0 0
        %1426 = vmatpush1.bf16.msra.mxu0 0
        %1427 = vmatprep.subr.bf16.mxu0 0
        %1428 = vmatpush1.bf16.msra.mxu0 0
        %1429 = vmatprep.subr.bf16.mxu0 0
        %1430 = vmatpush1.bf16.msra.mxu0 0
        %1431 = vmatprep.subr.bf16.mxu0 0
        %1432 = vmatpush1.bf16.msra.mxu0 0
        %1433 = vmatprep.subr.bf16.mxu0 0
        %1434 = vmatpush1.bf16.msra.mxu0 0
        %1435 = vmatprep.mubr.bf16.mxu0 0
        %1436 = vmatmul.mubr.bf16.gmra.mrb[0].mxu0 %v864
        %v1437 = vpop.f32.mrb[0].mxu0
        %v1438 = vadd.f32 %v1277, %v1437
        %v1439 = vpop.f32.mrb[0].mxu0
        %v1440 = vpop.f32.mrb[0].mxu0
        %v1441 = vadd.f32 %v1280, %v1440
        %v1442 = vpop.f32.mrb[0].mxu0
        %1443 = vmatprep.mubr.bf16.mxu0 0
        %1444 = vmatmul.mubr.bf16.gmra.mrb[0].mxu0 %v872
        %v1445 = vpop.f32.mrb[0].mxu0
        %v1446 = vadd.f32 %v1285, %v1445
        %v1447 = vpop.f32.mrb[0].mxu0
        %v1448 = vpop.f32.mrb[0].mxu0
        %v1449 = vadd.f32 %v1288, %v1448
        %v1450 = vpop.f32.mrb[0].mxu0
        %1451 = vmatprep.mubr.bf16.mxu0 0
        %1452 = vmatmul.mubr.bf16.gmra.mrb[0].mxu0 %v880
        %v1453 = vpop.f32.mrb[0].mxu0
        %v1454 = vadd.f32 %v1293, %v1453
        %v1455 = vpop.f32.mrb[0].mxu0
        %v1456 = vpop.f32.mrb[0].mxu0
        %v1457 = vadd.f32 %v1296, %v1456
        %v1458 = vpop.f32.mrb[0].mxu0
        %1459 = vmatprep.mubr.bf16.mxu0 0
        %1460 = vmatmul.mubr.bf16.gmra.mrb[0].mxu0 %v888
        %v1461 = vpop.f32.mrb[0].mxu0
        %v1462 = vadd.f32 %v1301, %v1461
        %v1463 = vpop.f32.mrb[0].mxu0
        %v1464 = vpop.f32.mrb[0].mxu0
        %v1465 = vadd.f32 %v1304, %v1464
        %v1466 = vpop.f32.mrb[0].mxu0
        %1467 = vmatprep.mubr.bf16.mxu0 0
        %1468 = vmatmul.mubr.bf16.gmra.mrb[0].mxu0 %v896
        %v1469 = vpop.f32.mrb[0].mxu0
        %v1470 = vadd.f32 %v1309, %v1469
        %v1471 = vpop.f32.mrb[0].mxu0
        %v1472 = vpop.f32.mrb[0].mxu0
        %v1473 = vadd.f32 %v1312, %v1472
        %v1474 = vpop.f32.mrb[0].mxu0
        %1475 = vmatprep.mubr.bf16.mxu0 0
        %1476 = vmatmul.mubr.bf16.gmra.mrb[0].mxu0 %v904
        %v1477 = vpop.f32.mrb[0].mxu0
        %v1478 = vadd.f32 %v1317, %v1477
        %v1479 = vpop.f32.mrb[0].mxu0
        %v1480 = vpop.f32.mrb[0].mxu0
        %v1481 = vadd.f32 %v1320, %v1480
        %v1482 = vpop.f32.mrb[0].mxu0
        %1483 = vmatprep.mubr.bf16.mxu0 0
        %1484 = vmatmul.mubr.bf16.gmra.mrb[0].mxu0 %v912
        %v1485 = vpop.f32.mrb[0].mxu0
        %v1486 = vadd.f32 %v1325, %v1485
        %v1487 = vpop.f32.mrb[0].mxu0
        %v1488 = vpop.f32.mrb[0].mxu0
        %v1489 = vadd.f32 %v1328, %v1488
        %v1490 = vpop.f32.mrb[0].mxu0
        %1491 = vmatprep.mubr.bf16.mxu0 0
        %1492 = vmatmul.mubr.bf16.gmra.mrb[0].mxu0 %v920
        %v1493 = vpop.f32.mrb[0].mxu0
        %v1494 = vadd.f32 %v1333, %v1493
        %v1495 = vpop.f32.mrb[0].mxu0
        %v1496 = vpop.f32.mrb[0].mxu0
        %v1497 = vadd.f32 %v1336, %v1496
        %v1498 = vpop.f32.mrb[0].mxu0
        %1499 = vmatprep.mubr.bf16.mxu0 0
        %1500 = vmatmul.mubr.bf16.gmra.mrb[0].mxu0 %v928
        %v1501 = vpop.f32.mrb[0].mxu0
        %v1502 = vadd.f32 %v1341, %v1501
        %v1503 = vpop.f32.mrb[0].mxu0
        %v1504 = vpop.f32.mrb[0].mxu0
        %v1505 = vadd.f32 %v1344, %v1504
        %v1506 = vpop.f32.mrb[0].mxu0
        %1507 = vmatprep.mubr.bf16.mxu0 0
        %1508 = vmatmul.mubr.bf16.gmra.mrb[0].mxu0 %v936
        %v1509 = vpop.f32.mrb[0].mxu0
        %v1510 = vadd.f32 %v1349, %v1509
        %v1511 = vpop.f32.mrb[0].mxu0
        %v1512 = vpop.f32.mrb[0].mxu0
        %v1513 = vadd.f32 %v1352, %v1512
        %v1514 = vpop.f32.mrb[0].mxu0
        %1515 = vmatprep.mubr.bf16.mxu0 0
        %1516 = vmatmul.mubr.bf16.gmra.mrb[0].mxu0 %v944
        %v1517 = vpop.f32.mrb[0].mxu0
        %v1518 = vadd.f32 %v1357, %v1517
        %v1519 = vpop.f32.mrb[0].mxu0
        %v1520 = vpop.f32.mrb[0].mxu0
        %v1521 = vadd.f32 %v1360, %v1520
        %v1522 = vpop.f32.mrb[0].mxu0
        %1523 = vmatprep.mubr.bf16.mxu0 0
        %1524 = vmatmul.mubr.bf16.gmra.mrb[0].mxu0 %v952
        %v1525 = vpop.f32.mrb[0].mxu0
        %v1526 = vadd.f32 %v1365, %v1525
        %v1527 = vpop.f32.mrb[0].mxu0
        %v1528 = vpop.f32.mrb[0].mxu0
        %v1529 = vadd.f32 %v1368, %v1528
        %v1530 = vpop.f32.mrb[0].mxu0
        %1531 = vmatprep.mubr.bf16.mxu0 0
        %1532 = vmatmul.mubr.bf16.gmra.mrb[0].mxu0 %v960
        %v1533 = vpop.f32.mrb[0].mxu0
        %v1534 = vadd.f32 %v1373, %v1533
        %v1535 = vpop.f32.mrb[0].mxu0
        %v1536 = vpop.f32.mrb[0].mxu0
        %v1537 = vadd.f32 %v1376, %v1536
        %v1538 = vpop.f32.mrb[0].mxu0
        %1539 = vmatprep.mubr.bf16.mxu0 0
        %1540 = vmatmul.mubr.bf16.gmra.mrb[0].mxu0 %v968
        %v1541 = vpop.f32.mrb[0].mxu0
        %v1542 = vadd.f32 %v1381, %v1541
        %v1543 = vpop.f32.mrb[0].mxu0
        %v1544 = vpop.f32.mrb[0].mxu0
        %v1545 = vadd.f32 %v1384, %v1544
        %v1546 = vpop.f32.mrb[0].mxu0
        %1547 = vmatprep.mubr.bf16.mxu0 0
        %1548 = vmatmul.mubr.bf16.gmra.mrb[0].mxu0 %v976
        %v1549 = vpop.f32.mrb[0].mxu0
        %v1550 = vadd.f32 %v1389, %v1549
        %v1551 = vpop.f32.mrb[0].mxu0
        %v1552 = vpop.f32.mrb[0].mxu0
        %v1553 = vadd.f32 %v1392, %v1552
        %v1554 = vpop.f32.mrb[0].mxu0
        %1555 = vmatprep.mubr.bf16.mxu0 0
        %1556 = vmatmul.mubr.bf16.gmra.mrb[0].mxu0 %v1000
        %v1557 = vpop.f32.mrb[0].mxu0
        %v1558 = vadd.f32 %v1397, %v1557
        %v1559 = vpop.f32.mrb[0].mxu0
        %v1560 = vpop.f32.mrb[0].mxu0
        %v1561 = vadd.f32 %v1400, %v1560
        %v1562 = vpop.f32.mrb[0].mxu0
        %1563 = vdwg.mxu0
        %v1612 = vunpack.c.l.b16 %v1001
        %v1613 = vunpack.c.l.b16 %v1002
        %v1614 = vunpack.c.l.b16 %v1003
        %v1615 = vunpack.c.l.b16 %v1004
        %v1616 = vunpack.c.l.b16 %v1005
        %v1617 = vunpack.c.l.b16 %v1006
        %v1618 = vunpack.c.l.b16 %v1007
        %v1619 = vunpack.c.l.b16 %v1008
        %v1620 = vunpack.c.l.b16 %v1009
        %v1621 = vunpack.c.l.b16 %v1010
        %v1622 = vunpack.c.l.b16 %v1011
        %v1623 = vunpack.c.l.b16 %v1012
        %v1624 = vunpack.c.l.b16 %v1013
        %v1625 = vunpack.c.l.b16 %v1014
        %v1626 = vunpack.c.l.b16 %v1015
        %v1627 = vunpack.c.l.b16 %v1016
        %v1628 = vunpack.c.l.b16 %v1017
        %v1629 = vunpack.c.l.b16 %v1018
        %v1630 = vunpack.c.l.b16 %v1019
        %v1631 = vunpack.c.l.b16 %v1020
        %v1632 = vunpack.c.l.b16 %v1021
        %v1633 = vunpack.c.l.b16 %v1022
        %v1634 = vunpack.c.l.b16 %v1023
        %v1635 = vunpack.c.l.b16 %v1024
        %v1636 = vunpack.c.l.b16 %v1025
        %v1637 = vunpack.c.l.b16 %v1026
        %v1638 = vunpack.c.l.b16 %v1027
        %v1639 = vunpack.c.l.b16 %v1028
        %v1640 = vunpack.c.l.b16 %v1029
        %v1641 = vunpack.c.l.b16 %v1030
        %v1642 = vunpack.c.l.b16 %v1031
        %v1643 = vunpack.c.l.b16 %v1032
        %v1644 = vunpack.c.l.b16 %v1033
        %v1645 = vunpack.c.l.b16 %v1034
        %v1646 = vunpack.c.l.b16 %v1035
        %v1647 = vunpack.c.l.b16 %v1036
        %v1648 = vunpack.c.l.b16 %v1037
        %v1649 = vunpack.c.l.b16 %v1038
        %v1650 = vunpack.c.l.b16 %v1039
        %v1651 = vunpack.c.l.b16 %v1040
        %v1652 = vunpack.c.l.b16 %v1041
        %v1653 = vunpack.c.l.b16 %v1042
        %v1654 = vunpack.c.l.b16 %v1043
        %v1655 = vunpack.c.l.b16 %v1044
        %v1656 = vunpack.c.l.b16 %v1045
        %v1657 = vunpack.c.l.b16 %v1046
        %v1658 = vunpack.c.l.b16 %v1047
        %v1659 = vunpack.c.l.b16 %v1048
        %v1660 = vpack.c.b16 %v1613, %v1612
        %v1661 = vpack.c.b16 %v1615, %v1614
        %v1662 = vpack.c.b16 %v1617, %v1616
        %v1663 = vpack.c.b16 %v1619, %v1618
        %v1664 = vpack.c.b16 %v1621, %v1620
        %v1665 = vpack.c.b16 %v1623, %v1622
        %v1666 = vpack.c.b16 %v1625, %v1624
        %v1667 = vpack.c.b16 %v1627, %v1626
        %v1668 = vpack.c.b16 %v1629, %v1628
        %v1669 = vpack.c.b16 %v1631, %v1630
        %v1670 = vpack.c.b16 %v1633, %v1632
        %v1671 = vpack.c.b16 %v1635, %v1634
        %v1672 = vpack.c.b16 %v1637, %v1636
        %v1673 = vpack.c.b16 %v1639, %v1638
        %v1674 = vpack.c.b16 %v1641, %v1640
        %v1675 = vpack.c.b16 %v1643, %v1642
        %v1676 = vpack.c.b16 %v1645, %v1644
        %v1677 = vpack.c.b16 %v1647, %v1646
        %v1678 = vpack.c.b16 %v1649, %v1648
        %v1679 = vpack.c.b16 %v1651, %v1650
        %v1680 = vpack.c.b16 %v1653, %v1652
        %v1681 = vpack.c.b16 %v1655, %v1654
        %v1682 = vpack.c.b16 %v1657, %v1656
        %v1683 = vpack.c.b16 %v1659, %v1658
        %1708 = vmatprep.subr.bf16.mxu0 0
        %1709 = vmatpush1.bf16.msra.mxu0 %v1660
        %1710 = vmatprep.subr.bf16.mxu0 0
        %1711 = vmatpush1.bf16.msra.mxu0 %v1661
        %1712 = vmatprep.subr.bf16.mxu0 0
        %1713 = vmatpush1.bf16.msra.mxu0 %v1662
        %1714 = vmatprep.subr.bf16.mxu0 0
        %1715 = vmatpush1.bf16.msra.mxu0 %v1663
        %1716 = vmatprep.subr.bf16.mxu0 0
        %1717 = vmatpush1.bf16.msra.mxu0 %v1664
        %1718 = vmatprep.subr.bf16.mxu0 0
        %1719 = vmatpush1.bf16.msra.mxu0 %v1665
        %1720 = vmatprep.subr.bf16.mxu0 0
        %1721 = vmatpush1.bf16.msra.mxu0 %v1666
        %1722 = vmatprep.subr.bf16.mxu0 0
        %1723 = vmatpush1.bf16.msra.mxu0 %v1667
        %1724 = vmatprep.subr.bf16.mxu0 0
        %1725 = vmatpush1.bf16.msra.mxu0 %v1668
        %1726 = vmatprep.subr.bf16.mxu0 0
        %1727 = vmatpush1.bf16.msra.mxu0 %v1669
        %1728 = vmatprep.subr.bf16.mxu0 0
        %1729 = vmatpush1.bf16.msra.mxu0 %v1670
        %1730 = vmatprep.subr.bf16.mxu0 0
        %1731 = vmatpush1.bf16.msra.mxu0 %v1671
        %1732 = vmatprep.subr.bf16.mxu0 0
        %1733 = vmatpush1.bf16.msra.mxu0 %v1672
        %1734 = vmatprep.subr.bf16.mxu0 0
        %1735 = vmatpush1.bf16.msra.mxu0 %v1673
        %1736 = vmatprep.subr.bf16.mxu0 0
        %1737 = vmatpush1.bf16.msra.mxu0 %v1674
        %1738 = vmatprep.subr.bf16.mxu0 0
        %1739 = vmatpush1.bf16.msra.mxu0 %v1675
        %1740 = vmatprep.mubr.bf16.mxu0 0
        %1741 = vmatmul.mubr.bf16.gmra.mrb[0].mxu0 0
        %v1742 = vpop.f32.mrb[0].mxu0
        %v1743 = vadd.f32 %v1438, %v1742
        %v1744 = vpop.f32.mrb[0].mxu0
        %v1745 = vpop.f32.mrb[0].mxu0
        %v1746 = vadd.f32 %v1441, %v1745
        %v1747 = vpop.f32.mrb[0].mxu0
        %1748 = vmatprep.mubr.bf16.mxu0 %v740
        %1749 = vmatmul.mubr.bf16.gmra.mrb[0].mxu0 %v674
        %v1750 = vpop.f32.mrb[0].mxu0
        %v1751 = vadd.f32 %v1446, %v1750
        %v1752 = vpop.f32.mrb[0].mxu0
        %v1753 = vpop.f32.mrb[0].mxu0
        %v1754 = vadd.f32 %v1449, %v1753
        %v1755 = vpop.f32.mrb[0].mxu0
        %1756 = vmatprep.mubr.bf16.mxu0 %v741
        %1757 = vmatmul.mubr.bf16.gmra.mrb[0].mxu0 %v542
        %v1758 = vpop.f32.mrb[0].mxu0
        %v1759 = vadd.f32 %v1454, %v1758
        %v1760 = vpop.f32.mrb[0].mxu0
        %v1761 = vpop.f32.mrb[0].mxu0
        %v1762 = vadd.f32 %v1457, %v1761
        %v1763 = vpop.f32.mrb[0].mxu0
        %1764 = vmatprep.mubr.bf16.mxu0 %v742
        %1765 = vmatmul.mubr.bf16.gmra.mrb[0].mxu0 %v550
        %v1766 = vpop.f32.mrb[0].mxu0
        %v1767 = vadd.f32 %v1462, %v1766
        %v1768 = vpop.f32.mrb[0].mxu0
        %v1769 = vpop.f32.mrb[0].mxu0
        %v1770 = vadd.f32 %v1465, %v1769
        %v1771 = vpop.f32.mrb[0].mxu0
        %1772 = vmatprep.mubr.bf16.mxu0 %v743
        %1773 = vmatmul.mubr.bf16.gmra.mrb[0].mxu0 %v558
        %v1774 = vpop.f32.mrb[0].mxu0
        %v1775 = vadd.f32 %v1470, %v1774
        %v1776 = vpop.f32.mrb[0].mxu0
        %v1777 = vpop.f32.mrb[0].mxu0
        %v1778 = vadd.f32 %v1473, %v1777
        %v1779 = vpop.f32.mrb[0].mxu0
        %1780 = vmatprep.mubr.bf16.mxu0 %v744
        %1781 = vmatmul.mubr.bf16.gmra.mrb[0].mxu0 %v566
        %v1782 = vpop.f32.mrb[0].mxu0
        %v1783 = vadd.f32 %v1478, %v1782
        %v1784 = vpop.f32.mrb[0].mxu0
        %v1785 = vpop.f32.mrb[0].mxu0
        %v1786 = vadd.f32 %v1481, %v1785
        %v1787 = vpop.f32.mrb[0].mxu0
        %1788 = vmatprep.mubr.bf16.mxu0 %v745
        %1789 = vmatmul.mubr.bf16.gmra.mrb[0].mxu0 %v574
        %v1790 = vpop.f32.mrb[0].mxu0
        %v1791 = vadd.f32 %v1486, %v1790
        %v1792 = vpop.f32.mrb[0].mxu0
        %v1793 = vpop.f32.mrb[0].mxu0
        %v1794 = vadd.f32 %v1489, %v1793
        %v1795 = vpop.f32.mrb[0].mxu0
        %1796 = vmatprep.mubr.bf16.mxu0 %v746
        %1797 = vmatmul.mubr.bf16.gmra.mrb[0].mxu0 %v582
        %v1798 = vpop.f32.mrb[0].mxu0
        %v1799 = vadd.f32 %v1494, %v1798
        %v1800 = vpop.f32.mrb[0].mxu0
        %v1801 = vpop.f32.mrb[0].mxu0
        %v1802 = vadd.f32 %v1497, %v1801
        %v1803 = vpop.f32.mrb[0].mxu0
        %1804 = vmatprep.mubr.bf16.mxu0 %v747
        %1805 = vmatmul.mubr.bf16.gmra.mrb[0].mxu0 %v590
        %v1806 = vpop.f32.mrb[0].mxu0
        %v1807 = vadd.f32 %v1502, %v1806
        %v1808 = vpop.f32.mrb[0].mxu0
        %v1809 = vpop.f32.mrb[0].mxu0
        %v1810 = vadd.f32 %v1505, %v1809
        %v1811 = vpop.f32.mrb[0].mxu0
        %1812 = vmatprep.mubr.bf16.mxu0 %v748
        %1813 = vmatmul.mubr.bf16.gmra.mrb[0].mxu0 %v598
        %v1814 = vpop.f32.mrb[0].mxu0
        %v1815 = vadd.f32 %v1510, %v1814
        %v1816 = vpop.f32.mrb[0].mxu0
        %v1817 = vpop.f32.mrb[0].mxu0
        %v1818 = vadd.f32 %v1513, %v1817
        %v1819 = vpop.f32.mrb[0].mxu0
        %1820 = vmatprep.mubr.bf16.mxu0 %v749
        %1821 = vmatmul.mubr.bf16.gmra.mrb[0].mxu0 %v606
        %v1822 = vpop.f32.mrb[0].mxu0
        %v1823 = vadd.f32 %v1518, %v1822
        %v1824 = vpop.f32.mrb[0].mxu0
        %v1825 = vpop.f32.mrb[0].mxu0
        %v1826 = vadd.f32 %v1521, %v1825
        %v1827 = vpop.f32.mrb[0].mxu0
        %1828 = vmatprep.mubr.bf16.mxu0 %v750
        %1829 = vmatmul.mubr.bf16.gmra.mrb[0].mxu0 %v614
        %v1830 = vpop.f32.mrb[0].mxu0
        %v1831 = vadd.f32 %v1526, %v1830
        %v1832 = vpop.f32.mrb[0].mxu0
        %v1833 = vpop.f32.mrb[0].mxu0
        %v1834 = vadd.f32 %v1529, %v1833
        %v1835 = vpop.f32.mrb[0].mxu0
        %1836 = vmatprep.mubr.bf16.mxu0 %v751
        %1837 = vmatmul.mubr.bf16.gmra.mrb[0].mxu0 %v622
        %v1838 = vpop.f32.mrb[0].mxu0
        %v1839 = vadd.f32 %v1534, %v1838
        %v1840 = vpop.f32.mrb[0].mxu0
        %v1841 = vpop.f32.mrb[0].mxu0
        %v1842 = vadd.f32 %v1537, %v1841
        %v1843 = vpop.f32.mrb[0].mxu0
        %1844 = vmatprep.mubr.bf16.mxu0 %v752
        %1845 = vmatmul.mubr.bf16.gmra.mrb[0].mxu0 %v630
        %v1846 = vpop.f32.mrb[0].mxu0
        %v1847 = vadd.f32 %v1542, %v1846
        %v1848 = vpop.f32.mrb[0].mxu0
        %v1849 = vpop.f32.mrb[0].mxu0
        %v1850 = vadd.f32 %v1545, %v1849
        %v1851 = vpop.f32.mrb[0].mxu0
        %1852 = vmatprep.mubr.bf16.mxu0 %v753
        %1853 = vmatmul.mubr.bf16.gmra.mrb[0].mxu0 %v638
        %v1854 = vpop.f32.mrb[0].mxu0
        %v1855 = vadd.f32 %v1550, %v1854
        %v1856 = vpop.f32.mrb[0].mxu0
        %v1857 = vpop.f32.mrb[0].mxu0
        %v1858 = vadd.f32 %v1553, %v1857
        %v1859 = vpop.f32.mrb[0].mxu0
        %1860 = vmatprep.mubr.bf16.mxu0 %v754
        %1861 = vmatmul.mubr.bf16.gmra.mrb[0].mxu0 %v646
        %v1862 = vpop.f32.mrb[0].mxu0
        %v1863 = vadd.f32 %v1558, %v1862
        %v1864 = vpop.f32.mrb[0].mxu0
        %v1865 = vpop.f32.mrb[0].mxu0
        %v1866 = vadd.f32 %v1561, %v1865
        %v1867 = vpop.f32.mrb[0].mxu0
        %1868 = vdwg.mxu0
        %1869 = vmatprep.subr.bf16.mxu0 0
        %1870 = vmatpush1.bf16.msra.mxu0 %v1676
        %1871 = vmatprep.subr.bf16.mxu0 0
        %1872 = vmatpush1.bf16.msra.mxu0 %v1677
        %1873 = vmatprep.subr.bf16.mxu0 0
        %1874 = vmatpush1.bf16.msra.mxu0 %v1678
        %1875 = vmatprep.subr.bf16.mxu0 0
        %1876 = vmatpush1.bf16.msra.mxu0 %v1679
        %1877 = vmatprep.subr.bf16.mxu0 0
        %1878 = vmatpush1.bf16.msra.mxu0 %v1680
        %1879 = vmatprep.subr.bf16.mxu0 0
        %1880 = vmatpush1.bf16.msra.mxu0 %v1681
        %1881 = vmatprep.subr.bf16.mxu0 0
        %1882 = vmatpush1.bf16.msra.mxu0 %v1682
        %1883 = vmatprep.subr.bf16.mxu0 0
        %1884 = vmatpush1.bf16.msra.mxu0 %v1683
        %1885 = vmatprep.subr.bf16.mxu0 0
        %1886 = vmatpush1.bf16.msra.mxu0 0
        %1887 = vmatprep.subr.bf16.mxu0 0
        %1888 = vmatpush1.bf16.msra.mxu0 0
        %1889 = vmatprep.subr.bf16.mxu0 0
        %1890 = vmatpush1.bf16.msra.mxu0 0
        %1891 = vmatprep.subr.bf16.mxu0 0
        %1892 = vmatpush1.bf16.msra.mxu0 0
        %1893 = vmatprep.subr.bf16.mxu0 0
        %1894 = vmatpush1.bf16.msra.mxu0 0
        %1895 = vmatprep.subr.bf16.mxu0 0
        %1896 = vmatpush1.bf16.msra.mxu0 0
        %1897 = vmatprep.subr.bf16.mxu0 0
        %1898 = vmatpush1.bf16.msra.mxu0 0
        %1899 = vmatprep.subr.bf16.mxu0 0
        %1900 = vmatpush1.bf16.msra.mxu0 0
        %1901 = vmatprep.mubr.bf16.mxu0 0
        %1902 = vmatmul.mubr.bf16.gmra.mrb[0].mxu0 %v999
        %v1903 = vpop.f32.mrb[0].mxu0
        %v1904 = vadd.f32 %v1743, %v1903
        %v1905 = vpop.f32.mrb[0].mxu0
        %v1906 = vpop.f32.mrb[0].mxu0
        %v1907 = vadd.f32 %v1746, %v1906
        %v1908 = vpop.f32.mrb[0].mxu0
        %1909 = vmatprep.mubr.bf16.mxu0 0
        %1910 = vmatmul.mubr.bf16.gmra.mrb[0].mxu0 %v864
        %v1911 = vpop.f32.mrb[0].mxu0
        %v1912 = vadd.f32 %v1751, %v1911
        %v1913 = vpop.f32.mrb[0].mxu0
        %v1914 = vpop.f32.mrb[0].mxu0
        %v1915 = vadd.f32 %v1754, %v1914
        %v1916 = vpop.f32.mrb[0].mxu0
        %1917 = vmatprep.mubr.bf16.mxu0 0
        %1918 = vmatmul.mubr.bf16.gmra.mrb[0].mxu0 %v872
        %v1919 = vpop.f32.mrb[0].mxu0
        %v1920 = vadd.f32 %v1759, %v1919
        %v1921 = vpop.f32.mrb[0].mxu0
        %v1922 = vpop.f32.mrb[0].mxu0
        %v1923 = vadd.f32 %v1762, %v1922
        %v1924 = vpop.f32.mrb[0].mxu0
        %1925 = vmatprep.mubr.bf16.mxu0 0
        %1926 = vmatmul.mubr.bf16.gmra.mrb[0].mxu0 %v880
        %v1927 = vpop.f32.mrb[0].mxu0
        %v1928 = vadd.f32 %v1767, %v1927
        %v1929 = vpop.f32.mrb[0].mxu0
        %v1930 = vpop.f32.mrb[0].mxu0
        %v1931 = vadd.f32 %v1770, %v1930
        %v1932 = vpop.f32.mrb[0].mxu0
        %1933 = vmatprep.mubr.bf16.mxu0 0
        %1934 = vmatmul.mubr.bf16.gmra.mrb[0].mxu0 %v888
        %v1935 = vpop.f32.mrb[0].mxu0
        %v1936 = vadd.f32 %v1775, %v1935
        %v1937 = vpop.f32.mrb[0].mxu0
        %v1938 = vpop.f32.mrb[0].mxu0
        %v1939 = vadd.f32 %v1778, %v1938
        %v1940 = vpop.f32.mrb[0].mxu0
        %1941 = vmatprep.mubr.bf16.mxu0 0
        %1942 = vmatmul.mubr.bf16.gmra.mrb[0].mxu0 %v896
        %v1943 = vpop.f32.mrb[0].mxu0
        %v1944 = vadd.f32 %v1783, %v1943
        %v1945 = vpop.f32.mrb[0].mxu0
        %v1946 = vpop.f32.mrb[0].mxu0
        %v1947 = vadd.f32 %v1786, %v1946
        %v1948 = vpop.f32.mrb[0].mxu0
        %1949 = vmatprep.mubr.bf16.mxu0 0
        %1950 = vmatmul.mubr.bf16.gmra.mrb[0].mxu0 %v904
        %v1951 = vpop.f32.mrb[0].mxu0
        %v1952 = vadd.f32 %v1791, %v1951
        %v1953 = vpop.f32.mrb[0].mxu0
        %v1954 = vpop.f32.mrb[0].mxu0
        %v1955 = vadd.f32 %v1794, %v1954
        %v1956 = vpop.f32.mrb[0].mxu0
        %1957 = vmatprep.mubr.bf16.mxu0 0
        %1958 = vmatmul.mubr.bf16.gmra.mrb[0].mxu0 %v912
        %v1959 = vpop.f32.mrb[0].mxu0
        %v1960 = vadd.f32 %v1799, %v1959
        %v1961 = vpop.f32.mrb[0].mxu0
        %v1962 = vpop.f32.mrb[0].mxu0
        %v1963 = vadd.f32 %v1802, %v1962
        %v1964 = vpop.f32.mrb[0].mxu0
        %1965 = vmatprep.mubr.bf16.mxu0 0
        %1966 = vmatmul.mubr.bf16.gmra.mrb[0].mxu0 %v920
        %v1967 = vpop.f32.mrb[0].mxu0
        %v1968 = vadd.f32 %v1807, %v1967
        %v1969 = vpop.f32.mrb[0].mxu0
        %v1970 = vpop.f32.mrb[0].mxu0
        %v1971 = vadd.f32 %v1810, %v1970
        %v1972 = vpop.f32.mrb[0].mxu0
        %1973 = vmatprep.mubr.bf16.mxu0 0
        %1974 = vmatmul.mubr.bf16.gmra.mrb[0].mxu0 %v928
        %v1975 = vpop.f32.mrb[0].mxu0
        %v1976 = vadd.f32 %v1815, %v1975
        %v1977 = vpop.f32.mrb[0].mxu0
        %v1978 = vpop.f32.mrb[0].mxu0
        %v1979 = vadd.f32 %v1818, %v1978
        %v1980 = vpop.f32.mrb[0].mxu0
        %1981 = vmatprep.mubr.bf16.mxu0 0
        %1982 = vmatmul.mubr.bf16.gmra.mrb[0].mxu0 %v936
        %v1983 = vpop.f32.mrb[0].mxu0
        %v1984 = vadd.f32 %v1823, %v1983
        %v1985 = vpop.f32.mrb[0].mxu0
        %v1986 = vpop.f32.mrb[0].mxu0
        %v1987 = vadd.f32 %v1826, %v1986
        %v1988 = vpop.f32.mrb[0].mxu0
        %1989 = vmatprep.mubr.bf16.mxu0 0
        %1990 = vmatmul.mubr.bf16.gmra.mrb[0].mxu0 %v944
        %v1991 = vpop.f32.mrb[0].mxu0
        %v1992 = vadd.f32 %v1831, %v1991
        %v1993 = vpop.f32.mrb[0].mxu0
        %v1994 = vpop.f32.mrb[0].mxu0
        %v1995 = vadd.f32 %v1834, %v1994
        %v1996 = vpop.f32.mrb[0].mxu0
        %1997 = vmatprep.mubr.bf16.mxu0 0
        %1998 = vmatmul.mubr.bf16.gmra.mrb[0].mxu0 %v952
        %v1999 = vpop.f32.mrb[0].mxu0
        %v2000 = vadd.f32 %v1839, %v1999
        %v2001 = vpop.f32.mrb[0].mxu0
        %v2002 = vpop.f32.mrb[0].mxu0
        %v2003 = vadd.f32 %v1842, %v2002
        %v2004 = vpop.f32.mrb[0].mxu0
        %2005 = vmatprep.mubr.bf16.mxu0 0
        %2006 = vmatmul.mubr.bf16.gmra.mrb[0].mxu0 %v960
        %v2007 = vpop.f32.mrb[0].mxu0
        %v2008 = vadd.f32 %v1847, %v2007
        %v2009 = vpop.f32.mrb[0].mxu0
        %v2010 = vpop.f32.mrb[0].mxu0
        %v2011 = vadd.f32 %v1850, %v2010
        %v2012 = vpop.f32.mrb[0].mxu0
        %2013 = vmatprep.mubr.bf16.mxu0 0
        %2014 = vmatmul.mubr.bf16.gmra.mrb[0].mxu0 %v968
        %v2015 = vpop.f32.mrb[0].mxu0
        %v2016 = vadd.f32 %v1855, %v2015
        %v2017 = vpop.f32.mrb[0].mxu0
        %v2018 = vpop.f32.mrb[0].mxu0
        %v2019 = vadd.f32 %v1858, %v2018
        %v2020 = vpop.f32.mrb[0].mxu0
        %2021 = vmatprep.mubr.bf16.mxu0 0
        %2022 = vmatmul.mubr.bf16.gmra.mrb[0].mxu0 %v976
        %v2023 = vpop.f32.mrb[0].mxu0
        %v2024 = vadd.f32 %v1863, %v2023
        %v2025 = vpop.f32.mrb[0].mxu0
        %v2026 = vpop.f32.mrb[0].mxu0
        %v2027 = vadd.f32 %v1866, %v2026
        %v2028 = vpop.f32.mrb[0].mxu0
        %2029 = vdwg.mxu0
        %s2030 = scalar_lea.vmem [#allocation5], 384
        %v2031 = vld [vmem:[%s2030] sm:$0xf]
        %v2032 = vld [vmem:[%s2030 + $0x4] sm:$0xf]
        %v2033 = vld [vmem:[%s2030 + $0x8] sm:$0xf]
        %v2034 = vld [vmem:[%s2030 + $0xc] sm:$0xf]
        %v2035 = vld [vmem:[%s2030 + $0x10] sm:$0xf]
        %v2036 = vld [vmem:[%s2030 + $0x14] sm:$0xf]
        %v2037 = vld [vmem:[%s2030 + $0x18] sm:$0xf]
        %v2038 = vld [vmem:[%s2030 + $0x1c] sm:$0xf]
        %v2039 = vld [vmem:[%s2030 + $0x20] sm:$0xf]
        %v2040 = vld [vmem:[%s2030 + $0x24] sm:$0xf]
        %v2041 = vld [vmem:[%s2030 + $0x28] sm:$0xf]
        %v2042 = vld [vmem:[%s2030 + $0x2c] sm:$0xf]
        %v2043 = vld [vmem:[%s2030 + $0x30] sm:$0xf]
        %v2044 = vld [vmem:[%s2030 + $0x34] sm:$0xf]
        %v2045 = vld [vmem:[%s2030 + $0x38] sm:$0xf]
        %v2046 = vld [vmem:[%s2030 + $0x3c] sm:$0xf]
        %v2047 = vld [vmem:[%s2030 + $0x40] sm:$0xf]
        %v2048 = vld [vmem:[%s2030 + $0x44] sm:$0xf]
        %v2049 = vld [vmem:[%s2030 + $0x48] sm:$0xf]
        %v2050 = vld [vmem:[%s2030 + $0x4c] sm:$0xf]
        %v2051 = vld [vmem:[%s2030 + $0x50] sm:$0xf]
        %v2052 = vld [vmem:[%s2030 + $0x54] sm:$0xf]
        %v2053 = vld [vmem:[%s2030 + $0x58] sm:$0xf]
        %v2054 = vld [vmem:[%s2030 + $0x5c] sm:$0xf]
        %v2055 = vld [vmem:[%s2030 + $0x60] sm:$0xf]
        %v2056 = vld [vmem:[%s2030 + $0x64] sm:$0xf]
        %v2057 = vld [vmem:[%s2030 + $0x68] sm:$0xf]
        %v2058 = vld [vmem:[%s2030 + $0x6c] sm:$0xf]
        %v2059 = vld [vmem:[%s2030 + $0x70] sm:$0xf]
        %v2060 = vld [vmem:[%s2030 + $0x74] sm:$0xf]
        %v2061 = vld [vmem:[%s2030 + $0x78] sm:$0xf]
        %v2062 = vld [vmem:[%s2030 + $0x7c] sm:$0xf]
        %v2063 = vld [vmem:[%s2030 + $0x80] sm:$0xf]
        %v2064 = vld [vmem:[%s2030 + $0x84] sm:$0xf]
        %v2065 = vld [vmem:[%s2030 + $0x88] sm:$0xf]
        %v2066 = vld [vmem:[%s2030 + $0x8c] sm:$0xf]
        %v2067 = vld [vmem:[%s2030 + $0x90] sm:$0xf]
        %v2068 = vld [vmem:[%s2030 + $0x94] sm:$0xf]
        %v2069 = vld [vmem:[%s2030 + $0x98] sm:$0xf]
        %v2070 = vld [vmem:[%s2030 + $0x9c] sm:$0xf]
        %v2071 = vld [vmem:[%s2030 + $0xa0] sm:$0xf]
        %v2072 = vld [vmem:[%s2030 + $0xa4] sm:$0xf]
        %v2073 = vld [vmem:[%s2030 + $0xa8] sm:$0xf]
        %v2074 = vld [vmem:[%s2030 + $0xac] sm:$0xf]
        %v2075 = vld [vmem:[%s2030 + $0xb0] sm:$0xf]
        %v2076 = vld [vmem:[%s2030 + $0xb4] sm:$0xf]
        %v2077 = vld [vmem:[%s2030 + $0xb8] sm:$0xf]
        %v2078 = vld [vmem:[%s2030 + $0xbc] sm:$0xf]
        %v2127 = vunpack.c.l.b16 %v2031
        %v2128 = vunpack.c.l.b16 %v2032
        %v2129 = vunpack.c.l.b16 %v2033
        %v2130 = vunpack.c.l.b16 %v2034
        %v2131 = vunpack.c.l.b16 %v2035
        %v2132 = vunpack.c.l.b16 %v2036
        %v2133 = vunpack.c.l.b16 %v2037
        %v2134 = vunpack.c.l.b16 %v2038
        %v2135 = vunpack.c.l.b16 %v2039
        %v2136 = vunpack.c.l.b16 %v2040
        %v2137 = vunpack.c.l.b16 %v2041
        %v2138 = vunpack.c.l.b16 %v2042
        %v2139 = vunpack.c.l.b16 %v2043
        %v2140 = vunpack.c.l.b16 %v2044
        %v2141 = vunpack.c.l.b16 %v2045
        %v2142 = vunpack.c.l.b16 %v2046
        %v2143 = vunpack.c.l.b16 %v2047
        %v2144 = vunpack.c.l.b16 %v2048
        %v2145 = vunpack.c.l.b16 %v2049
        %v2146 = vunpack.c.l.b16 %v2050
        %v2147 = vunpack.c.l.b16 %v2051
        %v2148 = vunpack.c.l.b16 %v2052
        %v2149 = vunpack.c.l.b16 %v2053
        %v2150 = vunpack.c.l.b16 %v2054
        %v2151 = vunpack.c.l.b16 %v2055
        %v2152 = vunpack.c.l.b16 %v2056
        %v2153 = vunpack.c.l.b16 %v2057
        %v2154 = vunpack.c.l.b16 %v2058
        %v2155 = vunpack.c.l.b16 %v2059
        %v2156 = vunpack.c.l.b16 %v2060
        %v2157 = vunpack.c.l.b16 %v2061
        %v2158 = vunpack.c.l.b16 %v2062
        %v2159 = vunpack.c.l.b16 %v2063
        %v2160 = vunpack.c.l.b16 %v2064
        %v2161 = vunpack.c.l.b16 %v2065
        %v2162 = vunpack.c.l.b16 %v2066
        %v2163 = vunpack.c.l.b16 %v2067
        %v2164 = vunpack.c.l.b16 %v2068
        %v2165 = vunpack.c.l.b16 %v2069
        %v2166 = vunpack.c.l.b16 %v2070
        %v2167 = vunpack.c.l.b16 %v2071
        %v2168 = vunpack.c.l.b16 %v2072
        %v2169 = vunpack.c.l.b16 %v2073
        %v2170 = vunpack.c.l.b16 %v2074
        %v2171 = vunpack.c.l.b16 %v2075
        %v2172 = vunpack.c.l.b16 %v2076
        %v2173 = vunpack.c.l.b16 %v2077
        %v2174 = vunpack.c.l.b16 %v2078
        %v2175 = vpack.c.b16 %v2128, %v2127
        %v2176 = vpack.c.b16 %v2130, %v2129
        %v2177 = vpack.c.b16 %v2132, %v2131
        %v2178 = vpack.c.b16 %v2134, %v2133
        %v2179 = vpack.c.b16 %v2136, %v2135
        %v2180 = vpack.c.b16 %v2138, %v2137
        %v2181 = vpack.c.b16 %v2140, %v2139
        %v2182 = vpack.c.b16 %v2142, %v2141
        %v2183 = vpack.c.b16 %v2144, %v2143
        %v2184 = vpack.c.b16 %v2146, %v2145
        %v2185 = vpack.c.b16 %v2148, %v2147
        %v2186 = vpack.c.b16 %v2150, %v2149
        %v2187 = vpack.c.b16 %v2152, %v2151
        %v2188 = vpack.c.b16 %v2154, %v2153
        %v2189 = vpack.c.b16 %v2156, %v2155
        %v2190 = vpack.c.b16 %v2158, %v2157
        %v2191 = vpack.c.b16 %v2160, %v2159
        %v2192 = vpack.c.b16 %v2162, %v2161
        %v2193 = vpack.c.b16 %v2164, %v2163
        %v2194 = vpack.c.b16 %v2166, %v2165
        %v2195 = vpack.c.b16 %v2168, %v2167
        %v2196 = vpack.c.b16 %v2170, %v2169
        %v2197 = vpack.c.b16 %v2172, %v2171
        %v2198 = vpack.c.b16 %v2174, %v2173
        %2223 = vmatprep.subr.bf16.mxu0 0
        %2224 = vmatpush1.bf16.msra.mxu0 %v2175
        %2225 = vmatprep.subr.bf16.mxu0 0
        %2226 = vmatpush1.bf16.msra.mxu0 %v2176
        %2227 = vmatprep.subr.bf16.mxu0 0
        %2228 = vmatpush1.bf16.msra.mxu0 %v2177
        %2229 = vmatprep.subr.bf16.mxu0 0
        %2230 = vmatpush1.bf16.msra.mxu0 %v2178
        %2231 = vmatprep.subr.bf16.mxu0 0
        %2232 = vmatpush1.bf16.msra.mxu0 %v2179
        %2233 = vmatprep.subr.bf16.mxu0 0
        %2234 = vmatpush1.bf16.msra.mxu0 %v2180
        %2235 = vmatprep.subr.bf16.mxu0 0
        %2236 = vmatpush1.bf16.msra.mxu0 %v2181
        %2237 = vmatprep.subr.bf16.mxu0 0
        %2238 = vmatpush1.bf16.msra.mxu0 %v2182
        %2239 = vmatprep.subr.bf16.mxu0 0
        %2240 = vmatpush1.bf16.msra.mxu0 %v2183
        %2241 = vmatprep.subr.bf16.mxu0 0
        %2242 = vmatpush1.bf16.msra.mxu0 %v2184
        %2243 = vmatprep.subr.bf16.mxu0 0
        %2244 = vmatpush1.bf16.msra.mxu0 %v2185
        %2245 = vmatprep.subr.bf16.mxu0 0
        %2246 = vmatpush1.bf16.msra.mxu0 %v2186
        %2247 = vmatprep.subr.bf16.mxu0 0
        %2248 = vmatpush1.bf16.msra.mxu0 %v2187
        %2249 = vmatprep.subr.bf16.mxu0 0
        %2250 = vmatpush1.bf16.msra.mxu0 %v2188
        %2251 = vmatprep.subr.bf16.mxu0 0
        %2252 = vmatpush1.bf16.msra.mxu0 %v2189
        %2253 = vmatprep.subr.bf16.mxu0 0
        %2254 = vmatpush1.bf16.msra.mxu0 %v2190
        %2255 = vmatprep.mubr.bf16.mxu0 %v741
        %2256 = vmatmul.mubr.bf16.gmra.mrb[0].mxu0 %v542
        %v2257 = vpop.f32.mrb[0].mxu0
        %v2258 = vadd.f32 0.0, %v2257
        %v2259 = vpop.f32.mrb[0].mxu0
        %v2260 = vpop.f32.mrb[0].mxu0
        %v2261 = vadd.f32 0.0, %v2260
        %v2262 = vpop.f32.mrb[0].mxu0
        %2263 = vmatprep.mubr.bf16.mxu0 %v742
        %2264 = vmatmul.mubr.bf16.gmra.mrb[0].mxu0 %v550
        %v2265 = vpop.f32.mrb[0].mxu0
        %v2266 = vadd.f32 0.0, %v2265
        %v2267 = vpop.f32.mrb[0].mxu0
        %v2268 = vpop.f32.mrb[0].mxu0
        %v2269 = vadd.f32 0.0, %v2268
        %v2270 = vpop.f32.mrb[0].mxu0
        %2271 = vmatprep.mubr.bf16.mxu0 %v743
        %2272 = vmatmul.mubr.bf16.gmra.mrb[0].mxu0 %v558
        %v2273 = vpop.f32.mrb[0].mxu0
        %v2274 = vadd.f32 0.0, %v2273
        %v2275 = vpop.f32.mrb[0].mxu0
        %v2276 = vpop.f32.mrb[0].mxu0
        %v2277 = vadd.f32 0.0, %v2276
        %v2278 = vpop.f32.mrb[0].mxu0
        %2279 = vmatprep.mubr.bf16.mxu0 %v744
        %2280 = vmatmul.mubr.bf16.gmra.mrb[0].mxu0 %v566
        %v2281 = vpop.f32.mrb[0].mxu0
        %v2282 = vadd.f32 0.0, %v2281
        %v2283 = vpop.f32.mrb[0].mxu0
        %v2284 = vpop.f32.mrb[0].mxu0
        %v2285 = vadd.f32 0.0, %v2284
        %v2286 = vpop.f32.mrb[0].mxu0
        %2287 = vmatprep.mubr.bf16.mxu0 %v745
        %2288 = vmatmul.mubr.bf16.gmra.mrb[0].mxu0 %v574
        %v2289 = vpop.f32.mrb[0].mxu0
        %v2290 = vadd.f32 0.0, %v2289
        %v2291 = vpop.f32.mrb[0].mxu0
        %v2292 = vpop.f32.mrb[0].mxu0
        %v2293 = vadd.f32 0.0, %v2292
        %v2294 = vpop.f32.mrb[0].mxu0
        %2295 = vmatprep.mubr.bf16.mxu0 %v746
        %2296 = vmatmul.mubr.bf16.gmra.mrb[0].mxu0 %v582
        %v2297 = vpop.f32.mrb[0].mxu0
        %v2298 = vadd.f32 0.0, %v2297
        %v2299 = vpop.f32.mrb[0].mxu0
        %v2300 = vpop.f32.mrb[0].mxu0
        %v2301 = vadd.f32 0.0, %v2300
        %v2302 = vpop.f32.mrb[0].mxu0
        %2303 = vmatprep.mubr.bf16.mxu0 %v747
        %2304 = vmatmul.mubr.bf16.gmra.mrb[0].mxu0 %v590
        %v2305 = vpop.f32.mrb[0].mxu0
        %v2306 = vadd.f32 0.0, %v2305
        %v2307 = vpop.f32.mrb[0].mxu0
        %v2308 = vpop.f32.mrb[0].mxu0
        %v2309 = vadd.f32 0.0, %v2308
        %v2310 = vpop.f32.mrb[0].mxu0
        %2311 = vmatprep.mubr.bf16.mxu0 %v748
        %2312 = vmatmul.mubr.bf16.gmra.mrb[0].mxu0 %v598
        %v2313 = vpop.f32.mrb[0].mxu0
        %v2314 = vadd.f32 0.0, %v2313
        %v2315 = vpop.f32.mrb[0].mxu0
        %v2316 = vpop.f32.mrb[0].mxu0
        %v2317 = vadd.f32 0.0, %v2316
        %v2318 = vpop.f32.mrb[0].mxu0
        %2319 = vmatprep.mubr.bf16.mxu0 %v749
        %2320 = vmatmul.mubr.bf16.gmra.mrb[0].mxu0 %v606
        %v2321 = vpop.f32.mrb[0].mxu0
        %v2322 = vadd.f32 0.0, %v2321
        %v2323 = vpop.f32.mrb[0].mxu0
        %v2324 = vpop.f32.mrb[0].mxu0
        %v2325 = vadd.f32 0.0, %v2324
        %v2326 = vpop.f32.mrb[0].mxu0
        %2327 = vmatprep.mubr.bf16.mxu0 %v750
        %2328 = vmatmul.mubr.bf16.gmra.mrb[0].mxu0 %v614
        %v2329 = vpop.f32.mrb[0].mxu0
        %v2330 = vadd.f32 0.0, %v2329
        %v2331 = vpop.f32.mrb[0].mxu0
        %v2332 = vpop.f32.mrb[0].mxu0
        %v2333 = vadd.f32 0.0, %v2332
        %v2334 = vpop.f32.mrb[0].mxu0
        %2335 = vmatprep.mubr.bf16.mxu0 %v751
        %2336 = vmatmul.mubr.bf16.gmra.mrb[0].mxu0 %v622
        %v2337 = vpop.f32.mrb[0].mxu0
        %v2338 = vadd.f32 0.0, %v2337
        %v2339 = vpop.f32.mrb[0].mxu0
        %v2340 = vpop.f32.mrb[0].mxu0
        %v2341 = vadd.f32 0.0, %v2340
        %v2342 = vpop.f32.mrb[0].mxu0
        %2343 = vmatprep.mubr.bf16.mxu0 %v752
        %2344 = vmatmul.mubr.bf16.gmra.mrb[0].mxu0 %v630
        %v2345 = vpop.f32.mrb[0].mxu0
        %v2346 = vadd.f32 0.0, %v2345
        %v2347 = vpop.f32.mrb[0].mxu0
        %v2348 = vpop.f32.mrb[0].mxu0
        %v2349 = vadd.f32 0.0, %v2348
        %v2350 = vpop.f32.mrb[0].mxu0
        %2351 = vmatprep.mubr.bf16.mxu0 %v753
        %2352 = vmatmul.mubr.bf16.gmra.mrb[0].mxu0 %v638
        %v2353 = vpop.f32.mrb[0].mxu0
        %v2354 = vadd.f32 0.0, %v2353
        %v2355 = vpop.f32.mrb[0].mxu0
        %v2356 = vpop.f32.mrb[0].mxu0
        %v2357 = vadd.f32 0.0, %v2356
        %v2358 = vpop.f32.mrb[0].mxu0
        %2359 = vmatprep.mubr.bf16.mxu0 %v754
        %2360 = vmatmul.mubr.bf16.gmra.mrb[0].mxu0 %v646
        %v2361 = vpop.f32.mrb[0].mxu0
        %v2362 = vadd.f32 0.0, %v2361
        %v2363 = vpop.f32.mrb[0].mxu0
        %v2364 = vpop.f32.mrb[0].mxu0
        %v2365 = vadd.f32 0.0, %v2364
        %v2366 = vpop.f32.mrb[0].mxu0
        %2367 = vmatprep.mubr.bf16.mxu0 %v755
        %2368 = vmatmul.mubr.bf16.gmra.mrb[0].mxu0 %v654
        %v2369 = vpop.f32.mrb[0].mxu0
        %v2370 = vadd.f32 0.0, %v2369
        %v2371 = vpop.f32.mrb[0].mxu0
        %v2372 = vpop.f32.mrb[0].mxu0
        %v2373 = vadd.f32 0.0, %v2372
        %v2374 = vpop.f32.mrb[0].mxu0
        %2375 = vmatprep.mubr.bf16.mxu0 0
        %2376 = vmatmul.mubr.bf16.gmra.mrb[0].mxu0 %v675
        %v2377 = vpop.f32.mrb[0].mxu0
        %v2378 = vadd.f32 0.0, %v2377
        %v2379 = vpop.f32.mrb[0].mxu0
        %v2380 = vpop.f32.mrb[0].mxu0
        %v2381 = vadd.f32 0.0, %v2380
        %v2382 = vpop.f32.mrb[0].mxu0
        %2383 = vdwg.mxu0
        %2384 = vmatprep.subr.bf16.mxu0 0
        %2385 = vmatpush1.bf16.msra.mxu0 %v2191
        %2386 = vmatprep.subr.bf16.mxu0 0
        %2387 = vmatpush1.bf16.msra.mxu0 %v2192
        %2388 = vmatprep.subr.bf16.mxu0 0
        %2389 = vmatpush1.bf16.msra.mxu0 %v2193
        %2390 = vmatprep.subr.bf16.mxu0 0
        %2391 = vmatpush1.bf16.msra.mxu0 %v2194
        %2392 = vmatprep.subr.bf16.mxu0 0
        %2393 = vmatpush1.bf16.msra.mxu0 %v2195
        %2394 = vmatprep.subr.bf16.mxu0 0
        %2395 = vmatpush1.bf16.msra.mxu0 %v2196
        %2396 = vmatprep.subr.bf16.mxu0 0
        %2397 = vmatpush1.bf16.msra.mxu0 %v2197
        %2398 = vmatprep.subr.bf16.mxu0 0
        %2399 = vmatpush1.bf16.msra.mxu0 %v2198
        %2400 = vmatprep.subr.bf16.mxu0 0
        %2401 = vmatpush1.bf16.msra.mxu0 0
        %2402 = vmatprep.subr.bf16.mxu0 0
        %2403 = vmatpush1.bf16.msra.mxu0 0
        %2404 = vmatprep.subr.bf16.mxu0 0
        %2405 = vmatpush1.bf16.msra.mxu0 0
        %2406 = vmatprep.subr.bf16.mxu0 0
        %2407 = vmatpush1.bf16.msra.mxu0 0
        %2408 = vmatprep.subr.bf16.mxu0 0
        %2409 = vmatpush1.bf16.msra.mxu0 0
        %2410 = vmatprep.subr.bf16.mxu0 0
        %2411 = vmatpush1.bf16.msra.mxu0 0
        %2412 = vmatprep.subr.bf16.mxu0 0
        %2413 = vmatpush1.bf16.msra.mxu0 0
        %2414 = vmatprep.subr.bf16.mxu0 0
        %2415 = vmatpush1.bf16.msra.mxu0 0
        %2416 = vmatprep.mubr.bf16.mxu0 0
        %2417 = vmatmul.mubr.bf16.gmra.mrb[0].mxu0 %v872
        %v2418 = vpop.f32.mrb[0].mxu0
        %v2419 = vadd.f32 %v2258, %v2418
        %v2420 = vpop.f32.mrb[0].mxu0
        %v2421 = vpop.f32.mrb[0].mxu0
        %v2422 = vadd.f32 %v2261, %v2421
        %v2423 = vpop.f32.mrb[0].mxu0
        %2424 = vmatprep.mubr.bf16.mxu0 0
        %2425 = vmatmul.mubr.bf16.gmra.mrb[0].mxu0 %v880
        %v2426 = vpop.f32.mrb[0].mxu0
        %v2427 = vadd.f32 %v2266, %v2426
        %v2428 = vpop.f32.mrb[0].mxu0
        %v2429 = vpop.f32.mrb[0].mxu0
        %v2430 = vadd.f32 %v2269, %v2429
        %v2431 = vpop.f32.mrb[0].mxu0
        %2432 = vmatprep.mubr.bf16.mxu0 0
        %2433 = vmatmul.mubr.bf16.gmra.mrb[0].mxu0 %v888
        %v2434 = vpop.f32.mrb[0].mxu0
        %v2435 = vadd.f32 %v2274, %v2434
        %v2436 = vpop.f32.mrb[0].mxu0
        %v2437 = vpop.f32.mrb[0].mxu0
        %v2438 = vadd.f32 %v2277, %v2437
        %v2439 = vpop.f32.mrb[0].mxu0
        %2440 = vmatprep.mubr.bf16.mxu0 0
        %2441 = vmatmul.mubr.bf16.gmra.mrb[0].mxu0 %v896
        %v2442 = vpop.f32.mrb[0].mxu0
        %v2443 = vadd.f32 %v2282, %v2442
        %v2444 = vpop.f32.mrb[0].mxu0
        %v2445 = vpop.f32.mrb[0].mxu0
        %v2446 = vadd.f32 %v2285, %v2445
        %v2447 = vpop.f32.mrb[0].mxu0
        %2448 = vmatprep.mubr.bf16.mxu0 0
        %2449 = vmatmul.mubr.bf16.gmra.mrb[0].mxu0 %v904
        %v2450 = vpop.f32.mrb[0].mxu0
        %v2451 = vadd.f32 %v2290, %v2450
        %v2452 = vpop.f32.mrb[0].mxu0
        %v2453 = vpop.f32.mrb[0].mxu0
        %v2454 = vadd.f32 %v2293, %v2453
        %v2455 = vpop.f32.mrb[0].mxu0
        %2456 = vmatprep.mubr.bf16.mxu0 0
        %2457 = vmatmul.mubr.bf16.gmra.mrb[0].mxu0 %v912
        %v2458 = vpop.f32.mrb[0].mxu0
        %v2459 = vadd.f32 %v2298, %v2458
        %v2460 = vpop.f32.mrb[0].mxu0
        %v2461 = vpop.f32.mrb[0].mxu0
        %v2462 = vadd.f32 %v2301, %v2461
        %v2463 = vpop.f32.mrb[0].mxu0
        %2464 = vmatprep.mubr.bf16.mxu0 0
        %2465 = vmatmul.mubr.bf16.gmra.mrb[0].mxu0 %v920
        %v2466 = vpop.f32.mrb[0].mxu0
        %v2467 = vadd.f32 %v2306, %v2466
        %v2468 = vpop.f32.mrb[0].mxu0
        %v2469 = vpop.f32.mrb[0].mxu0
        %v2470 = vadd.f32 %v2309, %v2469
        %v2471 = vpop.f32.mrb[0].mxu0
        %2472 = vmatprep.mubr.bf16.mxu0 0
        %2473 = vmatmul.mubr.bf16.gmra.mrb[0].mxu0 %v928
        %v2474 = vpop.f32.mrb[0].mxu0
        %v2475 = vadd.f32 %v2314, %v2474
        %v2476 = vpop.f32.mrb[0].mxu0
        %v2477 = vpop.f32.mrb[0].mxu0
        %v2478 = vadd.f32 %v2317, %v2477
        %v2479 = vpop.f32.mrb[0].mxu0
        %2480 = vmatprep.mubr.bf16.mxu0 0
        %2481 = vmatmul.mubr.bf16.gmra.mrb[0].mxu0 %v936
        %v2482 = vpop.f32.mrb[0].mxu0
        %v2483 = vadd.f32 %v2322, %v2482
        %v2484 = vpop.f32.mrb[0].mxu0
        %v2485 = vpop.f32.mrb[0].mxu0
        %v2486 = vadd.f32 %v2325, %v2485
        %v2487 = vpop.f32.mrb[0].mxu0
        %2488 = vmatprep.mubr.bf16.mxu0 0
        %2489 = vmatmul.mubr.bf16.gmra.mrb[0].mxu0 %v944
        %v2490 = vpop.f32.mrb[0].mxu0
        %v2491 = vadd.f32 %v2330, %v2490
        %v2492 = vpop.f32.mrb[0].mxu0
        %v2493 = vpop.f32.mrb[0].mxu0
        %v2494 = vadd.f32 %v2333, %v2493
        %v2495 = vpop.f32.mrb[0].mxu0
        %2496 = vmatprep.mubr.bf16.mxu0 0
        %2497 = vmatmul.mubr.bf16.gmra.mrb[0].mxu0 %v952
        %v2498 = vpop.f32.mrb[0].mxu0
        %v2499 = vadd.f32 %v2338, %v2498
        %v2500 = vpop.f32.mrb[0].mxu0
        %v2501 = vpop.f32.mrb[0].mxu0
        %v2502 = vadd.f32 %v2341, %v2501
        %v2503 = vpop.f32.mrb[0].mxu0
        %2504 = vmatprep.mubr.bf16.mxu0 0
        %2505 = vmatmul.mubr.bf16.gmra.mrb[0].mxu0 %v960
        %v2506 = vpop.f32.mrb[0].mxu0
        %v2507 = vadd.f32 %v2346, %v2506
        %v2508 = vpop.f32.mrb[0].mxu0
        %v2509 = vpop.f32.mrb[0].mxu0
        %v2510 = vadd.f32 %v2349, %v2509
        %v2511 = vpop.f32.mrb[0].mxu0
        %2512 = vmatprep.mubr.bf16.mxu0 0
        %2513 = vmatmul.mubr.bf16.gmra.mrb[0].mxu0 %v968
        %v2514 = vpop.f32.mrb[0].mxu0
        %v2515 = vadd.f32 %v2354, %v2514
        %v2516 = vpop.f32.mrb[0].mxu0
        %v2517 = vpop.f32.mrb[0].mxu0
        %v2518 = vadd.f32 %v2357, %v2517
        %v2519 = vpop.f32.mrb[0].mxu0
        %2520 = vmatprep.mubr.bf16.mxu0 0
        %2521 = vmatmul.mubr.bf16.gmra.mrb[0].mxu0 %v976
        %v2522 = vpop.f32.mrb[0].mxu0
        %v2523 = vadd.f32 %v2362, %v2522
        %v2524 = vpop.f32.mrb[0].mxu0
        %v2525 = vpop.f32.mrb[0].mxu0
        %v2526 = vadd.f32 %v2365, %v2525
        %v2527 = vpop.f32.mrb[0].mxu0
        %2528 = vmatprep.mubr.bf16.mxu0 0
        %2529 = vmatmul.mubr.bf16.gmra.mrb[0].mxu0 %v1000
        %v2530 = vpop.f32.mrb[0].mxu0
        %v2531 = vadd.f32 %v2370, %v2530
        %v2532 = vpop.f32.mrb[0].mxu0
        %v2533 = vpop.f32.mrb[0].mxu0
        %v2534 = vadd.f32 %v2373, %v2533
        %v2535 = vpop.f32.mrb[0].mxu0
        %2536 = vmatprep.mubr.bf16.mxu0 0
        %2537 = vmatmul.mubr.bf16.gmra.mrb[0].mxu0 0
        %v2538 = vpop.f32.mrb[0].mxu0
        %v2539 = vadd.f32 %v2378, %v2538
        %v2540 = vpop.f32.mrb[0].mxu0
        %v2541 = vpop.f32.mrb[0].mxu0
        %v2542 = vadd.f32 %v2381, %v2541
        %v2543 = vpop.f32.mrb[0].mxu0
        %2544 = vdwg.mxu0
        %v2545 = vadd.f32 %v1904, %v2419
        %v2546 = vadd.f32 %v1907, %v2422
        %v2547 = vadd.f32 %v1912, %v2427
        %v2548 = vadd.f32 %v1915, %v2430
        %v2549 = vadd.f32 %v1920, %v2435
        %v2550 = vadd.f32 %v1923, %v2438
        %v2551 = vadd.f32 %v1928, %v2443
        %v2552 = vadd.f32 %v1931, %v2446
        %v2553 = vadd.f32 %v1936, %v2451
        %v2554 = vadd.f32 %v1939, %v2454
        %v2555 = vadd.f32 %v1944, %v2459
        %v2556 = vadd.f32 %v1947, %v2462
        %v2557 = vadd.f32 %v1952, %v2467
        %v2558 = vadd.f32 %v1955, %v2470
        %v2559 = vadd.f32 %v1960, %v2475
        %v2560 = vadd.f32 %v1963, %v2478
        %v2561 = vadd.f32 %v1968, %v2483
        %v2562 = vadd.f32 %v1971, %v2486
        %v2563 = vadd.f32 %v1976, %v2491
        %v2564 = vadd.f32 %v1979, %v2494
        %v2565 = vadd.f32 %v1984, %v2499
        %v2566 = vadd.f32 %v1987, %v2502
        %v2567 = vadd.f32 %v1992, %v2507
        %v2568 = vadd.f32 %v1995, %v2510
        %v2569 = vadd.f32 %v2000, %v2515
        %v2570 = vadd.f32 %v2003, %v2518
        %v2571 = vadd.f32 %v2008, %v2523
        %v2572 = vadd.f32 %v2011, %v2526
        %v2573 = vadd.f32 %v2016, %v2531
        %v2574 = vadd.f32 %v2019, %v2534
        %v2575 = vadd.f32 %v2024, %v2539
        %v2576 = vadd.f32 %v2027, %v2542
        %v2577 = vld [vmem:[%s3] sm:$0x1]
        %v2579 = vlaneseq
        %v2580 = vshrl.u32 %v2579, 7
        %v2581 = vsub.s32 0, %v2580
        %v2582 = vrot.slane %v2577, %v2581
        %v2584 = vmul.f32 %v2545, %v2582
        %v2585 = vmul.f32 %v2546, %v2582
        %v2586 = vmul.f32 %v2547, %v2582
        %v2587 = vmul.f32 %v2548, %v2582
        %v2588 = vmul.f32 %v2549, %v2582
        %v2589 = vmul.f32 %v2550, %v2582
        %v2590 = vmul.f32 %v2551, %v2582
        %v2591 = vmul.f32 %v2552, %v2582
        %v2592 = vmul.f32 %v2553, %v2582
        %v2593 = vmul.f32 %v2554, %v2582
        %v2594 = vmul.f32 %v2555, %v2582
        %v2595 = vmul.f32 %v2556, %v2582
        %v2596 = vmul.f32 %v2557, %v2582
        %v2597 = vmul.f32 %v2558, %v2582
        %v2598 = vmul.f32 %v2559, %v2582
        %v2599 = vmul.f32 %v2560, %v2582
        %v2600 = vmul.f32 %v2561, %v2582
        %v2601 = vmul.f32 %v2562, %v2582
        %v2602 = vmul.f32 %v2563, %v2582
        %v2603 = vmul.f32 %v2564, %v2582
        %v2604 = vmul.f32 %v2565, %v2582
        %v2605 = vmul.f32 %v2566, %v2582
        %v2606 = vmul.f32 %v2567, %v2582
        %v2607 = vmul.f32 %v2568, %v2582
        %v2608 = vmul.f32 %v2569, %v2582
        %v2609 = vmul.f32 %v2570, %v2582
        %v2610 = vmul.f32 %v2571, %v2582
        %v2611 = vmul.f32 %v2572, %v2582
        %v2612 = vmul.f32 %v2573, %v2582
        %v2613 = vmul.f32 %v2574, %v2582
        %v2614 = vmul.f32 %v2575, %v2582
        %v2615 = vmul.f32 %v2576, %v2582
        %v2616 = vld [vmem:[%s4] sm:$0x1]
        %v2618 = vlaneseq
        %v2619 = vshrl.u32 %v2618, 7
        %v2620 = vsub.s32 0, %v2619
        %v2621 = vrot.slane %v2616, %v2620
        %v2623 = vadd.f32 %v2584, %v2621
        %v2624 = vadd.f32 %v2585, %v2621
        %v2625 = vadd.f32 %v2586, %v2621
        %v2626 = vadd.f32 %v2587, %v2621
        %v2627 = vadd.f32 %v2588, %v2621
        %v2628 = vadd.f32 %v2589, %v2621
        %v2629 = vadd.f32 %v2590, %v2621
        %v2630 = vadd.f32 %v2591, %v2621
        %v2631 = vadd.f32 %v2592, %v2621
        %v2632 = vadd.f32 %v2593, %v2621
        %v2633 = vadd.f32 %v2594, %v2621
        %v2634 = vadd.f32 %v2595, %v2621
        %v2635 = vadd.f32 %v2596, %v2621
        %v2636 = vadd.f32 %v2597, %v2621
        %v2637 = vadd.f32 %v2598, %v2621
        %v2638 = vadd.f32 %v2599, %v2621
        %v2639 = vadd.f32 %v2600, %v2621
        %v2640 = vadd.f32 %v2601, %v2621
        %v2641 = vadd.f32 %v2602, %v2621
        %v2642 = vadd.f32 %v2603, %v2621
        %v2643 = vadd.f32 %v2604, %v2621
        %v2644 = vadd.f32 %v2605, %v2621
        %v2645 = vadd.f32 %v2606, %v2621
        %v2646 = vadd.f32 %v2607, %v2621
        %v2647 = vadd.f32 %v2608, %v2621
        %v2648 = vadd.f32 %v2609, %v2621
        %v2649 = vadd.f32 %v2610, %v2621
        %v2650 = vadd.f32 %v2611, %v2621
        %v2651 = vadd.f32 %v2612, %v2621
        %v2652 = vadd.f32 %v2613, %v2621
        %v2653 = vadd.f32 %v2614, %v2621
        %v2654 = vadd.f32 %v2615, %v2621
        %v2655 = vmax.f32 %v2623, 0.0
        %v2656 = vmax.f32 %v2624, 0.0
        %v2657 = vmax.f32 %v2625, 0.0
        %v2658 = vmax.f32 %v2626, 0.0
        %v2659 = vmax.f32 %v2627, 0.0
        %v2660 = vmax.f32 %v2628, 0.0
        %v2661 = vmax.f32 %v2629, 0.0
        %v2662 = vmax.f32 %v2630, 0.0
        %v2663 = vmax.f32 %v2631, 0.0
        %v2664 = vmax.f32 %v2632, 0.0
        %v2665 = vmax.f32 %v2633, 0.0
        %v2666 = vmax.f32 %v2634, 0.0
        %v2667 = vmax.f32 %v2635, 0.0
        %v2668 = vmax.f32 %v2636, 0.0
        %v2669 = vmax.f32 %v2637, 0.0
        %v2670 = vmax.f32 %v2638, 0.0
        %v2671 = vmax.f32 %v2639, 0.0
        %v2672 = vmax.f32 %v2640, 0.0
        %v2673 = vmax.f32 %v2641, 0.0
        %v2674 = vmax.f32 %v2642, 0.0
        %v2675 = vmax.f32 %v2643, 0.0
        %v2676 = vmax.f32 %v2644, 0.0
        %v2677 = vmax.f32 %v2645, 0.0
        %v2678 = vmax.f32 %v2646, 0.0
        %v2679 = vmax.f32 %v2647, 0.0
        %v2680 = vmax.f32 %v2648, 0.0
        %v2681 = vmax.f32 %v2649, 0.0
        %v2682 = vmax.f32 %v2650, 0.0
        %v2683 = vmax.f32 %v2651, 0.0
        %v2684 = vmax.f32 %v2652, 0.0
        %v2685 = vmax.f32 %v2653, 0.0
        %v2686 = vmax.f32 %v2654, 0.0
        %v2687 = vpack.c.bf16 %v2656, %v2655
        %v2688 = vpack.c.bf16 %v2658, %v2657
        %v2689 = vpack.c.bf16 %v2660, %v2659
        %v2690 = vpack.c.bf16 %v2662, %v2661
        %v2691 = vpack.c.bf16 %v2664, %v2663
        %v2692 = vpack.c.bf16 %v2666, %v2665
        %v2693 = vpack.c.bf16 %v2668, %v2667
        %v2694 = vpack.c.bf16 %v2670, %v2669
        %v2695 = vpack.c.bf16 %v2672, %v2671
        %v2696 = vpack.c.bf16 %v2674, %v2673
        %v2697 = vpack.c.bf16 %v2676, %v2675
        %v2698 = vpack.c.bf16 %v2678, %v2677
        %v2699 = vpack.c.bf16 %v2680, %v2679
        %v2700 = vpack.c.bf16 %v2682, %v2681
        %v2701 = vpack.c.bf16 %v2684, %v2683
        %v2702 = vpack.c.bf16 %v2686, %v2685
        %v2703 = vsel %vm375, 65537, 0
        %v2704 = vsel %vm376, 65537, 0
        %v2705 = vunpack.c.l.b16 %v2703
        %v2706 = vunpack.c.l.b16 %v2704
        %v2707 = vpack.c.b16 %v2706, %v2705
        %vm2708 = vcmp.ne.s16.totalorder %v2707, 0
        %v2709 = vsel %vm2708, %v2687, 0
        %v2710 = vsel %vm2708, %v2688, 0
        %v2711 = vsel %vm2708, %v2689, 0
        %v2712 = vsel %vm2708, %v2690, 0
        %v2713 = vsel %vm2708, %v2691, 0
        %v2714 = vsel %vm2708, %v2692, 0
        %v2715 = vsel %vm2708, %v2693, 0
        %v2716 = vsel %vm2708, %v2694, 0
        %v2717 = vsel %vm2708, %v2695, 0
        %v2718 = vsel %vm2708, %v2696, 0
        %v2719 = vsel %vm2708, %v2697, 0
        %v2720 = vsel %vm2708, %v2698, 0
        %v2721 = vsel %vm2708, %v2699, 0
        %v2722 = vsel %vm2708, %v2700, 0
        %v2723 = vsel %vm2708, %v2701, 0
        %v2724 = vsel %vm2708, %v2702, 0
        %v2725 = vsel %vm413, 65537, 0
        %v2726 = vsel %vm414, 65537, 0
        %v2727 = vunpack.c.l.b16 %v2725
        %v2728 = vunpack.c.l.b16 %v2726
        %v2729 = vpack.c.b16 %v2728, %v2727
        %vm2730 = vcmp.ne.s16.totalorder %v2729, 0
        %v2731 = vsel %vm2730, %v2687, 0
        %v2732 = vsel %vm2730, %v2688, 0
        %v2733 = vsel %vm2730, %v2689, 0
        %v2734 = vsel %vm2730, %v2690, 0
        %v2735 = vsel %vm2730, %v2691, 0
        %v2736 = vsel %vm2730, %v2692, 0
        %v2737 = vsel %vm2730, %v2693, 0
        %v2738 = vsel %vm2730, %v2694, 0
        %v2739 = vsel %vm2730, %v2695, 0
        %v2740 = vsel %vm2730, %v2696, 0
        %v2741 = vsel %vm2730, %v2697, 0
        %v2742 = vsel %vm2730, %v2698, 0
        %v2743 = vsel %vm2730, %v2699, 0
        %v2744 = vsel %vm2730, %v2700, 0
        %v2745 = vsel %vm2730, %v2701, 0
        %v2746 = vsel %vm2730, %v2702, 0
        %v2748 = vshrl.u32 %v2709, 16
        %v2750 = vrot.slane %v2748, 7
        %v2751 = vshll.u32 %v2709, 16
        %v2753 = vor.u32 %v2750, %v2751
        %v2755 = vshrl.u32 %v2710, 16
        %v2757 = vrot.slane %v2755, 7
        %v2758 = vshll.u32 %v2710, 16
        %v2760 = vor.u32 %v2757, %v2758
        %v2761 = vsel %vm527, %v2750, %v2760
        %v2763 = vshrl.u32 %v2711, 16
        %v2765 = vrot.slane %v2763, 7
        %v2766 = vshll.u32 %v2711, 16
        %v2768 = vor.u32 %v2765, %v2766
        %v2769 = vsel %vm527, %v2757, %v2768
        %v2771 = vshrl.u32 %v2712, 16
        %v2773 = vrot.slane %v2771, 7
        %v2774 = vshll.u32 %v2712, 16
        %v2776 = vor.u32 %v2773, %v2774
        %v2777 = vsel %vm527, %v2765, %v2776
        %v2779 = vshrl.u32 %v2713, 16
        %v2781 = vrot.slane %v2779, 7
        %v2782 = vshll.u32 %v2713, 16
        %v2784 = vor.u32 %v2781, %v2782
        %v2785 = vsel %vm527, %v2773, %v2784
        %v2787 = vshrl.u32 %v2714, 16
        %v2789 = vrot.slane %v2787, 7
        %v2790 = vshll.u32 %v2714, 16
        %v2792 = vor.u32 %v2789, %v2790
        %v2793 = vsel %vm527, %v2781, %v2792
        %v2795 = vshrl.u32 %v2715, 16
        %v2797 = vrot.slane %v2795, 7
        %v2798 = vshll.u32 %v2715, 16
        %v2800 = vor.u32 %v2797, %v2798
        %v2801 = vsel %vm527, %v2789, %v2800
        %v2803 = vshrl.u32 %v2716, 16
        %v2805 = vrot.slane %v2803, 7
        %v2806 = vshll.u32 %v2716, 16
        %v2808 = vor.u32 %v2805, %v2806
        %v2809 = vsel %vm527, %v2797, %v2808
        %v2811 = vshrl.u32 %v2717, 16
        %v2813 = vrot.slane %v2811, 7
        %v2814 = vshll.u32 %v2717, 16
        %v2816 = vor.u32 %v2813, %v2814
        %v2817 = vsel %vm527, %v2805, %v2816
        %v2819 = vshrl.u32 %v2718, 16
        %v2821 = vrot.slane %v2819, 7
        %v2822 = vshll.u32 %v2718, 16
        %v2824 = vor.u32 %v2821, %v2822
        %v2825 = vsel %vm527, %v2813, %v2824
        %v2827 = vshrl.u32 %v2719, 16
        %v2829 = vrot.slane %v2827, 7
        %v2830 = vshll.u32 %v2719, 16
        %v2832 = vor.u32 %v2829, %v2830
        %v2833 = vsel %vm527, %v2821, %v2832
        %v2835 = vshrl.u32 %v2720, 16
        %v2837 = vrot.slane %v2835, 7
        %v2838 = vshll.u32 %v2720, 16
        %v2840 = vor.u32 %v2837, %v2838
        %v2841 = vsel %vm527, %v2829, %v2840
        %v2843 = vshrl.u32 %v2721, 16
        %v2845 = vrot.slane %v2843, 7
        %v2846 = vshll.u32 %v2721, 16
        %v2848 = vor.u32 %v2845, %v2846
        %v2849 = vsel %vm527, %v2837, %v2848
        %v2851 = vshrl.u32 %v2722, 16
        %v2853 = vrot.slane %v2851, 7
        %v2854 = vshll.u32 %v2722, 16
        %v2856 = vor.u32 %v2853, %v2854
        %v2857 = vsel %vm527, %v2845, %v2856
        %v2859 = vshrl.u32 %v2723, 16
        %v2861 = vrot.slane %v2859, 7
        %v2862 = vshll.u32 %v2723, 16
        %v2864 = vor.u32 %v2861, %v2862
        %v2865 = vsel %vm527, %v2853, %v2864
        %v2867 = vshrl.u32 %v2724, 16
        %v2869 = vrot.slane %v2867, 7
        %v2870 = vshll.u32 %v2724, 16
        %v2872 = vor.u32 %v2869, %v2870
        %v2873 = vsel %vm527, %v2861, %v2872
        %v2891 = vsel %vm673, 0, %v2753
        %v2892 = vsel %vm673, %v2869, 0
        %v2894 = vshll.u32 %v2731, 16
        %v2896 = vrot.slane %v2894, 1
        %v2897 = vshrl.u32 %v2731, 16
        %v2899 = vor.u32 %v2897, %v2896
        %v2901 = vshll.u32 %v2732, 16
        %v2903 = vrot.slane %v2901, 1
        %v2904 = vsel %vm852, %v2899, %v2903
        %v2905 = vshrl.u32 %v2732, 16
        %v2907 = vor.u32 %v2905, %v2903
        %v2909 = vshll.u32 %v2733, 16
        %v2911 = vrot.slane %v2909, 1
        %v2912 = vsel %vm852, %v2907, %v2911
        %v2913 = vshrl.u32 %v2733, 16
        %v2915 = vor.u32 %v2913, %v2911
        %v2917 = vshll.u32 %v2734, 16
        %v2919 = vrot.slane %v2917, 1
        %v2920 = vsel %vm852, %v2915, %v2919
        %v2921 = vshrl.u32 %v2734, 16
        %v2923 = vor.u32 %v2921, %v2919
        %v2925 = vshll.u32 %v2735, 16
        %v2927 = vrot.slane %v2925, 1
        %v2928 = vsel %vm852, %v2923, %v2927
        %v2929 = vshrl.u32 %v2735, 16
        %v2931 = vor.u32 %v2929, %v2927
        %v2933 = vshll.u32 %v2736, 16
        %v2935 = vrot.slane %v2933, 1
        %v2936 = vsel %vm852, %v2931, %v2935
        %v2937 = vshrl.u32 %v2736, 16
        %v2939 = vor.u32 %v2937, %v2935
        %v2941 = vshll.u32 %v2737, 16
        %v2943 = vrot.slane %v2941, 1
        %v2944 = vsel %vm852, %v2939, %v2943
        %v2945 = vshrl.u32 %v2737, 16
        %v2947 = vor.u32 %v2945, %v2943
        %v2949 = vshll.u32 %v2738, 16
        %v2951 = vrot.slane %v2949, 1
        %v2952 = vsel %vm852, %v2947, %v2951
        %v2953 = vshrl.u32 %v2738, 16
        %v2955 = vor.u32 %v2953, %v2951
        %v2957 = vshll.u32 %v2739, 16
        %v2959 = vrot.slane %v2957, 1
        %v2960 = vsel %vm852, %v2955, %v2959
        %v2961 = vshrl.u32 %v2739, 16
        %v2963 = vor.u32 %v2961, %v2959
        %v2965 = vshll.u32 %v2740, 16
        %v2967 = vrot.slane %v2965, 1
        %v2968 = vsel %vm852, %v2963, %v2967
        %v2969 = vshrl.u32 %v2740, 16
        %v2971 = vor.u32 %v2969, %v2967
        %v2973 = vshll.u32 %v2741, 16
        %v2975 = vrot.slane %v2973, 1
        %v2976 = vsel %vm852, %v2971, %v2975
        %v2977 = vshrl.u32 %v2741, 16
        %v2979 = vor.u32 %v2977, %v2975
        %v2981 = vshll.u32 %v2742, 16
        %v2983 = vrot.slane %v2981, 1
        %v2984 = vsel %vm852, %v2979, %v2983
        %v2985 = vshrl.u32 %v2742, 16
        %v2987 = vor.u32 %v2985, %v2983
        %v2989 = vshll.u32 %v2743, 16
        %v2991 = vrot.slane %v2989, 1
        %v2992 = vsel %vm852, %v2987, %v2991
        %v2993 = vshrl.u32 %v2743, 16
        %v2995 = vor.u32 %v2993, %v2991
        %v2997 = vshll.u32 %v2744, 16
        %v2999 = vrot.slane %v2997, 1
        %v3000 = vsel %vm852, %v2995, %v2999
        %v3001 = vshrl.u32 %v2744, 16
        %v3003 = vor.u32 %v3001, %v2999
        %v3005 = vshll.u32 %v2745, 16
        %v3007 = vrot.slane %v3005, 1
        %v3008 = vsel %vm852, %v3003, %v3007
        %v3009 = vshrl.u32 %v2745, 16
        %v3011 = vor.u32 %v3009, %v3007
        %v3013 = vshll.u32 %v2746, 16
        %v3015 = vrot.slane %v3013, 1
        %v3016 = vsel %vm852, %v3011, %v3015
        %v3017 = vshrl.u32 %v2746, 16
        %v3019 = vor.u32 %v3017, %v3015
        %v3037 = vsel %vm998, 0, %v2896
        %v3038 = vsel %vm998, %v3019, 0
        %v3039 = vld [vmem:[#allocation7] sm:$0xf]
        %v3040 = vld [vmem:[#allocation7 + $0x4] sm:$0xf]
        %v3041 = vld [vmem:[#allocation7 + $0x8] sm:$0xf]
        %v3042 = vld [vmem:[#allocation7 + $0xc] sm:$0xf]
        %v3043 = vld [vmem:[#allocation7 + $0x10] sm:$0xf]
        %v3044 = vld [vmem:[#allocation7 + $0x14] sm:$0xf]
        %v3045 = vld [vmem:[#allocation7 + $0x18] sm:$0xf]
        %v3046 = vld [vmem:[#allocation7 + $0x1c] sm:$0xf]
        %v3047 = vld [vmem:[#allocation7 + $0x20] sm:$0xf]
        %v3048 = vld [vmem:[#allocation7 + $0x24] sm:$0xf]
        %v3049 = vld [vmem:[#allocation7 + $0x28] sm:$0xf]
        %v3050 = vld [vmem:[#allocation7 + $0x2c] sm:$0xf]
        %v3051 = vld [vmem:[#allocation7 + $0x30] sm:$0xf]
        %v3052 = vld [vmem:[#allocation7 + $0x34] sm:$0xf]
        %v3053 = vld [vmem:[#allocation7 + $0x38] sm:$0xf]
        %v3054 = vld [vmem:[#allocation7 + $0x3c] sm:$0xf]
        %v3055 = vld [vmem:[#allocation7 + $0x40] sm:$0xf]
        %v3056 = vld [vmem:[#allocation7 + $0x44] sm:$0xf]
        %v3057 = vld [vmem:[#allocation7 + $0x48] sm:$0xf]
        %v3058 = vld [vmem:[#allocation7 + $0x4c] sm:$0xf]
        %v3059 = vld [vmem:[#allocation7 + $0x50] sm:$0xf]
        %v3060 = vld [vmem:[#allocation7 + $0x54] sm:$0xf]
        %v3061 = vld [vmem:[#allocation7 + $0x58] sm:$0xf]
        %v3062 = vld [vmem:[#allocation7 + $0x5c] sm:$0xf]
        %v3063 = vld [vmem:[#allocation7 + $0x60] sm:$0xf]
        %v3064 = vld [vmem:[#allocation7 + $0x64] sm:$0xf]
        %v3065 = vld [vmem:[#allocation7 + $0x68] sm:$0xf]
        %v3066 = vld [vmem:[#allocation7 + $0x6c] sm:$0xf]
        %v3067 = vld [vmem:[#allocation7 + $0x70] sm:$0xf]
        %v3068 = vld [vmem:[#allocation7 + $0x74] sm:$0xf]
        %v3069 = vld [vmem:[#allocation7 + $0x78] sm:$0xf]
        %v3070 = vld [vmem:[#allocation7 + $0x7c] sm:$0xf]
        %v3071 = vld [vmem:[#allocation7 + $0x80] sm:$0xf]
        %v3072 = vld [vmem:[#allocation7 + $0x84] sm:$0xf]
        %v3073 = vld [vmem:[#allocation7 + $0x88] sm:$0xf]
        %v3074 = vld [vmem:[#allocation7 + $0x8c] sm:$0xf]
        %v3075 = vld [vmem:[#allocation7 + $0x90] sm:$0xf]
        %v3076 = vld [vmem:[#allocation7 + $0x94] sm:$0xf]
        %v3077 = vld [vmem:[#allocation7 + $0x98] sm:$0xf]
        %v3078 = vld [vmem:[#allocation7 + $0x9c] sm:$0xf]
        %v3079 = vld [vmem:[#allocation7 + $0xa0] sm:$0xf]
        %v3080 = vld [vmem:[#allocation7 + $0xa4] sm:$0xf]
        %v3081 = vld [vmem:[#allocation7 + $0xa8] sm:$0xf]
        %v3082 = vld [vmem:[#allocation7 + $0xac] sm:$0xf]
        %v3083 = vld [vmem:[#allocation7 + $0xb0] sm:$0xf]
        %v3084 = vld [vmem:[#allocation7 + $0xb4] sm:$0xf]
        %v3085 = vld [vmem:[#allocation7 + $0xb8] sm:$0xf]
        %v3086 = vld [vmem:[#allocation7 + $0xbc] sm:$0xf]
        %s3087 = scalar_lea.vmem [#allocation7], 192
        %v3088 = vld [vmem:[%s3087] sm:$0xf]
        %v3089 = vld [vmem:[%s3087 + $0x4] sm:$0xf]
        %v3090 = vld [vmem:[%s3087 + $0x8] sm:$0xf]
        %v3091 = vld [vmem:[%s3087 + $0xc] sm:$0xf]
        %v3092 = vld [vmem:[%s3087 + $0x10] sm:$0xf]
        %v3093 = vld [vmem:[%s3087 + $0x14] sm:$0xf]
        %v3094 = vld [vmem:[%s3087 + $0x18] sm:$0xf]
        %v3095 = vld [vmem:[%s3087 + $0x1c] sm:$0xf]
        %v3096 = vld [vmem:[%s3087 + $0x20] sm:$0xf]
        %v3097 = vld [vmem:[%s3087 + $0x24] sm:$0xf]
        %v3098 = vld [vmem:[%s3087 + $0x28] sm:$0xf]
        %v3099 = vld [vmem:[%s3087 + $0x2c] sm:$0xf]
        %v3100 = vld [vmem:[%s3087 + $0x30] sm:$0xf]
        %v3101 = vld [vmem:[%s3087 + $0x34] sm:$0xf]
        %v3102 = vld [vmem:[%s3087 + $0x38] sm:$0xf]
        %v3103 = vld [vmem:[%s3087 + $0x3c] sm:$0xf]
        %v3104 = vld [vmem:[%s3087 + $0x40] sm:$0xf]
        %v3105 = vld [vmem:[%s3087 + $0x44] sm:$0xf]
        %v3106 = vld [vmem:[%s3087 + $0x48] sm:$0xf]
        %v3107 = vld [vmem:[%s3087 + $0x4c] sm:$0xf]
        %v3108 = vld [vmem:[%s3087 + $0x50] sm:$0xf]
        %v3109 = vld [vmem:[%s3087 + $0x54] sm:$0xf]
        %v3110 = vld [vmem:[%s3087 + $0x58] sm:$0xf]
        %v3111 = vld [vmem:[%s3087 + $0x5c] sm:$0xf]
        %v3112 = vld [vmem:[%s3087 + $0x60] sm:$0xf]
        %v3113 = vld [vmem:[%s3087 + $0x64] sm:$0xf]
        %v3114 = vld [vmem:[%s3087 + $0x68] sm:$0xf]
        %v3115 = vld [vmem:[%s3087 + $0x6c] sm:$0xf]
        %v3116 = vld [vmem:[%s3087 + $0x70] sm:$0xf]
        %v3117 = vld [vmem:[%s3087 + $0x74] sm:$0xf]
        %v3118 = vld [vmem:[%s3087 + $0x78] sm:$0xf]
        %v3119 = vld [vmem:[%s3087 + $0x7c] sm:$0xf]
        %v3120 = vld [vmem:[%s3087 + $0x80] sm:$0xf]
        %v3121 = vld [vmem:[%s3087 + $0x84] sm:$0xf]
        %v3122 = vld [vmem:[%s3087 + $0x88] sm:$0xf]
        %v3123 = vld [vmem:[%s3087 + $0x8c] sm:$0xf]
        %v3124 = vld [vmem:[%s3087 + $0x90] sm:$0xf]
        %v3125 = vld [vmem:[%s3087 + $0x94] sm:$0xf]
        %v3126 = vld [vmem:[%s3087 + $0x98] sm:$0xf]
        %v3127 = vld [vmem:[%s3087 + $0x9c] sm:$0xf]
        %v3128 = vld [vmem:[%s3087 + $0xa0] sm:$0xf]
        %v3129 = vld [vmem:[%s3087 + $0xa4] sm:$0xf]
        %v3130 = vld [vmem:[%s3087 + $0xa8] sm:$0xf]
        %v3131 = vld [vmem:[%s3087 + $0xac] sm:$0xf]
        %v3132 = vld [vmem:[%s3087 + $0xb0] sm:$0xf]
        %v3133 = vld [vmem:[%s3087 + $0xb4] sm:$0xf]
        %v3134 = vld [vmem:[%s3087 + $0xb8] sm:$0xf]
        %v3135 = vld [vmem:[%s3087 + $0xbc] sm:$0xf]
        %v3184 = vunpack.c.l.b16 %v3088
        %v3185 = vunpack.c.l.b16 %v3089
        %v3186 = vunpack.c.l.b16 %v3090
        %v3187 = vunpack.c.l.b16 %v3091
        %v3188 = vunpack.c.l.b16 %v3092
        %v3189 = vunpack.c.l.b16 %v3093
        %v3190 = vunpack.c.l.b16 %v3094
        %v3191 = vunpack.c.l.b16 %v3095
        %v3192 = vunpack.c.l.b16 %v3096
        %v3193 = vunpack.c.l.b16 %v3097
        %v3194 = vunpack.c.l.b16 %v3098
        %v3195 = vunpack.c.l.b16 %v3099
        %v3196 = vunpack.c.l.b16 %v3100
        %v3197 = vunpack.c.l.b16 %v3101
        %v3198 = vunpack.c.l.b16 %v3102
        %v3199 = vunpack.c.l.b16 %v3103
        %v3200 = vunpack.c.l.b16 %v3104
        %v3201 = vunpack.c.l.b16 %v3105
        %v3202 = vunpack.c.l.b16 %v3106
        %v3203 = vunpack.c.l.b16 %v3107
        %v3204 = vunpack.c.l.b16 %v3108
        %v3205 = vunpack.c.l.b16 %v3109
        %v3206 = vunpack.c.l.b16 %v3110
        %v3207 = vunpack.c.l.b16 %v3111
        %v3208 = vunpack.c.l.b16 %v3112
        %v3209 = vunpack.c.l.b16 %v3113
        %v3210 = vunpack.c.l.b16 %v3114
        %v3211 = vunpack.c.l.b16 %v3115
        %v3212 = vunpack.c.l.b16 %v3116
        %v3213 = vunpack.c.l.b16 %v3117
        %v3214 = vunpack.c.l.b16 %v3118
        %v3215 = vunpack.c.l.b16 %v3119
        %v3216 = vunpack.c.l.b16 %v3120
        %v3217 = vunpack.c.l.b16 %v3121
        %v3218 = vunpack.c.l.b16 %v3122
        %v3219 = vunpack.c.l.b16 %v3123
        %v3220 = vunpack.c.l.b16 %v3124
        %v3221 = vunpack.c.l.b16 %v3125
        %v3222 = vunpack.c.l.b16 %v3126
        %v3223 = vunpack.c.l.b16 %v3127
        %v3224 = vunpack.c.l.b16 %v3128
        %v3225 = vunpack.c.l.b16 %v3129
        %v3226 = vunpack.c.l.b16 %v3130
        %v3227 = vunpack.c.l.b16 %v3131
        %v3228 = vunpack.c.l.b16 %v3132
        %v3229 = vunpack.c.l.b16 %v3133
        %v3230 = vunpack.c.l.b16 %v3134
        %v3231 = vunpack.c.l.b16 %v3135
        %v3232 = vpack.c.b16 %v3185, %v3184
        %v3233 = vpack.c.b16 %v3187, %v3186
        %v3234 = vpack.c.b16 %v3189, %v3188
        %v3235 = vpack.c.b16 %v3191, %v3190
        %v3236 = vpack.c.b16 %v3193, %v3192
        %v3237 = vpack.c.b16 %v3195, %v3194
        %v3238 = vpack.c.b16 %v3197, %v3196
        %v3239 = vpack.c.b16 %v3199, %v3198
        %v3240 = vpack.c.b16 %v3201, %v3200
        %v3241 = vpack.c.b16 %v3203, %v3202
        %v3242 = vpack.c.b16 %v3205, %v3204
        %v3243 = vpack.c.b16 %v3207, %v3206
        %v3244 = vpack.c.b16 %v3209, %v3208
        %v3245 = vpack.c.b16 %v3211, %v3210
        %v3246 = vpack.c.b16 %v3213, %v3212
        %v3247 = vpack.c.b16 %v3215, %v3214
        %v3248 = vpack.c.b16 %v3217, %v3216
        %v3249 = vpack.c.b16 %v3219, %v3218
        %v3250 = vpack.c.b16 %v3221, %v3220
        %v3251 = vpack.c.b16 %v3223, %v3222
        %v3252 = vpack.c.b16 %v3225, %v3224
        %v3253 = vpack.c.b16 %v3227, %v3226
        %v3254 = vpack.c.b16 %v3229, %v3228
        %v3255 = vpack.c.b16 %v3231, %v3230
        %3280 = vmatprep.subr.bf16.mxu0 0
        %3281 = vmatpush1.bf16.msra.mxu0 %v3232
        %3282 = vmatprep.subr.bf16.mxu0 0
        %3283 = vmatpush1.bf16.msra.mxu0 %v3233
        %3284 = vmatprep.subr.bf16.mxu0 0
        %3285 = vmatpush1.bf16.msra.mxu0 %v3234
        %3286 = vmatprep.subr.bf16.mxu0 0
        %3287 = vmatpush1.bf16.msra.mxu0 %v3235
        %3288 = vmatprep.subr.bf16.mxu0 0
        %3289 = vmatpush1.bf16.msra.mxu0 %v3236
        %3290 = vmatprep.subr.bf16.mxu0 0
        %3291 = vmatpush1.bf16.msra.mxu0 %v3237
        %3292 = vmatprep.subr.bf16.mxu0 0
        %3293 = vmatpush1.bf16.msra.mxu0 %v3238
        %3294 = vmatprep.subr.bf16.mxu0 0
        %3295 = vmatpush1.bf16.msra.mxu0 %v3239
        %3296 = vmatprep.subr.bf16.mxu0 0
        %3297 = vmatpush1.bf16.msra.mxu0 %v3240
        %3298 = vmatprep.subr.bf16.mxu0 0
        %3299 = vmatpush1.bf16.msra.mxu0 %v3241
        %3300 = vmatprep.subr.bf16.mxu0 0
        %3301 = vmatpush1.bf16.msra.mxu0 %v3242
        %3302 = vmatprep.subr.bf16.mxu0 0
        %3303 = vmatpush1.bf16.msra.mxu0 %v3243
        %3304 = vmatprep.subr.bf16.mxu0 0
        %3305 = vmatpush1.bf16.msra.mxu0 %v3244
        %3306 = vmatprep.subr.bf16.mxu0 0
        %3307 = vmatpush1.bf16.msra.mxu0 %v3245
        %3308 = vmatprep.subr.bf16.mxu0 0
        %3309 = vmatpush1.bf16.msra.mxu0 %v3246
        %3310 = vmatprep.subr.bf16.mxu0 0
        %3311 = vmatpush1.bf16.msra.mxu0 %v3247
        %3312 = vmatprep.mubr.bf16.mxu0 %v2687
        %3313 = vmatmul.mubr.bf16.gmra.mrb[0].mxu0 %v2891
        %v3314 = vpop.f32.mrb[0].mxu0
        %v3315 = vadd.f32 0.0, %v3314
        %v3316 = vpop.f32.mrb[0].mxu0
        %v3317 = vpop.f32.mrb[0].mxu0
        %v3318 = vadd.f32 0.0, %v3317
        %v3319 = vpop.f32.mrb[0].mxu0
        %3320 = vmatprep.mubr.bf16.mxu0 %v2688
        %3321 = vmatmul.mubr.bf16.gmra.mrb[0].mxu0 %v2761
        %v3322 = vpop.f32.mrb[0].mxu0
        %v3323 = vadd.f32 0.0, %v3322
        %v3324 = vpop.f32.mrb[0].mxu0
        %v3325 = vpop.f32.mrb[0].mxu0
        %v3326 = vadd.f32 0.0, %v3325
        %v3327 = vpop.f32.mrb[0].mxu0
        %3328 = vmatprep.mubr.bf16.mxu0 %v2689
        %3329 = vmatmul.mubr.bf16.gmra.mrb[0].mxu0 %v2769
        %v3330 = vpop.f32.mrb[0].mxu0
        %v3331 = vadd.f32 0.0, %v3330
        %v3332 = vpop.f32.mrb[0].mxu0
        %v3333 = vpop.f32.mrb[0].mxu0
        %v3334 = vadd.f32 0.0, %v3333
        %v3335 = vpop.f32.mrb[0].mxu0
        %3336 = vmatprep.mubr.bf16.mxu0 %v2690
        %3337 = vmatmul.mubr.bf16.gmra.mrb[0].mxu0 %v2777
        %v3338 = vpop.f32.mrb[0].mxu0
        %v3339 = vadd.f32 0.0, %v3338
        %v3340 = vpop.f32.mrb[0].mxu0
        %v3341 = vpop.f32.mrb[0].mxu0
        %v3342 = vadd.f32 0.0, %v3341
        %v3343 = vpop.f32.mrb[0].mxu0
        %3344 = vmatprep.mubr.bf16.mxu0 %v2691
        %3345 = vmatmul.mubr.bf16.gmra.mrb[0].mxu0 %v2785
        %v3346 = vpop.f32.mrb[0].mxu0
        %v3347 = vadd.f32 0.0, %v3346
        %v3348 = vpop.f32.mrb[0].mxu0
        %v3349 = vpop.f32.mrb[0].mxu0
        %v3350 = vadd.f32 0.0, %v3349
        %v3351 = vpop.f32.mrb[0].mxu0
        %3352 = vmatprep.mubr.bf16.mxu0 %v2692
        %3353 = vmatmul.mubr.bf16.gmra.mrb[0].mxu0 %v2793
        %v3354 = vpop.f32.mrb[0].mxu0
        %v3355 = vadd.f32 0.0, %v3354
        %v3356 = vpop.f32.mrb[0].mxu0
        %v3357 = vpop.f32.mrb[0].mxu0
        %v3358 = vadd.f32 0.0, %v3357
        %v3359 = vpop.f32.mrb[0].mxu0
        %3360 = vmatprep.mubr.bf16.mxu0 %v2693
        %3361 = vmatmul.mubr.bf16.gmra.mrb[0].mxu0 %v2801
        %v3362 = vpop.f32.mrb[0].mxu0
        %v3363 = vadd.f32 0.0, %v3362
        %v3364 = vpop.f32.mrb[0].mxu0
        %v3365 = vpop.f32.mrb[0].mxu0
        %v3366 = vadd.f32 0.0, %v3365
        %v3367 = vpop.f32.mrb[0].mxu0
        %3368 = vmatprep.mubr.bf16.mxu0 %v2694
        %3369 = vmatmul.mubr.bf16.gmra.mrb[0].mxu0 %v2809
        %v3370 = vpop.f32.mrb[0].mxu0
        %v3371 = vadd.f32 0.0, %v3370
        %v3372 = vpop.f32.mrb[0].mxu0
        %v3373 = vpop.f32.mrb[0].mxu0
        %v3374 = vadd.f32 0.0, %v3373
        %v3375 = vpop.f32.mrb[0].mxu0
        %3376 = vmatprep.mubr.bf16.mxu0 %v2695
        %3377 = vmatmul.mubr.bf16.gmra.mrb[0].mxu0 %v2817
        %v3378 = vpop.f32.mrb[0].mxu0
        %v3379 = vadd.f32 0.0, %v3378
        %v3380 = vpop.f32.mrb[0].mxu0
        %v3381 = vpop.f32.mrb[0].mxu0
        %v3382 = vadd.f32 0.0, %v3381
        %v3383 = vpop.f32.mrb[0].mxu0
        %3384 = vmatprep.mubr.bf16.mxu0 %v2696
        %3385 = vmatmul.mubr.bf16.gmra.mrb[0].mxu0 %v2825
        %v3386 = vpop.f32.mrb[0].mxu0
        %v3387 = vadd.f32 0.0, %v3386
        %v3388 = vpop.f32.mrb[0].mxu0
        %v3389 = vpop.f32.mrb[0].mxu0
        %v3390 = vadd.f32 0.0, %v3389
        %v3391 = vpop.f32.mrb[0].mxu0
        %3392 = vmatprep.mubr.bf16.mxu0 %v2697
        %3393 = vmatmul.mubr.bf16.gmra.mrb[0].mxu0 %v2833
        %v3394 = vpop.f32.mrb[0].mxu0
        %v3395 = vadd.f32 0.0, %v3394
        %v3396 = vpop.f32.mrb[0].mxu0
        %v3397 = vpop.f32.mrb[0].mxu0
        %v3398 = vadd.f32 0.0, %v3397
        %v3399 = vpop.f32.mrb[0].mxu0
        %3400 = vmatprep.mubr.bf16.mxu0 %v2698
        %3401 = vmatmul.mubr.bf16.gmra.mrb[0].mxu0 %v2841
        %v3402 = vpop.f32.mrb[0].mxu0
        %v3403 = vadd.f32 0.0, %v3402
        %v3404 = vpop.f32.mrb[0].mxu0
        %v3405 = vpop.f32.mrb[0].mxu0
        %v3406 = vadd.f32 0.0, %v3405
        %v3407 = vpop.f32.mrb[0].mxu0
        %3408 = vmatprep.mubr.bf16.mxu0 %v2699
        %3409 = vmatmul.mubr.bf16.gmra.mrb[0].mxu0 %v2849
        %v3410 = vpop.f32.mrb[0].mxu0
        %v3411 = vadd.f32 0.0, %v3410
        %v3412 = vpop.f32.mrb[0].mxu0
        %v3413 = vpop.f32.mrb[0].mxu0
        %v3414 = vadd.f32 0.0, %v3413
        %v3415 = vpop.f32.mrb[0].mxu0
        %3416 = vmatprep.mubr.bf16.mxu0 %v2700
        %3417 = vmatmul.mubr.bf16.gmra.mrb[0].mxu0 %v2857
        %v3418 = vpop.f32.mrb[0].mxu0
        %v3419 = vadd.f32 0.0, %v3418
        %v3420 = vpop.f32.mrb[0].mxu0
        %v3421 = vpop.f32.mrb[0].mxu0
        %v3422 = vadd.f32 0.0, %v3421
        %v3423 = vpop.f32.mrb[0].mxu0
        %3424 = vmatprep.mubr.bf16.mxu0 %v2701
        %3425 = vmatmul.mubr.bf16.gmra.mrb[0].mxu0 %v2865
        %v3426 = vpop.f32.mrb[0].mxu0
        %v3427 = vadd.f32 0.0, %v3426
        %v3428 = vpop.f32.mrb[0].mxu0
        %v3429 = vpop.f32.mrb[0].mxu0
        %v3430 = vadd.f32 0.0, %v3429
        %v3431 = vpop.f32.mrb[0].mxu0
        %3432 = vmatprep.mubr.bf16.mxu0 %v2702
        %3433 = vmatmul.mubr.bf16.gmra.mrb[0].mxu0 %v2873
        %v3434 = vpop.f32.mrb[0].mxu0
        %v3435 = vadd.f32 0.0, %v3434
        %v3436 = vpop.f32.mrb[0].mxu0
        %v3437 = vpop.f32.mrb[0].mxu0
        %v3438 = vadd.f32 0.0, %v3437
        %v3439 = vpop.f32.mrb[0].mxu0
        %3440 = vdwg.mxu0
        %3441 = vmatprep.subr.bf16.mxu0 0
        %3442 = vmatpush1.bf16.msra.mxu0 %v3248
        %3443 = vmatprep.subr.bf16.mxu0 0
        %3444 = vmatpush1.bf16.msra.mxu0 %v3249
        %3445 = vmatprep.subr.bf16.mxu0 0
        %3446 = vmatpush1.bf16.msra.mxu0 %v3250
        %3447 = vmatprep.subr.bf16.mxu0 0
        %3448 = vmatpush1.bf16.msra.mxu0 %v3251
        %3449 = vmatprep.subr.bf16.mxu0 0
        %3450 = vmatpush1.bf16.msra.mxu0 %v3252
        %3451 = vmatprep.subr.bf16.mxu0 0
        %3452 = vmatpush1.bf16.msra.mxu0 %v3253
        %3453 = vmatprep.subr.bf16.mxu0 0
        %3454 = vmatpush1.bf16.msra.mxu0 %v3254
        %3455 = vmatprep.subr.bf16.mxu0 0
        %3456 = vmatpush1.bf16.msra.mxu0 %v3255
        %3457 = vmatprep.subr.bf16.mxu0 0
        %3458 = vmatpush1.bf16.msra.mxu0 0
        %3459 = vmatprep.subr.bf16.mxu0 0
        %3460 = vmatpush1.bf16.msra.mxu0 0
        %3461 = vmatprep.subr.bf16.mxu0 0
        %3462 = vmatpush1.bf16.msra.mxu0 0
        %3463 = vmatprep.subr.bf16.mxu0 0
        %3464 = vmatpush1.bf16.msra.mxu0 0
        %3465 = vmatprep.subr.bf16.mxu0 0
        %3466 = vmatpush1.bf16.msra.mxu0 0
        %3467 = vmatprep.subr.bf16.mxu0 0
        %3468 = vmatpush1.bf16.msra.mxu0 0
        %3469 = vmatprep.subr.bf16.mxu0 0
        %3470 = vmatpush1.bf16.msra.mxu0 0
        %3471 = vmatprep.subr.bf16.mxu0 0
        %3472 = vmatpush1.bf16.msra.mxu0 0
        %3473 = vmatprep.mubr.bf16.mxu0 0
        %3474 = vmatmul.mubr.bf16.gmra.mrb[0].mxu0 %v2904
        %v3475 = vpop.f32.mrb[0].mxu0
        %v3476 = vadd.f32 %v3315, %v3475
        %v3477 = vpop.f32.mrb[0].mxu0
        %v3478 = vpop.f32.mrb[0].mxu0
        %v3479 = vadd.f32 %v3318, %v3478
        %v3480 = vpop.f32.mrb[0].mxu0
        %3481 = vmatprep.mubr.bf16.mxu0 0
        %3482 = vmatmul.mubr.bf16.gmra.mrb[0].mxu0 %v2912
        %v3483 = vpop.f32.mrb[0].mxu0
        %v3484 = vadd.f32 %v3323, %v3483
        %v3485 = vpop.f32.mrb[0].mxu0
        %v3486 = vpop.f32.mrb[0].mxu0
        %v3487 = vadd.f32 %v3326, %v3486
        %v3488 = vpop.f32.mrb[0].mxu0
        %3489 = vmatprep.mubr.bf16.mxu0 0
        %3490 = vmatmul.mubr.bf16.gmra.mrb[0].mxu0 %v2920
        %v3491 = vpop.f32.mrb[0].mxu0
        %v3492 = vadd.f32 %v3331, %v3491
        %v3493 = vpop.f32.mrb[0].mxu0
        %v3494 = vpop.f32.mrb[0].mxu0
        %v3495 = vadd.f32 %v3334, %v3494
        %v3496 = vpop.f32.mrb[0].mxu0
        %3497 = vmatprep.mubr.bf16.mxu0 0
        %3498 = vmatmul.mubr.bf16.gmra.mrb[0].mxu0 %v2928
        %v3499 = vpop.f32.mrb[0].mxu0
        %v3500 = vadd.f32 %v3339, %v3499
        %v3501 = vpop.f32.mrb[0].mxu0
        %v3502 = vpop.f32.mrb[0].mxu0
        %v3503 = vadd.f32 %v3342, %v3502
        %v3504 = vpop.f32.mrb[0].mxu0
        %3505 = vmatprep.mubr.bf16.mxu0 0
        %3506 = vmatmul.mubr.bf16.gmra.mrb[0].mxu0 %v2936
        %v3507 = vpop.f32.mrb[0].mxu0
        %v3508 = vadd.f32 %v3347, %v3507
        %v3509 = vpop.f32.mrb[0].mxu0
        %v3510 = vpop.f32.mrb[0].mxu0
        %v3511 = vadd.f32 %v3350, %v3510
        %v3512 = vpop.f32.mrb[0].mxu0
        %3513 = vmatprep.mubr.bf16.mxu0 0
        %3514 = vmatmul.mubr.bf16.gmra.mrb[0].mxu0 %v2944
        %v3515 = vpop.f32.mrb[0].mxu0
        %v3516 = vadd.f32 %v3355, %v3515
        %v3517 = vpop.f32.mrb[0].mxu0
        %v3518 = vpop.f32.mrb[0].mxu0
        %v3519 = vadd.f32 %v3358, %v3518
        %v3520 = vpop.f32.mrb[0].mxu0
        %3521 = vmatprep.mubr.bf16.mxu0 0
        %3522 = vmatmul.mubr.bf16.gmra.mrb[0].mxu0 %v2952
        %v3523 = vpop.f32.mrb[0].mxu0
        %v3524 = vadd.f32 %v3363, %v3523
        %v3525 = vpop.f32.mrb[0].mxu0
        %v3526 = vpop.f32.mrb[0].mxu0
        %v3527 = vadd.f32 %v3366, %v3526
        %v3528 = vpop.f32.mrb[0].mxu0
        %3529 = vmatprep.mubr.bf16.mxu0 0
        %3530 = vmatmul.mubr.bf16.gmra.mrb[0].mxu0 %v2960
        %v3531 = vpop.f32.mrb[0].mxu0
        %v3532 = vadd.f32 %v3371, %v3531
        %v3533 = vpop.f32.mrb[0].mxu0
        %v3534 = vpop.f32.mrb[0].mxu0
        %v3535 = vadd.f32 %v3374, %v3534
        %v3536 = vpop.f32.mrb[0].mxu0
        %3537 = vmatprep.mubr.bf16.mxu0 0
        %3538 = vmatmul.mubr.bf16.gmra.mrb[0].mxu0 %v2968
        %v3539 = vpop.f32.mrb[0].mxu0
        %v3540 = vadd.f32 %v3379, %v3539
        %v3541 = vpop.f32.mrb[0].mxu0
        %v3542 = vpop.f32.mrb[0].mxu0
        %v3543 = vadd.f32 %v3382, %v3542
        %v3544 = vpop.f32.mrb[0].mxu0
        %3545 = vmatprep.mubr.bf16.mxu0 0
        %3546 = vmatmul.mubr.bf16.gmra.mrb[0].mxu0 %v2976
        %v3547 = vpop.f32.mrb[0].mxu0
        %v3548 = vadd.f32 %v3387, %v3547
        %v3549 = vpop.f32.mrb[0].mxu0
        %v3550 = vpop.f32.mrb[0].mxu0
        %v3551 = vadd.f32 %v3390, %v3550
        %v3552 = vpop.f32.mrb[0].mxu0
        %3553 = vmatprep.mubr.bf16.mxu0 0
        %3554 = vmatmul.mubr.bf16.gmra.mrb[0].mxu0 %v2984
        %v3555 = vpop.f32.mrb[0].mxu0
        %v3556 = vadd.f32 %v3395, %v3555
        %v3557 = vpop.f32.mrb[0].mxu0
        %v3558 = vpop.f32.mrb[0].mxu0
        %v3559 = vadd.f32 %v3398, %v3558
        %v3560 = vpop.f32.mrb[0].mxu0
        %3561 = vmatprep.mubr.bf16.mxu0 0
        %3562 = vmatmul.mubr.bf16.gmra.mrb[0].mxu0 %v2992
        %v3563 = vpop.f32.mrb[0].mxu0
        %v3564 = vadd.f32 %v3403, %v3563
        %v3565 = vpop.f32.mrb[0].mxu0
        %v3566 = vpop.f32.mrb[0].mxu0
        %v3567 = vadd.f32 %v3406, %v3566
        %v3568 = vpop.f32.mrb[0].mxu0
        %3569 = vmatprep.mubr.bf16.mxu0 0
        %3570 = vmatmul.mubr.bf16.gmra.mrb[0].mxu0 %v3000
        %v3571 = vpop.f32.mrb[0].mxu0
        %v3572 = vadd.f32 %v3411, %v3571
        %v3573 = vpop.f32.mrb[0].mxu0
        %v3574 = vpop.f32.mrb[0].mxu0
        %v3575 = vadd.f32 %v3414, %v3574
        %v3576 = vpop.f32.mrb[0].mxu0
        %3577 = vmatprep.mubr.bf16.mxu0 0
        %3578 = vmatmul.mubr.bf16.gmra.mrb[0].mxu0 %v3008
        %v3579 = vpop.f32.mrb[0].mxu0
        %v3580 = vadd.f32 %v3419, %v3579
        %v3581 = vpop.f32.mrb[0].mxu0
        %v3582 = vpop.f32.mrb[0].mxu0
        %v3583 = vadd.f32 %v3422, %v3582
        %v3584 = vpop.f32.mrb[0].mxu0
        %3585 = vmatprep.mubr.bf16.mxu0 0
        %3586 = vmatmul.mubr.bf16.gmra.mrb[0].mxu0 %v3016
        %v3587 = vpop.f32.mrb[0].mxu0
        %v3588 = vadd.f32 %v3427, %v3587
        %v3589 = vpop.f32.mrb[0].mxu0
        %v3590 = vpop.f32.mrb[0].mxu0
        %v3591 = vadd.f32 %v3430, %v3590
        %v3592 = vpop.f32.mrb[0].mxu0
        %3593 = vmatprep.mubr.bf16.mxu0 0
        %3594 = vmatmul.mubr.bf16.gmra.mrb[0].mxu0 %v3038
        %v3595 = vpop.f32.mrb[0].mxu0
        %v3596 = vadd.f32 %v3435, %v3595
        %v3597 = vpop.f32.mrb[0].mxu0
        %v3598 = vpop.f32.mrb[0].mxu0
        %v3599 = vadd.f32 %v3438, %v3598
        %v3600 = vpop.f32.mrb[0].mxu0
        %3601 = vdwg.mxu0
        %v3650 = vunpack.c.l.b16 %v3039
        %v3651 = vunpack.c.l.b16 %v3040
        %v3652 = vunpack.c.l.b16 %v3041
        %v3653 = vunpack.c.l.b16 %v3042
        %v3654 = vunpack.c.l.b16 %v3043
        %v3655 = vunpack.c.l.b16 %v3044
        %v3656 = vunpack.c.l.b16 %v3045
        %v3657 = vunpack.c.l.b16 %v3046
        %v3658 = vunpack.c.l.b16 %v3047
        %v3659 = vunpack.c.l.b16 %v3048
        %v3660 = vunpack.c.l.b16 %v3049
        %v3661 = vunpack.c.l.b16 %v3050
        %v3662 = vunpack.c.l.b16 %v3051
        %v3663 = vunpack.c.l.b16 %v3052
        %v3664 = vunpack.c.l.b16 %v3053
        %v3665 = vunpack.c.l.b16 %v3054
        %v3666 = vunpack.c.l.b16 %v3055
        %v3667 = vunpack.c.l.b16 %v3056
        %v3668 = vunpack.c.l.b16 %v3057
        %v3669 = vunpack.c.l.b16 %v3058
        %v3670 = vunpack.c.l.b16 %v3059
        %v3671 = vunpack.c.l.b16 %v3060
        %v3672 = vunpack.c.l.b16 %v3061
        %v3673 = vunpack.c.l.b16 %v3062
        %v3674 = vunpack.c.l.b16 %v3063
        %v3675 = vunpack.c.l.b16 %v3064
        %v3676 = vunpack.c.l.b16 %v3065
        %v3677 = vunpack.c.l.b16 %v3066
        %v3678 = vunpack.c.l.b16 %v3067
        %v3679 = vunpack.c.l.b16 %v3068
        %v3680 = vunpack.c.l.b16 %v3069
        %v3681 = vunpack.c.l.b16 %v3070
        %v3682 = vunpack.c.l.b16 %v3071
        %v3683 = vunpack.c.l.b16 %v3072
        %v3684 = vunpack.c.l.b16 %v3073
        %v3685 = vunpack.c.l.b16 %v3074
        %v3686 = vunpack.c.l.b16 %v3075
        %v3687 = vunpack.c.l.b16 %v3076
        %v3688 = vunpack.c.l.b16 %v3077
        %v3689 = vunpack.c.l.b16 %v3078
        %v3690 = vunpack.c.l.b16 %v3079
        %v3691 = vunpack.c.l.b16 %v3080
        %v3692 = vunpack.c.l.b16 %v3081
        %v3693 = vunpack.c.l.b16 %v3082
        %v3694 = vunpack.c.l.b16 %v3083
        %v3695 = vunpack.c.l.b16 %v3084
        %v3696 = vunpack.c.l.b16 %v3085
        %v3697 = vunpack.c.l.b16 %v3086
        %v3698 = vpack.c.b16 %v3651, %v3650
        %v3699 = vpack.c.b16 %v3653, %v3652
        %v3700 = vpack.c.b16 %v3655, %v3654
        %v3701 = vpack.c.b16 %v3657, %v3656
        %v3702 = vpack.c.b16 %v3659, %v3658
        %v3703 = vpack.c.b16 %v3661, %v3660
        %v3704 = vpack.c.b16 %v3663, %v3662
        %v3705 = vpack.c.b16 %v3665, %v3664
        %v3706 = vpack.c.b16 %v3667, %v3666
        %v3707 = vpack.c.b16 %v3669, %v3668
        %v3708 = vpack.c.b16 %v3671, %v3670
        %v3709 = vpack.c.b16 %v3673, %v3672
        %v3710 = vpack.c.b16 %v3675, %v3674
        %v3711 = vpack.c.b16 %v3677, %v3676
        %v3712 = vpack.c.b16 %v3679, %v3678
        %v3713 = vpack.c.b16 %v3681, %v3680
        %v3714 = vpack.c.b16 %v3683, %v3682
        %v3715 = vpack.c.b16 %v3685, %v3684
        %v3716 = vpack.c.b16 %v3687, %v3686
        %v3717 = vpack.c.b16 %v3689, %v3688
        %v3718 = vpack.c.b16 %v3691, %v3690
        %v3719 = vpack.c.b16 %v3693, %v3692
        %v3720 = vpack.c.b16 %v3695, %v3694
        %v3721 = vpack.c.b16 %v3697, %v3696
        %3746 = vmatprep.subr.bf16.mxu0 0
        %3747 = vmatpush1.bf16.msra.mxu0 %v3698
        %3748 = vmatprep.subr.bf16.mxu0 0
        %3749 = vmatpush1.bf16.msra.mxu0 %v3699
        %3750 = vmatprep.subr.bf16.mxu0 0
        %3751 = vmatpush1.bf16.msra.mxu0 %v3700
        %3752 = vmatprep.subr.bf16.mxu0 0
        %3753 = vmatpush1.bf16.msra.mxu0 %v3701
        %3754 = vmatprep.subr.bf16.mxu0 0
        %3755 = vmatpush1.bf16.msra.mxu0 %v3702
        %3756 = vmatprep.subr.bf16.mxu0 0
        %3757 = vmatpush1.bf16.msra.mxu0 %v3703
        %3758 = vmatprep.subr.bf16.mxu0 0
        %3759 = vmatpush1.bf16.msra.mxu0 %v3704
        %3760 = vmatprep.subr.bf16.mxu0 0
        %3761 = vmatpush1.bf16.msra.mxu0 %v3705
        %3762 = vmatprep.subr.bf16.mxu0 0
        %3763 = vmatpush1.bf16.msra.mxu0 %v3706
        %3764 = vmatprep.subr.bf16.mxu0 0
        %3765 = vmatpush1.bf16.msra.mxu0 %v3707
        %3766 = vmatprep.subr.bf16.mxu0 0
        %3767 = vmatpush1.bf16.msra.mxu0 %v3708
        %3768 = vmatprep.subr.bf16.mxu0 0
        %3769 = vmatpush1.bf16.msra.mxu0 %v3709
        %3770 = vmatprep.subr.bf16.mxu0 0
        %3771 = vmatpush1.bf16.msra.mxu0 %v3710
        %3772 = vmatprep.subr.bf16.mxu0 0
        %3773 = vmatpush1.bf16.msra.mxu0 %v3711
        %3774 = vmatprep.subr.bf16.mxu0 0
        %3775 = vmatpush1.bf16.msra.mxu0 %v3712
        %3776 = vmatprep.subr.bf16.mxu0 0
        %3777 = vmatpush1.bf16.msra.mxu0 %v3713
        %3778 = vmatprep.mubr.bf16.mxu0 0
        %3779 = vmatmul.mubr.bf16.gmra.mrb[0].mxu0 0
        %v3780 = vpop.f32.mrb[0].mxu0
        %v3781 = vadd.f32 %v3476, %v3780
        %v3782 = vpop.f32.mrb[0].mxu0
        %v3783 = vpop.f32.mrb[0].mxu0
        %v3784 = vadd.f32 %v3479, %v3783
        %v3785 = vpop.f32.mrb[0].mxu0
        %3786 = vmatprep.mubr.bf16.mxu0 %v2687
        %3787 = vmatmul.mubr.bf16.gmra.mrb[0].mxu0 %v2891
        %v3788 = vpop.f32.mrb[0].mxu0
        %v3789 = vadd.f32 %v3484, %v3788
        %v3790 = vpop.f32.mrb[0].mxu0
        %v3791 = vpop.f32.mrb[0].mxu0
        %v3792 = vadd.f32 %v3487, %v3791
        %v3793 = vpop.f32.mrb[0].mxu0
        %3794 = vmatprep.mubr.bf16.mxu0 %v2688
        %3795 = vmatmul.mubr.bf16.gmra.mrb[0].mxu0 %v2761
        %v3796 = vpop.f32.mrb[0].mxu0
        %v3797 = vadd.f32 %v3492, %v3796
        %v3798 = vpop.f32.mrb[0].mxu0
        %v3799 = vpop.f32.mrb[0].mxu0
        %v3800 = vadd.f32 %v3495, %v3799
        %v3801 = vpop.f32.mrb[0].mxu0
        %3802 = vmatprep.mubr.bf16.mxu0 %v2689
        %3803 = vmatmul.mubr.bf16.gmra.mrb[0].mxu0 %v2769
        %v3804 = vpop.f32.mrb[0].mxu0
        %v3805 = vadd.f32 %v3500, %v3804
        %v3806 = vpop.f32.mrb[0].mxu0
        %v3807 = vpop.f32.mrb[0].mxu0
        %v3808 = vadd.f32 %v3503, %v3807
        %v3809 = vpop.f32.mrb[0].mxu0
        %3810 = vmatprep.mubr.bf16.mxu0 %v2690
        %3811 = vmatmul.mubr.bf16.gmra.mrb[0].mxu0 %v2777
        %v3812 = vpop.f32.mrb[0].mxu0
        %v3813 = vadd.f32 %v3508, %v3812
        %v3814 = vpop.f32.mrb[0].mxu0
        %v3815 = vpop.f32.mrb[0].mxu0
        %v3816 = vadd.f32 %v3511, %v3815
        %v3817 = vpop.f32.mrb[0].mxu0
        %3818 = vmatprep.mubr.bf16.mxu0 %v2691
        %3819 = vmatmul.mubr.bf16.gmra.mrb[0].mxu0 %v2785
        %v3820 = vpop.f32.mrb[0].mxu0
        %v3821 = vadd.f32 %v3516, %v3820
        %v3822 = vpop.f32.mrb[0].mxu0
        %v3823 = vpop.f32.mrb[0].mxu0
        %v3824 = vadd.f32 %v3519, %v3823
        %v3825 = vpop.f32.mrb[0].mxu0
        %3826 = vmatprep.mubr.bf16.mxu0 %v2692
        %3827 = vmatmul.mubr.bf16.gmra.mrb[0].mxu0 %v2793
        %v3828 = vpop.f32.mrb[0].mxu0
        %v3829 = vadd.f32 %v3524, %v3828
        %v3830 = vpop.f32.mrb[0].mxu0
        %v3831 = vpop.f32.mrb[0].mxu0
        %v3832 = vadd.f32 %v3527, %v3831
        %v3833 = vpop.f32.mrb[0].mxu0
        %3834 = vmatprep.mubr.bf16.mxu0 %v2693
        %3835 = vmatmul.mubr.bf16.gmra.mrb[0].mxu0 %v2801
        %v3836 = vpop.f32.mrb[0].mxu0
        %v3837 = vadd.f32 %v3532, %v3836
        %v3838 = vpop.f32.mrb[0].mxu0
        %v3839 = vpop.f32.mrb[0].mxu0
        %v3840 = vadd.f32 %v3535, %v3839
        %v3841 = vpop.f32.mrb[0].mxu0
        %3842 = vmatprep.mubr.bf16.mxu0 %v2694
        %3843 = vmatmul.mubr.bf16.gmra.mrb[0].mxu0 %v2809
        %v3844 = vpop.f32.mrb[0].mxu0
        %v3845 = vadd.f32 %v3540, %v3844
        %v3846 = vpop.f32.mrb[0].mxu0
        %v3847 = vpop.f32.mrb[0].mxu0
        %v3848 = vadd.f32 %v3543, %v3847
        %v3849 = vpop.f32.mrb[0].mxu0
        %3850 = vmatprep.mubr.bf16.mxu0 %v2695
        %3851 = vmatmul.mubr.bf16.gmra.mrb[0].mxu0 %v2817
        %v3852 = vpop.f32.mrb[0].mxu0
        %v3853 = vadd.f32 %v3548, %v3852
        %v3854 = vpop.f32.mrb[0].mxu0
        %v3855 = vpop.f32.mrb[0].mxu0
        %v3856 = vadd.f32 %v3551, %v3855
        %v3857 = vpop.f32.mrb[0].mxu0
        %3858 = vmatprep.mubr.bf16.mxu0 %v2696
        %3859 = vmatmul.mubr.bf16.gmra.mrb[0].mxu0 %v2825
        %v3860 = vpop.f32.mrb[0].mxu0
        %v3861 = vadd.f32 %v3556, %v3860
        %v3862 = vpop.f32.mrb[0].mxu0
        %v3863 = vpop.f32.mrb[0].mxu0
        %v3864 = vadd.f32 %v3559, %v3863
        %v3865 = vpop.f32.mrb[0].mxu0
        %3866 = vmatprep.mubr.bf16.mxu0 %v2697
        %3867 = vmatmul.mubr.bf16.gmra.mrb[0].mxu0 %v2833
        %v3868 = vpop.f32.mrb[0].mxu0
        %v3869 = vadd.f32 %v3564, %v3868
        %v3870 = vpop.f32.mrb[0].mxu0
        %v3871 = vpop.f32.mrb[0].mxu0
        %v3872 = vadd.f32 %v3567, %v3871
        %v3873 = vpop.f32.mrb[0].mxu0
        %3874 = vmatprep.mubr.bf16.mxu0 %v2698
        %3875 = vmatmul.mubr.bf16.gmra.mrb[0].mxu0 %v2841
        %v3876 = vpop.f32.mrb[0].mxu0
        %v3877 = vadd.f32 %v3572, %v3876
        %v3878 = vpop.f32.mrb[0].mxu0
        %v3879 = vpop.f32.mrb[0].mxu0
        %v3880 = vadd.f32 %v3575, %v3879
        %v3881 = vpop.f32.mrb[0].mxu0
        %3882 = vmatprep.mubr.bf16.mxu0 %v2699
        %3883 = vmatmul.mubr.bf16.gmra.mrb[0].mxu0 %v2849
        %v3884 = vpop.f32.mrb[0].mxu0
        %v3885 = vadd.f32 %v3580, %v3884
        %v3886 = vpop.f32.mrb[0].mxu0
        %v3887 = vpop.f32.mrb[0].mxu0
        %v3888 = vadd.f32 %v3583, %v3887
        %v3889 = vpop.f32.mrb[0].mxu0
        %3890 = vmatprep.mubr.bf16.mxu0 %v2700
        %3891 = vmatmul.mubr.bf16.gmra.mrb[0].mxu0 %v2857
        %v3892 = vpop.f32.mrb[0].mxu0
        %v3893 = vadd.f32 %v3588, %v3892
        %v3894 = vpop.f32.mrb[0].mxu0
        %v3895 = vpop.f32.mrb[0].mxu0
        %v3896 = vadd.f32 %v3591, %v3895
        %v3897 = vpop.f32.mrb[0].mxu0
        %3898 = vmatprep.mubr.bf16.mxu0 %v2701
        %3899 = vmatmul.mubr.bf16.gmra.mrb[0].mxu0 %v2865
        %v3900 = vpop.f32.mrb[0].mxu0
        %v3901 = vadd.f32 %v3596, %v3900
        %v3902 = vpop.f32.mrb[0].mxu0
        %v3903 = vpop.f32.mrb[0].mxu0
        %v3904 = vadd.f32 %v3599, %v3903
        %v3905 = vpop.f32.mrb[0].mxu0
        %3906 = vdwg.mxu0
        %3907 = vmatprep.subr.bf16.mxu0 0
        %3908 = vmatpush1.bf16.msra.mxu0 %v3714
        %3909 = vmatprep.subr.bf16.mxu0 0
        %3910 = vmatpush1.bf16.msra.mxu0 %v3715
        %3911 = vmatprep.subr.bf16.mxu0 0
        %3912 = vmatpush1.bf16.msra.mxu0 %v3716
        %3913 = vmatprep.subr.bf16.mxu0 0
        %3914 = vmatpush1.bf16.msra.mxu0 %v3717
        %3915 = vmatprep.subr.bf16.mxu0 0
        %3916 = vmatpush1.bf16.msra.mxu0 %v3718
        %3917 = vmatprep.subr.bf16.mxu0 0
        %3918 = vmatpush1.bf16.msra.mxu0 %v3719
        %3919 = vmatprep.subr.bf16.mxu0 0
        %3920 = vmatpush1.bf16.msra.mxu0 %v3720
        %3921 = vmatprep.subr.bf16.mxu0 0
        %3922 = vmatpush1.bf16.msra.mxu0 %v3721
        %3923 = vmatprep.subr.bf16.mxu0 0
        %3924 = vmatpush1.bf16.msra.mxu0 0
        %3925 = vmatprep.subr.bf16.mxu0 0
        %3926 = vmatpush1.bf16.msra.mxu0 0
        %3927 = vmatprep.subr.bf16.mxu0 0
        %3928 = vmatpush1.bf16.msra.mxu0 0
        %3929 = vmatprep.subr.bf16.mxu0 0
        %3930 = vmatpush1.bf16.msra.mxu0 0
        %3931 = vmatprep.subr.bf16.mxu0 0
        %3932 = vmatpush1.bf16.msra.mxu0 0
        %3933 = vmatprep.subr.bf16.mxu0 0
        %3934 = vmatpush1.bf16.msra.mxu0 0
        %3935 = vmatprep.subr.bf16.mxu0 0
        %3936 = vmatpush1.bf16.msra.mxu0 0
        %3937 = vmatprep.subr.bf16.mxu0 0
        %3938 = vmatpush1.bf16.msra.mxu0 0
        %3939 = vmatprep.mubr.bf16.mxu0 0
        %3940 = vmatmul.mubr.bf16.gmra.mrb[0].mxu0 %v3037
        %v3941 = vpop.f32.mrb[0].mxu0
        %v3942 = vadd.f32 %v3781, %v3941
        %v3943 = vpop.f32.mrb[0].mxu0
        %v3944 = vpop.f32.mrb[0].mxu0
        %v3945 = vadd.f32 %v3784, %v3944
        %v3946 = vpop.f32.mrb[0].mxu0
        %3947 = vmatprep.mubr.bf16.mxu0 0
        %3948 = vmatmul.mubr.bf16.gmra.mrb[0].mxu0 %v2904
        %v3949 = vpop.f32.mrb[0].mxu0
        %v3950 = vadd.f32 %v3789, %v3949
        %v3951 = vpop.f32.mrb[0].mxu0
        %v3952 = vpop.f32.mrb[0].mxu0
        %v3953 = vadd.f32 %v3792, %v3952
        %v3954 = vpop.f32.mrb[0].mxu0
        %3955 = vmatprep.mubr.bf16.mxu0 0
        %3956 = vmatmul.mubr.bf16.gmra.mrb[0].mxu0 %v2912
        %v3957 = vpop.f32.mrb[0].mxu0
        %v3958 = vadd.f32 %v3797, %v3957
        %v3959 = vpop.f32.mrb[0].mxu0
        %v3960 = vpop.f32.mrb[0].mxu0
        %v3961 = vadd.f32 %v3800, %v3960
        %v3962 = vpop.f32.mrb[0].mxu0
        %3963 = vmatprep.mubr.bf16.mxu0 0
        %3964 = vmatmul.mubr.bf16.gmra.mrb[0].mxu0 %v2920
        %v3965 = vpop.f32.mrb[0].mxu0
        %v3966 = vadd.f32 %v3805, %v3965
        %v3967 = vpop.f32.mrb[0].mxu0
        %v3968 = vpop.f32.mrb[0].mxu0
        %v3969 = vadd.f32 %v3808, %v3968
        %v3970 = vpop.f32.mrb[0].mxu0
        %3971 = vmatprep.mubr.bf16.mxu0 0
        %3972 = vmatmul.mubr.bf16.gmra.mrb[0].mxu0 %v2928
        %v3973 = vpop.f32.mrb[0].mxu0
        %v3974 = vadd.f32 %v3813, %v3973
        %v3975 = vpop.f32.mrb[0].mxu0
        %v3976 = vpop.f32.mrb[0].mxu0
        %v3977 = vadd.f32 %v3816, %v3976
        %v3978 = vpop.f32.mrb[0].mxu0
        %3979 = vmatprep.mubr.bf16.mxu0 0
        %3980 = vmatmul.mubr.bf16.gmra.mrb[0].mxu0 %v2936
        %v3981 = vpop.f32.mrb[0].mxu0
        %v3982 = vadd.f32 %v3821, %v3981
        %v3983 = vpop.f32.mrb[0].mxu0
        %v3984 = vpop.f32.mrb[0].mxu0
        %v3985 = vadd.f32 %v3824, %v3984
        %v3986 = vpop.f32.mrb[0].mxu0
        %3987 = vmatprep.mubr.bf16.mxu0 0
        %3988 = vmatmul.mubr.bf16.gmra.mrb[0].mxu0 %v2944
        %v3989 = vpop.f32.mrb[0].mxu0
        %v3990 = vadd.f32 %v3829, %v3989
        %v3991 = vpop.f32.mrb[0].mxu0
        %v3992 = vpop.f32.mrb[0].mxu0
        %v3993 = vadd.f32 %v3832, %v3992
        %v3994 = vpop.f32.mrb[0].mxu0
        %3995 = vmatprep.mubr.bf16.mxu0 0
        %3996 = vmatmul.mubr.bf16.gmra.mrb[0].mxu0 %v2952
        %v3997 = vpop.f32.mrb[0].mxu0
        %v3998 = vadd.f32 %v3837, %v3997
        %v3999 = vpop.f32.mrb[0].mxu0
        %v4000 = vpop.f32.mrb[0].mxu0
        %v4001 = vadd.f32 %v3840, %v4000
        %v4002 = vpop.f32.mrb[0].mxu0
        %4003 = vmatprep.mubr.bf16.mxu0 0
        %4004 = vmatmul.mubr.bf16.gmra.mrb[0].mxu0 %v2960
        %v4005 = vpop.f32.mrb[0].mxu0
        %v4006 = vadd.f32 %v3845, %v4005
        %v4007 = vpop.f32.mrb[0].mxu0
        %v4008 = vpop.f32.mrb[0].mxu0
        %v4009 = vadd.f32 %v3848, %v4008
        %v4010 = vpop.f32.mrb[0].mxu0
        %4011 = vmatprep.mubr.bf16.mxu0 0
        %4012 = vmatmul.mubr.bf16.gmra.mrb[0].mxu0 %v2968
        %v4013 = vpop.f32.mrb[0].mxu0
        %v4014 = vadd.f32 %v3853, %v4013
        %v4015 = vpop.f32.mrb[0].mxu0
        %v4016 = vpop.f32.mrb[0].mxu0
        %v4017 = vadd.f32 %v3856, %v4016
        %v4018 = vpop.f32.mrb[0].mxu0
        %4019 = vmatprep.mubr.bf16.mxu0 0
        %4020 = vmatmul.mubr.bf16.gmra.mrb[0].mxu0 %v2976
        %v4021 = vpop.f32.mrb[0].mxu0
        %v4022 = vadd.f32 %v3861, %v4021
        %v4023 = vpop.f32.mrb[0].mxu0
        %v4024 = vpop.f32.mrb[0].mxu0
        %v4025 = vadd.f32 %v3864, %v4024
        %v4026 = vpop.f32.mrb[0].mxu0
        %4027 = vmatprep.mubr.bf16.mxu0 0
        %4028 = vmatmul.mubr.bf16.gmra.mrb[0].mxu0 %v2984
        %v4029 = vpop.f32.mrb[0].mxu0
        %v4030 = vadd.f32 %v3869, %v4029
        %v4031 = vpop.f32.mrb[0].mxu0
        %v4032 = vpop.f32.mrb[0].mxu0
        %v4033 = vadd.f32 %v3872, %v4032
        %v4034 = vpop.f32.mrb[0].mxu0
        %4035 = vmatprep.mubr.bf16.mxu0 0
        %4036 = vmatmul.mubr.bf16.gmra.mrb[0].mxu0 %v2992
        %v4037 = vpop.f32.mrb[0].mxu0
        %v4038 = vadd.f32 %v3877, %v4037
        %v4039 = vpop.f32.mrb[0].mxu0
        %v4040 = vpop.f32.mrb[0].mxu0
        %v4041 = vadd.f32 %v3880, %v4040
        %v4042 = vpop.f32.mrb[0].mxu0
        %4043 = vmatprep.mubr.bf16.mxu0 0
        %4044 = vmatmul.mubr.bf16.gmra.mrb[0].mxu0 %v3000
        %v4045 = vpop.f32.mrb[0].mxu0
        %v4046 = vadd.f32 %v3885, %v4045
        %v4047 = vpop.f32.mrb[0].mxu0
        %v4048 = vpop.f32.mrb[0].mxu0
        %v4049 = vadd.f32 %v3888, %v4048
        %v4050 = vpop.f32.mrb[0].mxu0
        %4051 = vmatprep.mubr.bf16.mxu0 0
        %4052 = vmatmul.mubr.bf16.gmra.mrb[0].mxu0 %v3008
        %v4053 = vpop.f32.mrb[0].mxu0
        %v4054 = vadd.f32 %v3893, %v4053
        %v4055 = vpop.f32.mrb[0].mxu0
        %v4056 = vpop.f32.mrb[0].mxu0
        %v4057 = vadd.f32 %v3896, %v4056
        %v4058 = vpop.f32.mrb[0].mxu0
        %4059 = vmatprep.mubr.bf16.mxu0 0
        %4060 = vmatmul.mubr.bf16.gmra.mrb[0].mxu0 %v3016
        %v4061 = vpop.f32.mrb[0].mxu0
        %v4062 = vadd.f32 %v3901, %v4061
        %v4063 = vpop.f32.mrb[0].mxu0
        %v4064 = vpop.f32.mrb[0].mxu0
        %v4065 = vadd.f32 %v3904, %v4064
        %v4066 = vpop.f32.mrb[0].mxu0
        %4067 = vdwg.mxu0
        %s4068 = scalar_lea.vmem [#allocation7], 384
        %v4069 = vld [vmem:[%s4068] sm:$0xf]
        %v4070 = vld [vmem:[%s4068 + $0x4] sm:$0xf]
        %v4071 = vld [vmem:[%s4068 + $0x8] sm:$0xf]
        %v4072 = vld [vmem:[%s4068 + $0xc] sm:$0xf]
        %v4073 = vld [vmem:[%s4068 + $0x10] sm:$0xf]
        %v4074 = vld [vmem:[%s4068 + $0x14] sm:$0xf]
        %v4075 = vld [vmem:[%s4068 + $0x18] sm:$0xf]
        %v4076 = vld [vmem:[%s4068 + $0x1c] sm:$0xf]
        %v4077 = vld [vmem:[%s4068 + $0x20] sm:$0xf]
        %v4078 = vld [vmem:[%s4068 + $0x24] sm:$0xf]
        %v4079 = vld [vmem:[%s4068 + $0x28] sm:$0xf]
        %v4080 = vld [vmem:[%s4068 + $0x2c] sm:$0xf]
        %v4081 = vld [vmem:[%s4068 + $0x30] sm:$0xf]
        %v4082 = vld [vmem:[%s4068 + $0x34] sm:$0xf]
        %v4083 = vld [vmem:[%s4068 + $0x38] sm:$0xf]
        %v4084 = vld [vmem:[%s4068 + $0x3c] sm:$0xf]
        %v4085 = vld [vmem:[%s4068 + $0x40] sm:$0xf]
        %v4086 = vld [vmem:[%s4068 + $0x44] sm:$0xf]
        %v4087 = vld [vmem:[%s4068 + $0x48] sm:$0xf]
        %v4088 = vld [vmem:[%s4068 + $0x4c] sm:$0xf]
        %v4089 = vld [vmem:[%s4068 + $0x50] sm:$0xf]
        %v4090 = vld [vmem:[%s4068 + $0x54] sm:$0xf]
        %v4091 = vld [vmem:[%s4068 + $0x58] sm:$0xf]
        %v4092 = vld [vmem:[%s4068 + $0x5c] sm:$0xf]
        %v4093 = vld [vmem:[%s4068 + $0x60] sm:$0xf]
        %v4094 = vld [vmem:[%s4068 + $0x64] sm:$0xf]
        %v4095 = vld [vmem:[%s4068 + $0x68] sm:$0xf]
        %v4096 = vld [vmem:[%s4068 + $0x6c] sm:$0xf]
        %v4097 = vld [vmem:[%s4068 + $0x70] sm:$0xf]
        %v4098 = vld [vmem:[%s4068 + $0x74] sm:$0xf]
        %v4099 = vld [vmem:[%s4068 + $0x78] sm:$0xf]
        %v4100 = vld [vmem:[%s4068 + $0x7c] sm:$0xf]
        %v4101 = vld [vmem:[%s4068 + $0x80] sm:$0xf]
        %v4102 = vld [vmem:[%s4068 + $0x84] sm:$0xf]
        %v4103 = vld [vmem:[%s4068 + $0x88] sm:$0xf]
        %v4104 = vld [vmem:[%s4068 + $0x8c] sm:$0xf]
        %v4105 = vld [vmem:[%s4068 + $0x90] sm:$0xf]
        %v4106 = vld [vmem:[%s4068 + $0x94] sm:$0xf]
        %v4107 = vld [vmem:[%s4068 + $0x98] sm:$0xf]
        %v4108 = vld [vmem:[%s4068 + $0x9c] sm:$0xf]
        %v4109 = vld [vmem:[%s4068 + $0xa0] sm:$0xf]
        %v4110 = vld [vmem:[%s4068 + $0xa4] sm:$0xf]
        %v4111 = vld [vmem:[%s4068 + $0xa8] sm:$0xf]
        %v4112 = vld [vmem:[%s4068 + $0xac] sm:$0xf]
        %v4113 = vld [vmem:[%s4068 + $0xb0] sm:$0xf]
        %v4114 = vld [vmem:[%s4068 + $0xb4] sm:$0xf]
        %v4115 = vld [vmem:[%s4068 + $0xb8] sm:$0xf]
        %v4116 = vld [vmem:[%s4068 + $0xbc] sm:$0xf]
        %v4165 = vunpack.c.l.b16 %v4069
        %v4166 = vunpack.c.l.b16 %v4070
        %v4167 = vunpack.c.l.b16 %v4071
        %v4168 = vunpack.c.l.b16 %v4072
        %v4169 = vunpack.c.l.b16 %v4073
        %v4170 = vunpack.c.l.b16 %v4074
        %v4171 = vunpack.c.l.b16 %v4075
        %v4172 = vunpack.c.l.b16 %v4076
        %v4173 = vunpack.c.l.b16 %v4077
        %v4174 = vunpack.c.l.b16 %v4078
        %v4175 = vunpack.c.l.b16 %v4079
        %v4176 = vunpack.c.l.b16 %v4080
        %v4177 = vunpack.c.l.b16 %v4081
        %v4178 = vunpack.c.l.b16 %v4082
        %v4179 = vunpack.c.l.b16 %v4083
        %v4180 = vunpack.c.l.b16 %v4084
        %v4181 = vunpack.c.l.b16 %v4085
        %v4182 = vunpack.c.l.b16 %v4086
        %v4183 = vunpack.c.l.b16 %v4087
        %v4184 = vunpack.c.l.b16 %v4088
        %v4185 = vunpack.c.l.b16 %v4089
        %v4186 = vunpack.c.l.b16 %v4090
        %v4187 = vunpack.c.l.b16 %v4091
        %v4188 = vunpack.c.l.b16 %v4092
        %v4189 = vunpack.c.l.b16 %v4093
        %v4190 = vunpack.c.l.b16 %v4094
        %v4191 = vunpack.c.l.b16 %v4095
        %v4192 = vunpack.c.l.b16 %v4096
        %v4193 = vunpack.c.l.b16 %v4097
        %v4194 = vunpack.c.l.b16 %v4098
        %v4195 = vunpack.c.l.b16 %v4099
        %v4196 = vunpack.c.l.b16 %v4100
        %v4197 = vunpack.c.l.b16 %v4101
        %v4198 = vunpack.c.l.b16 %v4102
        %v4199 = vunpack.c.l.b16 %v4103
        %v4200 = vunpack.c.l.b16 %v4104
        %v4201 = vunpack.c.l.b16 %v4105
        %v4202 = vunpack.c.l.b16 %v4106
        %v4203 = vunpack.c.l.b16 %v4107
        %v4204 = vunpack.c.l.b16 %v4108
        %v4205 = vunpack.c.l.b16 %v4109
        %v4206 = vunpack.c.l.b16 %v4110
        %v4207 = vunpack.c.l.b16 %v4111
        %v4208 = vunpack.c.l.b16 %v4112
        %v4209 = vunpack.c.l.b16 %v4113
        %v4210 = vunpack.c.l.b16 %v4114
        %v4211 = vunpack.c.l.b16 %v4115
        %v4212 = vunpack.c.l.b16 %v4116
        %v4213 = vpack.c.b16 %v4166, %v4165
        %v4214 = vpack.c.b16 %v4168, %v4167
        %v4215 = vpack.c.b16 %v4170, %v4169
        %v4216 = vpack.c.b16 %v4172, %v4171
        %v4217 = vpack.c.b16 %v4174, %v4173
        %v4218 = vpack.c.b16 %v4176, %v4175
        %v4219 = vpack.c.b16 %v4178, %v4177
        %v4220 = vpack.c.b16 %v4180, %v4179
        %v4221 = vpack.c.b16 %v4182, %v4181
        %v4222 = vpack.c.b16 %v4184, %v4183
        %v4223 = vpack.c.b16 %v4186, %v4185
        %v4224 = vpack.c.b16 %v4188, %v4187
        %v4225 = vpack.c.b16 %v4190, %v4189
        %v4226 = vpack.c.b16 %v4192, %v4191
        %v4227 = vpack.c.b16 %v4194, %v4193
        %v4228 = vpack.c.b16 %v4196, %v4195
        %v4229 = vpack.c.b16 %v4198, %v4197
        %v4230 = vpack.c.b16 %v4200, %v4199
        %v4231 = vpack.c.b16 %v4202, %v4201
        %v4232 = vpack.c.b16 %v4204, %v4203
        %v4233 = vpack.c.b16 %v4206, %v4205
        %v4234 = vpack.c.b16 %v4208, %v4207
        %v4235 = vpack.c.b16 %v4210, %v4209
        %v4236 = vpack.c.b16 %v4212, %v4211
        %4261 = vmatprep.subr.bf16.mxu0 0
        %4262 = vmatpush1.bf16.msra.mxu0 %v4213
        %4263 = vmatprep.subr.bf16.mxu0 0
        %4264 = vmatpush1.bf16.msra.mxu0 %v4214
        %4265 = vmatprep.subr.bf16.mxu0 0
        %4266 = vmatpush1.bf16.msra.mxu0 %v4215
        %4267 = vmatprep.subr.bf16.mxu0 0
        %4268 = vmatpush1.bf16.msra.mxu0 %v4216
        %4269 = vmatprep.subr.bf16.mxu0 0
        %4270 = vmatpush1.bf16.msra.mxu0 %v4217
        %4271 = vmatprep.subr.bf16.mxu0 0
        %4272 = vmatpush1.bf16.msra.mxu0 %v4218
        %4273 = vmatprep.subr.bf16.mxu0 0
        %4274 = vmatpush1.bf16.msra.mxu0 %v4219
        %4275 = vmatprep.subr.bf16.mxu0 0
        %4276 = vmatpush1.bf16.msra.mxu0 %v4220
        %4277 = vmatprep.subr.bf16.mxu0 0
        %4278 = vmatpush1.bf16.msra.mxu0 %v4221
        %4279 = vmatprep.subr.bf16.mxu0 0
        %4280 = vmatpush1.bf16.msra.mxu0 %v4222
        %4281 = vmatprep.subr.bf16.mxu0 0
        %4282 = vmatpush1.bf16.msra.mxu0 %v4223
        %4283 = vmatprep.subr.bf16.mxu0 0
        %4284 = vmatpush1.bf16.msra.mxu0 %v4224
        %4285 = vmatprep.subr.bf16.mxu0 0
        %4286 = vmatpush1.bf16.msra.mxu0 %v4225
        %4287 = vmatprep.subr.bf16.mxu0 0
        %4288 = vmatpush1.bf16.msra.mxu0 %v4226
        %4289 = vmatprep.subr.bf16.mxu0 0
        %4290 = vmatpush1.bf16.msra.mxu0 %v4227
        %4291 = vmatprep.subr.bf16.mxu0 0
        %4292 = vmatpush1.bf16.msra.mxu0 %v4228
        %4293 = vmatprep.mubr.bf16.mxu0 %v2688
        %4294 = vmatmul.mubr.bf16.gmra.mrb[0].mxu0 %v2761
        %v4295 = vpop.f32.mrb[0].mxu0
        %v4296 = vadd.f32 0.0, %v4295
        %v4297 = vpop.f32.mrb[0].mxu0
        %v4298 = vpop.f32.mrb[0].mxu0
        %v4299 = vadd.f32 0.0, %v4298
        %v4300 = vpop.f32.mrb[0].mxu0
        %4301 = vmatprep.mubr.bf16.mxu0 %v2689
        %4302 = vmatmul.mubr.bf16.gmra.mrb[0].mxu0 %v2769
        %v4303 = vpop.f32.mrb[0].mxu0
        %v4304 = vadd.f32 0.0, %v4303
        %v4305 = vpop.f32.mrb[0].mxu0
        %v4306 = vpop.f32.mrb[0].mxu0
        %v4307 = vadd.f32 0.0, %v4306
        %v4308 = vpop.f32.mrb[0].mxu0
        %4309 = vmatprep.mubr.bf16.mxu0 %v2690
        %4310 = vmatmul.mubr.bf16.gmra.mrb[0].mxu0 %v2777
        %v4311 = vpop.f32.mrb[0].mxu0
        %v4312 = vadd.f32 0.0, %v4311
        %v4313 = vpop.f32.mrb[0].mxu0
        %v4314 = vpop.f32.mrb[0].mxu0
        %v4315 = vadd.f32 0.0, %v4314
        %v4316 = vpop.f32.mrb[0].mxu0
        %4317 = vmatprep.mubr.bf16.mxu0 %v2691
        %4318 = vmatmul.mubr.bf16.gmra.mrb[0].mxu0 %v2785
        %v4319 = vpop.f32.mrb[0].mxu0
        %v4320 = vadd.f32 0.0, %v4319
        %v4321 = vpop.f32.mrb[0].mxu0
        %v4322 = vpop.f32.mrb[0].mxu0
        %v4323 = vadd.f32 0.0, %v4322
        %v4324 = vpop.f32.mrb[0].mxu0
        %4325 = vmatprep.mubr.bf16.mxu0 %v2692
        %4326 = vmatmul.mubr.bf16.gmra.mrb[0].mxu0 %v2793
        %v4327 = vpop.f32.mrb[0].mxu0
        %v4328 = vadd.f32 0.0, %v4327
        %v4329 = vpop.f32.mrb[0].mxu0
        %v4330 = vpop.f32.mrb[0].mxu0
        %v4331 = vadd.f32 0.0, %v4330
        %v4332 = vpop.f32.mrb[0].mxu0
        %4333 = vmatprep.mubr.bf16.mxu0 %v2693
        %4334 = vmatmul.mubr.bf16.gmra.mrb[0].mxu0 %v2801
        %v4335 = vpop.f32.mrb[0].mxu0
        %v4336 = vadd.f32 0.0, %v4335
        %v4337 = vpop.f32.mrb[0].mxu0
        %v4338 = vpop.f32.mrb[0].mxu0
        %v4339 = vadd.f32 0.0, %v4338
        %v4340 = vpop.f32.mrb[0].mxu0
        %4341 = vmatprep.mubr.bf16.mxu0 %v2694
        %4342 = vmatmul.mubr.bf16.gmra.mrb[0].mxu0 %v2809
        %v4343 = vpop.f32.mrb[0].mxu0
        %v4344 = vadd.f32 0.0, %v4343
        %v4345 = vpop.f32.mrb[0].mxu0
        %v4346 = vpop.f32.mrb[0].mxu0
        %v4347 = vadd.f32 0.0, %v4346
        %v4348 = vpop.f32.mrb[0].mxu0
        %4349 = vmatprep.mubr.bf16.mxu0 %v2695
        %4350 = vmatmul.mubr.bf16.gmra.mrb[0].mxu0 %v2817
        %v4351 = vpop.f32.mrb[0].mxu0
        %v4352 = vadd.f32 0.0, %v4351
        %v4353 = vpop.f32.mrb[0].mxu0
        %v4354 = vpop.f32.mrb[0].mxu0
        %v4355 = vadd.f32 0.0, %v4354
        %v4356 = vpop.f32.mrb[0].mxu0
        %4357 = vmatprep.mubr.bf16.mxu0 %v2696
        %4358 = vmatmul.mubr.bf16.gmra.mrb[0].mxu0 %v2825
        %v4359 = vpop.f32.mrb[0].mxu0
        %v4360 = vadd.f32 0.0, %v4359
        %v4361 = vpop.f32.mrb[0].mxu0
        %v4362 = vpop.f32.mrb[0].mxu0
        %v4363 = vadd.f32 0.0, %v4362
        %v4364 = vpop.f32.mrb[0].mxu0
        %4365 = vmatprep.mubr.bf16.mxu0 %v2697
        %4366 = vmatmul.mubr.bf16.gmra.mrb[0].mxu0 %v2833
        %v4367 = vpop.f32.mrb[0].mxu0
        %v4368 = vadd.f32 0.0, %v4367
        %v4369 = vpop.f32.mrb[0].mxu0
        %v4370 = vpop.f32.mrb[0].mxu0
        %v4371 = vadd.f32 0.0, %v4370
        %v4372 = vpop.f32.mrb[0].mxu0
        %4373 = vmatprep.mubr.bf16.mxu0 %v2698
        %4374 = vmatmul.mubr.bf16.gmra.mrb[0].mxu0 %v2841
        %v4375 = vpop.f32.mrb[0].mxu0
        %v4376 = vadd.f32 0.0, %v4375
        %v4377 = vpop.f32.mrb[0].mxu0
        %v4378 = vpop.f32.mrb[0].mxu0
        %v4379 = vadd.f32 0.0, %v4378
        %v4380 = vpop.f32.mrb[0].mxu0
        %4381 = vmatprep.mubr.bf16.mxu0 %v2699
        %4382 = vmatmul.mubr.bf16.gmra.mrb[0].mxu0 %v2849
        %v4383 = vpop.f32.mrb[0].mxu0
        %v4384 = vadd.f32 0.0, %v4383
        %v4385 = vpop.f32.mrb[0].mxu0
        %v4386 = vpop.f32.mrb[0].mxu0
        %v4387 = vadd.f32 0.0, %v4386
        %v4388 = vpop.f32.mrb[0].mxu0
        %4389 = vmatprep.mubr.bf16.mxu0 %v2700
        %4390 = vmatmul.mubr.bf16.gmra.mrb[0].mxu0 %v2857
        %v4391 = vpop.f32.mrb[0].mxu0
        %v4392 = vadd.f32 0.0, %v4391
        %v4393 = vpop.f32.mrb[0].mxu0
        %v4394 = vpop.f32.mrb[0].mxu0
        %v4395 = vadd.f32 0.0, %v4394
        %v4396 = vpop.f32.mrb[0].mxu0
        %4397 = vmatprep.mubr.bf16.mxu0 %v2701
        %4398 = vmatmul.mubr.bf16.gmra.mrb[0].mxu0 %v2865
        %v4399 = vpop.f32.mrb[0].mxu0
        %v4400 = vadd.f32 0.0, %v4399
        %v4401 = vpop.f32.mrb[0].mxu0
        %v4402 = vpop.f32.mrb[0].mxu0
        %v4403 = vadd.f32 0.0, %v4402
        %v4404 = vpop.f32.mrb[0].mxu0
        %4405 = vmatprep.mubr.bf16.mxu0 %v2702
        %4406 = vmatmul.mubr.bf16.gmra.mrb[0].mxu0 %v2873
        %v4407 = vpop.f32.mrb[0].mxu0
        %v4408 = vadd.f32 0.0, %v4407
        %v4409 = vpop.f32.mrb[0].mxu0
        %v4410 = vpop.f32.mrb[0].mxu0
        %v4411 = vadd.f32 0.0, %v4410
        %v4412 = vpop.f32.mrb[0].mxu0
        %4413 = vmatprep.mubr.bf16.mxu0 0
        %4414 = vmatmul.mubr.bf16.gmra.mrb[0].mxu0 %v2892
        %v4415 = vpop.f32.mrb[0].mxu0
        %v4416 = vadd.f32 0.0, %v4415
        %v4417 = vpop.f32.mrb[0].mxu0
        %v4418 = vpop.f32.mrb[0].mxu0
        %v4419 = vadd.f32 0.0, %v4418
        %v4420 = vpop.f32.mrb[0].mxu0
        %4421 = vdwg.mxu0
        %4422 = vmatprep.subr.bf16.mxu0 0
        %4423 = vmatpush1.bf16.msra.mxu0 %v4229
        %4424 = vmatprep.subr.bf16.mxu0 0
        %4425 = vmatpush1.bf16.msra.mxu0 %v4230
        %4426 = vmatprep.subr.bf16.mxu0 0
        %4427 = vmatpush1.bf16.msra.mxu0 %v4231
        %4428 = vmatprep.subr.bf16.mxu0 0
        %4429 = vmatpush1.bf16.msra.mxu0 %v4232
        %4430 = vmatprep.subr.bf16.mxu0 0
        %4431 = vmatpush1.bf16.msra.mxu0 %v4233
        %4432 = vmatprep.subr.bf16.mxu0 0
        %4433 = vmatpush1.bf16.msra.mxu0 %v4234
        %4434 = vmatprep.subr.bf16.mxu0 0
        %4435 = vmatpush1.bf16.msra.mxu0 %v4235
        %4436 = vmatprep.subr.bf16.mxu0 0
        %4437 = vmatpush1.bf16.msra.mxu0 %v4236
        %4438 = vmatprep.subr.bf16.mxu0 0
        %4439 = vmatpush1.bf16.msra.mxu0 0
        %4440 = vmatprep.subr.bf16.mxu0 0
        %4441 = vmatpush1.bf16.msra.mxu0 0
        %4442 = vmatprep.subr.bf16.mxu0 0
        %4443 = vmatpush1.bf16.msra.mxu0 0
        %4444 = vmatprep.subr.bf16.mxu0 0
        %4445 = vmatpush1.bf16.msra.mxu0 0
        %4446 = vmatprep.subr.bf16.mxu0 0
        %4447 = vmatpush1.bf16.msra.mxu0 0
        %4448 = vmatprep.subr.bf16.mxu0 0
        %4449 = vmatpush1.bf16.msra.mxu0 0
        %4450 = vmatprep.subr.bf16.mxu0 0
        %4451 = vmatpush1.bf16.msra.mxu0 0
        %4452 = vmatprep.subr.bf16.mxu0 0
        %4453 = vmatpush1.bf16.msra.mxu0 0
        %4454 = vmatprep.mubr.bf16.mxu0 0
        %4455 = vmatmul.mubr.bf16.gmra.mrb[0].mxu0 %v2912
        %v4456 = vpop.f32.mrb[0].mxu0
        %v4457 = vadd.f32 %v4296, %v4456
        %v4458 = vpop.f32.mrb[0].mxu0
        %v4459 = vpop.f32.mrb[0].mxu0
        %v4460 = vadd.f32 %v4299, %v4459
        %v4461 = vpop.f32.mrb[0].mxu0
        %4462 = vmatprep.mubr.bf16.mxu0 0
        %4463 = vmatmul.mubr.bf16.gmra.mrb[0].mxu0 %v2920
        %v4464 = vpop.f32.mrb[0].mxu0
        %v4465 = vadd.f32 %v4304, %v4464
        %v4466 = vpop.f32.mrb[0].mxu0
        %v4467 = vpop.f32.mrb[0].mxu0
        %v4468 = vadd.f32 %v4307, %v4467
        %v4469 = vpop.f32.mrb[0].mxu0
        %4470 = vmatprep.mubr.bf16.mxu0 0
        %4471 = vmatmul.mubr.bf16.gmra.mrb[0].mxu0 %v2928
        %v4472 = vpop.f32.mrb[0].mxu0
        %v4473 = vadd.f32 %v4312, %v4472
        %v4474 = vpop.f32.mrb[0].mxu0
        %v4475 = vpop.f32.mrb[0].mxu0
        %v4476 = vadd.f32 %v4315, %v4475
        %v4477 = vpop.f32.mrb[0].mxu0
        %4478 = vmatprep.mubr.bf16.mxu0 0
        %4479 = vmatmul.mubr.bf16.gmra.mrb[0].mxu0 %v2936
        %v4480 = vpop.f32.mrb[0].mxu0
        %v4481 = vadd.f32 %v4320, %v4480
        %v4482 = vpop.f32.mrb[0].mxu0
        %v4483 = vpop.f32.mrb[0].mxu0
        %v4484 = vadd.f32 %v4323, %v4483
        %v4485 = vpop.f32.mrb[0].mxu0
        %4486 = vmatprep.mubr.bf16.mxu0 0
        %4487 = vmatmul.mubr.bf16.gmra.mrb[0].mxu0 %v2944
        %v4488 = vpop.f32.mrb[0].mxu0
        %v4489 = vadd.f32 %v4328, %v4488
        %v4490 = vpop.f32.mrb[0].mxu0
        %v4491 = vpop.f32.mrb[0].mxu0
        %v4492 = vadd.f32 %v4331, %v4491
        %v4493 = vpop.f32.mrb[0].mxu0
        %4494 = vmatprep.mubr.bf16.mxu0 0
        %4495 = vmatmul.mubr.bf16.gmra.mrb[0].mxu0 %v2952
        %v4496 = vpop.f32.mrb[0].mxu0
        %v4497 = vadd.f32 %v4336, %v4496
        %v4498 = vpop.f32.mrb[0].mxu0
        %v4499 = vpop.f32.mrb[0].mxu0
        %v4500 = vadd.f32 %v4339, %v4499
        %v4501 = vpop.f32.mrb[0].mxu0
        %4502 = vmatprep.mubr.bf16.mxu0 0
        %4503 = vmatmul.mubr.bf16.gmra.mrb[0].mxu0 %v2960
        %v4504 = vpop.f32.mrb[0].mxu0
        %v4505 = vadd.f32 %v4344, %v4504
        %v4506 = vpop.f32.mrb[0].mxu0
        %v4507 = vpop.f32.mrb[0].mxu0
        %v4508 = vadd.f32 %v4347, %v4507
        %v4509 = vpop.f32.mrb[0].mxu0
        %4510 = vmatprep.mubr.bf16.mxu0 0
        %4511 = vmatmul.mubr.bf16.gmra.mrb[0].mxu0 %v2968
        %v4512 = vpop.f32.mrb[0].mxu0
        %v4513 = vadd.f32 %v4352, %v4512
        %v4514 = vpop.f32.mrb[0].mxu0
        %v4515 = vpop.f32.mrb[0].mxu0
        %v4516 = vadd.f32 %v4355, %v4515
        %v4517 = vpop.f32.mrb[0].mxu0
        %4518 = vmatprep.mubr.bf16.mxu0 0
        %4519 = vmatmul.mubr.bf16.gmra.mrb[0].mxu0 %v2976
        %v4520 = vpop.f32.mrb[0].mxu0
        %v4521 = vadd.f32 %v4360, %v4520
        %v4522 = vpop.f32.mrb[0].mxu0
        %v4523 = vpop.f32.mrb[0].mxu0
        %v4524 = vadd.f32 %v4363, %v4523
        %v4525 = vpop.f32.mrb[0].mxu0
        %4526 = vmatprep.mubr.bf16.mxu0 0
        %4527 = vmatmul.mubr.bf16.gmra.mrb[0].mxu0 %v2984
        %v4528 = vpop.f32.mrb[0].mxu0
        %v4529 = vadd.f32 %v4368, %v4528
        %v4530 = vpop.f32.mrb[0].mxu0
        %v4531 = vpop.f32.mrb[0].mxu0
        %v4532 = vadd.f32 %v4371, %v4531
        %v4533 = vpop.f32.mrb[0].mxu0
        %4534 = vmatprep.mubr.bf16.mxu0 0
        %4535 = vmatmul.mubr.bf16.gmra.mrb[0].mxu0 %v2992
        %v4536 = vpop.f32.mrb[0].mxu0
        %v4537 = vadd.f32 %v4376, %v4536
        %v4538 = vpop.f32.mrb[0].mxu0
        %v4539 = vpop.f32.mrb[0].mxu0
        %v4540 = vadd.f32 %v4379, %v4539
        %v4541 = vpop.f32.mrb[0].mxu0
        %4542 = vmatprep.mubr.bf16.mxu0 0
        %4543 = vmatmul.mubr.bf16.gmra.mrb[0].mxu0 %v3000
        %v4544 = vpop.f32.mrb[0].mxu0
        %v4545 = vadd.f32 %v4384, %v4544
        %v4546 = vpop.f32.mrb[0].mxu0
        %v4547 = vpop.f32.mrb[0].mxu0
        %v4548 = vadd.f32 %v4387, %v4547
        %v4549 = vpop.f32.mrb[0].mxu0
        %4550 = vmatprep.mubr.bf16.mxu0 0
        %4551 = vmatmul.mubr.bf16.gmra.mrb[0].mxu0 %v3008
        %v4552 = vpop.f32.mrb[0].mxu0
        %v4553 = vadd.f32 %v4392, %v4552
        %v4554 = vpop.f32.mrb[0].mxu0
        %v4555 = vpop.f32.mrb[0].mxu0
        %v4556 = vadd.f32 %v4395, %v4555
        %v4557 = vpop.f32.mrb[0].mxu0
        %4558 = vmatprep.mubr.bf16.mxu0 0
        %4559 = vmatmul.mubr.bf16.gmra.mrb[0].mxu0 %v3016
        %v4560 = vpop.f32.mrb[0].mxu0
        %v4561 = vadd.f32 %v4400, %v4560
        %v4562 = vpop.f32.mrb[0].mxu0
        %v4563 = vpop.f32.mrb[0].mxu0
        %v4564 = vadd.f32 %v4403, %v4563
        %v4565 = vpop.f32.mrb[0].mxu0
        %4566 = vmatprep.mubr.bf16.mxu0 0
        %4567 = vmatmul.mubr.bf16.gmra.mrb[0].mxu0 %v3038
        %v4568 = vpop.f32.mrb[0].mxu0
        %v4569 = vadd.f32 %v4408, %v4568
        %v4570 = vpop.f32.mrb[0].mxu0
        %v4571 = vpop.f32.mrb[0].mxu0
        %v4572 = vadd.f32 %v4411, %v4571
        %v4573 = vpop.f32.mrb[0].mxu0
        %4574 = vmatprep.mubr.bf16.mxu0 0
        %4575 = vmatmul.mubr.bf16.gmra.mrb[0].mxu0 0
        %v4576 = vpop.f32.mrb[0].mxu0
        %v4577 = vadd.f32 %v4416, %v4576
        %v4578 = vpop.f32.mrb[0].mxu0
        %v4579 = vpop.f32.mrb[0].mxu0
        %v4580 = vadd.f32 %v4419, %v4579
        %v4581 = vpop.f32.mrb[0].mxu0
        %4582 = vdwg.mxu0
        %v4583 = vadd.f32 %v3942, %v4457
        %v4584 = vadd.f32 %v3945, %v4460
        %v4585 = vadd.f32 %v3950, %v4465
        %v4586 = vadd.f32 %v3953, %v4468
        %v4587 = vadd.f32 %v3958, %v4473
        %v4588 = vadd.f32 %v3961, %v4476
        %v4589 = vadd.f32 %v3966, %v4481
        %v4590 = vadd.f32 %v3969, %v4484
        %v4591 = vadd.f32 %v3974, %v4489
        %v4592 = vadd.f32 %v3977, %v4492
        %v4593 = vadd.f32 %v3982, %v4497
        %v4594 = vadd.f32 %v3985, %v4500
        %v4595 = vadd.f32 %v3990, %v4505
        %v4596 = vadd.f32 %v3993, %v4508
        %v4597 = vadd.f32 %v3998, %v4513
        %v4598 = vadd.f32 %v4001, %v4516
        %v4599 = vadd.f32 %v4006, %v4521
        %v4600 = vadd.f32 %v4009, %v4524
        %v4601 = vadd.f32 %v4014, %v4529
        %v4602 = vadd.f32 %v4017, %v4532
        %v4603 = vadd.f32 %v4022, %v4537
        %v4604 = vadd.f32 %v4025, %v4540
        %v4605 = vadd.f32 %v4030, %v4545
        %v4606 = vadd.f32 %v4033, %v4548
        %v4607 = vadd.f32 %v4038, %v4553
        %v4608 = vadd.f32 %v4041, %v4556
        %v4609 = vadd.f32 %v4046, %v4561
        %v4610 = vadd.f32 %v4049, %v4564
        %v4611 = vadd.f32 %v4054, %v4569
        %v4612 = vadd.f32 %v4057, %v4572
        %v4613 = vadd.f32 %v4062, %v4577
        %v4614 = vadd.f32 %v4065, %v4580
        %v4615 = vld [vmem:[%s5] sm:$0x1]
        %v4617 = vlaneseq
        %v4618 = vshrl.u32 %v4617, 7
        %v4619 = vsub.s32 0, %v4618
        %v4620 = vrot.slane %v4615, %v4619
        %v4622 = vmul.f32 %v4583, %v4620
        %v4623 = vmul.f32 %v4584, %v4620
        %v4624 = vmul.f32 %v4585, %v4620
        %v4625 = vmul.f32 %v4586, %v4620
        %v4626 = vmul.f32 %v4587, %v4620
        %v4627 = vmul.f32 %v4588, %v4620
        %v4628 = vmul.f32 %v4589, %v4620
        %v4629 = vmul.f32 %v4590, %v4620
        %v4630 = vmul.f32 %v4591, %v4620
        %v4631 = vmul.f32 %v4592, %v4620
        %v4632 = vmul.f32 %v4593, %v4620
        %v4633 = vmul.f32 %v4594, %v4620
        %v4634 = vmul.f32 %v4595, %v4620
        %v4635 = vmul.f32 %v4596, %v4620
        %v4636 = vmul.f32 %v4597, %v4620
        %v4637 = vmul.f32 %v4598, %v4620
        %v4638 = vmul.f32 %v4599, %v4620
        %v4639 = vmul.f32 %v4600, %v4620
        %v4640 = vmul.f32 %v4601, %v4620
        %v4641 = vmul.f32 %v4602, %v4620
        %v4642 = vmul.f32 %v4603, %v4620
        %v4643 = vmul.f32 %v4604, %v4620
        %v4644 = vmul.f32 %v4605, %v4620
        %v4645 = vmul.f32 %v4606, %v4620
        %v4646 = vmul.f32 %v4607, %v4620
        %v4647 = vmul.f32 %v4608, %v4620
        %v4648 = vmul.f32 %v4609, %v4620
        %v4649 = vmul.f32 %v4610, %v4620
        %v4650 = vmul.f32 %v4611, %v4620
        %v4651 = vmul.f32 %v4612, %v4620
        %v4652 = vmul.f32 %v4613, %v4620
        %v4653 = vmul.f32 %v4614, %v4620
        %v4654 = vld [vmem:[%s6] sm:$0x1]
        %v4656 = vlaneseq
        %v4657 = vshrl.u32 %v4656, 7
        %v4658 = vsub.s32 0, %v4657
        %v4659 = vrot.slane %v4654, %v4658
        %v4661 = vadd.f32 %v4622, %v4659
        %v4662 = vadd.f32 %v4623, %v4659
        %v4663 = vadd.f32 %v4624, %v4659
        %v4664 = vadd.f32 %v4625, %v4659
        %v4665 = vadd.f32 %v4626, %v4659
        %v4666 = vadd.f32 %v4627, %v4659
        %v4667 = vadd.f32 %v4628, %v4659
        %v4668 = vadd.f32 %v4629, %v4659
        %v4669 = vadd.f32 %v4630, %v4659
        %v4670 = vadd.f32 %v4631, %v4659
        %v4671 = vadd.f32 %v4632, %v4659
        %v4672 = vadd.f32 %v4633, %v4659
        %v4673 = vadd.f32 %v4634, %v4659
        %v4674 = vadd.f32 %v4635, %v4659
        %v4675 = vadd.f32 %v4636, %v4659
        %v4676 = vadd.f32 %v4637, %v4659
        %v4677 = vadd.f32 %v4638, %v4659
        %v4678 = vadd.f32 %v4639, %v4659
        %v4679 = vadd.f32 %v4640, %v4659
        %v4680 = vadd.f32 %v4641, %v4659
        %v4681 = vadd.f32 %v4642, %v4659
        %v4682 = vadd.f32 %v4643, %v4659
        %v4683 = vadd.f32 %v4644, %v4659
        %v4684 = vadd.f32 %v4645, %v4659
        %v4685 = vadd.f32 %v4646, %v4659
        %v4686 = vadd.f32 %v4647, %v4659
        %v4687 = vadd.f32 %v4648, %v4659
        %v4688 = vadd.f32 %v4649, %v4659
        %v4689 = vadd.f32 %v4650, %v4659
        %v4690 = vadd.f32 %v4651, %v4659
        %v4691 = vadd.f32 %v4652, %v4659
        %v4692 = vadd.f32 %v4653, %v4659
        %v4693 = vunpack.c.l.bf16 %v339
        %v4694 = vunpack.c.l.bf16 %v340
        %v4695 = vunpack.c.l.bf16 %v341
        %v4696 = vunpack.c.l.bf16 %v342
        %v4697 = vunpack.c.l.bf16 %v343
        %v4698 = vunpack.c.l.bf16 %v344
        %v4699 = vunpack.c.l.bf16 %v345
        %v4700 = vunpack.c.l.bf16 %v346
        %v4701 = vunpack.c.l.bf16 %v347
        %v4702 = vunpack.c.l.bf16 %v348
        %v4703 = vunpack.c.l.bf16 %v349
        %v4704 = vunpack.c.l.bf16 %v350
        %v4705 = vunpack.c.l.bf16 %v351
        %v4706 = vunpack.c.l.bf16 %v352
        %v4707 = vunpack.c.l.bf16 %v353
        %v4708 = vunpack.c.l.bf16 %v354
        %v4709 = vunpack.c.l.bf16 %v355
        %v4710 = vunpack.c.l.bf16 %v356
        %v4711 = vunpack.c.l.bf16 %v357
        %v4712 = vunpack.c.l.bf16 %v358
        %v4713 = vunpack.c.l.bf16 %v359
        %v4714 = vunpack.c.l.bf16 %v360
        %v4715 = vunpack.c.l.bf16 %v361
        %v4716 = vunpack.c.l.bf16 %v362
        %v4717 = vunpack.c.l.bf16 %v363
        %v4718 = vunpack.c.l.bf16 %v364
        %v4719 = vunpack.c.l.bf16 %v365
        %v4720 = vunpack.c.l.bf16 %v366
        %v4721 = vunpack.c.l.bf16 %v367
        %v4722 = vunpack.c.l.bf16 %v368
        %v4723 = vunpack.c.l.bf16 %v369
        %v4724 = vunpack.c.l.bf16 %v370
        %v4725 = vadd.f32 %v4661, %v4693
        %v4726 = vadd.f32 %v4662, %v4694
        %v4727 = vadd.f32 %v4663, %v4695
        %v4728 = vadd.f32 %v4664, %v4696
        %v4729 = vadd.f32 %v4665, %v4697
        %v4730 = vadd.f32 %v4666, %v4698
        %v4731 = vadd.f32 %v4667, %v4699
        %v4732 = vadd.f32 %v4668, %v4700
        %v4733 = vadd.f32 %v4669, %v4701
        %v4734 = vadd.f32 %v4670, %v4702
        %v4735 = vadd.f32 %v4671, %v4703
        %v4736 = vadd.f32 %v4672, %v4704
        %v4737 = vadd.f32 %v4673, %v4705
        %v4738 = vadd.f32 %v4674, %v4706
        %v4739 = vadd.f32 %v4675, %v4707
        %v4740 = vadd.f32 %v4676, %v4708
        %v4741 = vadd.f32 %v4677, %v4709
        %v4742 = vadd.f32 %v4678, %v4710
        %v4743 = vadd.f32 %v4679, %v4711
        %v4744 = vadd.f32 %v4680, %v4712
        %v4745 = vadd.f32 %v4681, %v4713
        %v4746 = vadd.f32 %v4682, %v4714
        %v4747 = vadd.f32 %v4683, %v4715
        %v4748 = vadd.f32 %v4684, %v4716
        %v4749 = vadd.f32 %v4685, %v4717
        %v4750 = vadd.f32 %v4686, %v4718
        %v4751 = vadd.f32 %v4687, %v4719
        %v4752 = vadd.f32 %v4688, %v4720
        %v4753 = vadd.f32 %v4689, %v4721
        %v4754 = vadd.f32 %v4690, %v4722
        %v4755 = vadd.f32 %v4691, %v4723
        %v4756 = vadd.f32 %v4692, %v4724
        %v4757 = vmax.f32 %v4725, 0.0
        %v4758 = vmax.f32 %v4726, 0.0
        %v4759 = vmax.f32 %v4727, 0.0
        %v4760 = vmax.f32 %v4728, 0.0
        %v4761 = vmax.f32 %v4729, 0.0
        %v4762 = vmax.f32 %v4730, 0.0
        %v4763 = vmax.f32 %v4731, 0.0
        %v4764 = vmax.f32 %v4732, 0.0
        %v4765 = vmax.f32 %v4733, 0.0
        %v4766 = vmax.f32 %v4734, 0.0
        %v4767 = vmax.f32 %v4735, 0.0
        %v4768 = vmax.f32 %v4736, 0.0
        %v4769 = vmax.f32 %v4737, 0.0
        %v4770 = vmax.f32 %v4738, 0.0
        %v4771 = vmax.f32 %v4739, 0.0
        %v4772 = vmax.f32 %v4740, 0.0
        %v4773 = vmax.f32 %v4741, 0.0
        %v4774 = vmax.f32 %v4742, 0.0
        %v4775 = vmax.f32 %v4743, 0.0
        %v4776 = vmax.f32 %v4744, 0.0
        %v4777 = vmax.f32 %v4745, 0.0
        %v4778 = vmax.f32 %v4746, 0.0
        %v4779 = vmax.f32 %v4747, 0.0
        %v4780 = vmax.f32 %v4748, 0.0
        %v4781 = vmax.f32 %v4749, 0.0
        %v4782 = vmax.f32 %v4750, 0.0
        %v4783 = vmax.f32 %v4751, 0.0
        %v4784 = vmax.f32 %v4752, 0.0
        %v4785 = vmax.f32 %v4753, 0.0
        %v4786 = vmax.f32 %v4754, 0.0
        %v4787 = vmax.f32 %v4755, 0.0
        %v4788 = vmax.f32 %v4756, 0.0
        %v4789 = vpack.c.bf16 %v4758, %v4757
        %v4790 = vpack.c.bf16 %v4760, %v4759
        %v4791 = vpack.c.bf16 %v4762, %v4761
        %v4792 = vpack.c.bf16 %v4764, %v4763
        %v4793 = vpack.c.bf16 %v4766, %v4765
        %v4794 = vpack.c.bf16 %v4768, %v4767
        %v4795 = vpack.c.bf16 %v4770, %v4769
        %v4796 = vpack.c.bf16 %v4772, %v4771
        %v4797 = vpack.c.bf16 %v4774, %v4773
        %v4798 = vpack.c.bf16 %v4776, %v4775
        %v4799 = vpack.c.bf16 %v4778, %v4777
        %v4800 = vpack.c.bf16 %v4780, %v4779
        %v4801 = vpack.c.bf16 %v4782, %v4781
        %v4802 = vpack.c.bf16 %v4784, %v4783
        %v4803 = vpack.c.bf16 %v4786, %v4785
        %v4804 = vpack.c.bf16 %v4788, %v4787
        %v4821 = vunpack.c.l.b16 %v4789
        %v4822 = vunpack.c.h.b16 %v4789
        %v4823 = vunpack.c.l.b16 %v4790
        %v4824 = vunpack.c.h.b16 %v4790
        %v4825 = vunpack.c.l.b16 %v4791
        %v4826 = vunpack.c.h.b16 %v4791
        %v4827 = vunpack.c.l.b16 %v4792
        %v4828 = vunpack.c.h.b16 %v4792
        %v4829 = vunpack.c.l.b16 %v4793
        %v4830 = vunpack.c.h.b16 %v4793
        %v4831 = vunpack.c.l.b16 %v4794
        %v4832 = vunpack.c.h.b16 %v4794
        %v4833 = vunpack.c.l.b16 %v4795
        %v4834 = vunpack.c.h.b16 %v4795
        %v4835 = vunpack.c.l.b16 %v4796
        %v4836 = vunpack.c.h.b16 %v4796
        %v4837 = vunpack.c.l.b16 %v4797
        %v4838 = vunpack.c.h.b16 %v4797
        %v4839 = vunpack.c.l.b16 %v4798
        %v4840 = vunpack.c.h.b16 %v4798
        %v4841 = vunpack.c.l.b16 %v4799
        %v4842 = vunpack.c.h.b16 %v4799
        %v4843 = vunpack.c.l.b16 %v4800
        %v4844 = vunpack.c.h.b16 %v4800
        %v4845 = vunpack.c.l.b16 %v4801
        %v4846 = vunpack.c.h.b16 %v4801
        %v4847 = vunpack.c.l.b16 %v4802
        %v4848 = vunpack.c.h.b16 %v4802
        %v4849 = vunpack.c.l.b16 %v4803
        %v4850 = vunpack.c.h.b16 %v4803
        %v4851 = vunpack.c.l.b16 %v4804
        %v4852 = vunpack.c.h.b16 %v4804
        %v4853 = vpack.c.b16 %v4821, %v4821
        %v4854 = vpack.c.b16 %v4822, %v4822
        %v4855 = vpack.c.b16 %v4823, %v4823
        %v4856 = vpack.c.b16 %v4824, %v4824
        %v4857 = vpack.c.b16 %v4825, %v4825
        %v4858 = vpack.c.b16 %v4826, %v4826
        %v4859 = vpack.c.b16 %v4827, %v4827
        %v4860 = vpack.c.b16 %v4828, %v4828
        %v4861 = vpack.c.b16 %v4829, %v4829
        %v4862 = vpack.c.b16 %v4830, %v4830
        %v4863 = vpack.c.b16 %v4831, %v4831
        %v4864 = vpack.c.b16 %v4832, %v4832
        %v4865 = vpack.c.b16 %v4833, %v4833
        %v4866 = vpack.c.b16 %v4834, %v4834
        %v4867 = vpack.c.b16 %v4835, %v4835
        %v4868 = vpack.c.b16 %v4836, %v4836
        %v4869 = vpack.c.b16 %v4837, %v4837
        %v4870 = vpack.c.b16 %v4838, %v4838
        %v4871 = vpack.c.b16 %v4839, %v4839
        %v4872 = vpack.c.b16 %v4840, %v4840
        %v4873 = vpack.c.b16 %v4841, %v4841
        %v4874 = vpack.c.b16 %v4842, %v4842
        %v4875 = vpack.c.b16 %v4843, %v4843
        %v4876 = vpack.c.b16 %v4844, %v4844
        %v4877 = vpack.c.b16 %v4845, %v4845
        %v4878 = vpack.c.b16 %v4846, %v4846
        %v4879 = vpack.c.b16 %v4847, %v4847
        %v4880 = vpack.c.b16 %v4848, %v4848
        %v4881 = vpack.c.b16 %v4849, %v4849
        %v4882 = vpack.c.b16 %v4850, %v4850
        %v4883 = vpack.c.b16 %v4851, %v4851
        %v4884 = vpack.c.b16 %v4852, %v4852
        %4917 = vst [vmem:[%s326] sm:$0xf] %v4853
        %4918 = vst [vmem:[%s326 + $0x4] sm:$0xf] %v4854
        %4919 = vst [vmem:[%s326 + $0x8] sm:$0xf] %v4855
        %4920 = vst [vmem:[%s326 + $0xc] sm:$0xf] %v4856
        %4921 = vst [vmem:[%s326 + $0x10] sm:$0xf] %v4857
        %4922 = vst [vmem:[%s326 + $0x14] sm:$0xf] %v4858
        %4923 = vst [vmem:[%s326 + $0x18] sm:$0xf] %v4859
        %4924 = vst [vmem:[%s326 + $0x1c] sm:$0xf] %v4860
        %4925 = vst [vmem:[%s326 + $0x20] sm:$0xf] %v4861
        %4926 = vst [vmem:[%s326 + $0x24] sm:$0xf] %v4862
        %4927 = vst [vmem:[%s326 + $0x28] sm:$0xf] %v4863
        %4928 = vst [vmem:[%s326 + $0x2c] sm:$0xf] %v4864
        %4929 = vst [vmem:[%s326 + $0x30] sm:$0xf] %v4865
        %4930 = vst [vmem:[%s326 + $0x34] sm:$0xf] %v4866
        %4931 = vst [vmem:[%s326 + $0x38] sm:$0xf] %v4867
        %4932 = vst [vmem:[%s326 + $0x3c] sm:$0xf] %v4868
        %4933 = vst [vmem:[%s326 + $0x40] sm:$0xf] %v4869
        %4934 = vst [vmem:[%s326 + $0x44] sm:$0xf] %v4870
        %4935 = vst [vmem:[%s326 + $0x48] sm:$0xf] %v4871
        %4936 = vst [vmem:[%s326 + $0x4c] sm:$0xf] %v4872
        %4937 = vst [vmem:[%s326 + $0x50] sm:$0xf] %v4873
        %4938 = vst [vmem:[%s326 + $0x54] sm:$0xf] %v4874
        %4939 = vst [vmem:[%s326 + $0x58] sm:$0xf] %v4875
        %4940 = vst [vmem:[%s326 + $0x5c] sm:$0xf] %v4876
        %4941 = vst [vmem:[%s326 + $0x60] sm:$0xf] %v4877
        %4942 = vst [vmem:[%s326 + $0x64] sm:$0xf] %v4878
        %4943 = vst [vmem:[%s326 + $0x68] sm:$0xf] %v4879
        %4944 = vst [vmem:[%s326 + $0x6c] sm:$0xf] %v4880
        %4945 = vst [vmem:[%s326 + $0x70] sm:$0xf] %v4881
        %4946 = vst [vmem:[%s326 + $0x74] sm:$0xf] %v4882
        %4947 = vst [vmem:[%s326 + $0x78] sm:$0xf] %v4883
        %4948 = vst [vmem:[%s326 + $0x7c] sm:$0xf] %v4884
        %s4949 = scalar_lea.vmem %s288, 128 [#allocation2]
        %v4950 = vld [vmem:[%s4949] sm:$0xf]
        %v4951 = vld [vmem:[%s4949 + $0x4] sm:$0xf]
        %v4952 = vld [vmem:[%s4949 + $0x8] sm:$0xf]
        %v4953 = vld [vmem:[%s4949 + $0xc] sm:$0xf]
        %v4954 = vld [vmem:[%s4949 + $0x10] sm:$0xf]
        %v4955 = vld [vmem:[%s4949 + $0x14] sm:$0xf]
        %v4956 = vld [vmem:[%s4949 + $0x18] sm:$0xf]
        %v4957 = vld [vmem:[%s4949 + $0x1c] sm:$0xf]
        %v4958 = vld [vmem:[%s4949 + $0x20] sm:$0xf]
        %v4959 = vld [vmem:[%s4949 + $0x24] sm:$0xf]
        %v4960 = vld [vmem:[%s4949 + $0x28] sm:$0xf]
        %v4961 = vld [vmem:[%s4949 + $0x2c] sm:$0xf]
        %v4962 = vld [vmem:[%s4949 + $0x30] sm:$0xf]
        %v4963 = vld [vmem:[%s4949 + $0x34] sm:$0xf]
        %v4964 = vld [vmem:[%s4949 + $0x38] sm:$0xf]
        %v4965 = vld [vmem:[%s4949 + $0x3c] sm:$0xf]
        %v4966 = vld [vmem:[%s4949 + $0x40] sm:$0xf]
        %v4967 = vld [vmem:[%s4949 + $0x44] sm:$0xf]
        %v4968 = vld [vmem:[%s4949 + $0x48] sm:$0xf]
        %v4969 = vld [vmem:[%s4949 + $0x4c] sm:$0xf]
        %v4970 = vld [vmem:[%s4949 + $0x50] sm:$0xf]
        %v4971 = vld [vmem:[%s4949 + $0x54] sm:$0xf]
        %v4972 = vld [vmem:[%s4949 + $0x58] sm:$0xf]
        %v4973 = vld [vmem:[%s4949 + $0x5c] sm:$0xf]
        %v4974 = vld [vmem:[%s4949 + $0x60] sm:$0xf]
        %v4975 = vld [vmem:[%s4949 + $0x64] sm:$0xf]
        %v4976 = vld [vmem:[%s4949 + $0x68] sm:$0xf]
        %v4977 = vld [vmem:[%s4949 + $0x6c] sm:$0xf]
        %v4978 = vld [vmem:[%s4949 + $0x70] sm:$0xf]
        %v4979 = vld [vmem:[%s4949 + $0x74] sm:$0xf]
        %v4980 = vld [vmem:[%s4949 + $0x78] sm:$0xf]
        %v4981 = vld [vmem:[%s4949 + $0x7c] sm:$0xf]
        %v4982 = vsel %vm375, %v4950, 0
        %v4983 = vsel %vm376, %v4951, 0
        %v4984 = vsel %vm375, %v4952, 0
        %v4985 = vsel %vm376, %v4953, 0
        %v4986 = vsel %vm375, %v4954, 0
        %v4987 = vsel %vm376, %v4955, 0
        %v4988 = vsel %vm375, %v4956, 0
        %v4989 = vsel %vm376, %v4957, 0
        %v4990 = vsel %vm375, %v4958, 0
        %v4991 = vsel %vm376, %v4959, 0
        %v4992 = vsel %vm375, %v4960, 0
        %v4993 = vsel %vm376, %v4961, 0
        %v4994 = vsel %vm375, %v4962, 0
        %v4995 = vsel %vm376, %v4963, 0
        %v4996 = vsel %vm375, %v4964, 0
        %v4997 = vsel %vm376, %v4965, 0
        %v4998 = vsel %vm375, %v4966, 0
        %v4999 = vsel %vm376, %v4967, 0
        %v5000 = vsel %vm375, %v4968, 0
        %v5001 = vsel %vm376, %v4969, 0
        %v5002 = vsel %vm375, %v4970, 0
        %v5003 = vsel %vm376, %v4971, 0
        %v5004 = vsel %vm375, %v4972, 0
        %v5005 = vsel %vm376, %v4973, 0
        %v5006 = vsel %vm375, %v4974, 0
        %v5007 = vsel %vm376, %v4975, 0
        %v5008 = vsel %vm375, %v4976, 0
        %v5009 = vsel %vm376, %v4977, 0
        %v5010 = vsel %vm375, %v4978, 0
        %v5011 = vsel %vm376, %v4979, 0
        %v5012 = vsel %vm375, %v4980, 0
        %v5013 = vsel %vm376, %v4981, 0
        %v5014 = vsel %vm413, %v4950, 0
        %v5015 = vsel %vm414, %v4951, 0
        %v5016 = vsel %vm413, %v4952, 0
        %v5017 = vsel %vm414, %v4953, 0
        %v5018 = vsel %vm413, %v4954, 0
        %v5019 = vsel %vm414, %v4955, 0
        %v5020 = vsel %vm413, %v4956, 0
        %v5021 = vsel %vm414, %v4957, 0
        %v5022 = vsel %vm413, %v4958, 0
        %v5023 = vsel %vm414, %v4959, 0
        %v5024 = vsel %vm413, %v4960, 0
        %v5025 = vsel %vm414, %v4961, 0
        %v5026 = vsel %vm413, %v4962, 0
        %v5027 = vsel %vm414, %v4963, 0
        %v5028 = vsel %vm413, %v4964, 0
        %v5029 = vsel %vm414, %v4965, 0
        %v5030 = vsel %vm413, %v4966, 0
        %v5031 = vsel %vm414, %v4967, 0
        %v5032 = vsel %vm413, %v4968, 0
        %v5033 = vsel %vm414, %v4969, 0
        %v5034 = vsel %vm413, %v4970, 0
        %v5035 = vsel %vm414, %v4971, 0
        %v5036 = vsel %vm413, %v4972, 0
        %v5037 = vsel %vm414, %v4973, 0
        %v5038 = vsel %vm413, %v4974, 0
        %v5039 = vsel %vm414, %v4975, 0
        %v5040 = vsel %vm413, %v4976, 0
        %v5041 = vsel %vm414, %v4977, 0
        %v5042 = vsel %vm413, %v4978, 0
        %v5043 = vsel %vm414, %v4979, 0
        %v5044 = vsel %vm413, %v4980, 0
        %v5045 = vsel %vm414, %v4981, 0
        %v5078 = vunpack.c.l.b16 %v4982
        %v5079 = vunpack.c.l.b16 %v4983
        %v5080 = vunpack.c.l.b16 %v4984
        %v5081 = vunpack.c.l.b16 %v4985
        %v5082 = vunpack.c.l.b16 %v4986
        %v5083 = vunpack.c.l.b16 %v4987
        %v5084 = vunpack.c.l.b16 %v4988
        %v5085 = vunpack.c.l.b16 %v4989
        %v5086 = vunpack.c.l.b16 %v4990
        %v5087 = vunpack.c.l.b16 %v4991
        %v5088 = vunpack.c.l.b16 %v4992
        %v5089 = vunpack.c.l.b16 %v4993
        %v5090 = vunpack.c.l.b16 %v4994
        %v5091 = vunpack.c.l.b16 %v4995
        %v5092 = vunpack.c.l.b16 %v4996
        %v5093 = vunpack.c.l.b16 %v4997
        %v5094 = vunpack.c.l.b16 %v4998
        %v5095 = vunpack.c.l.b16 %v4999
        %v5096 = vunpack.c.l.b16 %v5000
        %v5097 = vunpack.c.l.b16 %v5001
        %v5098 = vunpack.c.l.b16 %v5002
        %v5099 = vunpack.c.l.b16 %v5003
        %v5100 = vunpack.c.l.b16 %v5004
        %v5101 = vunpack.c.l.b16 %v5005
        %v5102 = vunpack.c.l.b16 %v5006
        %v5103 = vunpack.c.l.b16 %v5007
        %v5104 = vunpack.c.l.b16 %v5008
        %v5105 = vunpack.c.l.b16 %v5009
        %v5106 = vunpack.c.l.b16 %v5010
        %v5107 = vunpack.c.l.b16 %v5011
        %v5108 = vunpack.c.l.b16 %v5012
        %v5109 = vunpack.c.l.b16 %v5013
        %v5110 = vpack.c.b16 %v5079, %v5078
        %v5111 = vpack.c.b16 %v5081, %v5080
        %v5112 = vpack.c.b16 %v5083, %v5082
        %v5113 = vpack.c.b16 %v5085, %v5084
        %v5114 = vpack.c.b16 %v5087, %v5086
        %v5115 = vpack.c.b16 %v5089, %v5088
        %v5116 = vpack.c.b16 %v5091, %v5090
        %v5117 = vpack.c.b16 %v5093, %v5092
        %v5118 = vpack.c.b16 %v5095, %v5094
        %v5119 = vpack.c.b16 %v5097, %v5096
        %v5120 = vpack.c.b16 %v5099, %v5098
        %v5121 = vpack.c.b16 %v5101, %v5100
        %v5122 = vpack.c.b16 %v5103, %v5102
        %v5123 = vpack.c.b16 %v5105, %v5104
        %v5124 = vpack.c.b16 %v5107, %v5106
        %v5125 = vpack.c.b16 %v5109, %v5108
        %v5127 = vshrl.u32 %v5110, 16
        %v5129 = vrot.slane %v5127, 7
        %v5130 = vshll.u32 %v5110, 16
        %v5132 = vor.u32 %v5129, %v5130
        %v5134 = vshrl.u32 %v5111, 16
        %v5136 = vrot.slane %v5134, 7
        %v5137 = vshll.u32 %v5111, 16
        %v5139 = vor.u32 %v5136, %v5137
        %v5140 = vsel %vm527, %v5129, %v5139
        %v5142 = vshrl.u32 %v5112, 16
        %v5144 = vrot.slane %v5142, 7
        %v5145 = vshll.u32 %v5112, 16
        %v5147 = vor.u32 %v5144, %v5145
        %v5148 = vsel %vm527, %v5136, %v5147
        %v5150 = vshrl.u32 %v5113, 16
        %v5152 = vrot.slane %v5150, 7
        %v5153 = vshll.u32 %v5113, 16
        %v5155 = vor.u32 %v5152, %v5153
        %v5156 = vsel %vm527, %v5144, %v5155
        %v5158 = vshrl.u32 %v5114, 16
        %v5160 = vrot.slane %v5158, 7
        %v5161 = vshll.u32 %v5114, 16
        %v5163 = vor.u32 %v5160, %v5161
        %v5164 = vsel %vm527, %v5152, %v5163
        %v5166 = vshrl.u32 %v5115, 16
        %v5168 = vrot.slane %v5166, 7
        %v5169 = vshll.u32 %v5115, 16
        %v5171 = vor.u32 %v5168, %v5169
        %v5172 = vsel %vm527, %v5160, %v5171
        %v5174 = vshrl.u32 %v5116, 16
        %v5176 = vrot.slane %v5174, 7
        %v5177 = vshll.u32 %v5116, 16
        %v5179 = vor.u32 %v5176, %v5177
        %v5180 = vsel %vm527, %v5168, %v5179
        %v5182 = vshrl.u32 %v5117, 16
        %v5184 = vrot.slane %v5182, 7
        %v5185 = vshll.u32 %v5117, 16
        %v5187 = vor.u32 %v5184, %v5185
        %v5188 = vsel %vm527, %v5176, %v5187
        %v5190 = vshrl.u32 %v5118, 16
        %v5192 = vrot.slane %v5190, 7
        %v5193 = vshll.u32 %v5118, 16
        %v5195 = vor.u32 %v5192, %v5193
        %v5196 = vsel %vm527, %v5184, %v5195
        %v5198 = vshrl.u32 %v5119, 16
        %v5200 = vrot.slane %v5198, 7
        %v5201 = vshll.u32 %v5119, 16
        %v5203 = vor.u32 %v5200, %v5201
        %v5204 = vsel %vm527, %v5192, %v5203
        %v5206 = vshrl.u32 %v5120, 16
        %v5208 = vrot.slane %v5206, 7
        %v5209 = vshll.u32 %v5120, 16
        %v5211 = vor.u32 %v5208, %v5209
        %v5212 = vsel %vm527, %v5200, %v5211
        %v5214 = vshrl.u32 %v5121, 16
        %v5216 = vrot.slane %v5214, 7
        %v5217 = vshll.u32 %v5121, 16
        %v5219 = vor.u32 %v5216, %v5217
        %v5220 = vsel %vm527, %v5208, %v5219
        %v5222 = vshrl.u32 %v5122, 16
        %v5224 = vrot.slane %v5222, 7
        %v5225 = vshll.u32 %v5122, 16
        %v5227 = vor.u32 %v5224, %v5225
        %v5228 = vsel %vm527, %v5216, %v5227
        %v5230 = vshrl.u32 %v5123, 16
        %v5232 = vrot.slane %v5230, 7
        %v5233 = vshll.u32 %v5123, 16
        %v5235 = vor.u32 %v5232, %v5233
        %v5236 = vsel %vm527, %v5224, %v5235
        %v5238 = vshrl.u32 %v5124, 16
        %v5240 = vrot.slane %v5238, 7
        %v5241 = vshll.u32 %v5124, 16
        %v5243 = vor.u32 %v5240, %v5241
        %v5244 = vsel %vm527, %v5232, %v5243
        %v5246 = vshrl.u32 %v5125, 16
        %v5248 = vrot.slane %v5246, 7
        %v5249 = vshll.u32 %v5125, 16
        %v5251 = vor.u32 %v5248, %v5249
        %v5252 = vsel %vm527, %v5240, %v5251
        %v5270 = vsel %vm673, 0, %v5132
        %v5271 = vsel %vm673, %v5248, 0
        %v5304 = vunpack.c.l.b16 %v4950
        %v5305 = vunpack.c.l.b16 %v4951
        %v5306 = vunpack.c.l.b16 %v4952
        %v5307 = vunpack.c.l.b16 %v4953
        %v5308 = vunpack.c.l.b16 %v4954
        %v5309 = vunpack.c.l.b16 %v4955
        %v5310 = vunpack.c.l.b16 %v4956
        %v5311 = vunpack.c.l.b16 %v4957
        %v5312 = vunpack.c.l.b16 %v4958
        %v5313 = vunpack.c.l.b16 %v4959
        %v5314 = vunpack.c.l.b16 %v4960
        %v5315 = vunpack.c.l.b16 %v4961
        %v5316 = vunpack.c.l.b16 %v4962
        %v5317 = vunpack.c.l.b16 %v4963
        %v5318 = vunpack.c.l.b16 %v4964
        %v5319 = vunpack.c.l.b16 %v4965
        %v5320 = vunpack.c.l.b16 %v4966
        %v5321 = vunpack.c.l.b16 %v4967
        %v5322 = vunpack.c.l.b16 %v4968
        %v5323 = vunpack.c.l.b16 %v4969
        %v5324 = vunpack.c.l.b16 %v4970
        %v5325 = vunpack.c.l.b16 %v4971
        %v5326 = vunpack.c.l.b16 %v4972
        %v5327 = vunpack.c.l.b16 %v4973
        %v5328 = vunpack.c.l.b16 %v4974
        %v5329 = vunpack.c.l.b16 %v4975
        %v5330 = vunpack.c.l.b16 %v4976
        %v5331 = vunpack.c.l.b16 %v4977
        %v5332 = vunpack.c.l.b16 %v4978
        %v5333 = vunpack.c.l.b16 %v4979
        %v5334 = vunpack.c.l.b16 %v4980
        %v5335 = vunpack.c.l.b16 %v4981
        %v5336 = vpack.c.b16 %v5305, %v5304
        %v5337 = vpack.c.b16 %v5307, %v5306
        %v5338 = vpack.c.b16 %v5309, %v5308
        %v5339 = vpack.c.b16 %v5311, %v5310
        %v5340 = vpack.c.b16 %v5313, %v5312
        %v5341 = vpack.c.b16 %v5315, %v5314
        %v5342 = vpack.c.b16 %v5317, %v5316
        %v5343 = vpack.c.b16 %v5319, %v5318
        %v5344 = vpack.c.b16 %v5321, %v5320
        %v5345 = vpack.c.b16 %v5323, %v5322
        %v5346 = vpack.c.b16 %v5325, %v5324
        %v5347 = vpack.c.b16 %v5327, %v5326
        %v5348 = vpack.c.b16 %v5329, %v5328
        %v5349 = vpack.c.b16 %v5331, %v5330
        %v5350 = vpack.c.b16 %v5333, %v5332
        %v5351 = vpack.c.b16 %v5335, %v5334
        %v5400 = vunpack.c.l.b16 %v5014
        %v5401 = vunpack.c.l.b16 %v5015
        %v5402 = vunpack.c.l.b16 %v5016
        %v5403 = vunpack.c.l.b16 %v5017
        %v5404 = vunpack.c.l.b16 %v5018
        %v5405 = vunpack.c.l.b16 %v5019
        %v5406 = vunpack.c.l.b16 %v5020
        %v5407 = vunpack.c.l.b16 %v5021
        %v5408 = vunpack.c.l.b16 %v5022
        %v5409 = vunpack.c.l.b16 %v5023
        %v5410 = vunpack.c.l.b16 %v5024
        %v5411 = vunpack.c.l.b16 %v5025
        %v5412 = vunpack.c.l.b16 %v5026
        %v5413 = vunpack.c.l.b16 %v5027
        %v5414 = vunpack.c.l.b16 %v5028
        %v5415 = vunpack.c.l.b16 %v5029
        %v5416 = vunpack.c.l.b16 %v5030
        %v5417 = vunpack.c.l.b16 %v5031
        %v5418 = vunpack.c.l.b16 %v5032
        %v5419 = vunpack.c.l.b16 %v5033
        %v5420 = vunpack.c.l.b16 %v5034
        %v5421 = vunpack.c.l.b16 %v5035
        %v5422 = vunpack.c.l.b16 %v5036
        %v5423 = vunpack.c.l.b16 %v5037
        %v5424 = vunpack.c.l.b16 %v5038
        %v5425 = vunpack.c.l.b16 %v5039
        %v5426 = vunpack.c.l.b16 %v5040
        %v5427 = vunpack.c.l.b16 %v5041
        %v5428 = vunpack.c.l.b16 %v5042
        %v5429 = vunpack.c.l.b16 %v5043
        %v5430 = vunpack.c.l.b16 %v5044
        %v5431 = vunpack.c.l.b16 %v5045
        %v5432 = vpack.c.b16 %v5401, %v5400
        %v5433 = vpack.c.b16 %v5403, %v5402
        %v5434 = vpack.c.b16 %v5405, %v5404
        %v5435 = vpack.c.b16 %v5407, %v5406
        %v5436 = vpack.c.b16 %v5409, %v5408
        %v5437 = vpack.c.b16 %v5411, %v5410
        %v5438 = vpack.c.b16 %v5413, %v5412
        %v5439 = vpack.c.b16 %v5415, %v5414
        %v5440 = vpack.c.b16 %v5417, %v5416
        %v5441 = vpack.c.b16 %v5419, %v5418
        %v5442 = vpack.c.b16 %v5421, %v5420
        %v5443 = vpack.c.b16 %v5423, %v5422
        %v5444 = vpack.c.b16 %v5425, %v5424
        %v5445 = vpack.c.b16 %v5427, %v5426
        %v5446 = vpack.c.b16 %v5429, %v5428
        %v5447 = vpack.c.b16 %v5431, %v5430
        %v5449 = vshll.u32 %v5432, 16
        %v5451 = vrot.slane %v5449, 1
        %v5452 = vshrl.u32 %v5432, 16
        %v5454 = vor.u32 %v5452, %v5451
        %v5456 = vshll.u32 %v5433, 16
        %v5458 = vrot.slane %v5456, 1
        %v5459 = vsel %vm852, %v5454, %v5458
        %v5460 = vshrl.u32 %v5433, 16
        %v5462 = vor.u32 %v5460, %v5458
        %v5464 = vshll.u32 %v5434, 16
        %v5466 = vrot.slane %v5464, 1
        %v5467 = vsel %vm852, %v5462, %v5466
        %v5468 = vshrl.u32 %v5434, 16
        %v5470 = vor.u32 %v5468, %v5466
        %v5472 = vshll.u32 %v5435, 16
        %v5474 = vrot.slane %v5472, 1
        %v5475 = vsel %vm852, %v5470, %v5474
        %v5476 = vshrl.u32 %v5435, 16
        %v5478 = vor.u32 %v5476, %v5474
        %v5480 = vshll.u32 %v5436, 16
        %v5482 = vrot.slane %v5480, 1
        %v5483 = vsel %vm852, %v5478, %v5482
        %v5484 = vshrl.u32 %v5436, 16
        %v5486 = vor.u32 %v5484, %v5482
        %v5488 = vshll.u32 %v5437, 16
        %v5490 = vrot.slane %v5488, 1
        %v5491 = vsel %vm852, %v5486, %v5490
        %v5492 = vshrl.u32 %v5437, 16
        %v5494 = vor.u32 %v5492, %v5490
        %v5496 = vshll.u32 %v5438, 16
        %v5498 = vrot.slane %v5496, 1
        %v5499 = vsel %vm852, %v5494, %v5498
        %v5500 = vshrl.u32 %v5438, 16
        %v5502 = vor.u32 %v5500, %v5498
        %v5504 = vshll.u32 %v5439, 16
        %v5506 = vrot.slane %v5504, 1
        %v5507 = vsel %vm852, %v5502, %v5506
        %v5508 = vshrl.u32 %v5439, 16
        %v5510 = vor.u32 %v5508, %v5506
        %v5512 = vshll.u32 %v5440, 16
        %v5514 = vrot.slane %v5512, 1
        %v5515 = vsel %vm852, %v5510, %v5514
        %v5516 = vshrl.u32 %v5440, 16
        %v5518 = vor.u32 %v5516, %v5514
        %v5520 = vshll.u32 %v5441, 16
        %v5522 = vrot.slane %v5520, 1
        %v5523 = vsel %vm852, %v5518, %v5522
        %v5524 = vshrl.u32 %v5441, 16
        %v5526 = vor.u32 %v5524, %v5522
        %v5528 = vshll.u32 %v5442, 16
        %v5530 = vrot.slane %v5528, 1
        %v5531 = vsel %vm852, %v5526, %v5530
        %v5532 = vshrl.u32 %v5442, 16
        %v5534 = vor.u32 %v5532, %v5530
        %v5536 = vshll.u32 %v5443, 16
        %v5538 = vrot.slane %v5536, 1
        %v5539 = vsel %vm852, %v5534, %v5538
        %v5540 = vshrl.u32 %v5443, 16
        %v5542 = vor.u32 %v5540, %v5538
        %v5544 = vshll.u32 %v5444, 16
        %v5546 = vrot.slane %v5544, 1
        %v5547 = vsel %vm852, %v5542, %v5546
        %v5548 = vshrl.u32 %v5444, 16
        %v5550 = vor.u32 %v5548, %v5546
        %v5552 = vshll.u32 %v5445, 16
        %v5554 = vrot.slane %v5552, 1
        %v5555 = vsel %vm852, %v5550, %v5554
        %v5556 = vshrl.u32 %v5445, 16
        %v5558 = vor.u32 %v5556, %v5554
        %v5560 = vshll.u32 %v5446, 16
        %v5562 = vrot.slane %v5560, 1
        %v5563 = vsel %vm852, %v5558, %v5562
        %v5564 = vshrl.u32 %v5446, 16
        %v5566 = vor.u32 %v5564, %v5562
        %v5568 = vshll.u32 %v5447, 16
        %v5570 = vrot.slane %v5568, 1
        %v5571 = vsel %vm852, %v5566, %v5570
        %v5572 = vshrl.u32 %v5447, 16
        %v5574 = vor.u32 %v5572, %v5570
        %v5592 = vsel %vm998, 0, %v5451
        %v5593 = vsel %vm998, %v5574, 0
        %v5594 = vld [vmem:[#allocation5] sm:$0xf]
        %v5595 = vld [vmem:[#allocation5 + $0x4] sm:$0xf]
        %v5596 = vld [vmem:[#allocation5 + $0x8] sm:$0xf]
        %v5597 = vld [vmem:[#allocation5 + $0xc] sm:$0xf]
        %v5598 = vld [vmem:[#allocation5 + $0x10] sm:$0xf]
        %v5599 = vld [vmem:[#allocation5 + $0x14] sm:$0xf]
        %v5600 = vld [vmem:[#allocation5 + $0x18] sm:$0xf]
        %v5601 = vld [vmem:[#allocation5 + $0x1c] sm:$0xf]
        %v5602 = vld [vmem:[#allocation5 + $0x20] sm:$0xf]
        %v5603 = vld [vmem:[#allocation5 + $0x24] sm:$0xf]
        %v5604 = vld [vmem:[#allocation5 + $0x28] sm:$0xf]
        %v5605 = vld [vmem:[#allocation5 + $0x2c] sm:$0xf]
        %v5606 = vld [vmem:[#allocation5 + $0x30] sm:$0xf]
        %v5607 = vld [vmem:[#allocation5 + $0x34] sm:$0xf]
        %v5608 = vld [vmem:[#allocation5 + $0x38] sm:$0xf]
        %v5609 = vld [vmem:[#allocation5 + $0x3c] sm:$0xf]
        %v5610 = vld [vmem:[#allocation5 + $0x40] sm:$0xf]
        %v5611 = vld [vmem:[#allocation5 + $0x44] sm:$0xf]
        %v5612 = vld [vmem:[#allocation5 + $0x48] sm:$0xf]
        %v5613 = vld [vmem:[#allocation5 + $0x4c] sm:$0xf]
        %v5614 = vld [vmem:[#allocation5 + $0x50] sm:$0xf]
        %v5615 = vld [vmem:[#allocation5 + $0x54] sm:$0xf]
        %v5616 = vld [vmem:[#allocation5 + $0x58] sm:$0xf]
        %v5617 = vld [vmem:[#allocation5 + $0x5c] sm:$0xf]
        %v5618 = vld [vmem:[#allocation5 + $0x60] sm:$0xf]
        %v5619 = vld [vmem:[#allocation5 + $0x64] sm:$0xf]
        %v5620 = vld [vmem:[#allocation5 + $0x68] sm:$0xf]
        %v5621 = vld [vmem:[#allocation5 + $0x6c] sm:$0xf]
        %v5622 = vld [vmem:[#allocation5 + $0x70] sm:$0xf]
        %v5623 = vld [vmem:[#allocation5 + $0x74] sm:$0xf]
        %v5624 = vld [vmem:[#allocation5 + $0x78] sm:$0xf]
        %v5625 = vld [vmem:[#allocation5 + $0x7c] sm:$0xf]
        %v5626 = vld [vmem:[#allocation5 + $0x80] sm:$0xf]
        %v5627 = vld [vmem:[#allocation5 + $0x84] sm:$0xf]
        %v5628 = vld [vmem:[#allocation5 + $0x88] sm:$0xf]
        %v5629 = vld [vmem:[#allocation5 + $0x8c] sm:$0xf]
        %v5630 = vld [vmem:[#allocation5 + $0x90] sm:$0xf]
        %v5631 = vld [vmem:[#allocation5 + $0x94] sm:$0xf]
        %v5632 = vld [vmem:[#allocation5 + $0x98] sm:$0xf]
        %v5633 = vld [vmem:[#allocation5 + $0x9c] sm:$0xf]
        %v5634 = vld [vmem:[#allocation5 + $0xa0] sm:$0xf]
        %v5635 = vld [vmem:[#allocation5 + $0xa4] sm:$0xf]
        %v5636 = vld [vmem:[#allocation5 + $0xa8] sm:$0xf]
        %v5637 = vld [vmem:[#allocation5 + $0xac] sm:$0xf]
        %v5638 = vld [vmem:[#allocation5 + $0xb0] sm:$0xf]
        %v5639 = vld [vmem:[#allocation5 + $0xb4] sm:$0xf]
        %v5640 = vld [vmem:[#allocation5 + $0xb8] sm:$0xf]
        %v5641 = vld [vmem:[#allocation5 + $0xbc] sm:$0xf]
        %v5642 = vld [vmem:[%s1049] sm:$0xf]
        %v5643 = vld [vmem:[%s1049 + $0x4] sm:$0xf]
        %v5644 = vld [vmem:[%s1049 + $0x8] sm:$0xf]
        %v5645 = vld [vmem:[%s1049 + $0xc] sm:$0xf]
        %v5646 = vld [vmem:[%s1049 + $0x10] sm:$0xf]
        %v5647 = vld [vmem:[%s1049 + $0x14] sm:$0xf]
        %v5648 = vld [vmem:[%s1049 + $0x18] sm:$0xf]
        %v5649 = vld [vmem:[%s1049 + $0x1c] sm:$0xf]
        %v5650 = vld [vmem:[%s1049 + $0x20] sm:$0xf]
        %v5651 = vld [vmem:[%s1049 + $0x24] sm:$0xf]
        %v5652 = vld [vmem:[%s1049 + $0x28] sm:$0xf]
        %v5653 = vld [vmem:[%s1049 + $0x2c] sm:$0xf]
        %v5654 = vld [vmem:[%s1049 + $0x30] sm:$0xf]
        %v5655 = vld [vmem:[%s1049 + $0x34] sm:$0xf]
        %v5656 = vld [vmem:[%s1049 + $0x38] sm:$0xf]
        %v5657 = vld [vmem:[%s1049 + $0x3c] sm:$0xf]
        %v5658 = vld [vmem:[%s1049 + $0x40] sm:$0xf]
        %v5659 = vld [vmem:[%s1049 + $0x44] sm:$0xf]
        %v5660 = vld [vmem:[%s1049 + $0x48] sm:$0xf]
        %v5661 = vld [vmem:[%s1049 + $0x4c] sm:$0xf]
        %v5662 = vld [vmem:[%s1049 + $0x50] sm:$0xf]
        %v5663 = vld [vmem:[%s1049 + $0x54] sm:$0xf]
        %v5664 = vld [vmem:[%s1049 + $0x58] sm:$0xf]
        %v5665 = vld [vmem:[%s1049 + $0x5c] sm:$0xf]
        %v5666 = vld [vmem:[%s1049 + $0x60] sm:$0xf]
        %v5667 = vld [vmem:[%s1049 + $0x64] sm:$0xf]
        %v5668 = vld [vmem:[%s1049 + $0x68] sm:$0xf]
        %v5669 = vld [vmem:[%s1049 + $0x6c] sm:$0xf]
        %v5670 = vld [vmem:[%s1049 + $0x70] sm:$0xf]
        %v5671 = vld [vmem:[%s1049 + $0x74] sm:$0xf]
        %v5672 = vld [vmem:[%s1049 + $0x78] sm:$0xf]
        %v5673 = vld [vmem:[%s1049 + $0x7c] sm:$0xf]
        %v5674 = vld [vmem:[%s1049 + $0x80] sm:$0xf]
        %v5675 = vld [vmem:[%s1049 + $0x84] sm:$0xf]
        %v5676 = vld [vmem:[%s1049 + $0x88] sm:$0xf]
        %v5677 = vld [vmem:[%s1049 + $0x8c] sm:$0xf]
        %v5678 = vld [vmem:[%s1049 + $0x90] sm:$0xf]
        %v5679 = vld [vmem:[%s1049 + $0x94] sm:$0xf]
        %v5680 = vld [vmem:[%s1049 + $0x98] sm:$0xf]
        %v5681 = vld [vmem:[%s1049 + $0x9c] sm:$0xf]
        %v5682 = vld [vmem:[%s1049 + $0xa0] sm:$0xf]
        %v5683 = vld [vmem:[%s1049 + $0xa4] sm:$0xf]
        %v5684 = vld [vmem:[%s1049 + $0xa8] sm:$0xf]
        %v5685 = vld [vmem:[%s1049 + $0xac] sm:$0xf]
        %v5686 = vld [vmem:[%s1049 + $0xb0] sm:$0xf]
        %v5687 = vld [vmem:[%s1049 + $0xb4] sm:$0xf]
        %v5688 = vld [vmem:[%s1049 + $0xb8] sm:$0xf]
        %v5689 = vld [vmem:[%s1049 + $0xbc] sm:$0xf]
        %v5738 = vunpack.c.l.b16 %v5642
        %v5739 = vunpack.c.l.b16 %v5643
        %v5740 = vunpack.c.l.b16 %v5644
        %v5741 = vunpack.c.l.b16 %v5645
        %v5742 = vunpack.c.l.b16 %v5646
        %v5743 = vunpack.c.l.b16 %v5647
        %v5744 = vunpack.c.l.b16 %v5648
        %v5745 = vunpack.c.l.b16 %v5649
        %v5746 = vunpack.c.l.b16 %v5650
        %v5747 = vunpack.c.l.b16 %v5651
        %v5748 = vunpack.c.l.b16 %v5652
        %v5749 = vunpack.c.l.b16 %v5653
        %v5750 = vunpack.c.l.b16 %v5654
        %v5751 = vunpack.c.l.b16 %v5655
        %v5752 = vunpack.c.l.b16 %v5656
        %v5753 = vunpack.c.l.b16 %v5657
        %v5754 = vunpack.c.l.b16 %v5658
        %v5755 = vunpack.c.l.b16 %v5659
        %v5756 = vunpack.c.l.b16 %v5660
        %v5757 = vunpack.c.l.b16 %v5661
        %v5758 = vunpack.c.l.b16 %v5662
        %v5759 = vunpack.c.l.b16 %v5663
        %v5760 = vunpack.c.l.b16 %v5664
        %v5761 = vunpack.c.l.b16 %v5665
        %v5762 = vunpack.c.l.b16 %v5666
        %v5763 = vunpack.c.l.b16 %v5667
        %v5764 = vunpack.c.l.b16 %v5668
        %v5765 = vunpack.c.l.b16 %v5669
        %v5766 = vunpack.c.l.b16 %v5670
        %v5767 = vunpack.c.l.b16 %v5671
        %v5768 = vunpack.c.l.b16 %v5672
        %v5769 = vunpack.c.l.b16 %v5673
        %v5770 = vunpack.c.l.b16 %v5674
        %v5771 = vunpack.c.l.b16 %v5675
        %v5772 = vunpack.c.l.b16 %v5676
        %v5773 = vunpack.c.l.b16 %v5677
        %v5774 = vunpack.c.l.b16 %v5678
        %v5775 = vunpack.c.l.b16 %v5679
        %v5776 = vunpack.c.l.b16 %v5680
        %v5777 = vunpack.c.l.b16 %v5681
        %v5778 = vunpack.c.l.b16 %v5682
        %v5779 = vunpack.c.l.b16 %v5683
        %v5780 = vunpack.c.l.b16 %v5684
        %v5781 = vunpack.c.l.b16 %v5685
        %v5782 = vunpack.c.l.b16 %v5686
        %v5783 = vunpack.c.l.b16 %v5687
        %v5784 = vunpack.c.l.b16 %v5688
        %v5785 = vunpack.c.l.b16 %v5689
        %v5786 = vpack.c.b16 %v5739, %v5738
        %v5787 = vpack.c.b16 %v5741, %v5740
        %v5788 = vpack.c.b16 %v5743, %v5742
        %v5789 = vpack.c.b16 %v5745, %v5744
        %v5790 = vpack.c.b16 %v5747, %v5746
        %v5791 = vpack.c.b16 %v5749, %v5748
        %v5792 = vpack.c.b16 %v5751, %v5750
        %v5793 = vpack.c.b16 %v5753, %v5752
        %v5794 = vpack.c.b16 %v5755, %v5754
        %v5795 = vpack.c.b16 %v5757, %v5756
        %v5796 = vpack.c.b16 %v5759, %v5758
        %v5797 = vpack.c.b16 %v5761, %v5760
        %v5798 = vpack.c.b16 %v5763, %v5762
        %v5799 = vpack.c.b16 %v5765, %v5764
        %v5800 = vpack.c.b16 %v5767, %v5766
        %v5801 = vpack.c.b16 %v5769, %v5768
        %v5802 = vpack.c.b16 %v5771, %v5770
        %v5803 = vpack.c.b16 %v5773, %v5772
        %v5804 = vpack.c.b16 %v5775, %v5774
        %v5805 = vpack.c.b16 %v5777, %v5776
        %v5806 = vpack.c.b16 %v5779, %v5778
        %v5807 = vpack.c.b16 %v5781, %v5780
        %v5808 = vpack.c.b16 %v5783, %v5782
        %v5809 = vpack.c.b16 %v5785, %v5784
        %5834 = vmatprep.subr.bf16.mxu0 0
        %5835 = vmatpush1.bf16.msra.mxu0 %v5786
        %5836 = vmatprep.subr.bf16.mxu0 0
        %5837 = vmatpush1.bf16.msra.mxu0 %v5787
        %5838 = vmatprep.subr.bf16.mxu0 0
        %5839 = vmatpush1.bf16.msra.mxu0 %v5788
        %5840 = vmatprep.subr.bf16.mxu0 0
        %5841 = vmatpush1.bf16.msra.mxu0 %v5789
        %5842 = vmatprep.subr.bf16.mxu0 0
        %5843 = vmatpush1.bf16.msra.mxu0 %v5790
        %5844 = vmatprep.subr.bf16.mxu0 0
        %5845 = vmatpush1.bf16.msra.mxu0 %v5791
        %5846 = vmatprep.subr.bf16.mxu0 0
        %5847 = vmatpush1.bf16.msra.mxu0 %v5792
        %5848 = vmatprep.subr.bf16.mxu0 0
        %5849 = vmatpush1.bf16.msra.mxu0 %v5793
        %5850 = vmatprep.subr.bf16.mxu0 0
        %5851 = vmatpush1.bf16.msra.mxu0 %v5794
        %5852 = vmatprep.subr.bf16.mxu0 0
        %5853 = vmatpush1.bf16.msra.mxu0 %v5795
        %5854 = vmatprep.subr.bf16.mxu0 0
        %5855 = vmatpush1.bf16.msra.mxu0 %v5796
        %5856 = vmatprep.subr.bf16.mxu0 0
        %5857 = vmatpush1.bf16.msra.mxu0 %v5797
        %5858 = vmatprep.subr.bf16.mxu0 0
        %5859 = vmatpush1.bf16.msra.mxu0 %v5798
        %5860 = vmatprep.subr.bf16.mxu0 0
        %5861 = vmatpush1.bf16.msra.mxu0 %v5799
        %5862 = vmatprep.subr.bf16.mxu0 0
        %5863 = vmatpush1.bf16.msra.mxu0 %v5800
        %5864 = vmatprep.subr.bf16.mxu0 0
        %5865 = vmatpush1.bf16.msra.mxu0 %v5801
        %5866 = vmatprep.mubr.bf16.mxu0 %v5336
        %5867 = vmatmul.mubr.bf16.gmra.mrb[0].mxu0 %v5270
        %v5868 = vpop.f32.mrb[0].mxu0
        %v5869 = vadd.f32 0.0, %v5868
        %v5870 = vpop.f32.mrb[0].mxu0
        %v5871 = vpop.f32.mrb[0].mxu0
        %v5872 = vadd.f32 0.0, %v5871
        %v5873 = vpop.f32.mrb[0].mxu0
        %5874 = vmatprep.mubr.bf16.mxu0 %v5337
        %5875 = vmatmul.mubr.bf16.gmra.mrb[0].mxu0 %v5140
        %v5876 = vpop.f32.mrb[0].mxu0
        %v5877 = vadd.f32 0.0, %v5876
        %v5878 = vpop.f32.mrb[0].mxu0
        %v5879 = vpop.f32.mrb[0].mxu0
        %v5880 = vadd.f32 0.0, %v5879
        %v5881 = vpop.f32.mrb[0].mxu0
        %5882 = vmatprep.mubr.bf16.mxu0 %v5338
        %5883 = vmatmul.mubr.bf16.gmra.mrb[0].mxu0 %v5148
        %v5884 = vpop.f32.mrb[0].mxu0
        %v5885 = vadd.f32 0.0, %v5884
        %v5886 = vpop.f32.mrb[0].mxu0
        %v5887 = vpop.f32.mrb[0].mxu0
        %v5888 = vadd.f32 0.0, %v5887
        %v5889 = vpop.f32.mrb[0].mxu0
        %5890 = vmatprep.mubr.bf16.mxu0 %v5339
        %5891 = vmatmul.mubr.bf16.gmra.mrb[0].mxu0 %v5156
        %v5892 = vpop.f32.mrb[0].mxu0
        %v5893 = vadd.f32 0.0, %v5892
        %v5894 = vpop.f32.mrb[0].mxu0
        %v5895 = vpop.f32.mrb[0].mxu0
        %v5896 = vadd.f32 0.0, %v5895
        %v5897 = vpop.f32.mrb[0].mxu0
        %5898 = vmatprep.mubr.bf16.mxu0 %v5340
        %5899 = vmatmul.mubr.bf16.gmra.mrb[0].mxu0 %v5164
        %v5900 = vpop.f32.mrb[0].mxu0
        %v5901 = vadd.f32 0.0, %v5900
        %v5902 = vpop.f32.mrb[0].mxu0
        %v5903 = vpop.f32.mrb[0].mxu0
        %v5904 = vadd.f32 0.0, %v5903
        %v5905 = vpop.f32.mrb[0].mxu0
        %5906 = vmatprep.mubr.bf16.mxu0 %v5341
        %5907 = vmatmul.mubr.bf16.gmra.mrb[0].mxu0 %v5172
        %v5908 = vpop.f32.mrb[0].mxu0
        %v5909 = vadd.f32 0.0, %v5908
        %v5910 = vpop.f32.mrb[0].mxu0
        %v5911 = vpop.f32.mrb[0].mxu0
        %v5912 = vadd.f32 0.0, %v5911
        %v5913 = vpop.f32.mrb[0].mxu0
        %5914 = vmatprep.mubr.bf16.mxu0 %v5342
        %5915 = vmatmul.mubr.bf16.gmra.mrb[0].mxu0 %v5180
        %v5916 = vpop.f32.mrb[0].mxu0
        %v5917 = vadd.f32 0.0, %v5916
        %v5918 = vpop.f32.mrb[0].mxu0
        %v5919 = vpop.f32.mrb[0].mxu0
        %v5920 = vadd.f32 0.0, %v5919
        %v5921 = vpop.f32.mrb[0].mxu0
        %5922 = vmatprep.mubr.bf16.mxu0 %v5343
        %5923 = vmatmul.mubr.bf16.gmra.mrb[0].mxu0 %v5188
        %v5924 = vpop.f32.mrb[0].mxu0
        %v5925 = vadd.f32 0.0, %v5924
        %v5926 = vpop.f32.mrb[0].mxu0
        %v5927 = vpop.f32.mrb[0].mxu0
        %v5928 = vadd.f32 0.0, %v5927
        %v5929 = vpop.f32.mrb[0].mxu0
        %5930 = vmatprep.mubr.bf16.mxu0 %v5344
        %5931 = vmatmul.mubr.bf16.gmra.mrb[0].mxu0 %v5196
        %v5932 = vpop.f32.mrb[0].mxu0
        %v5933 = vadd.f32 0.0, %v5932
        %v5934 = vpop.f32.mrb[0].mxu0
        %v5935 = vpop.f32.mrb[0].mxu0
        %v5936 = vadd.f32 0.0, %v5935
        %v5937 = vpop.f32.mrb[0].mxu0
        %5938 = vmatprep.mubr.bf16.mxu0 %v5345
        %5939 = vmatmul.mubr.bf16.gmra.mrb[0].mxu0 %v5204
        %v5940 = vpop.f32.mrb[0].mxu0
        %v5941 = vadd.f32 0.0, %v5940
        %v5942 = vpop.f32.mrb[0].mxu0
        %v5943 = vpop.f32.mrb[0].mxu0
        %v5944 = vadd.f32 0.0, %v5943
        %v5945 = vpop.f32.mrb[0].mxu0
        %5946 = vmatprep.mubr.bf16.mxu0 %v5346
        %5947 = vmatmul.mubr.bf16.gmra.mrb[0].mxu0 %v5212
        %v5948 = vpop.f32.mrb[0].mxu0
        %v5949 = vadd.f32 0.0, %v5948
        %v5950 = vpop.f32.mrb[0].mxu0
        %v5951 = vpop.f32.mrb[0].mxu0
        %v5952 = vadd.f32 0.0, %v5951
        %v5953 = vpop.f32.mrb[0].mxu0
        %5954 = vmatprep.mubr.bf16.mxu0 %v5347
        %5955 = vmatmul.mubr.bf16.gmra.mrb[0].mxu0 %v5220
        %v5956 = vpop.f32.mrb[0].mxu0
        %v5957 = vadd.f32 0.0, %v5956
        %v5958 = vpop.f32.mrb[0].mxu0
        %v5959 = vpop.f32.mrb[0].mxu0
        %v5960 = vadd.f32 0.0, %v5959
        %v5961 = vpop.f32.mrb[0].mxu0
        %5962 = vmatprep.mubr.bf16.mxu0 %v5348
        %5963 = vmatmul.mubr.bf16.gmra.mrb[0].mxu0 %v5228
        %v5964 = vpop.f32.mrb[0].mxu0
        %v5965 = vadd.f32 0.0, %v5964
        %v5966 = vpop.f32.mrb[0].mxu0
        %v5967 = vpop.f32.mrb[0].mxu0
        %v5968 = vadd.f32 0.0, %v5967
        %v5969 = vpop.f32.mrb[0].mxu0
        %5970 = vmatprep.mubr.bf16.mxu0 %v5349
        %5971 = vmatmul.mubr.bf16.gmra.mrb[0].mxu0 %v5236
        %v5972 = vpop.f32.mrb[0].mxu0
        %v5973 = vadd.f32 0.0, %v5972
        %v5974 = vpop.f32.mrb[0].mxu0
        %v5975 = vpop.f32.mrb[0].mxu0
        %v5976 = vadd.f32 0.0, %v5975
        %v5977 = vpop.f32.mrb[0].mxu0
        %5978 = vmatprep.mubr.bf16.mxu0 %v5350
        %5979 = vmatmul.mubr.bf16.gmra.mrb[0].mxu0 %v5244
        %v5980 = vpop.f32.mrb[0].mxu0
        %v5981 = vadd.f32 0.0, %v5980
        %v5982 = vpop.f32.mrb[0].mxu0
        %v5983 = vpop.f32.mrb[0].mxu0
        %v5984 = vadd.f32 0.0, %v5983
        %v5985 = vpop.f32.mrb[0].mxu0
        %5986 = vmatprep.mubr.bf16.mxu0 %v5351
        %5987 = vmatmul.mubr.bf16.gmra.mrb[0].mxu0 %v5252
        %v5988 = vpop.f32.mrb[0].mxu0
        %v5989 = vadd.f32 0.0, %v5988
        %v5990 = vpop.f32.mrb[0].mxu0
        %v5991 = vpop.f32.mrb[0].mxu0
        %v5992 = vadd.f32 0.0, %v5991
        %v5993 = vpop.f32.mrb[0].mxu0
        %5994 = vdwg.mxu0
        %5995 = vmatprep.subr.bf16.mxu0 0
        %5996 = vmatpush1.bf16.msra.mxu0 %v5802
        %5997 = vmatprep.subr.bf16.mxu0 0
        %5998 = vmatpush1.bf16.msra.mxu0 %v5803
        %5999 = vmatprep.subr.bf16.mxu0 0
        %6000 = vmatpush1.bf16.msra.mxu0 %v5804
        %6001 = vmatprep.subr.bf16.mxu0 0
        %6002 = vmatpush1.bf16.msra.mxu0 %v5805
        %6003 = vmatprep.subr.bf16.mxu0 0
        %6004 = vmatpush1.bf16.msra.mxu0 %v5806
        %6005 = vmatprep.subr.bf16.mxu0 0
        %6006 = vmatpush1.bf16.msra.mxu0 %v5807
        %6007 = vmatprep.subr.bf16.mxu0 0
        %6008 = vmatpush1.bf16.msra.mxu0 %v5808
        %6009 = vmatprep.subr.bf16.mxu0 0
        %6010 = vmatpush1.bf16.msra.mxu0 %v5809
        %6011 = vmatprep.subr.bf16.mxu0 0
        %6012 = vmatpush1.bf16.msra.mxu0 0
        %6013 = vmatprep.subr.bf16.mxu0 0
        %6014 = vmatpush1.bf16.msra.mxu0 0
        %6015 = vmatprep.subr.bf16.mxu0 0
        %6016 = vmatpush1.bf16.msra.mxu0 0
        %6017 = vmatprep.subr.bf16.mxu0 0
        %6018 = vmatpush1.bf16.msra.mxu0 0
        %6019 = vmatprep.subr.bf16.mxu0 0
        %6020 = vmatpush1.bf16.msra.mxu0 0
        %6021 = vmatprep.subr.bf16.mxu0 0
        %6022 = vmatpush1.bf16.msra.mxu0 0
        %6023 = vmatprep.subr.bf16.mxu0 0
        %6024 = vmatpush1.bf16.msra.mxu0 0
        %6025 = vmatprep.subr.bf16.mxu0 0
        %6026 = vmatpush1.bf16.msra.mxu0 0
        %6027 = vmatprep.mubr.bf16.mxu0 0
        %6028 = vmatmul.mubr.bf16.gmra.mrb[0].mxu0 %v5459
        %v6029 = vpop.f32.mrb[0].mxu0
        %v6030 = vadd.f32 %v5869, %v6029
        %v6031 = vpop.f32.mrb[0].mxu0
        %v6032 = vpop.f32.mrb[0].mxu0
        %v6033 = vadd.f32 %v5872, %v6032
        %v6034 = vpop.f32.mrb[0].mxu0
        %6035 = vmatprep.mubr.bf16.mxu0 0
        %6036 = vmatmul.mubr.bf16.gmra.mrb[0].mxu0 %v5467
        %v6037 = vpop.f32.mrb[0].mxu0
        %v6038 = vadd.f32 %v5877, %v6037
        %v6039 = vpop.f32.mrb[0].mxu0
        %v6040 = vpop.f32.mrb[0].mxu0
        %v6041 = vadd.f32 %v5880, %v6040
        %v6042 = vpop.f32.mrb[0].mxu0
        %6043 = vmatprep.mubr.bf16.mxu0 0
        %6044 = vmatmul.mubr.bf16.gmra.mrb[0].mxu0 %v5475
        %v6045 = vpop.f32.mrb[0].mxu0
        %v6046 = vadd.f32 %v5885, %v6045
        %v6047 = vpop.f32.mrb[0].mxu0
        %v6048 = vpop.f32.mrb[0].mxu0
        %v6049 = vadd.f32 %v5888, %v6048
        %v6050 = vpop.f32.mrb[0].mxu0
        %6051 = vmatprep.mubr.bf16.mxu0 0
        %6052 = vmatmul.mubr.bf16.gmra.mrb[0].mxu0 %v5483
        %v6053 = vpop.f32.mrb[0].mxu0
        %v6054 = vadd.f32 %v5893, %v6053
        %v6055 = vpop.f32.mrb[0].mxu0
        %v6056 = vpop.f32.mrb[0].mxu0
        %v6057 = vadd.f32 %v5896, %v6056
        %v6058 = vpop.f32.mrb[0].mxu0
        %6059 = vmatprep.mubr.bf16.mxu0 0
        %6060 = vmatmul.mubr.bf16.gmra.mrb[0].mxu0 %v5491
        %v6061 = vpop.f32.mrb[0].mxu0
        %v6062 = vadd.f32 %v5901, %v6061
        %v6063 = vpop.f32.mrb[0].mxu0
        %v6064 = vpop.f32.mrb[0].mxu0
        %v6065 = vadd.f32 %v5904, %v6064
        %v6066 = vpop.f32.mrb[0].mxu0
        %6067 = vmatprep.mubr.bf16.mxu0 0
        %6068 = vmatmul.mubr.bf16.gmra.mrb[0].mxu0 %v5499
        %v6069 = vpop.f32.mrb[0].mxu0
        %v6070 = vadd.f32 %v5909, %v6069
        %v6071 = vpop.f32.mrb[0].mxu0
        %v6072 = vpop.f32.mrb[0].mxu0
        %v6073 = vadd.f32 %v5912, %v6072
        %v6074 = vpop.f32.mrb[0].mxu0
        %6075 = vmatprep.mubr.bf16.mxu0 0
        %6076 = vmatmul.mubr.bf16.gmra.mrb[0].mxu0 %v5507
        %v6077 = vpop.f32.mrb[0].mxu0
        %v6078 = vadd.f32 %v5917, %v6077
        %v6079 = vpop.f32.mrb[0].mxu0
        %v6080 = vpop.f32.mrb[0].mxu0
        %v6081 = vadd.f32 %v5920, %v6080
        %v6082 = vpop.f32.mrb[0].mxu0
        %6083 = vmatprep.mubr.bf16.mxu0 0
        %6084 = vmatmul.mubr.bf16.gmra.mrb[0].mxu0 %v5515
        %v6085 = vpop.f32.mrb[0].mxu0
        %v6086 = vadd.f32 %v5925, %v6085
        %v6087 = vpop.f32.mrb[0].mxu0
        %v6088 = vpop.f32.mrb[0].mxu0
        %v6089 = vadd.f32 %v5928, %v6088
        %v6090 = vpop.f32.mrb[0].mxu0
        %6091 = vmatprep.mubr.bf16.mxu0 0
        %6092 = vmatmul.mubr.bf16.gmra.mrb[0].mxu0 %v5523
        %v6093 = vpop.f32.mrb[0].mxu0
        %v6094 = vadd.f32 %v5933, %v6093
        %v6095 = vpop.f32.mrb[0].mxu0
        %v6096 = vpop.f32.mrb[0].mxu0
        %v6097 = vadd.f32 %v5936, %v6096
        %v6098 = vpop.f32.mrb[0].mxu0
        %6099 = vmatprep.mubr.bf16.mxu0 0
        %6100 = vmatmul.mubr.bf16.gmra.mrb[0].mxu0 %v5531
        %v6101 = vpop.f32.mrb[0].mxu0
        %v6102 = vadd.f32 %v5941, %v6101
        %v6103 = vpop.f32.mrb[0].mxu0
        %v6104 = vpop.f32.mrb[0].mxu0
        %v6105 = vadd.f32 %v5944, %v6104
        %v6106 = vpop.f32.mrb[0].mxu0
        %6107 = vmatprep.mubr.bf16.mxu0 0
        %6108 = vmatmul.mubr.bf16.gmra.mrb[0].mxu0 %v5539
        %v6109 = vpop.f32.mrb[0].mxu0
        %v6110 = vadd.f32 %v5949, %v6109
        %v6111 = vpop.f32.mrb[0].mxu0
        %v6112 = vpop.f32.mrb[0].mxu0
        %v6113 = vadd.f32 %v5952, %v6112
        %v6114 = vpop.f32.mrb[0].mxu0
        %6115 = vmatprep.mubr.bf16.mxu0 0
        %6116 = vmatmul.mubr.bf16.gmra.mrb[0].mxu0 %v5547
        %v6117 = vpop.f32.mrb[0].mxu0
        %v6118 = vadd.f32 %v5957, %v6117
        %v6119 = vpop.f32.mrb[0].mxu0
        %v6120 = vpop.f32.mrb[0].mxu0
        %v6121 = vadd.f32 %v5960, %v6120
        %v6122 = vpop.f32.mrb[0].mxu0
        %6123 = vmatprep.mubr.bf16.mxu0 0
        %6124 = vmatmul.mubr.bf16.gmra.mrb[0].mxu0 %v5555
        %v6125 = vpop.f32.mrb[0].mxu0
        %v6126 = vadd.f32 %v5965, %v6125
        %v6127 = vpop.f32.mrb[0].mxu0
        %v6128 = vpop.f32.mrb[0].mxu0
        %v6129 = vadd.f32 %v5968, %v6128
        %v6130 = vpop.f32.mrb[0].mxu0
        %6131 = vmatprep.mubr.bf16.mxu0 0
        %6132 = vmatmul.mubr.bf16.gmra.mrb[0].mxu0 %v5563
        %v6133 = vpop.f32.mrb[0].mxu0
        %v6134 = vadd.f32 %v5973, %v6133
        %v6135 = vpop.f32.mrb[0].mxu0
        %v6136 = vpop.f32.mrb[0].mxu0
        %v6137 = vadd.f32 %v5976, %v6136
        %v6138 = vpop.f32.mrb[0].mxu0
        %6139 = vmatprep.mubr.bf16.mxu0 0
        %6140 = vmatmul.mubr.bf16.gmra.mrb[0].mxu0 %v5571
        %v6141 = vpop.f32.mrb[0].mxu0
        %v6142 = vadd.f32 %v5981, %v6141
        %v6143 = vpop.f32.mrb[0].mxu0
        %v6144 = vpop.f32.mrb[0].mxu0
        %v6145 = vadd.f32 %v5984, %v6144
        %v6146 = vpop.f32.mrb[0].mxu0
        %6147 = vmatprep.mubr.bf16.mxu0 0
        %6148 = vmatmul.mubr.bf16.gmra.mrb[0].mxu0 %v5593
        %v6149 = vpop.f32.mrb[0].mxu0
        %v6150 = vadd.f32 %v5989, %v6149
        %v6151 = vpop.f32.mrb[0].mxu0
        %v6152 = vpop.f32.mrb[0].mxu0
        %v6153 = vadd.f32 %v5992, %v6152
        %v6154 = vpop.f32.mrb[0].mxu0
        %6155 = vdwg.mxu0
        %v6204 = vunpack.c.l.b16 %v5594
        %v6205 = vunpack.c.l.b16 %v5595
        %v6206 = vunpack.c.l.b16 %v5596
        %v6207 = vunpack.c.l.b16 %v5597
        %v6208 = vunpack.c.l.b16 %v5598
        %v6209 = vunpack.c.l.b16 %v5599
        %v6210 = vunpack.c.l.b16 %v5600
        %v6211 = vunpack.c.l.b16 %v5601
        %v6212 = vunpack.c.l.b16 %v5602
        %v6213 = vunpack.c.l.b16 %v5603
        %v6214 = vunpack.c.l.b16 %v5604
        %v6215 = vunpack.c.l.b16 %v5605
        %v6216 = vunpack.c.l.b16 %v5606
        %v6217 = vunpack.c.l.b16 %v5607
        %v6218 = vunpack.c.l.b16 %v5608
        %v6219 = vunpack.c.l.b16 %v5609
        %v6220 = vunpack.c.l.b16 %v5610
        %v6221 = vunpack.c.l.b16 %v5611
        %v6222 = vunpack.c.l.b16 %v5612
        %v6223 = vunpack.c.l.b16 %v5613
        %v6224 = vunpack.c.l.b16 %v5614
        %v6225 = vunpack.c.l.b16 %v5615
        %v6226 = vunpack.c.l.b16 %v5616
        %v6227 = vunpack.c.l.b16 %v5617
        %v6228 = vunpack.c.l.b16 %v5618
        %v6229 = vunpack.c.l.b16 %v5619
        %v6230 = vunpack.c.l.b16 %v5620
        %v6231 = vunpack.c.l.b16 %v5621
        %v6232 = vunpack.c.l.b16 %v5622
        %v6233 = vunpack.c.l.b16 %v5623
        %v6234 = vunpack.c.l.b16 %v5624
        %v6235 = vunpack.c.l.b16 %v5625
        %v6236 = vunpack.c.l.b16 %v5626
        %v6237 = vunpack.c.l.b16 %v5627
        %v6238 = vunpack.c.l.b16 %v5628
        %v6239 = vunpack.c.l.b16 %v5629
        %v6240 = vunpack.c.l.b16 %v5630
        %v6241 = vunpack.c.l.b16 %v5631
        %v6242 = vunpack.c.l.b16 %v5632
        %v6243 = vunpack.c.l.b16 %v5633
        %v6244 = vunpack.c.l.b16 %v5634
        %v6245 = vunpack.c.l.b16 %v5635
        %v6246 = vunpack.c.l.b16 %v5636
        %v6247 = vunpack.c.l.b16 %v5637
        %v6248 = vunpack.c.l.b16 %v5638
        %v6249 = vunpack.c.l.b16 %v5639
        %v6250 = vunpack.c.l.b16 %v5640
        %v6251 = vunpack.c.l.b16 %v5641
        %v6252 = vpack.c.b16 %v6205, %v6204
        %v6253 = vpack.c.b16 %v6207, %v6206
        %v6254 = vpack.c.b16 %v6209, %v6208
        %v6255 = vpack.c.b16 %v6211, %v6210
        %v6256 = vpack.c.b16 %v6213, %v6212
        %v6257 = vpack.c.b16 %v6215, %v6214
        %v6258 = vpack.c.b16 %v6217, %v6216
        %v6259 = vpack.c.b16 %v6219, %v6218
        %v6260 = vpack.c.b16 %v6221, %v6220
        %v6261 = vpack.c.b16 %v6223, %v6222
        %v6262 = vpack.c.b16 %v6225, %v6224
        %v6263 = vpack.c.b16 %v6227, %v6226
        %v6264 = vpack.c.b16 %v6229, %v6228
        %v6265 = vpack.c.b16 %v6231, %v6230
        %v6266 = vpack.c.b16 %v6233, %v6232
        %v6267 = vpack.c.b16 %v6235, %v6234
        %v6268 = vpack.c.b16 %v6237, %v6236
        %v6269 = vpack.c.b16 %v6239, %v6238
        %v6270 = vpack.c.b16 %v6241, %v6240
        %v6271 = vpack.c.b16 %v6243, %v6242
        %v6272 = vpack.c.b16 %v6245, %v6244
        %v6273 = vpack.c.b16 %v6247, %v6246
        %v6274 = vpack.c.b16 %v6249, %v6248
        %v6275 = vpack.c.b16 %v6251, %v6250
        %6300 = vmatprep.subr.bf16.mxu0 0
        %6301 = vmatpush1.bf16.msra.mxu0 %v6252
        %6302 = vmatprep.subr.bf16.mxu0 0
        %6303 = vmatpush1.bf16.msra.mxu0 %v6253
        %6304 = vmatprep.subr.bf16.mxu0 0
        %6305 = vmatpush1.bf16.msra.mxu0 %v6254
        %6306 = vmatprep.subr.bf16.mxu0 0
        %6307 = vmatpush1.bf16.msra.mxu0 %v6255
        %6308 = vmatprep.subr.bf16.mxu0 0
        %6309 = vmatpush1.bf16.msra.mxu0 %v6256
        %6310 = vmatprep.subr.bf16.mxu0 0
        %6311 = vmatpush1.bf16.msra.mxu0 %v6257
        %6312 = vmatprep.subr.bf16.mxu0 0
        %6313 = vmatpush1.bf16.msra.mxu0 %v6258
        %6314 = vmatprep.subr.bf16.mxu0 0
        %6315 = vmatpush1.bf16.msra.mxu0 %v6259
        %6316 = vmatprep.subr.bf16.mxu0 0
        %6317 = vmatpush1.bf16.msra.mxu0 %v6260
        %6318 = vmatprep.subr.bf16.mxu0 0
        %6319 = vmatpush1.bf16.msra.mxu0 %v6261
        %6320 = vmatprep.subr.bf16.mxu0 0
        %6321 = vmatpush1.bf16.msra.mxu0 %v6262
        %6322 = vmatprep.subr.bf16.mxu0 0
        %6323 = vmatpush1.bf16.msra.mxu0 %v6263
        %6324 = vmatprep.subr.bf16.mxu0 0
        %6325 = vmatpush1.bf16.msra.mxu0 %v6264
        %6326 = vmatprep.subr.bf16.mxu0 0
        %6327 = vmatpush1.bf16.msra.mxu0 %v6265
        %6328 = vmatprep.subr.bf16.mxu0 0
        %6329 = vmatpush1.bf16.msra.mxu0 %v6266
        %6330 = vmatprep.subr.bf16.mxu0 0
        %6331 = vmatpush1.bf16.msra.mxu0 %v6267
        %6332 = vmatprep.mubr.bf16.mxu0 0
        %6333 = vmatmul.mubr.bf16.gmra.mrb[0].mxu0 0
        %v6334 = vpop.f32.mrb[0].mxu0
        %v6335 = vadd.f32 %v6030, %v6334
        %v6336 = vpop.f32.mrb[0].mxu0
        %v6337 = vpop.f32.mrb[0].mxu0
        %v6338 = vadd.f32 %v6033, %v6337
        %v6339 = vpop.f32.mrb[0].mxu0
        %6340 = vmatprep.mubr.bf16.mxu0 %v5336
        %6341 = vmatmul.mubr.bf16.gmra.mrb[0].mxu0 %v5270
        %v6342 = vpop.f32.mrb[0].mxu0
        %v6343 = vadd.f32 %v6038, %v6342
        %v6344 = vpop.f32.mrb[0].mxu0
        %v6345 = vpop.f32.mrb[0].mxu0
        %v6346 = vadd.f32 %v6041, %v6345
        %v6347 = vpop.f32.mrb[0].mxu0
        %6348 = vmatprep.mubr.bf16.mxu0 %v5337
        %6349 = vmatmul.mubr.bf16.gmra.mrb[0].mxu0 %v5140
        %v6350 = vpop.f32.mrb[0].mxu0
        %v6351 = vadd.f32 %v6046, %v6350
        %v6352 = vpop.f32.mrb[0].mxu0
        %v6353 = vpop.f32.mrb[0].mxu0
        %v6354 = vadd.f32 %v6049, %v6353
        %v6355 = vpop.f32.mrb[0].mxu0
        %6356 = vmatprep.mubr.bf16.mxu0 %v5338
        %6357 = vmatmul.mubr.bf16.gmra.mrb[0].mxu0 %v5148
        %v6358 = vpop.f32.mrb[0].mxu0
        %v6359 = vadd.f32 %v6054, %v6358
        %v6360 = vpop.f32.mrb[0].mxu0
        %v6361 = vpop.f32.mrb[0].mxu0
        %v6362 = vadd.f32 %v6057, %v6361
        %v6363 = vpop.f32.mrb[0].mxu0
        %6364 = vmatprep.mubr.bf16.mxu0 %v5339
        %6365 = vmatmul.mubr.bf16.gmra.mrb[0].mxu0 %v5156
        %v6366 = vpop.f32.mrb[0].mxu0
        %v6367 = vadd.f32 %v6062, %v6366
        %v6368 = vpop.f32.mrb[0].mxu0
        %v6369 = vpop.f32.mrb[0].mxu0
        %v6370 = vadd.f32 %v6065, %v6369
        %v6371 = vpop.f32.mrb[0].mxu0
        %6372 = vmatprep.mubr.bf16.mxu0 %v5340
        %6373 = vmatmul.mubr.bf16.gmra.mrb[0].mxu0 %v5164
        %v6374 = vpop.f32.mrb[0].mxu0
        %v6375 = vadd.f32 %v6070, %v6374
        %v6376 = vpop.f32.mrb[0].mxu0
        %v6377 = vpop.f32.mrb[0].mxu0
        %v6378 = vadd.f32 %v6073, %v6377
        %v6379 = vpop.f32.mrb[0].mxu0
        %6380 = vmatprep.mubr.bf16.mxu0 %v5341
        %6381 = vmatmul.mubr.bf16.gmra.mrb[0].mxu0 %v5172
        %v6382 = vpop.f32.mrb[0].mxu0
        %v6383 = vadd.f32 %v6078, %v6382
        %v6384 = vpop.f32.mrb[0].mxu0
        %v6385 = vpop.f32.mrb[0].mxu0
        %v6386 = vadd.f32 %v6081, %v6385
        %v6387 = vpop.f32.mrb[0].mxu0
        %6388 = vmatprep.mubr.bf16.mxu0 %v5342
        %6389 = vmatmul.mubr.bf16.gmra.mrb[0].mxu0 %v5180
        %v6390 = vpop.f32.mrb[0].mxu0
        %v6391 = vadd.f32 %v6086, %v6390
        %v6392 = vpop.f32.mrb[0].mxu0
        %v6393 = vpop.f32.mrb[0].mxu0
        %v6394 = vadd.f32 %v6089, %v6393
        %v6395 = vpop.f32.mrb[0].mxu0
        %6396 = vmatprep.mubr.bf16.mxu0 %v5343
        %6397 = vmatmul.mubr.bf16.gmra.mrb[0].mxu0 %v5188
        %v6398 = vpop.f32.mrb[0].mxu0
        %v6399 = vadd.f32 %v6094, %v6398
        %v6400 = vpop.f32.mrb[0].mxu0
        %v6401 = vpop.f32.mrb[0].mxu0
        %v6402 = vadd.f32 %v6097, %v6401
        %v6403 = vpop.f32.mrb[0].mxu0
        %6404 = vmatprep.mubr.bf16.mxu0 %v5344
        %6405 = vmatmul.mubr.bf16.gmra.mrb[0].mxu0 %v5196
        %v6406 = vpop.f32.mrb[0].mxu0
        %v6407 = vadd.f32 %v6102, %v6406
        %v6408 = vpop.f32.mrb[0].mxu0
        %v6409 = vpop.f32.mrb[0].mxu0
        %v6410 = vadd.f32 %v6105, %v6409
        %v6411 = vpop.f32.mrb[0].mxu0
        %6412 = vmatprep.mubr.bf16.mxu0 %v5345
        %6413 = vmatmul.mubr.bf16.gmra.mrb[0].mxu0 %v5204
        %v6414 = vpop.f32.mrb[0].mxu0
        %v6415 = vadd.f32 %v6110, %v6414
        %v6416 = vpop.f32.mrb[0].mxu0
        %v6417 = vpop.f32.mrb[0].mxu0
        %v6418 = vadd.f32 %v6113, %v6417
        %v6419 = vpop.f32.mrb[0].mxu0
        %6420 = vmatprep.mubr.bf16.mxu0 %v5346
        %6421 = vmatmul.mubr.bf16.gmra.mrb[0].mxu0 %v5212
        %v6422 = vpop.f32.mrb[0].mxu0
        %v6423 = vadd.f32 %v6118, %v6422
        %v6424 = vpop.f32.mrb[0].mxu0
        %v6425 = vpop.f32.mrb[0].mxu0
        %v6426 = vadd.f32 %v6121, %v6425
        %v6427 = vpop.f32.mrb[0].mxu0
        %6428 = vmatprep.mubr.bf16.mxu0 %v5347
        %6429 = vmatmul.mubr.bf16.gmra.mrb[0].mxu0 %v5220
        %v6430 = vpop.f32.mrb[0].mxu0
        %v6431 = vadd.f32 %v6126, %v6430
        %v6432 = vpop.f32.mrb[0].mxu0
        %v6433 = vpop.f32.mrb[0].mxu0
        %v6434 = vadd.f32 %v6129, %v6433
        %v6435 = vpop.f32.mrb[0].mxu0
        %6436 = vmatprep.mubr.bf16.mxu0 %v5348
        %6437 = vmatmul.mubr.bf16.gmra.mrb[0].mxu0 %v5228
        %v6438 = vpop.f32.mrb[0].mxu0
        %v6439 = vadd.f32 %v6134, %v6438
        %v6440 = vpop.f32.mrb[0].mxu0
        %v6441 = vpop.f32.mrb[0].mxu0
        %v6442 = vadd.f32 %v6137, %v6441
        %v6443 = vpop.f32.mrb[0].mxu0
        %6444 = vmatprep.mubr.bf16.mxu0 %v5349
        %6445 = vmatmul.mubr.bf16.gmra.mrb[0].mxu0 %v5236
        %v6446 = vpop.f32.mrb[0].mxu0
        %v6447 = vadd.f32 %v6142, %v6446
        %v6448 = vpop.f32.mrb[0].mxu0
        %v6449 = vpop.f32.mrb[0].mxu0
        %v6450 = vadd.f32 %v6145, %v6449
        %v6451 = vpop.f32.mrb[0].mxu0
        %6452 = vmatprep.mubr.bf16.mxu0 %v5350
        %6453 = vmatmul.mubr.bf16.gmra.mrb[0].mxu0 %v5244
        %v6454 = vpop.f32.mrb[0].mxu0
        %v6455 = vadd.f32 %v6150, %v6454
        %v6456 = vpop.f32.mrb[0].mxu0
        %v6457 = vpop.f32.mrb[0].mxu0
        %v6458 = vadd.f32 %v6153, %v6457
        %v6459 = vpop.f32.mrb[0].mxu0
        %6460 = vdwg.mxu0
        %6461 = vmatprep.subr.bf16.mxu0 0
        %6462 = vmatpush1.bf16.msra.mxu0 %v6268
        %6463 = vmatprep.subr.bf16.mxu0 0
        %6464 = vmatpush1.bf16.msra.mxu0 %v6269
        %6465 = vmatprep.subr.bf16.mxu0 0
        %6466 = vmatpush1.bf16.msra.mxu0 %v6270
        %6467 = vmatprep.subr.bf16.mxu0 0
        %6468 = vmatpush1.bf16.msra.mxu0 %v6271
        %6469 = vmatprep.subr.bf16.mxu0 0
        %6470 = vmatpush1.bf16.msra.mxu0 %v6272
        %6471 = vmatprep.subr.bf16.mxu0 0
        %6472 = vmatpush1.bf16.msra.mxu0 %v6273
        %6473 = vmatprep.subr.bf16.mxu0 0
        %6474 = vmatpush1.bf16.msra.mxu0 %v6274
        %6475 = vmatprep.subr.bf16.mxu0 0
        %6476 = vmatpush1.bf16.msra.mxu0 %v6275
        %6477 = vmatprep.subr.bf16.mxu0 0
        %6478 = vmatpush1.bf16.msra.mxu0 0
        %6479 = vmatprep.subr.bf16.mxu0 0
        %6480 = vmatpush1.bf16.msra.mxu0 0
        %6481 = vmatprep.subr.bf16.mxu0 0
        %6482 = vmatpush1.bf16.msra.mxu0 0
        %6483 = vmatprep.subr.bf16.mxu0 0
        %6484 = vmatpush1.bf16.msra.mxu0 0
        %6485 = vmatprep.subr.bf16.mxu0 0
        %6486 = vmatpush1.bf16.msra.mxu0 0
        %6487 = vmatprep.subr.bf16.mxu0 0
        %6488 = vmatpush1.bf16.msra.mxu0 0
        %6489 = vmatprep.subr.bf16.mxu0 0
        %6490 = vmatpush1.bf16.msra.mxu0 0
        %6491 = vmatprep.subr.bf16.mxu0 0
        %6492 = vmatpush1.bf16.msra.mxu0 0
        %6493 = vmatprep.mubr.bf16.mxu0 0
        %6494 = vmatmul.mubr.bf16.gmra.mrb[0].mxu0 %v5592
        %v6495 = vpop.f32.mrb[0].mxu0
        %v6496 = vadd.f32 %v6335, %v6495
        %v6497 = vpop.f32.mrb[0].mxu0
        %v6498 = vpop.f32.mrb[0].mxu0
        %v6499 = vadd.f32 %v6338, %v6498
        %v6500 = vpop.f32.mrb[0].mxu0
        %6501 = vmatprep.mubr.bf16.mxu0 0
        %6502 = vmatmul.mubr.bf16.gmra.mrb[0].mxu0 %v5459
        %v6503 = vpop.f32.mrb[0].mxu0
        %v6504 = vadd.f32 %v6343, %v6503
        %v6505 = vpop.f32.mrb[0].mxu0
        %v6506 = vpop.f32.mrb[0].mxu0
        %v6507 = vadd.f32 %v6346, %v6506
        %v6508 = vpop.f32.mrb[0].mxu0
        %6509 = vmatprep.mubr.bf16.mxu0 0
        %6510 = vmatmul.mubr.bf16.gmra.mrb[0].mxu0 %v5467
        %v6511 = vpop.f32.mrb[0].mxu0
        %v6512 = vadd.f32 %v6351, %v6511
        %v6513 = vpop.f32.mrb[0].mxu0
        %v6514 = vpop.f32.mrb[0].mxu0
        %v6515 = vadd.f32 %v6354, %v6514
        %v6516 = vpop.f32.mrb[0].mxu0
        %6517 = vmatprep.mubr.bf16.mxu0 0
        %6518 = vmatmul.mubr.bf16.gmra.mrb[0].mxu0 %v5475
        %v6519 = vpop.f32.mrb[0].mxu0
        %v6520 = vadd.f32 %v6359, %v6519
        %v6521 = vpop.f32.mrb[0].mxu0
        %v6522 = vpop.f32.mrb[0].mxu0
        %v6523 = vadd.f32 %v6362, %v6522
        %v6524 = vpop.f32.mrb[0].mxu0
        %6525 = vmatprep.mubr.bf16.mxu0 0
        %6526 = vmatmul.mubr.bf16.gmra.mrb[0].mxu0 %v5483
        %v6527 = vpop.f32.mrb[0].mxu0
        %v6528 = vadd.f32 %v6367, %v6527
        %v6529 = vpop.f32.mrb[0].mxu0
        %v6530 = vpop.f32.mrb[0].mxu0
        %v6531 = vadd.f32 %v6370, %v6530
        %v6532 = vpop.f32.mrb[0].mxu0
        %6533 = vmatprep.mubr.bf16.mxu0 0
        %6534 = vmatmul.mubr.bf16.gmra.mrb[0].mxu0 %v5491
        %v6535 = vpop.f32.mrb[0].mxu0
        %v6536 = vadd.f32 %v6375, %v6535
        %v6537 = vpop.f32.mrb[0].mxu0
        %v6538 = vpop.f32.mrb[0].mxu0
        %v6539 = vadd.f32 %v6378, %v6538
        %v6540 = vpop.f32.mrb[0].mxu0
        %6541 = vmatprep.mubr.bf16.mxu0 0
        %6542 = vmatmul.mubr.bf16.gmra.mrb[0].mxu0 %v5499
        %v6543 = vpop.f32.mrb[0].mxu0
        %v6544 = vadd.f32 %v6383, %v6543
        %v6545 = vpop.f32.mrb[0].mxu0
        %v6546 = vpop.f32.mrb[0].mxu0
        %v6547 = vadd.f32 %v6386, %v6546
        %v6548 = vpop.f32.mrb[0].mxu0
        %6549 = vmatprep.mubr.bf16.mxu0 0
        %6550 = vmatmul.mubr.bf16.gmra.mrb[0].mxu0 %v5507
        %v6551 = vpop.f32.mrb[0].mxu0
        %v6552 = vadd.f32 %v6391, %v6551
        %v6553 = vpop.f32.mrb[0].mxu0
        %v6554 = vpop.f32.mrb[0].mxu0
        %v6555 = vadd.f32 %v6394, %v6554
        %v6556 = vpop.f32.mrb[0].mxu0
        %6557 = vmatprep.mubr.bf16.mxu0 0
        %6558 = vmatmul.mubr.bf16.gmra.mrb[0].mxu0 %v5515
        %v6559 = vpop.f32.mrb[0].mxu0
        %v6560 = vadd.f32 %v6399, %v6559
        %v6561 = vpop.f32.mrb[0].mxu0
        %v6562 = vpop.f32.mrb[0].mxu0
        %v6563 = vadd.f32 %v6402, %v6562
        %v6564 = vpop.f32.mrb[0].mxu0
        %6565 = vmatprep.mubr.bf16.mxu0 0
        %6566 = vmatmul.mubr.bf16.gmra.mrb[0].mxu0 %v5523
        %v6567 = vpop.f32.mrb[0].mxu0
        %v6568 = vadd.f32 %v6407, %v6567
        %v6569 = vpop.f32.mrb[0].mxu0
        %v6570 = vpop.f32.mrb[0].mxu0
        %v6571 = vadd.f32 %v6410, %v6570
        %v6572 = vpop.f32.mrb[0].mxu0
        %6573 = vmatprep.mubr.bf16.mxu0 0
        %6574 = vmatmul.mubr.bf16.gmra.mrb[0].mxu0 %v5531
        %v6575 = vpop.f32.mrb[0].mxu0
        %v6576 = vadd.f32 %v6415, %v6575
        %v6577 = vpop.f32.mrb[0].mxu0
        %v6578 = vpop.f32.mrb[0].mxu0
        %v6579 = vadd.f32 %v6418, %v6578
        %v6580 = vpop.f32.mrb[0].mxu0
        %6581 = vmatprep.mubr.bf16.mxu0 0
        %6582 = vmatmul.mubr.bf16.gmra.mrb[0].mxu0 %v5539
        %v6583 = vpop.f32.mrb[0].mxu0
        %v6584 = vadd.f32 %v6423, %v6583
        %v6585 = vpop.f32.mrb[0].mxu0
        %v6586 = vpop.f32.mrb[0].mxu0
        %v6587 = vadd.f32 %v6426, %v6586
        %v6588 = vpop.f32.mrb[0].mxu0
        %6589 = vmatprep.mubr.bf16.mxu0 0
        %6590 = vmatmul.mubr.bf16.gmra.mrb[0].mxu0 %v5547
        %v6591 = vpop.f32.mrb[0].mxu0
        %v6592 = vadd.f32 %v6431, %v6591
        %v6593 = vpop.f32.mrb[0].mxu0
        %v6594 = vpop.f32.mrb[0].mxu0
        %v6595 = vadd.f32 %v6434, %v6594
        %v6596 = vpop.f32.mrb[0].mxu0
        %6597 = vmatprep.mubr.bf16.mxu0 0
        %6598 = vmatmul.mubr.bf16.gmra.mrb[0].mxu0 %v5555
        %v6599 = vpop.f32.mrb[0].mxu0
        %v6600 = vadd.f32 %v6439, %v6599
        %v6601 = vpop.f32.mrb[0].mxu0
        %v6602 = vpop.f32.mrb[0].mxu0
        %v6603 = vadd.f32 %v6442, %v6602
        %v6604 = vpop.f32.mrb[0].mxu0
        %6605 = vmatprep.mubr.bf16.mxu0 0
        %6606 = vmatmul.mubr.bf16.gmra.mrb[0].mxu0 %v5563
        %v6607 = vpop.f32.mrb[0].mxu0
        %v6608 = vadd.f32 %v6447, %v6607
        %v6609 = vpop.f32.mrb[0].mxu0
        %v6610 = vpop.f32.mrb[0].mxu0
        %v6611 = vadd.f32 %v6450, %v6610
        %v6612 = vpop.f32.mrb[0].mxu0
        %6613 = vmatprep.mubr.bf16.mxu0 0
        %6614 = vmatmul.mubr.bf16.gmra.mrb[0].mxu0 %v5571
        %v6615 = vpop.f32.mrb[0].mxu0
        %v6616 = vadd.f32 %v6455, %v6615
        %v6617 = vpop.f32.mrb[0].mxu0
        %v6618 = vpop.f32.mrb[0].mxu0
        %v6619 = vadd.f32 %v6458, %v6618
        %v6620 = vpop.f32.mrb[0].mxu0
        %6621 = vdwg.mxu0
        %v6622 = vld [vmem:[%s2030] sm:$0xf]
        %v6623 = vld [vmem:[%s2030 + $0x4] sm:$0xf]
        %v6624 = vld [vmem:[%s2030 + $0x8] sm:$0xf]
        %v6625 = vld [vmem:[%s2030 + $0xc] sm:$0xf]
        %v6626 = vld [vmem:[%s2030 + $0x10] sm:$0xf]
        %v6627 = vld [vmem:[%s2030 + $0x14] sm:$0xf]
        %v6628 = vld [vmem:[%s2030 + $0x18] sm:$0xf]
        %v6629 = vld [vmem:[%s2030 + $0x1c] sm:$0xf]
        %v6630 = vld [vmem:[%s2030 + $0x20] sm:$0xf]
        %v6631 = vld [vmem:[%s2030 + $0x24] sm:$0xf]
        %v6632 = vld [vmem:[%s2030 + $0x28] sm:$0xf]
        %v6633 = vld [vmem:[%s2030 + $0x2c] sm:$0xf]
        %v6634 = vld [vmem:[%s2030 + $0x30] sm:$0xf]
        %v6635 = vld [vmem:[%s2030 + $0x34] sm:$0xf]
        %v6636 = vld [vmem:[%s2030 + $0x38] sm:$0xf]
        %v6637 = vld [vmem:[%s2030 + $0x3c] sm:$0xf]
        %v6638 = vld [vmem:[%s2030 + $0x40] sm:$0xf]
        %v6639 = vld [vmem:[%s2030 + $0x44] sm:$0xf]
        %v6640 = vld [vmem:[%s2030 + $0x48] sm:$0xf]
        %v6641 = vld [vmem:[%s2030 + $0x4c] sm:$0xf]
        %v6642 = vld [vmem:[%s2030 + $0x50] sm:$0xf]
        %v6643 = vld [vmem:[%s2030 + $0x54] sm:$0xf]
        %v6644 = vld [vmem:[%s2030 + $0x58] sm:$0xf]
        %v6645 = vld [vmem:[%s2030 + $0x5c] sm:$0xf]
        %v6646 = vld [vmem:[%s2030 + $0x60] sm:$0xf]
        %v6647 = vld [vmem:[%s2030 + $0x64] sm:$0xf]
        %v6648 = vld [vmem:[%s2030 + $0x68] sm:$0xf]
        %v6649 = vld [vmem:[%s2030 + $0x6c] sm:$0xf]
        %v6650 = vld [vmem:[%s2030 + $0x70] sm:$0xf]
        %v6651 = vld [vmem:[%s2030 + $0x74] sm:$0xf]
        %v6652 = vld [vmem:[%s2030 + $0x78] sm:$0xf]
        %v6653 = vld [vmem:[%s2030 + $0x7c] sm:$0xf]
        %v6654 = vld [vmem:[%s2030 + $0x80] sm:$0xf]
        %v6655 = vld [vmem:[%s2030 + $0x84] sm:$0xf]
        %v6656 = vld [vmem:[%s2030 + $0x88] sm:$0xf]
        %v6657 = vld [vmem:[%s2030 + $0x8c] sm:$0xf]
        %v6658 = vld [vmem:[%s2030 + $0x90] sm:$0xf]
        %v6659 = vld [vmem:[%s2030 + $0x94] sm:$0xf]
        %v6660 = vld [vmem:[%s2030 + $0x98] sm:$0xf]
        %v6661 = vld [vmem:[%s2030 + $0x9c] sm:$0xf]
        %v6662 = vld [vmem:[%s2030 + $0xa0] sm:$0xf]
        %v6663 = vld [vmem:[%s2030 + $0xa4] sm:$0xf]
        %v6664 = vld [vmem:[%s2030 + $0xa8] sm:$0xf]
        %v6665 = vld [vmem:[%s2030 + $0xac] sm:$0xf]
        %v6666 = vld [vmem:[%s2030 + $0xb0] sm:$0xf]
        %v6667 = vld [vmem:[%s2030 + $0xb4] sm:$0xf]
        %v6668 = vld [vmem:[%s2030 + $0xb8] sm:$0xf]
        %v6669 = vld [vmem:[%s2030 + $0xbc] sm:$0xf]
        %v6718 = vunpack.c.l.b16 %v6622
        %v6719 = vunpack.c.l.b16 %v6623
        %v6720 = vunpack.c.l.b16 %v6624
        %v6721 = vunpack.c.l.b16 %v6625
        %v6722 = vunpack.c.l.b16 %v6626
        %v6723 = vunpack.c.l.b16 %v6627
        %v6724 = vunpack.c.l.b16 %v6628
        %v6725 = vunpack.c.l.b16 %v6629
        %v6726 = vunpack.c.l.b16 %v6630
        %v6727 = vunpack.c.l.b16 %v6631
        %v6728 = vunpack.c.l.b16 %v6632
        %v6729 = vunpack.c.l.b16 %v6633
        %v6730 = vunpack.c.l.b16 %v6634
        %v6731 = vunpack.c.l.b16 %v6635
        %v6732 = vunpack.c.l.b16 %v6636
        %v6733 = vunpack.c.l.b16 %v6637
        %v6734 = vunpack.c.l.b16 %v6638
        %v6735 = vunpack.c.l.b16 %v6639
        %v6736 = vunpack.c.l.b16 %v6640
        %v6737 = vunpack.c.l.b16 %v6641
        %v6738 = vunpack.c.l.b16 %v6642
        %v6739 = vunpack.c.l.b16 %v6643
        %v6740 = vunpack.c.l.b16 %v6644
        %v6741 = vunpack.c.l.b16 %v6645
        %v6742 = vunpack.c.l.b16 %v6646
        %v6743 = vunpack.c.l.b16 %v6647
        %v6744 = vunpack.c.l.b16 %v6648
        %v6745 = vunpack.c.l.b16 %v6649
        %v6746 = vunpack.c.l.b16 %v6650
        %v6747 = vunpack.c.l.b16 %v6651
        %v6748 = vunpack.c.l.b16 %v6652
        %v6749 = vunpack.c.l.b16 %v6653
        %v6750 = vunpack.c.l.b16 %v6654
        %v6751 = vunpack.c.l.b16 %v6655
        %v6752 = vunpack.c.l.b16 %v6656
        %v6753 = vunpack.c.l.b16 %v6657
        %v6754 = vunpack.c.l.b16 %v6658
        %v6755 = vunpack.c.l.b16 %v6659
        %v6756 = vunpack.c.l.b16 %v6660
        %v6757 = vunpack.c.l.b16 %v6661
        %v6758 = vunpack.c.l.b16 %v6662
        %v6759 = vunpack.c.l.b16 %v6663
        %v6760 = vunpack.c.l.b16 %v6664
        %v6761 = vunpack.c.l.b16 %v6665
        %v6762 = vunpack.c.l.b16 %v6666
        %v6763 = vunpack.c.l.b16 %v6667
        %v6764 = vunpack.c.l.b16 %v6668
        %v6765 = vunpack.c.l.b16 %v6669
        %v6766 = vpack.c.b16 %v6719, %v6718
        %v6767 = vpack.c.b16 %v6721, %v6720
        %v6768 = vpack.c.b16 %v6723, %v6722
        %v6769 = vpack.c.b16 %v6725, %v6724
        %v6770 = vpack.c.b16 %v6727, %v6726
        %v6771 = vpack.c.b16 %v6729, %v6728
        %v6772 = vpack.c.b16 %v6731, %v6730
        %v6773 = vpack.c.b16 %v6733, %v6732
        %v6774 = vpack.c.b16 %v6735, %v6734
        %v6775 = vpack.c.b16 %v6737, %v6736
        %v6776 = vpack.c.b16 %v6739, %v6738
        %v6777 = vpack.c.b16 %v6741, %v6740
        %v6778 = vpack.c.b16 %v6743, %v6742
        %v6779 = vpack.c.b16 %v6745, %v6744
        %v6780 = vpack.c.b16 %v6747, %v6746
        %v6781 = vpack.c.b16 %v6749, %v6748
        %v6782 = vpack.c.b16 %v6751, %v6750
        %v6783 = vpack.c.b16 %v6753, %v6752
        %v6784 = vpack.c.b16 %v6755, %v6754
        %v6785 = vpack.c.b16 %v6757, %v6756
        %v6786 = vpack.c.b16 %v6759, %v6758
        %v6787 = vpack.c.b16 %v6761, %v6760
        %v6788 = vpack.c.b16 %v6763, %v6762
        %v6789 = vpack.c.b16 %v6765, %v6764
        %6814 = vmatprep.subr.bf16.mxu0 0
        %6815 = vmatpush1.bf16.msra.mxu0 %v6766
        %6816 = vmatprep.subr.bf16.mxu0 0
        %6817 = vmatpush1.bf16.msra.mxu0 %v6767
        %6818 = vmatprep.subr.bf16.mxu0 0
        %6819 = vmatpush1.bf16.msra.mxu0 %v6768
        %6820 = vmatprep.subr.bf16.mxu0 0
        %6821 = vmatpush1.bf16.msra.mxu0 %v6769
        %6822 = vmatprep.subr.bf16.mxu0 0
        %6823 = vmatpush1.bf16.msra.mxu0 %v6770
        %6824 = vmatprep.subr.bf16.mxu0 0
        %6825 = vmatpush1.bf16.msra.mxu0 %v6771
        %6826 = vmatprep.subr.bf16.mxu0 0
        %6827 = vmatpush1.bf16.msra.mxu0 %v6772
        %6828 = vmatprep.subr.bf16.mxu0 0
        %6829 = vmatpush1.bf16.msra.mxu0 %v6773
        %6830 = vmatprep.subr.bf16.mxu0 0
        %6831 = vmatpush1.bf16.msra.mxu0 %v6774
        %6832 = vmatprep.subr.bf16.mxu0 0
        %6833 = vmatpush1.bf16.msra.mxu0 %v6775
        %6834 = vmatprep.subr.bf16.mxu0 0
        %6835 = vmatpush1.bf16.msra.mxu0 %v6776
        %6836 = vmatprep.subr.bf16.mxu0 0
        %6837 = vmatpush1.bf16.msra.mxu0 %v6777
        %6838 = vmatprep.subr.bf16.mxu0 0
        %6839 = vmatpush1.bf16.msra.mxu0 %v6778
        %6840 = vmatprep.subr.bf16.mxu0 0
        %6841 = vmatpush1.bf16.msra.mxu0 %v6779
        %6842 = vmatprep.subr.bf16.mxu0 0
        %6843 = vmatpush1.bf16.msra.mxu0 %v6780
        %6844 = vmatprep.subr.bf16.mxu0 0
        %6845 = vmatpush1.bf16.msra.mxu0 %v6781
        %6846 = vmatprep.mubr.bf16.mxu0 %v5337
        %6847 = vmatmul.mubr.bf16.gmra.mrb[0].mxu0 %v5140
        %v6848 = vpop.f32.mrb[0].mxu0
        %v6849 = vadd.f32 0.0, %v6848
        %v6850 = vpop.f32.mrb[0].mxu0
        %v6851 = vpop.f32.mrb[0].mxu0
        %v6852 = vadd.f32 0.0, %v6851
        %v6853 = vpop.f32.mrb[0].mxu0
        %6854 = vmatprep.mubr.bf16.mxu0 %v5338
        %6855 = vmatmul.mubr.bf16.gmra.mrb[0].mxu0 %v5148
        %v6856 = vpop.f32.mrb[0].mxu0
        %v6857 = vadd.f32 0.0, %v6856
        %v6858 = vpop.f32.mrb[0].mxu0
        %v6859 = vpop.f32.mrb[0].mxu0
        %v6860 = vadd.f32 0.0, %v6859
        %v6861 = vpop.f32.mrb[0].mxu0
        %6862 = vmatprep.mubr.bf16.mxu0 %v5339
        %6863 = vmatmul.mubr.bf16.gmra.mrb[0].mxu0 %v5156
        %v6864 = vpop.f32.mrb[0].mxu0
        %v6865 = vadd.f32 0.0, %v6864
        %v6866 = vpop.f32.mrb[0].mxu0
        %v6867 = vpop.f32.mrb[0].mxu0
        %v6868 = vadd.f32 0.0, %v6867
        %v6869 = vpop.f32.mrb[0].mxu0
        %6870 = vmatprep.mubr.bf16.mxu0 %v5340
        %6871 = vmatmul.mubr.bf16.gmra.mrb[0].mxu0 %v5164
        %v6872 = vpop.f32.mrb[0].mxu0
        %v6873 = vadd.f32 0.0, %v6872
        %v6874 = vpop.f32.mrb[0].mxu0
        %v6875 = vpop.f32.mrb[0].mxu0
        %v6876 = vadd.f32 0.0, %v6875
        %v6877 = vpop.f32.mrb[0].mxu0
        %6878 = vmatprep.mubr.bf16.mxu0 %v5341
        %6879 = vmatmul.mubr.bf16.gmra.mrb[0].mxu0 %v5172
        %v6880 = vpop.f32.mrb[0].mxu0
        %v6881 = vadd.f32 0.0, %v6880
        %v6882 = vpop.f32.mrb[0].mxu0
        %v6883 = vpop.f32.mrb[0].mxu0
        %v6884 = vadd.f32 0.0, %v6883
        %v6885 = vpop.f32.mrb[0].mxu0
        %6886 = vmatprep.mubr.bf16.mxu0 %v5342
        %6887 = vmatmul.mubr.bf16.gmra.mrb[0].mxu0 %v5180
        %v6888 = vpop.f32.mrb[0].mxu0
        %v6889 = vadd.f32 0.0, %v6888
        %v6890 = vpop.f32.mrb[0].mxu0
        %v6891 = vpop.f32.mrb[0].mxu0
        %v6892 = vadd.f32 0.0, %v6891
        %v6893 = vpop.f32.mrb[0].mxu0
        %6894 = vmatprep.mubr.bf16.mxu0 %v5343
        %6895 = vmatmul.mubr.bf16.gmra.mrb[0].mxu0 %v5188
        %v6896 = vpop.f32.mrb[0].mxu0
        %v6897 = vadd.f32 0.0, %v6896
        %v6898 = vpop.f32.mrb[0].mxu0
        %v6899 = vpop.f32.mrb[0].mxu0
        %v6900 = vadd.f32 0.0, %v6899
        %v6901 = vpop.f32.mrb[0].mxu0
        %6902 = vmatprep.mubr.bf16.mxu0 %v5344
        %6903 = vmatmul.mubr.bf16.gmra.mrb[0].mxu0 %v5196
        %v6904 = vpop.f32.mrb[0].mxu0
        %v6905 = vadd.f32 0.0, %v6904
        %v6906 = vpop.f32.mrb[0].mxu0
        %v6907 = vpop.f32.mrb[0].mxu0
        %v6908 = vadd.f32 0.0, %v6907
        %v6909 = vpop.f32.mrb[0].mxu0
        %6910 = vmatprep.mubr.bf16.mxu0 %v5345
        %6911 = vmatmul.mubr.bf16.gmra.mrb[0].mxu0 %v5204
        %v6912 = vpop.f32.mrb[0].mxu0
        %v6913 = vadd.f32 0.0, %v6912
        %v6914 = vpop.f32.mrb[0].mxu0
        %v6915 = vpop.f32.mrb[0].mxu0
        %v6916 = vadd.f32 0.0, %v6915
        %v6917 = vpop.f32.mrb[0].mxu0
        %6918 = vmatprep.mubr.bf16.mxu0 %v5346
        %6919 = vmatmul.mubr.bf16.gmra.mrb[0].mxu0 %v5212
        %v6920 = vpop.f32.mrb[0].mxu0
        %v6921 = vadd.f32 0.0, %v6920
        %v6922 = vpop.f32.mrb[0].mxu0
        %v6923 = vpop.f32.mrb[0].mxu0
        %v6924 = vadd.f32 0.0, %v6923
        %v6925 = vpop.f32.mrb[0].mxu0
        %6926 = vmatprep.mubr.bf16.mxu0 %v5347
        %6927 = vmatmul.mubr.bf16.gmra.mrb[0].mxu0 %v5220
        %v6928 = vpop.f32.mrb[0].mxu0
        %v6929 = vadd.f32 0.0, %v6928
        %v6930 = vpop.f32.mrb[0].mxu0
        %v6931 = vpop.f32.mrb[0].mxu0
        %v6932 = vadd.f32 0.0, %v6931
        %v6933 = vpop.f32.mrb[0].mxu0
        %6934 = vmatprep.mubr.bf16.mxu0 %v5348
        %6935 = vmatmul.mubr.bf16.gmra.mrb[0].mxu0 %v5228
        %v6936 = vpop.f32.mrb[0].mxu0
        %v6937 = vadd.f32 0.0, %v6936
        %v6938 = vpop.f32.mrb[0].mxu0
        %v6939 = vpop.f32.mrb[0].mxu0
        %v6940 = vadd.f32 0.0, %v6939
        %v6941 = vpop.f32.mrb[0].mxu0
        %6942 = vmatprep.mubr.bf16.mxu0 %v5349
        %6943 = vmatmul.mubr.bf16.gmra.mrb[0].mxu0 %v5236
        %v6944 = vpop.f32.mrb[0].mxu0
        %v6945 = vadd.f32 0.0, %v6944
        %v6946 = vpop.f32.mrb[0].mxu0
        %v6947 = vpop.f32.mrb[0].mxu0
        %v6948 = vadd.f32 0.0, %v6947
        %v6949 = vpop.f32.mrb[0].mxu0
        %6950 = vmatprep.mubr.bf16.mxu0 %v5350
        %6951 = vmatmul.mubr.bf16.gmra.mrb[0].mxu0 %v5244
        %v6952 = vpop.f32.mrb[0].mxu0
        %v6953 = vadd.f32 0.0, %v6952
        %v6954 = vpop.f32.mrb[0].mxu0
        %v6955 = vpop.f32.mrb[0].mxu0
        %v6956 = vadd.f32 0.0, %v6955
        %v6957 = vpop.f32.mrb[0].mxu0
        %6958 = vmatprep.mubr.bf16.mxu0 %v5351
        %6959 = vmatmul.mubr.bf16.gmra.mrb[0].mxu0 %v5252
        %v6960 = vpop.f32.mrb[0].mxu0
        %v6961 = vadd.f32 0.0, %v6960
        %v6962 = vpop.f32.mrb[0].mxu0
        %v6963 = vpop.f32.mrb[0].mxu0
        %v6964 = vadd.f32 0.0, %v6963
        %v6965 = vpop.f32.mrb[0].mxu0
        %6966 = vmatprep.mubr.bf16.mxu0 0
        %6967 = vmatmul.mubr.bf16.gmra.mrb[0].mxu0 %v5271
        %v6968 = vpop.f32.mrb[0].mxu0
        %v6969 = vadd.f32 0.0, %v6968
        %v6970 = vpop.f32.mrb[0].mxu0
        %v6971 = vpop.f32.mrb[0].mxu0
        %v6972 = vadd.f32 0.0, %v6971
        %v6973 = vpop.f32.mrb[0].mxu0
        %6974 = vdwg.mxu0
        %6975 = vmatprep.subr.bf16.mxu0 0
        %6976 = vmatpush1.bf16.msra.mxu0 %v6782
        %6977 = vmatprep.subr.bf16.mxu0 0
        %6978 = vmatpush1.bf16.msra.mxu0 %v6783
        %6979 = vmatprep.subr.bf16.mxu0 0
        %6980 = vmatpush1.bf16.msra.mxu0 %v6784
        %6981 = vmatprep.subr.bf16.mxu0 0
        %6982 = vmatpush1.bf16.msra.mxu0 %v6785
        %6983 = vmatprep.subr.bf16.mxu0 0
        %6984 = vmatpush1.bf16.msra.mxu0 %v6786
        %6985 = vmatprep.subr.bf16.mxu0 0
        %6986 = vmatpush1.bf16.msra.mxu0 %v6787
        %6987 = vmatprep.subr.bf16.mxu0 0
        %6988 = vmatpush1.bf16.msra.mxu0 %v6788
        %6989 = vmatprep.subr.bf16.mxu0 0
        %6990 = vmatpush1.bf16.msra.mxu0 %v6789
        %6991 = vmatprep.subr.bf16.mxu0 0
        %6992 = vmatpush1.bf16.msra.mxu0 0
        %6993 = vmatprep.subr.bf16.mxu0 0
        %6994 = vmatpush1.bf16.msra.mxu0 0
        %6995 = vmatprep.subr.bf16.mxu0 0
        %6996 = vmatpush1.bf16.msra.mxu0 0
        %6997 = vmatprep.subr.bf16.mxu0 0
        %6998 = vmatpush1.bf16.msra.mxu0 0
        %6999 = vmatprep.subr.bf16.mxu0 0
        %7000 = vmatpush1.bf16.msra.mxu0 0
        %7001 = vmatprep.subr.bf16.mxu0 0
        %7002 = vmatpush1.bf16.msra.mxu0 0
        %7003 = vmatprep.subr.bf16.mxu0 0
        %7004 = vmatpush1.bf16.msra.mxu0 0
        %7005 = vmatprep.subr.bf16.mxu0 0
        %7006 = vmatpush1.bf16.msra.mxu0 0
        %7007 = vmatprep.mubr.bf16.mxu0 0
        %7008 = vmatmul.mubr.bf16.gmra.mrb[0].mxu0 %v5467
        %v7009 = vpop.f32.mrb[0].mxu0
        %v7010 = vadd.f32 %v6849, %v7009
        %v7011 = vpop.f32.mrb[0].mxu0
        %v7012 = vpop.f32.mrb[0].mxu0
        %v7013 = vadd.f32 %v6852, %v7012
        %v7014 = vpop.f32.mrb[0].mxu0
        %7015 = vmatprep.mubr.bf16.mxu0 0
        %7016 = vmatmul.mubr.bf16.gmra.mrb[0].mxu0 %v5475
        %v7017 = vpop.f32.mrb[0].mxu0
        %v7018 = vadd.f32 %v6857, %v7017
        %v7019 = vpop.f32.mrb[0].mxu0
        %v7020 = vpop.f32.mrb[0].mxu0
        %v7021 = vadd.f32 %v6860, %v7020
        %v7022 = vpop.f32.mrb[0].mxu0
        %7023 = vmatprep.mubr.bf16.mxu0 0
        %7024 = vmatmul.mubr.bf16.gmra.mrb[0].mxu0 %v5483
        %v7025 = vpop.f32.mrb[0].mxu0
        %v7026 = vadd.f32 %v6865, %v7025
        %v7027 = vpop.f32.mrb[0].mxu0
        %v7028 = vpop.f32.mrb[0].mxu0
        %v7029 = vadd.f32 %v6868, %v7028
        %v7030 = vpop.f32.mrb[0].mxu0
        %7031 = vmatprep.mubr.bf16.mxu0 0
        %7032 = vmatmul.mubr.bf16.gmra.mrb[0].mxu0 %v5491
        %v7033 = vpop.f32.mrb[0].mxu0
        %v7034 = vadd.f32 %v6873, %v7033
        %v7035 = vpop.f32.mrb[0].mxu0
        %v7036 = vpop.f32.mrb[0].mxu0
        %v7037 = vadd.f32 %v6876, %v7036
        %v7038 = vpop.f32.mrb[0].mxu0
        %7039 = vmatprep.mubr.bf16.mxu0 0
        %7040 = vmatmul.mubr.bf16.gmra.mrb[0].mxu0 %v5499
        %v7041 = vpop.f32.mrb[0].mxu0
        %v7042 = vadd.f32 %v6881, %v7041
        %v7043 = vpop.f32.mrb[0].mxu0
        %v7044 = vpop.f32.mrb[0].mxu0
        %v7045 = vadd.f32 %v6884, %v7044
        %v7046 = vpop.f32.mrb[0].mxu0
        %7047 = vmatprep.mubr.bf16.mxu0 0
        %7048 = vmatmul.mubr.bf16.gmra.mrb[0].mxu0 %v5507
        %v7049 = vpop.f32.mrb[0].mxu0
        %v7050 = vadd.f32 %v6889, %v7049
        %v7051 = vpop.f32.mrb[0].mxu0
        %v7052 = vpop.f32.mrb[0].mxu0
        %v7053 = vadd.f32 %v6892, %v7052
        %v7054 = vpop.f32.mrb[0].mxu0
        %7055 = vmatprep.mubr.bf16.mxu0 0
        %7056 = vmatmul.mubr.bf16.gmra.mrb[0].mxu0 %v5515
        %v7057 = vpop.f32.mrb[0].mxu0
        %v7058 = vadd.f32 %v6897, %v7057
        %v7059 = vpop.f32.mrb[0].mxu0
        %v7060 = vpop.f32.mrb[0].mxu0
        %v7061 = vadd.f32 %v6900, %v7060
        %v7062 = vpop.f32.mrb[0].mxu0
        %7063 = vmatprep.mubr.bf16.mxu0 0
        %7064 = vmatmul.mubr.bf16.gmra.mrb[0].mxu0 %v5523
        %v7065 = vpop.f32.mrb[0].mxu0
        %v7066 = vadd.f32 %v6905, %v7065
        %v7067 = vpop.f32.mrb[0].mxu0
        %v7068 = vpop.f32.mrb[0].mxu0
        %v7069 = vadd.f32 %v6908, %v7068
        %v7070 = vpop.f32.mrb[0].mxu0
        %7071 = vmatprep.mubr.bf16.mxu0 0
        %7072 = vmatmul.mubr.bf16.gmra.mrb[0].mxu0 %v5531
        %v7073 = vpop.f32.mrb[0].mxu0
        %v7074 = vadd.f32 %v6913, %v7073
        %v7075 = vpop.f32.mrb[0].mxu0
        %v7076 = vpop.f32.mrb[0].mxu0
        %v7077 = vadd.f32 %v6916, %v7076
        %v7078 = vpop.f32.mrb[0].mxu0
        %7079 = vmatprep.mubr.bf16.mxu0 0
        %7080 = vmatmul.mubr.bf16.gmra.mrb[0].mxu0 %v5539
        %v7081 = vpop.f32.mrb[0].mxu0
        %v7082 = vadd.f32 %v6921, %v7081
        %v7083 = vpop.f32.mrb[0].mxu0
        %v7084 = vpop.f32.mrb[0].mxu0
        %v7085 = vadd.f32 %v6924, %v7084
        %v7086 = vpop.f32.mrb[0].mxu0
        %7087 = vmatprep.mubr.bf16.mxu0 0
        %7088 = vmatmul.mubr.bf16.gmra.mrb[0].mxu0 %v5547
        %v7089 = vpop.f32.mrb[0].mxu0
        %v7090 = vadd.f32 %v6929, %v7089
        %v7091 = vpop.f32.mrb[0].mxu0
        %v7092 = vpop.f32.mrb[0].mxu0
        %v7093 = vadd.f32 %v6932, %v7092
        %v7094 = vpop.f32.mrb[0].mxu0
        %7095 = vmatprep.mubr.bf16.mxu0 0
        %7096 = vmatmul.mubr.bf16.gmra.mrb[0].mxu0 %v5555
        %v7097 = vpop.f32.mrb[0].mxu0
        %v7098 = vadd.f32 %v6937, %v7097
        %v7099 = vpop.f32.mrb[0].mxu0
        %v7100 = vpop.f32.mrb[0].mxu0
        %v7101 = vadd.f32 %v6940, %v7100
        %v7102 = vpop.f32.mrb[0].mxu0
        %7103 = vmatprep.mubr.bf16.mxu0 0
        %7104 = vmatmul.mubr.bf16.gmra.mrb[0].mxu0 %v5563
        %v7105 = vpop.f32.mrb[0].mxu0
        %v7106 = vadd.f32 %v6945, %v7105
        %v7107 = vpop.f32.mrb[0].mxu0
        %v7108 = vpop.f32.mrb[0].mxu0
        %v7109 = vadd.f32 %v6948, %v7108
        %v7110 = vpop.f32.mrb[0].mxu0
        %7111 = vmatprep.mubr.bf16.mxu0 0
        %7112 = vmatmul.mubr.bf16.gmra.mrb[0].mxu0 %v5571
        %v7113 = vpop.f32.mrb[0].mxu0
        %v7114 = vadd.f32 %v6953, %v7113
        %v7115 = vpop.f32.mrb[0].mxu0
        %v7116 = vpop.f32.mrb[0].mxu0
        %v7117 = vadd.f32 %v6956, %v7116
        %v7118 = vpop.f32.mrb[0].mxu0
        %7119 = vmatprep.mubr.bf16.mxu0 0
        %7120 = vmatmul.mubr.bf16.gmra.mrb[0].mxu0 %v5593
        %v7121 = vpop.f32.mrb[0].mxu0
        %v7122 = vadd.f32 %v6961, %v7121
        %v7123 = vpop.f32.mrb[0].mxu0
        %v7124 = vpop.f32.mrb[0].mxu0
        %v7125 = vadd.f32 %v6964, %v7124
        %v7126 = vpop.f32.mrb[0].mxu0
        %7127 = vmatprep.mubr.bf16.mxu0 0
        %7128 = vmatmul.mubr.bf16.gmra.mrb[0].mxu0 0
        %v7129 = vpop.f32.mrb[0].mxu0
        %v7130 = vadd.f32 %v6969, %v7129
        %v7131 = vpop.f32.mrb[0].mxu0
        %v7132 = vpop.f32.mrb[0].mxu0
        %v7133 = vadd.f32 %v6972, %v7132
        %v7134 = vpop.f32.mrb[0].mxu0
        %7135 = vdwg.mxu0
        %v7136 = vadd.f32 %v6496, %v7010
        %v7137 = vadd.f32 %v6499, %v7013
        %v7138 = vadd.f32 %v6504, %v7018
        %v7139 = vadd.f32 %v6507, %v7021
        %v7140 = vadd.f32 %v6512, %v7026
        %v7141 = vadd.f32 %v6515, %v7029
        %v7142 = vadd.f32 %v6520, %v7034
        %v7143 = vadd.f32 %v6523, %v7037
        %v7144 = vadd.f32 %v6528, %v7042
        %v7145 = vadd.f32 %v6531, %v7045
        %v7146 = vadd.f32 %v6536, %v7050
        %v7147 = vadd.f32 %v6539, %v7053
        %v7148 = vadd.f32 %v6544, %v7058
        %v7149 = vadd.f32 %v6547, %v7061
        %v7150 = vadd.f32 %v6552, %v7066
        %v7151 = vadd.f32 %v6555, %v7069
        %v7152 = vadd.f32 %v6560, %v7074
        %v7153 = vadd.f32 %v6563, %v7077
        %v7154 = vadd.f32 %v6568, %v7082
        %v7155 = vadd.f32 %v6571, %v7085
        %v7156 = vadd.f32 %v6576, %v7090
        %v7157 = vadd.f32 %v6579, %v7093
        %v7158 = vadd.f32 %v6584, %v7098
        %v7159 = vadd.f32 %v6587, %v7101
        %v7160 = vadd.f32 %v6592, %v7106
        %v7161 = vadd.f32 %v6595, %v7109
        %v7162 = vadd.f32 %v6600, %v7114
        %v7163 = vadd.f32 %v6603, %v7117
        %v7164 = vadd.f32 %v6608, %v7122
        %v7165 = vadd.f32 %v6611, %v7125
        %v7166 = vadd.f32 %v6616, %v7130
        %v7167 = vadd.f32 %v6619, %v7133
        %v7168 = vld [vmem:[%s3] sm:$0x1]
        %v7170 = vlaneseq
        %v7171 = vshrl.u32 %v7170, 7
        %v7172 = vsub.s32 0, %v7171
        %v7173 = vrot.slane %v7168, %v7172
        %v7175 = vmul.f32 %v7136, %v7173
        %v7176 = vmul.f32 %v7137, %v7173
        %v7177 = vmul.f32 %v7138, %v7173
        %v7178 = vmul.f32 %v7139, %v7173
        %v7179 = vmul.f32 %v7140, %v7173
        %v7180 = vmul.f32 %v7141, %v7173
        %v7181 = vmul.f32 %v7142, %v7173
        %v7182 = vmul.f32 %v7143, %v7173
        %v7183 = vmul.f32 %v7144, %v7173
        %v7184 = vmul.f32 %v7145, %v7173
        %v7185 = vmul.f32 %v7146, %v7173
        %v7186 = vmul.f32 %v7147, %v7173
        %v7187 = vmul.f32 %v7148, %v7173
        %v7188 = vmul.f32 %v7149, %v7173
        %v7189 = vmul.f32 %v7150, %v7173
        %v7190 = vmul.f32 %v7151, %v7173
        %v7191 = vmul.f32 %v7152, %v7173
        %v7192 = vmul.f32 %v7153, %v7173
        %v7193 = vmul.f32 %v7154, %v7173
        %v7194 = vmul.f32 %v7155, %v7173
        %v7195 = vmul.f32 %v7156, %v7173
        %v7196 = vmul.f32 %v7157, %v7173
        %v7197 = vmul.f32 %v7158, %v7173
        %v7198 = vmul.f32 %v7159, %v7173
        %v7199 = vmul.f32 %v7160, %v7173
        %v7200 = vmul.f32 %v7161, %v7173
        %v7201 = vmul.f32 %v7162, %v7173
        %v7202 = vmul.f32 %v7163, %v7173
        %v7203 = vmul.f32 %v7164, %v7173
        %v7204 = vmul.f32 %v7165, %v7173
        %v7205 = vmul.f32 %v7166, %v7173
        %v7206 = vmul.f32 %v7167, %v7173
        %v7207 = vld [vmem:[%s4] sm:$0x1]
        %v7209 = vlaneseq
        %v7210 = vshrl.u32 %v7209, 7
        %v7211 = vsub.s32 0, %v7210
        %v7212 = vrot.slane %v7207, %v7211
        %v7214 = vadd.f32 %v7175, %v7212
        %v7215 = vadd.f32 %v7176, %v7212
        %v7216 = vadd.f32 %v7177, %v7212
        %v7217 = vadd.f32 %v7178, %v7212
        %v7218 = vadd.f32 %v7179, %v7212
        %v7219 = vadd.f32 %v7180, %v7212
        %v7220 = vadd.f32 %v7181, %v7212
        %v7221 = vadd.f32 %v7182, %v7212
        %v7222 = vadd.f32 %v7183, %v7212
        %v7223 = vadd.f32 %v7184, %v7212
        %v7224 = vadd.f32 %v7185, %v7212
        %v7225 = vadd.f32 %v7186, %v7212
        %v7226 = vadd.f32 %v7187, %v7212
        %v7227 = vadd.f32 %v7188, %v7212
        %v7228 = vadd.f32 %v7189, %v7212
        %v7229 = vadd.f32 %v7190, %v7212
        %v7230 = vadd.f32 %v7191, %v7212
        %v7231 = vadd.f32 %v7192, %v7212
        %v7232 = vadd.f32 %v7193, %v7212
        %v7233 = vadd.f32 %v7194, %v7212
        %v7234 = vadd.f32 %v7195, %v7212
        %v7235 = vadd.f32 %v7196, %v7212
        %v7236 = vadd.f32 %v7197, %v7212
        %v7237 = vadd.f32 %v7198, %v7212
        %v7238 = vadd.f32 %v7199, %v7212
        %v7239 = vadd.f32 %v7200, %v7212
        %v7240 = vadd.f32 %v7201, %v7212
        %v7241 = vadd.f32 %v7202, %v7212
        %v7242 = vadd.f32 %v7203, %v7212
        %v7243 = vadd.f32 %v7204, %v7212
        %v7244 = vadd.f32 %v7205, %v7212
        %v7245 = vadd.f32 %v7206, %v7212
        %v7246 = vmax.f32 %v7214, 0.0
        %v7247 = vmax.f32 %v7215, 0.0
        %v7248 = vmax.f32 %v7216, 0.0
        %v7249 = vmax.f32 %v7217, 0.0
        %v7250 = vmax.f32 %v7218, 0.0
        %v7251 = vmax.f32 %v7219, 0.0
        %v7252 = vmax.f32 %v7220, 0.0
        %v7253 = vmax.f32 %v7221, 0.0
        %v7254 = vmax.f32 %v7222, 0.0
        %v7255 = vmax.f32 %v7223, 0.0
        %v7256 = vmax.f32 %v7224, 0.0
        %v7257 = vmax.f32 %v7225, 0.0
        %v7258 = vmax.f32 %v7226, 0.0
        %v7259 = vmax.f32 %v7227, 0.0
        %v7260 = vmax.f32 %v7228, 0.0
        %v7261 = vmax.f32 %v7229, 0.0
        %v7262 = vmax.f32 %v7230, 0.0
        %v7263 = vmax.f32 %v7231, 0.0
        %v7264 = vmax.f32 %v7232, 0.0
        %v7265 = vmax.f32 %v7233, 0.0
        %v7266 = vmax.f32 %v7234, 0.0
        %v7267 = vmax.f32 %v7235, 0.0
        %v7268 = vmax.f32 %v7236, 0.0
        %v7269 = vmax.f32 %v7237, 0.0
        %v7270 = vmax.f32 %v7238, 0.0
        %v7271 = vmax.f32 %v7239, 0.0
        %v7272 = vmax.f32 %v7240, 0.0
        %v7273 = vmax.f32 %v7241, 0.0
        %v7274 = vmax.f32 %v7242, 0.0
        %v7275 = vmax.f32 %v7243, 0.0
        %v7276 = vmax.f32 %v7244, 0.0
        %v7277 = vmax.f32 %v7245, 0.0
        %v7278 = vpack.c.bf16 %v7247, %v7246
        %v7279 = vpack.c.bf16 %v7249, %v7248
        %v7280 = vpack.c.bf16 %v7251, %v7250
        %v7281 = vpack.c.bf16 %v7253, %v7252
        %v7282 = vpack.c.bf16 %v7255, %v7254
        %v7283 = vpack.c.bf16 %v7257, %v7256
        %v7284 = vpack.c.bf16 %v7259, %v7258
        %v7285 = vpack.c.bf16 %v7261, %v7260
        %v7286 = vpack.c.bf16 %v7263, %v7262
        %v7287 = vpack.c.bf16 %v7265, %v7264
        %v7288 = vpack.c.bf16 %v7267, %v7266
        %v7289 = vpack.c.bf16 %v7269, %v7268
        %v7290 = vpack.c.bf16 %v7271, %v7270
        %v7291 = vpack.c.bf16 %v7273, %v7272
        %v7292 = vpack.c.bf16 %v7275, %v7274
        %v7293 = vpack.c.bf16 %v7277, %v7276
        %v7294 = vsel %vm2708, %v7278, 0
        %v7295 = vsel %vm2708, %v7279, 0
        %v7296 = vsel %vm2708, %v7280, 0
        %v7297 = vsel %vm2708, %v7281, 0
        %v7298 = vsel %vm2708, %v7282, 0
        %v7299 = vsel %vm2708, %v7283, 0
        %v7300 = vsel %vm2708, %v7284, 0
        %v7301 = vsel %vm2708, %v7285, 0
        %v7302 = vsel %vm2708, %v7286, 0
        %v7303 = vsel %vm2708, %v7287, 0
        %v7304 = vsel %vm2708, %v7288, 0
        %v7305 = vsel %vm2708, %v7289, 0
        %v7306 = vsel %vm2708, %v7290, 0
        %v7307 = vsel %vm2708, %v7291, 0
        %v7308 = vsel %vm2708, %v7292, 0
        %v7309 = vsel %vm2708, %v7293, 0
        %v7310 = vsel %vm2730, %v7278, 0
        %v7311 = vsel %vm2730, %v7279, 0
        %v7312 = vsel %vm2730, %v7280, 0
        %v7313 = vsel %vm2730, %v7281, 0
        %v7314 = vsel %vm2730, %v7282, 0
        %v7315 = vsel %vm2730, %v7283, 0
        %v7316 = vsel %vm2730, %v7284, 0
        %v7317 = vsel %vm2730, %v7285, 0
        %v7318 = vsel %vm2730, %v7286, 0
        %v7319 = vsel %vm2730, %v7287, 0
        %v7320 = vsel %vm2730, %v7288, 0
        %v7321 = vsel %vm2730, %v7289, 0
        %v7322 = vsel %vm2730, %v7290, 0
        %v7323 = vsel %vm2730, %v7291, 0
        %v7324 = vsel %vm2730, %v7292, 0
        %v7325 = vsel %vm2730, %v7293, 0
        %v7327 = vshrl.u32 %v7294, 16
        %v7329 = vrot.slane %v7327, 7
        %v7330 = vshll.u32 %v7294, 16
        %v7332 = vor.u32 %v7329, %v7330
        %v7334 = vshrl.u32 %v7295, 16
        %v7336 = vrot.slane %v7334, 7
        %v7337 = vshll.u32 %v7295, 16
        %v7339 = vor.u32 %v7336, %v7337
        %v7340 = vsel %vm527, %v7329, %v7339
        %v7342 = vshrl.u32 %v7296, 16
        %v7344 = vrot.slane %v7342, 7
        %v7345 = vshll.u32 %v7296, 16
        %v7347 = vor.u32 %v7344, %v7345
        %v7348 = vsel %vm527, %v7336, %v7347
        %v7350 = vshrl.u32 %v7297, 16
        %v7352 = vrot.slane %v7350, 7
        %v7353 = vshll.u32 %v7297, 16
        %v7355 = vor.u32 %v7352, %v7353
        %v7356 = vsel %vm527, %v7344, %v7355
        %v7358 = vshrl.u32 %v7298, 16
        %v7360 = vrot.slane %v7358, 7
        %v7361 = vshll.u32 %v7298, 16
        %v7363 = vor.u32 %v7360, %v7361
        %v7364 = vsel %vm527, %v7352, %v7363
        %v7366 = vshrl.u32 %v7299, 16
        %v7368 = vrot.slane %v7366, 7
        %v7369 = vshll.u32 %v7299, 16
        %v7371 = vor.u32 %v7368, %v7369
        %v7372 = vsel %vm527, %v7360, %v7371
        %v7374 = vshrl.u32 %v7300, 16
        %v7376 = vrot.slane %v7374, 7
        %v7377 = vshll.u32 %v7300, 16
        %v7379 = vor.u32 %v7376, %v7377
        %v7380 = vsel %vm527, %v7368, %v7379
        %v7382 = vshrl.u32 %v7301, 16
        %v7384 = vrot.slane %v7382, 7
        %v7385 = vshll.u32 %v7301, 16
        %v7387 = vor.u32 %v7384, %v7385
        %v7388 = vsel %vm527, %v7376, %v7387
        %v7390 = vshrl.u32 %v7302, 16
        %v7392 = vrot.slane %v7390, 7
        %v7393 = vshll.u32 %v7302, 16
        %v7395 = vor.u32 %v7392, %v7393
        %v7396 = vsel %vm527, %v7384, %v7395
        %v7398 = vshrl.u32 %v7303, 16
        %v7400 = vrot.slane %v7398, 7
        %v7401 = vshll.u32 %v7303, 16
        %v7403 = vor.u32 %v7400, %v7401
        %v7404 = vsel %vm527, %v7392, %v7403
        %v7406 = vshrl.u32 %v7304, 16
        %v7408 = vrot.slane %v7406, 7
        %v7409 = vshll.u32 %v7304, 16
        %v7411 = vor.u32 %v7408, %v7409
        %v7412 = vsel %vm527, %v7400, %v7411
        %v7414 = vshrl.u32 %v7305, 16
        %v7416 = vrot.slane %v7414, 7
        %v7417 = vshll.u32 %v7305, 16
        %v7419 = vor.u32 %v7416, %v7417
        %v7420 = vsel %vm527, %v7408, %v7419
        %v7422 = vshrl.u32 %v7306, 16
        %v7424 = vrot.slane %v7422, 7
        %v7425 = vshll.u32 %v7306, 16
        %v7427 = vor.u32 %v7424, %v7425
        %v7428 = vsel %vm527, %v7416, %v7427
        %v7430 = vshrl.u32 %v7307, 16
        %v7432 = vrot.slane %v7430, 7
        %v7433 = vshll.u32 %v7307, 16
        %v7435 = vor.u32 %v7432, %v7433
        %v7436 = vsel %vm527, %v7424, %v7435
        %v7438 = vshrl.u32 %v7308, 16
        %v7440 = vrot.slane %v7438, 7
        %v7441 = vshll.u32 %v7308, 16
        %v7443 = vor.u32 %v7440, %v7441
        %v7444 = vsel %vm527, %v7432, %v7443
        %v7446 = vshrl.u32 %v7309, 16
        %v7448 = vrot.slane %v7446, 7
        %v7449 = vshll.u32 %v7309, 16
        %v7451 = vor.u32 %v7448, %v7449
        %v7452 = vsel %vm527, %v7440, %v7451
        %v7470 = vsel %vm673, 0, %v7332
        %v7471 = vsel %vm673, %v7448, 0
        %v7473 = vshll.u32 %v7310, 16
        %v7475 = vrot.slane %v7473, 1
        %v7476 = vshrl.u32 %v7310, 16
        %v7478 = vor.u32 %v7476, %v7475
        %v7480 = vshll.u32 %v7311, 16
        %v7482 = vrot.slane %v7480, 1
        %v7483 = vsel %vm852, %v7478, %v7482
        %v7484 = vshrl.u32 %v7311, 16
        %v7486 = vor.u32 %v7484, %v7482
        %v7488 = vshll.u32 %v7312, 16
        %v7490 = vrot.slane %v7488, 1
        %v7491 = vsel %vm852, %v7486, %v7490
        %v7492 = vshrl.u32 %v7312, 16
        %v7494 = vor.u32 %v7492, %v7490
        %v7496 = vshll.u32 %v7313, 16
        %v7498 = vrot.slane %v7496, 1
        %v7499 = vsel %vm852, %v7494, %v7498
        %v7500 = vshrl.u32 %v7313, 16
        %v7502 = vor.u32 %v7500, %v7498
        %v7504 = vshll.u32 %v7314, 16
        %v7506 = vrot.slane %v7504, 1
        %v7507 = vsel %vm852, %v7502, %v7506
        %v7508 = vshrl.u32 %v7314, 16
        %v7510 = vor.u32 %v7508, %v7506
        %v7512 = vshll.u32 %v7315, 16
        %v7514 = vrot.slane %v7512, 1
        %v7515 = vsel %vm852, %v7510, %v7514
        %v7516 = vshrl.u32 %v7315, 16
        %v7518 = vor.u32 %v7516, %v7514
        %v7520 = vshll.u32 %v7316, 16
        %v7522 = vrot.slane %v7520, 1
        %v7523 = vsel %vm852, %v7518, %v7522
        %v7524 = vshrl.u32 %v7316, 16
        %v7526 = vor.u32 %v7524, %v7522
        %v7528 = vshll.u32 %v7317, 16
        %v7530 = vrot.slane %v7528, 1
        %v7531 = vsel %vm852, %v7526, %v7530
        %v7532 = vshrl.u32 %v7317, 16
        %v7534 = vor.u32 %v7532, %v7530
        %v7536 = vshll.u32 %v7318, 16
        %v7538 = vrot.slane %v7536, 1
        %v7539 = vsel %vm852, %v7534, %v7538
        %v7540 = vshrl.u32 %v7318, 16
        %v7542 = vor.u32 %v7540, %v7538
        %v7544 = vshll.u32 %v7319, 16
        %v7546 = vrot.slane %v7544, 1
        %v7547 = vsel %vm852, %v7542, %v7546
        %v7548 = vshrl.u32 %v7319, 16
        %v7550 = vor.u32 %v7548, %v7546
        %v7552 = vshll.u32 %v7320, 16
        %v7554 = vrot.slane %v7552, 1
        %v7555 = vsel %vm852, %v7550, %v7554
        %v7556 = vshrl.u32 %v7320, 16
        %v7558 = vor.u32 %v7556, %v7554
        %v7560 = vshll.u32 %v7321, 16
        %v7562 = vrot.slane %v7560, 1
        %v7563 = vsel %vm852, %v7558, %v7562
        %v7564 = vshrl.u32 %v7321, 16
        %v7566 = vor.u32 %v7564, %v7562
        %v7568 = vshll.u32 %v7322, 16
        %v7570 = vrot.slane %v7568, 1
        %v7571 = vsel %vm852, %v7566, %v7570
        %v7572 = vshrl.u32 %v7322, 16
        %v7574 = vor.u32 %v7572, %v7570
        %v7576 = vshll.u32 %v7323, 16
        %v7578 = vrot.slane %v7576, 1
        %v7579 = vsel %vm852, %v7574, %v7578
        %v7580 = vshrl.u32 %v7323, 16
        %v7582 = vor.u32 %v7580, %v7578
        %v7584 = vshll.u32 %v7324, 16
        %v7586 = vrot.slane %v7584, 1
        %v7587 = vsel %vm852, %v7582, %v7586
        %v7588 = vshrl.u32 %v7324, 16
        %v7590 = vor.u32 %v7588, %v7586
        %v7592 = vshll.u32 %v7325, 16
        %v7594 = vrot.slane %v7592, 1
        %v7595 = vsel %vm852, %v7590, %v7594
        %v7596 = vshrl.u32 %v7325, 16
        %v7598 = vor.u32 %v7596, %v7594
        %v7616 = vsel %vm998, 0, %v7475
        %v7617 = vsel %vm998, %v7598, 0
        %v7618 = vld [vmem:[#allocation7] sm:$0xf]
        %v7619 = vld [vmem:[#allocation7 + $0x4] sm:$0xf]
        %v7620 = vld [vmem:[#allocation7 + $0x8] sm:$0xf]
        %v7621 = vld [vmem:[#allocation7 + $0xc] sm:$0xf]
        %v7622 = vld [vmem:[#allocation7 + $0x10] sm:$0xf]
        %v7623 = vld [vmem:[#allocation7 + $0x14] sm:$0xf]
        %v7624 = vld [vmem:[#allocation7 + $0x18] sm:$0xf]
        %v7625 = vld [vmem:[#allocation7 + $0x1c] sm:$0xf]
        %v7626 = vld [vmem:[#allocation7 + $0x20] sm:$0xf]
        %v7627 = vld [vmem:[#allocation7 + $0x24] sm:$0xf]
        %v7628 = vld [vmem:[#allocation7 + $0x28] sm:$0xf]
        %v7629 = vld [vmem:[#allocation7 + $0x2c] sm:$0xf]
        %v7630 = vld [vmem:[#allocation7 + $0x30] sm:$0xf]
        %v7631 = vld [vmem:[#allocation7 + $0x34] sm:$0xf]
        %v7632 = vld [vmem:[#allocation7 + $0x38] sm:$0xf]
        %v7633 = vld [vmem:[#allocation7 + $0x3c] sm:$0xf]
        %v7634 = vld [vmem:[#allocation7 + $0x40] sm:$0xf]
        %v7635 = vld [vmem:[#allocation7 + $0x44] sm:$0xf]
        %v7636 = vld [vmem:[#allocation7 + $0x48] sm:$0xf]
        %v7637 = vld [vmem:[#allocation7 + $0x4c] sm:$0xf]
        %v7638 = vld [vmem:[#allocation7 + $0x50] sm:$0xf]
        %v7639 = vld [vmem:[#allocation7 + $0x54] sm:$0xf]
        %v7640 = vld [vmem:[#allocation7 + $0x58] sm:$0xf]
        %v7641 = vld [vmem:[#allocation7 + $0x5c] sm:$0xf]
        %v7642 = vld [vmem:[#allocation7 + $0x60] sm:$0xf]
        %v7643 = vld [vmem:[#allocation7 + $0x64] sm:$0xf]
        %v7644 = vld [vmem:[#allocation7 + $0x68] sm:$0xf]
        %v7645 = vld [vmem:[#allocation7 + $0x6c] sm:$0xf]
        %v7646 = vld [vmem:[#allocation7 + $0x70] sm:$0xf]
        %v7647 = vld [vmem:[#allocation7 + $0x74] sm:$0xf]
        %v7648 = vld [vmem:[#allocation7 + $0x78] sm:$0xf]
        %v7649 = vld [vmem:[#allocation7 + $0x7c] sm:$0xf]
        %v7650 = vld [vmem:[#allocation7 + $0x80] sm:$0xf]
        %v7651 = vld [vmem:[#allocation7 + $0x84] sm:$0xf]
        %v7652 = vld [vmem:[#allocation7 + $0x88] sm:$0xf]
        %v7653 = vld [vmem:[#allocation7 + $0x8c] sm:$0xf]
        %v7654 = vld [vmem:[#allocation7 + $0x90] sm:$0xf]
        %v7655 = vld [vmem:[#allocation7 + $0x94] sm:$0xf]
        %v7656 = vld [vmem:[#allocation7 + $0x98] sm:$0xf]
        %v7657 = vld [vmem:[#allocation7 + $0x9c] sm:$0xf]
        %v7658 = vld [vmem:[#allocation7 + $0xa0] sm:$0xf]
        %v7659 = vld [vmem:[#allocation7 + $0xa4] sm:$0xf]
        %v7660 = vld [vmem:[#allocation7 + $0xa8] sm:$0xf]
        %v7661 = vld [vmem:[#allocation7 + $0xac] sm:$0xf]
        %v7662 = vld [vmem:[#allocation7 + $0xb0] sm:$0xf]
        %v7663 = vld [vmem:[#allocation7 + $0xb4] sm:$0xf]
        %v7664 = vld [vmem:[#allocation7 + $0xb8] sm:$0xf]
        %v7665 = vld [vmem:[#allocation7 + $0xbc] sm:$0xf]
        %v7666 = vld [vmem:[%s3087] sm:$0xf]
        %v7667 = vld [vmem:[%s3087 + $0x4] sm:$0xf]
        %v7668 = vld [vmem:[%s3087 + $0x8] sm:$0xf]
        %v7669 = vld [vmem:[%s3087 + $0xc] sm:$0xf]
        %v7670 = vld [vmem:[%s3087 + $0x10] sm:$0xf]
        %v7671 = vld [vmem:[%s3087 + $0x14] sm:$0xf]
        %v7672 = vld [vmem:[%s3087 + $0x18] sm:$0xf]
        %v7673 = vld [vmem:[%s3087 + $0x1c] sm:$0xf]
        %v7674 = vld [vmem:[%s3087 + $0x20] sm:$0xf]
        %v7675 = vld [vmem:[%s3087 + $0x24] sm:$0xf]
        %v7676 = vld [vmem:[%s3087 + $0x28] sm:$0xf]
        %v7677 = vld [vmem:[%s3087 + $0x2c] sm:$0xf]
        %v7678 = vld [vmem:[%s3087 + $0x30] sm:$0xf]
        %v7679 = vld [vmem:[%s3087 + $0x34] sm:$0xf]
        %v7680 = vld [vmem:[%s3087 + $0x38] sm:$0xf]
        %v7681 = vld [vmem:[%s3087 + $0x3c] sm:$0xf]
        %v7682 = vld [vmem:[%s3087 + $0x40] sm:$0xf]
        %v7683 = vld [vmem:[%s3087 + $0x44] sm:$0xf]
        %v7684 = vld [vmem:[%s3087 + $0x48] sm:$0xf]
        %v7685 = vld [vmem:[%s3087 + $0x4c] sm:$0xf]
        %v7686 = vld [vmem:[%s3087 + $0x50] sm:$0xf]
        %v7687 = vld [vmem:[%s3087 + $0x54] sm:$0xf]
        %v7688 = vld [vmem:[%s3087 + $0x58] sm:$0xf]
        %v7689 = vld [vmem:[%s3087 + $0x5c] sm:$0xf]
        %v7690 = vld [vmem:[%s3087 + $0x60] sm:$0xf]
        %v7691 = vld [vmem:[%s3087 + $0x64] sm:$0xf]
        %v7692 = vld [vmem:[%s3087 + $0x68] sm:$0xf]
        %v7693 = vld [vmem:[%s3087 + $0x6c] sm:$0xf]
        %v7694 = vld [vmem:[%s3087 + $0x70] sm:$0xf]
        %v7695 = vld [vmem:[%s3087 + $0x74] sm:$0xf]
        %v7696 = vld [vmem:[%s3087 + $0x78] sm:$0xf]
        %v7697 = vld [vmem:[%s3087 + $0x7c] sm:$0xf]
        %v7698 = vld [vmem:[%s3087 + $0x80] sm:$0xf]
        %v7699 = vld [vmem:[%s3087 + $0x84] sm:$0xf]
        %v7700 = vld [vmem:[%s3087 + $0x88] sm:$0xf]
        %v7701 = vld [vmem:[%s3087 + $0x8c] sm:$0xf]
        %v7702 = vld [vmem:[%s3087 + $0x90] sm:$0xf]
        %v7703 = vld [vmem:[%s3087 + $0x94] sm:$0xf]
        %v7704 = vld [vmem:[%s3087 + $0x98] sm:$0xf]
        %v7705 = vld [vmem:[%s3087 + $0x9c] sm:$0xf]
        %v7706 = vld [vmem:[%s3087 + $0xa0] sm:$0xf]
        %v7707 = vld [vmem:[%s3087 + $0xa4] sm:$0xf]
        %v7708 = vld [vmem:[%s3087 + $0xa8] sm:$0xf]
        %v7709 = vld [vmem:[%s3087 + $0xac] sm:$0xf]
        %v7710 = vld [vmem:[%s3087 + $0xb0] sm:$0xf]
        %v7711 = vld [vmem:[%s3087 + $0xb4] sm:$0xf]
        %v7712 = vld [vmem:[%s3087 + $0xb8] sm:$0xf]
        %v7713 = vld [vmem:[%s3087 + $0xbc] sm:$0xf]
        %v7762 = vunpack.c.l.b16 %v7666
        %v7763 = vunpack.c.l.b16 %v7667
        %v7764 = vunpack.c.l.b16 %v7668
        %v7765 = vunpack.c.l.b16 %v7669
        %v7766 = vunpack.c.l.b16 %v7670
        %v7767 = vunpack.c.l.b16 %v7671
        %v7768 = vunpack.c.l.b16 %v7672
        %v7769 = vunpack.c.l.b16 %v7673
        %v7770 = vunpack.c.l.b16 %v7674
        %v7771 = vunpack.c.l.b16 %v7675
        %v7772 = vunpack.c.l.b16 %v7676
        %v7773 = vunpack.c.l.b16 %v7677
        %v7774 = vunpack.c.l.b16 %v7678
        %v7775 = vunpack.c.l.b16 %v7679
        %v7776 = vunpack.c.l.b16 %v7680
        %v7777 = vunpack.c.l.b16 %v7681
        %v7778 = vunpack.c.l.b16 %v7682
        %v7779 = vunpack.c.l.b16 %v7683
        %v7780 = vunpack.c.l.b16 %v7684
        %v7781 = vunpack.c.l.b16 %v7685
        %v7782 = vunpack.c.l.b16 %v7686
        %v7783 = vunpack.c.l.b16 %v7687
        %v7784 = vunpack.c.l.b16 %v7688
        %v7785 = vunpack.c.l.b16 %v7689
        %v7786 = vunpack.c.l.b16 %v7690
        %v7787 = vunpack.c.l.b16 %v7691
        %v7788 = vunpack.c.l.b16 %v7692
        %v7789 = vunpack.c.l.b16 %v7693
        %v7790 = vunpack.c.l.b16 %v7694
        %v7791 = vunpack.c.l.b16 %v7695
        %v7792 = vunpack.c.l.b16 %v7696
        %v7793 = vunpack.c.l.b16 %v7697
        %v7794 = vunpack.c.l.b16 %v7698
        %v7795 = vunpack.c.l.b16 %v7699
        %v7796 = vunpack.c.l.b16 %v7700
        %v7797 = vunpack.c.l.b16 %v7701
        %v7798 = vunpack.c.l.b16 %v7702
        %v7799 = vunpack.c.l.b16 %v7703
        %v7800 = vunpack.c.l.b16 %v7704
        %v7801 = vunpack.c.l.b16 %v7705
        %v7802 = vunpack.c.l.b16 %v7706
        %v7803 = vunpack.c.l.b16 %v7707
        %v7804 = vunpack.c.l.b16 %v7708
        %v7805 = vunpack.c.l.b16 %v7709
        %v7806 = vunpack.c.l.b16 %v7710
        %v7807 = vunpack.c.l.b16 %v7711
        %v7808 = vunpack.c.l.b16 %v7712
        %v7809 = vunpack.c.l.b16 %v7713
        %v7810 = vpack.c.b16 %v7763, %v7762
        %v7811 = vpack.c.b16 %v7765, %v7764
        %v7812 = vpack.c.b16 %v7767, %v7766
        %v7813 = vpack.c.b16 %v7769, %v7768
        %v7814 = vpack.c.b16 %v7771, %v7770
        %v7815 = vpack.c.b16 %v7773, %v7772
        %v7816 = vpack.c.b16 %v7775, %v7774
        %v7817 = vpack.c.b16 %v7777, %v7776
        %v7818 = vpack.c.b16 %v7779, %v7778
        %v7819 = vpack.c.b16 %v7781, %v7780
        %v7820 = vpack.c.b16 %v7783, %v7782
        %v7821 = vpack.c.b16 %v7785, %v7784
        %v7822 = vpack.c.b16 %v7787, %v7786
        %v7823 = vpack.c.b16 %v7789, %v7788
        %v7824 = vpack.c.b16 %v7791, %v7790
        %v7825 = vpack.c.b16 %v7793, %v7792
        %v7826 = vpack.c.b16 %v7795, %v7794
        %v7827 = vpack.c.b16 %v7797, %v7796
        %v7828 = vpack.c.b16 %v7799, %v7798
        %v7829 = vpack.c.b16 %v7801, %v7800
        %v7830 = vpack.c.b16 %v7803, %v7802
        %v7831 = vpack.c.b16 %v7805, %v7804
        %v7832 = vpack.c.b16 %v7807, %v7806
        %v7833 = vpack.c.b16 %v7809, %v7808
        %7858 = vmatprep.subr.bf16.mxu0 0
        %7859 = vmatpush1.bf16.msra.mxu0 %v7810
        %7860 = vmatprep.subr.bf16.mxu0 0
        %7861 = vmatpush1.bf16.msra.mxu0 %v7811
        %7862 = vmatprep.subr.bf16.mxu0 0
        %7863 = vmatpush1.bf16.msra.mxu0 %v7812
        %7864 = vmatprep.subr.bf16.mxu0 0
        %7865 = vmatpush1.bf16.msra.mxu0 %v7813
        %7866 = vmatprep.subr.bf16.mxu0 0
        %7867 = vmatpush1.bf16.msra.mxu0 %v7814
        %7868 = vmatprep.subr.bf16.mxu0 0
        %7869 = vmatpush1.bf16.msra.mxu0 %v7815
        %7870 = vmatprep.subr.bf16.mxu0 0
        %7871 = vmatpush1.bf16.msra.mxu0 %v7816
        %7872 = vmatprep.subr.bf16.mxu0 0
        %7873 = vmatpush1.bf16.msra.mxu0 %v7817
        %7874 = vmatprep.subr.bf16.mxu0 0
        %7875 = vmatpush1.bf16.msra.mxu0 %v7818
        %7876 = vmatprep.subr.bf16.mxu0 0
        %7877 = vmatpush1.bf16.msra.mxu0 %v7819
        %7878 = vmatprep.subr.bf16.mxu0 0
        %7879 = vmatpush1.bf16.msra.mxu0 %v7820
        %7880 = vmatprep.subr.bf16.mxu0 0
        %7881 = vmatpush1.bf16.msra.mxu0 %v7821
        %7882 = vmatprep.subr.bf16.mxu0 0
        %7883 = vmatpush1.bf16.msra.mxu0 %v7822
        %7884 = vmatprep.subr.bf16.mxu0 0
        %7885 = vmatpush1.bf16.msra.mxu0 %v7823
        %7886 = vmatprep.subr.bf16.mxu0 0
        %7887 = vmatpush1.bf16.msra.mxu0 %v7824
        %7888 = vmatprep.subr.bf16.mxu0 0
        %7889 = vmatpush1.bf16.msra.mxu0 %v7825
        %7890 = vmatprep.mubr.bf16.mxu0 %v7278
        %7891 = vmatmul.mubr.bf16.gmra.mrb[0].mxu0 %v7470
        %v7892 = vpop.f32.mrb[0].mxu0
        %v7893 = vadd.f32 0.0, %v7892
        %v7894 = vpop.f32.mrb[0].mxu0
        %v7895 = vpop.f32.mrb[0].mxu0
        %v7896 = vadd.f32 0.0, %v7895
        %v7897 = vpop.f32.mrb[0].mxu0
        %7898 = vmatprep.mubr.bf16.mxu0 %v7279
        %7899 = vmatmul.mubr.bf16.gmra.mrb[0].mxu0 %v7340
        %v7900 = vpop.f32.mrb[0].mxu0
        %v7901 = vadd.f32 0.0, %v7900
        %v7902 = vpop.f32.mrb[0].mxu0
        %v7903 = vpop.f32.mrb[0].mxu0
        %v7904 = vadd.f32 0.0, %v7903
        %v7905 = vpop.f32.mrb[0].mxu0
        %7906 = vmatprep.mubr.bf16.mxu0 %v7280
        %7907 = vmatmul.mubr.bf16.gmra.mrb[0].mxu0 %v7348
        %v7908 = vpop.f32.mrb[0].mxu0
        %v7909 = vadd.f32 0.0, %v7908
        %v7910 = vpop.f32.mrb[0].mxu0
        %v7911 = vpop.f32.mrb[0].mxu0
        %v7912 = vadd.f32 0.0, %v7911
        %v7913 = vpop.f32.mrb[0].mxu0
        %7914 = vmatprep.mubr.bf16.mxu0 %v7281
        %7915 = vmatmul.mubr.bf16.gmra.mrb[0].mxu0 %v7356
        %v7916 = vpop.f32.mrb[0].mxu0
        %v7917 = vadd.f32 0.0, %v7916
        %v7918 = vpop.f32.mrb[0].mxu0
        %v7919 = vpop.f32.mrb[0].mxu0
        %v7920 = vadd.f32 0.0, %v7919
        %v7921 = vpop.f32.mrb[0].mxu0
        %7922 = vmatprep.mubr.bf16.mxu0 %v7282
        %7923 = vmatmul.mubr.bf16.gmra.mrb[0].mxu0 %v7364
        %v7924 = vpop.f32.mrb[0].mxu0
        %v7925 = vadd.f32 0.0, %v7924
        %v7926 = vpop.f32.mrb[0].mxu0
        %v7927 = vpop.f32.mrb[0].mxu0
        %v7928 = vadd.f32 0.0, %v7927
        %v7929 = vpop.f32.mrb[0].mxu0
        %7930 = vmatprep.mubr.bf16.mxu0 %v7283
        %7931 = vmatmul.mubr.bf16.gmra.mrb[0].mxu0 %v7372
        %v7932 = vpop.f32.mrb[0].mxu0
        %v7933 = vadd.f32 0.0, %v7932
        %v7934 = vpop.f32.mrb[0].mxu0
        %v7935 = vpop.f32.mrb[0].mxu0
        %v7936 = vadd.f32 0.0, %v7935
        %v7937 = vpop.f32.mrb[0].mxu0
        %7938 = vmatprep.mubr.bf16.mxu0 %v7284
        %7939 = vmatmul.mubr.bf16.gmra.mrb[0].mxu0 %v7380
        %v7940 = vpop.f32.mrb[0].mxu0
        %v7941 = vadd.f32 0.0, %v7940
        %v7942 = vpop.f32.mrb[0].mxu0
        %v7943 = vpop.f32.mrb[0].mxu0
        %v7944 = vadd.f32 0.0, %v7943
        %v7945 = vpop.f32.mrb[0].mxu0
        %7946 = vmatprep.mubr.bf16.mxu0 %v7285
        %7947 = vmatmul.mubr.bf16.gmra.mrb[0].mxu0 %v7388
        %v7948 = vpop.f32.mrb[0].mxu0
        %v7949 = vadd.f32 0.0, %v7948
        %v7950 = vpop.f32.mrb[0].mxu0
        %v7951 = vpop.f32.mrb[0].mxu0
        %v7952 = vadd.f32 0.0, %v7951
        %v7953 = vpop.f32.mrb[0].mxu0
        %7954 = vmatprep.mubr.bf16.mxu0 %v7286
        %7955 = vmatmul.mubr.bf16.gmra.mrb[0].mxu0 %v7396
        %v7956 = vpop.f32.mrb[0].mxu0
        %v7957 = vadd.f32 0.0, %v7956
        %v7958 = vpop.f32.mrb[0].mxu0
        %v7959 = vpop.f32.mrb[0].mxu0
        %v7960 = vadd.f32 0.0, %v7959
        %v7961 = vpop.f32.mrb[0].mxu0
        %7962 = vmatprep.mubr.bf16.mxu0 %v7287
        %7963 = vmatmul.mubr.bf16.gmra.mrb[0].mxu0 %v7404
        %v7964 = vpop.f32.mrb[0].mxu0
        %v7965 = vadd.f32 0.0, %v7964
        %v7966 = vpop.f32.mrb[0].mxu0
        %v7967 = vpop.f32.mrb[0].mxu0
        %v7968 = vadd.f32 0.0, %v7967
        %v7969 = vpop.f32.mrb[0].mxu0
        %7970 = vmatprep.mubr.bf16.mxu0 %v7288
        %7971 = vmatmul.mubr.bf16.gmra.mrb[0].mxu0 %v7412
        %v7972 = vpop.f32.mrb[0].mxu0
        %v7973 = vadd.f32 0.0, %v7972
        %v7974 = vpop.f32.mrb[0].mxu0
        %v7975 = vpop.f32.mrb[0].mxu0
        %v7976 = vadd.f32 0.0, %v7975
        %v7977 = vpop.f32.mrb[0].mxu0
        %7978 = vmatprep.mubr.bf16.mxu0 %v7289
        %7979 = vmatmul.mubr.bf16.gmra.mrb[0].mxu0 %v7420
        %v7980 = vpop.f32.mrb[0].mxu0
        %v7981 = vadd.f32 0.0, %v7980
        %v7982 = vpop.f32.mrb[0].mxu0
        %v7983 = vpop.f32.mrb[0].mxu0
        %v7984 = vadd.f32 0.0, %v7983
        %v7985 = vpop.f32.mrb[0].mxu0
        %7986 = vmatprep.mubr.bf16.mxu0 %v7290
        %7987 = vmatmul.mubr.bf16.gmra.mrb[0].mxu0 %v7428
        %v7988 = vpop.f32.mrb[0].mxu0
        %v7989 = vadd.f32 0.0, %v7988
        %v7990 = vpop.f32.mrb[0].mxu0
        %v7991 = vpop.f32.mrb[0].mxu0
        %v7992 = vadd.f32 0.0, %v7991
        %v7993 = vpop.f32.mrb[0].mxu0
        %7994 = vmatprep.mubr.bf16.mxu0 %v7291
        %7995 = vmatmul.mubr.bf16.gmra.mrb[0].mxu0 %v7436
        %v7996 = vpop.f32.mrb[0].mxu0
        %v7997 = vadd.f32 0.0, %v7996
        %v7998 = vpop.f32.mrb[0].mxu0
        %v7999 = vpop.f32.mrb[0].mxu0
        %v8000 = vadd.f32 0.0, %v7999
        %v8001 = vpop.f32.mrb[0].mxu0
        %8002 = vmatprep.mubr.bf16.mxu0 %v7292
        %8003 = vmatmul.mubr.bf16.gmra.mrb[0].mxu0 %v7444
        %v8004 = vpop.f32.mrb[0].mxu0
        %v8005 = vadd.f32 0.0, %v8004
        %v8006 = vpop.f32.mrb[0].mxu0
        %v8007 = vpop.f32.mrb[0].mxu0
        %v8008 = vadd.f32 0.0, %v8007
        %v8009 = vpop.f32.mrb[0].mxu0
        %8010 = vmatprep.mubr.bf16.mxu0 %v7293
        %8011 = vmatmul.mubr.bf16.gmra.mrb[0].mxu0 %v7452
        %v8012 = vpop.f32.mrb[0].mxu0
        %v8013 = vadd.f32 0.0, %v8012
        %v8014 = vpop.f32.mrb[0].mxu0
        %v8015 = vpop.f32.mrb[0].mxu0
        %v8016 = vadd.f32 0.0, %v8015
        %v8017 = vpop.f32.mrb[0].mxu0
        %8018 = vdwg.mxu0
        %8019 = vmatprep.subr.bf16.mxu0 0
        %8020 = vmatpush1.bf16.msra.mxu0 %v7826
        %8021 = vmatprep.subr.bf16.mxu0 0
        %8022 = vmatpush1.bf16.msra.mxu0 %v7827
        %8023 = vmatprep.subr.bf16.mxu0 0
        %8024 = vmatpush1.bf16.msra.mxu0 %v7828
        %8025 = vmatprep.subr.bf16.mxu0 0
        %8026 = vmatpush1.bf16.msra.mxu0 %v7829
        %8027 = vmatprep.subr.bf16.mxu0 0
        %8028 = vmatpush1.bf16.msra.mxu0 %v7830
        %8029 = vmatprep.subr.bf16.mxu0 0
        %8030 = vmatpush1.bf16.msra.mxu0 %v7831
        %8031 = vmatprep.subr.bf16.mxu0 0
        %8032 = vmatpush1.bf16.msra.mxu0 %v7832
        %8033 = vmatprep.subr.bf16.mxu0 0
        %8034 = vmatpush1.bf16.msra.mxu0 %v7833
        %8035 = vmatprep.subr.bf16.mxu0 0
        %8036 = vmatpush1.bf16.msra.mxu0 0
        %8037 = vmatprep.subr.bf16.mxu0 0
        %8038 = vmatpush1.bf16.msra.mxu0 0
        %8039 = vmatprep.subr.bf16.mxu0 0
        %8040 = vmatpush1.bf16.msra.mxu0 0
        %8041 = vmatprep.subr.bf16.mxu0 0
        %8042 = vmatpush1.bf16.msra.mxu0 0
        %8043 = vmatprep.subr.bf16.mxu0 0
        %8044 = vmatpush1.bf16.msra.mxu0 0
        %8045 = vmatprep.subr.bf16.mxu0 0
        %8046 = vmatpush1.bf16.msra.mxu0 0
        %8047 = vmatprep.subr.bf16.mxu0 0
        %8048 = vmatpush1.bf16.msra.mxu0 0
        %8049 = vmatprep.subr.bf16.mxu0 0
        %8050 = vmatpush1.bf16.msra.mxu0 0
        %8051 = vmatprep.mubr.bf16.mxu0 0
        %8052 = vmatmul.mubr.bf16.gmra.mrb[0].mxu0 %v7483
        %v8053 = vpop.f32.mrb[0].mxu0
        %v8054 = vadd.f32 %v7893, %v8053
        %v8055 = vpop.f32.mrb[0].mxu0
        %v8056 = vpop.f32.mrb[0].mxu0
        %v8057 = vadd.f32 %v7896, %v8056
        %v8058 = vpop.f32.mrb[0].mxu0
        %8059 = vmatprep.mubr.bf16.mxu0 0
        %8060 = vmatmul.mubr.bf16.gmra.mrb[0].mxu0 %v7491
        %v8061 = vpop.f32.mrb[0].mxu0
        %v8062 = vadd.f32 %v7901, %v8061
        %v8063 = vpop.f32.mrb[0].mxu0
        %v8064 = vpop.f32.mrb[0].mxu0
        %v8065 = vadd.f32 %v7904, %v8064
        %v8066 = vpop.f32.mrb[0].mxu0
        %8067 = vmatprep.mubr.bf16.mxu0 0
        %8068 = vmatmul.mubr.bf16.gmra.mrb[0].mxu0 %v7499
        %v8069 = vpop.f32.mrb[0].mxu0
        %v8070 = vadd.f32 %v7909, %v8069
        %v8071 = vpop.f32.mrb[0].mxu0
        %v8072 = vpop.f32.mrb[0].mxu0
        %v8073 = vadd.f32 %v7912, %v8072
        %v8074 = vpop.f32.mrb[0].mxu0
        %8075 = vmatprep.mubr.bf16.mxu0 0
        %8076 = vmatmul.mubr.bf16.gmra.mrb[0].mxu0 %v7507
        %v8077 = vpop.f32.mrb[0].mxu0
        %v8078 = vadd.f32 %v7917, %v8077
        %v8079 = vpop.f32.mrb[0].mxu0
        %v8080 = vpop.f32.mrb[0].mxu0
        %v8081 = vadd.f32 %v7920, %v8080
        %v8082 = vpop.f32.mrb[0].mxu0
        %8083 = vmatprep.mubr.bf16.mxu0 0
        %8084 = vmatmul.mubr.bf16.gmra.mrb[0].mxu0 %v7515
        %v8085 = vpop.f32.mrb[0].mxu0
        %v8086 = vadd.f32 %v7925, %v8085
        %v8087 = vpop.f32.mrb[0].mxu0
        %v8088 = vpop.f32.mrb[0].mxu0
        %v8089 = vadd.f32 %v7928, %v8088
        %v8090 = vpop.f32.mrb[0].mxu0
        %8091 = vmatprep.mubr.bf16.mxu0 0
        %8092 = vmatmul.mubr.bf16.gmra.mrb[0].mxu0 %v7523
        %v8093 = vpop.f32.mrb[0].mxu0
        %v8094 = vadd.f32 %v7933, %v8093
        %v8095 = vpop.f32.mrb[0].mxu0
        %v8096 = vpop.f32.mrb[0].mxu0
        %v8097 = vadd.f32 %v7936, %v8096
        %v8098 = vpop.f32.mrb[0].mxu0
        %8099 = vmatprep.mubr.bf16.mxu0 0
        %8100 = vmatmul.mubr.bf16.gmra.mrb[0].mxu0 %v7531
        %v8101 = vpop.f32.mrb[0].mxu0
        %v8102 = vadd.f32 %v7941, %v8101
        %v8103 = vpop.f32.mrb[0].mxu0
        %v8104 = vpop.f32.mrb[0].mxu0
        %v8105 = vadd.f32 %v7944, %v8104
        %v8106 = vpop.f32.mrb[0].mxu0
        %8107 = vmatprep.mubr.bf16.mxu0 0
        %8108 = vmatmul.mubr.bf16.gmra.mrb[0].mxu0 %v7539
        %v8109 = vpop.f32.mrb[0].mxu0
        %v8110 = vadd.f32 %v7949, %v8109
        %v8111 = vpop.f32.mrb[0].mxu0
        %v8112 = vpop.f32.mrb[0].mxu0
        %v8113 = vadd.f32 %v7952, %v8112
        %v8114 = vpop.f32.mrb[0].mxu0
        %8115 = vmatprep.mubr.bf16.mxu0 0
        %8116 = vmatmul.mubr.bf16.gmra.mrb[0].mxu0 %v7547
        %v8117 = vpop.f32.mrb[0].mxu0
        %v8118 = vadd.f32 %v7957, %v8117
        %v8119 = vpop.f32.mrb[0].mxu0
        %v8120 = vpop.f32.mrb[0].mxu0
        %v8121 = vadd.f32 %v7960, %v8120
        %v8122 = vpop.f32.mrb[0].mxu0
        %8123 = vmatprep.mubr.bf16.mxu0 0
        %8124 = vmatmul.mubr.bf16.gmra.mrb[0].mxu0 %v7555
        %v8125 = vpop.f32.mrb[0].mxu0
        %v8126 = vadd.f32 %v7965, %v8125
        %v8127 = vpop.f32.mrb[0].mxu0
        %v8128 = vpop.f32.mrb[0].mxu0
        %v8129 = vadd.f32 %v7968, %v8128
        %v8130 = vpop.f32.mrb[0].mxu0
        %8131 = vmatprep.mubr.bf16.mxu0 0
        %8132 = vmatmul.mubr.bf16.gmra.mrb[0].mxu0 %v7563
        %v8133 = vpop.f32.mrb[0].mxu0
        %v8134 = vadd.f32 %v7973, %v8133
        %v8135 = vpop.f32.mrb[0].mxu0
        %v8136 = vpop.f32.mrb[0].mxu0
        %v8137 = vadd.f32 %v7976, %v8136
        %v8138 = vpop.f32.mrb[0].mxu0
        %8139 = vmatprep.mubr.bf16.mxu0 0
        %8140 = vmatmul.mubr.bf16.gmra.mrb[0].mxu0 %v7571
        %v8141 = vpop.f32.mrb[0].mxu0
        %v8142 = vadd.f32 %v7981, %v8141
        %v8143 = vpop.f32.mrb[0].mxu0
        %v8144 = vpop.f32.mrb[0].mxu0
        %v8145 = vadd.f32 %v7984, %v8144
        %v8146 = vpop.f32.mrb[0].mxu0
        %8147 = vmatprep.mubr.bf16.mxu0 0
        %8148 = vmatmul.mubr.bf16.gmra.mrb[0].mxu0 %v7579
        %v8149 = vpop.f32.mrb[0].mxu0
        %v8150 = vadd.f32 %v7989, %v8149
        %v8151 = vpop.f32.mrb[0].mxu0
        %v8152 = vpop.f32.mrb[0].mxu0
        %v8153 = vadd.f32 %v7992, %v8152
        %v8154 = vpop.f32.mrb[0].mxu0
        %8155 = vmatprep.mubr.bf16.mxu0 0
        %8156 = vmatmul.mubr.bf16.gmra.mrb[0].mxu0 %v7587
        %v8157 = vpop.f32.mrb[0].mxu0
        %v8158 = vadd.f32 %v7997, %v8157
        %v8159 = vpop.f32.mrb[0].mxu0
        %v8160 = vpop.f32.mrb[0].mxu0
        %v8161 = vadd.f32 %v8000, %v8160
        %v8162 = vpop.f32.mrb[0].mxu0
        %8163 = vmatprep.mubr.bf16.mxu0 0
        %8164 = vmatmul.mubr.bf16.gmra.mrb[0].mxu0 %v7595
        %v8165 = vpop.f32.mrb[0].mxu0
        %v8166 = vadd.f32 %v8005, %v8165
        %v8167 = vpop.f32.mrb[0].mxu0
        %v8168 = vpop.f32.mrb[0].mxu0
        %v8169 = vadd.f32 %v8008, %v8168
        %v8170 = vpop.f32.mrb[0].mxu0
        %8171 = vmatprep.mubr.bf16.mxu0 0
        %8172 = vmatmul.mubr.bf16.gmra.mrb[0].mxu0 %v7617
        %v8173 = vpop.f32.mrb[0].mxu0
        %v8174 = vadd.f32 %v8013, %v8173
        %v8175 = vpop.f32.mrb[0].mxu0
        %v8176 = vpop.f32.mrb[0].mxu0
        %v8177 = vadd.f32 %v8016, %v8176
        %v8178 = vpop.f32.mrb[0].mxu0
        %8179 = vdwg.mxu0
        %v8228 = vunpack.c.l.b16 %v7618
        %v8229 = vunpack.c.l.b16 %v7619
        %v8230 = vunpack.c.l.b16 %v7620
        %v8231 = vunpack.c.l.b16 %v7621
        %v8232 = vunpack.c.l.b16 %v7622
        %v8233 = vunpack.c.l.b16 %v7623
        %v8234 = vunpack.c.l.b16 %v7624
        %v8235 = vunpack.c.l.b16 %v7625
        %v8236 = vunpack.c.l.b16 %v7626
        %v8237 = vunpack.c.l.b16 %v7627
        %v8238 = vunpack.c.l.b16 %v7628
        %v8239 = vunpack.c.l.b16 %v7629
        %v8240 = vunpack.c.l.b16 %v7630
        %v8241 = vunpack.c.l.b16 %v7631
        %v8242 = vunpack.c.l.b16 %v7632
        %v8243 = vunpack.c.l.b16 %v7633
        %v8244 = vunpack.c.l.b16 %v7634
        %v8245 = vunpack.c.l.b16 %v7635
        %v8246 = vunpack.c.l.b16 %v7636
        %v8247 = vunpack.c.l.b16 %v7637
        %v8248 = vunpack.c.l.b16 %v7638
        %v8249 = vunpack.c.l.b16 %v7639
        %v8250 = vunpack.c.l.b16 %v7640
        %v8251 = vunpack.c.l.b16 %v7641
        %v8252 = vunpack.c.l.b16 %v7642
        %v8253 = vunpack.c.l.b16 %v7643
        %v8254 = vunpack.c.l.b16 %v7644
        %v8255 = vunpack.c.l.b16 %v7645
        %v8256 = vunpack.c.l.b16 %v7646
        %v8257 = vunpack.c.l.b16 %v7647
        %v8258 = vunpack.c.l.b16 %v7648
        %v8259 = vunpack.c.l.b16 %v7649
        %v8260 = vunpack.c.l.b16 %v7650
        %v8261 = vunpack.c.l.b16 %v7651
        %v8262 = vunpack.c.l.b16 %v7652
        %v8263 = vunpack.c.l.b16 %v7653
        %v8264 = vunpack.c.l.b16 %v7654
        %v8265 = vunpack.c.l.b16 %v7655
        %v8266 = vunpack.c.l.b16 %v7656
        %v8267 = vunpack.c.l.b16 %v7657
        %v8268 = vunpack.c.l.b16 %v7658
        %v8269 = vunpack.c.l.b16 %v7659
        %v8270 = vunpack.c.l.b16 %v7660
        %v8271 = vunpack.c.l.b16 %v7661
        %v8272 = vunpack.c.l.b16 %v7662
        %v8273 = vunpack.c.l.b16 %v7663
        %v8274 = vunpack.c.l.b16 %v7664
        %v8275 = vunpack.c.l.b16 %v7665
        %v8276 = vpack.c.b16 %v8229, %v8228
        %v8277 = vpack.c.b16 %v8231, %v8230
        %v8278 = vpack.c.b16 %v8233, %v8232
        %v8279 = vpack.c.b16 %v8235, %v8234
        %v8280 = vpack.c.b16 %v8237, %v8236
        %v8281 = vpack.c.b16 %v8239, %v8238
        %v8282 = vpack.c.b16 %v8241, %v8240
        %v8283 = vpack.c.b16 %v8243, %v8242
        %v8284 = vpack.c.b16 %v8245, %v8244
        %v8285 = vpack.c.b16 %v8247, %v8246
        %v8286 = vpack.c.b16 %v8249, %v8248
        %v8287 = vpack.c.b16 %v8251, %v8250
        %v8288 = vpack.c.b16 %v8253, %v8252
        %v8289 = vpack.c.b16 %v8255, %v8254
        %v8290 = vpack.c.b16 %v8257, %v8256
        %v8291 = vpack.c.b16 %v8259, %v8258
        %v8292 = vpack.c.b16 %v8261, %v8260
        %v8293 = vpack.c.b16 %v8263, %v8262
        %v8294 = vpack.c.b16 %v8265, %v8264
        %v8295 = vpack.c.b16 %v8267, %v8266
        %v8296 = vpack.c.b16 %v8269, %v8268
        %v8297 = vpack.c.b16 %v8271, %v8270
        %v8298 = vpack.c.b16 %v8273, %v8272
        %v8299 = vpack.c.b16 %v8275, %v8274
        %8324 = vmatprep.subr.bf16.mxu0 0
        %8325 = vmatpush1.bf16.msra.mxu0 %v8276
        %8326 = vmatprep.subr.bf16.mxu0 0
        %8327 = vmatpush1.bf16.msra.mxu0 %v8277
        %8328 = vmatprep.subr.bf16.mxu0 0
        %8329 = vmatpush1.bf16.msra.mxu0 %v8278
        %8330 = vmatprep.subr.bf16.mxu0 0
        %8331 = vmatpush1.bf16.msra.mxu0 %v8279
        %8332 = vmatprep.subr.bf16.mxu0 0
        %8333 = vmatpush1.bf16.msra.mxu0 %v8280
        %8334 = vmatprep.subr.bf16.mxu0 0
        %8335 = vmatpush1.bf16.msra.mxu0 %v8281
        %8336 = vmatprep.subr.bf16.mxu0 0
        %8337 = vmatpush1.bf16.msra.mxu0 %v8282
        %8338 = vmatprep.subr.bf16.mxu0 0
        %8339 = vmatpush1.bf16.msra.mxu0 %v8283
        %8340 = vmatprep.subr.bf16.mxu0 0
        %8341 = vmatpush1.bf16.msra.mxu0 %v8284
        %8342 = vmatprep.subr.bf16.mxu0 0
        %8343 = vmatpush1.bf16.msra.mxu0 %v8285
        %8344 = vmatprep.subr.bf16.mxu0 0
        %8345 = vmatpush1.bf16.msra.mxu0 %v8286
        %8346 = vmatprep.subr.bf16.mxu0 0
        %8347 = vmatpush1.bf16.msra.mxu0 %v8287
        %8348 = vmatprep.subr.bf16.mxu0 0
        %8349 = vmatpush1.bf16.msra.mxu0 %v8288
        %8350 = vmatprep.subr.bf16.mxu0 0
        %8351 = vmatpush1.bf16.msra.mxu0 %v8289
        %8352 = vmatprep.subr.bf16.mxu0 0
        %8353 = vmatpush1.bf16.msra.mxu0 %v8290
        %8354 = vmatprep.subr.bf16.mxu0 0
        %8355 = vmatpush1.bf16.msra.mxu0 %v8291
        %8356 = vmatprep.mubr.bf16.mxu0 0
        %8357 = vmatmul.mubr.bf16.gmra.mrb[0].mxu0 0
        %v8358 = vpop.f32.mrb[0].mxu0
        %v8359 = vadd.f32 %v8054, %v8358
        %v8360 = vpop.f32.mrb[0].mxu0
        %v8361 = vpop.f32.mrb[0].mxu0
        %v8362 = vadd.f32 %v8057, %v8361
        %v8363 = vpop.f32.mrb[0].mxu0
        %8364 = vmatprep.mubr.bf16.mxu0 %v7278
        %8365 = vmatmul.mubr.bf16.gmra.mrb[0].mxu0 %v7470
        %v8366 = vpop.f32.mrb[0].mxu0
        %v8367 = vadd.f32 %v8062, %v8366
        %v8368 = vpop.f32.mrb[0].mxu0
        %v8369 = vpop.f32.mrb[0].mxu0
        %v8370 = vadd.f32 %v8065, %v8369
        %v8371 = vpop.f32.mrb[0].mxu0
        %8372 = vmatprep.mubr.bf16.mxu0 %v7279
        %8373 = vmatmul.mubr.bf16.gmra.mrb[0].mxu0 %v7340
        %v8374 = vpop.f32.mrb[0].mxu0
        %v8375 = vadd.f32 %v8070, %v8374
        %v8376 = vpop.f32.mrb[0].mxu0
        %v8377 = vpop.f32.mrb[0].mxu0
        %v8378 = vadd.f32 %v8073, %v8377
        %v8379 = vpop.f32.mrb[0].mxu0
        %8380 = vmatprep.mubr.bf16.mxu0 %v7280
        %8381 = vmatmul.mubr.bf16.gmra.mrb[0].mxu0 %v7348
        %v8382 = vpop.f32.mrb[0].mxu0
        %v8383 = vadd.f32 %v8078, %v8382
        %v8384 = vpop.f32.mrb[0].mxu0
        %v8385 = vpop.f32.mrb[0].mxu0
        %v8386 = vadd.f32 %v8081, %v8385
        %v8387 = vpop.f32.mrb[0].mxu0
        %8388 = vmatprep.mubr.bf16.mxu0 %v7281
        %8389 = vmatmul.mubr.bf16.gmra.mrb[0].mxu0 %v7356
        %v8390 = vpop.f32.mrb[0].mxu0
        %v8391 = vadd.f32 %v8086, %v8390
        %v8392 = vpop.f32.mrb[0].mxu0
        %v8393 = vpop.f32.mrb[0].mxu0
        %v8394 = vadd.f32 %v8089, %v8393
        %v8395 = vpop.f32.mrb[0].mxu0
        %8396 = vmatprep.mubr.bf16.mxu0 %v7282
        %8397 = vmatmul.mubr.bf16.gmra.mrb[0].mxu0 %v7364
        %v8398 = vpop.f32.mrb[0].mxu0
        %v8399 = vadd.f32 %v8094, %v8398
        %v8400 = vpop.f32.mrb[0].mxu0
        %v8401 = vpop.f32.mrb[0].mxu0
        %v8402 = vadd.f32 %v8097, %v8401
        %v8403 = vpop.f32.mrb[0].mxu0
        %8404 = vmatprep.mubr.bf16.mxu0 %v7283
        %8405 = vmatmul.mubr.bf16.gmra.mrb[0].mxu0 %v7372
        %v8406 = vpop.f32.mrb[0].mxu0
        %v8407 = vadd.f32 %v8102, %v8406
        %v8408 = vpop.f32.mrb[0].mxu0
        %v8409 = vpop.f32.mrb[0].mxu0
        %v8410 = vadd.f32 %v8105, %v8409
        %v8411 = vpop.f32.mrb[0].mxu0
        %8412 = vmatprep.mubr.bf16.mxu0 %v7284
        %8413 = vmatmul.mubr.bf16.gmra.mrb[0].mxu0 %v7380
        %v8414 = vpop.f32.mrb[0].mxu0
        %v8415 = vadd.f32 %v8110, %v8414
        %v8416 = vpop.f32.mrb[0].mxu0
        %v8417 = vpop.f32.mrb[0].mxu0
        %v8418 = vadd.f32 %v8113, %v8417
        %v8419 = vpop.f32.mrb[0].mxu0
        %8420 = vmatprep.mubr.bf16.mxu0 %v7285
        %8421 = vmatmul.mubr.bf16.gmra.mrb[0].mxu0 %v7388
        %v8422 = vpop.f32.mrb[0].mxu0
        %v8423 = vadd.f32 %v8118, %v8422
        %v8424 = vpop.f32.mrb[0].mxu0
        %v8425 = vpop.f32.mrb[0].mxu0
        %v8426 = vadd.f32 %v8121, %v8425
        %v8427 = vpop.f32.mrb[0].mxu0
        %8428 = vmatprep.mubr.bf16.mxu0 %v7286
        %8429 = vmatmul.mubr.bf16.gmra.mrb[0].mxu0 %v7396
        %v8430 = vpop.f32.mrb[0].mxu0
        %v8431 = vadd.f32 %v8126, %v8430
        %v8432 = vpop.f32.mrb[0].mxu0
        %v8433 = vpop.f32.mrb[0].mxu0
        %v8434 = vadd.f32 %v8129, %v8433
        %v8435 = vpop.f32.mrb[0].mxu0
        %8436 = vmatprep.mubr.bf16.mxu0 %v7287
        %8437 = vmatmul.mubr.bf16.gmra.mrb[0].mxu0 %v7404
        %v8438 = vpop.f32.mrb[0].mxu0
        %v8439 = vadd.f32 %v8134, %v8438
        %v8440 = vpop.f32.mrb[0].mxu0
        %v8441 = vpop.f32.mrb[0].mxu0
        %v8442 = vadd.f32 %v8137, %v8441
        %v8443 = vpop.f32.mrb[0].mxu0
        %8444 = vmatprep.mubr.bf16.mxu0 %v7288
        %8445 = vmatmul.mubr.bf16.gmra.mrb[0].mxu0 %v7412
        %v8446 = vpop.f32.mrb[0].mxu0
        %v8447 = vadd.f32 %v8142, %v8446
        %v8448 = vpop.f32.mrb[0].mxu0
        %v8449 = vpop.f32.mrb[0].mxu0
        %v8450 = vadd.f32 %v8145, %v8449
        %v8451 = vpop.f32.mrb[0].mxu0
        %8452 = vmatprep.mubr.bf16.mxu0 %v7289
        %8453 = vmatmul.mubr.bf16.gmra.mrb[0].mxu0 %v7420
        %v8454 = vpop.f32.mrb[0].mxu0
        %v8455 = vadd.f32 %v8150, %v8454
        %v8456 = vpop.f32.mrb[0].mxu0
        %v8457 = vpop.f32.mrb[0].mxu0
        %v8458 = vadd.f32 %v8153, %v8457
        %v8459 = vpop.f32.mrb[0].mxu0
        %8460 = vmatprep.mubr.bf16.mxu0 %v7290
        %8461 = vmatmul.mubr.bf16.gmra.mrb[0].mxu0 %v7428
        %v8462 = vpop.f32.mrb[0].mxu0
        %v8463 = vadd.f32 %v8158, %v8462
        %v8464 = vpop.f32.mrb[0].mxu0
        %v8465 = vpop.f32.mrb[0].mxu0
        %v8466 = vadd.f32 %v8161, %v8465
        %v8467 = vpop.f32.mrb[0].mxu0
        %8468 = vmatprep.mubr.bf16.mxu0 %v7291
        %8469 = vmatmul.mubr.bf16.gmra.mrb[0].mxu0 %v7436
        %v8470 = vpop.f32.mrb[0].mxu0
        %v8471 = vadd.f32 %v8166, %v8470
        %v8472 = vpop.f32.mrb[0].mxu0
        %v8473 = vpop.f32.mrb[0].mxu0
        %v8474 = vadd.f32 %v8169, %v8473
        %v8475 = vpop.f32.mrb[0].mxu0
        %8476 = vmatprep.mubr.bf16.mxu0 %v7292
        %8477 = vmatmul.mubr.bf16.gmra.mrb[0].mxu0 %v7444
        %v8478 = vpop.f32.mrb[0].mxu0
        %v8479 = vadd.f32 %v8174, %v8478
        %v8480 = vpop.f32.mrb[0].mxu0
        %v8481 = vpop.f32.mrb[0].mxu0
        %v8482 = vadd.f32 %v8177, %v8481
        %v8483 = vpop.f32.mrb[0].mxu0
        %8484 = vdwg.mxu0
        %8485 = vmatprep.subr.bf16.mxu0 0
        %8486 = vmatpush1.bf16.msra.mxu0 %v8292
        %8487 = vmatprep.subr.bf16.mxu0 0
        %8488 = vmatpush1.bf16.msra.mxu0 %v8293
        %8489 = vmatprep.subr.bf16.mxu0 0
        %8490 = vmatpush1.bf16.msra.mxu0 %v8294
        %8491 = vmatprep.subr.bf16.mxu0 0
        %8492 = vmatpush1.bf16.msra.mxu0 %v8295
        %8493 = vmatprep.subr.bf16.mxu0 0
        %8494 = vmatpush1.bf16.msra.mxu0 %v8296
        %8495 = vmatprep.subr.bf16.mxu0 0
        %8496 = vmatpush1.bf16.msra.mxu0 %v8297
        %8497 = vmatprep.subr.bf16.mxu0 0
        %8498 = vmatpush1.bf16.msra.mxu0 %v8298
        %8499 = vmatprep.subr.bf16.mxu0 0
        %8500 = vmatpush1.bf16.msra.mxu0 %v8299
        %8501 = vmatprep.subr.bf16.mxu0 0
        %8502 = vmatpush1.bf16.msra.mxu0 0
        %8503 = vmatprep.subr.bf16.mxu0 0
        %8504 = vmatpush1.bf16.msra.mxu0 0
        %8505 = vmatprep.subr.bf16.mxu0 0
        %8506 = vmatpush1.bf16.msra.mxu0 0
        %8507 = vmatprep.subr.bf16.mxu0 0
        %8508 = vmatpush1.bf16.msra.mxu0 0
        %8509 = vmatprep.subr.bf16.mxu0 0
        %8510 = vmatpush1.bf16.msra.mxu0 0
        %8511 = vmatprep.subr.bf16.mxu0 0
        %8512 = vmatpush1.bf16.msra.mxu0 0
        %8513 = vmatprep.subr.bf16.mxu0 0
        %8514 = vmatpush1.bf16.msra.mxu0 0
        %8515 = vmatprep.subr.bf16.mxu0 0
        %8516 = vmatpush1.bf16.msra.mxu0 0
        %8517 = vmatprep.mubr.bf16.mxu0 0
        %8518 = vmatmul.mubr.bf16.gmra.mrb[0].mxu0 %v7616
        %v8519 = vpop.f32.mrb[0].mxu0
        %v8520 = vadd.f32 %v8359, %v8519
        %v8521 = vpop.f32.mrb[0].mxu0
        %v8522 = vpop.f32.mrb[0].mxu0
        %v8523 = vadd.f32 %v8362, %v8522
        %v8524 = vpop.f32.mrb[0].mxu0
        %8525 = vmatprep.mubr.bf16.mxu0 0
        %8526 = vmatmul.mubr.bf16.gmra.mrb[0].mxu0 %v7483
        %v8527 = vpop.f32.mrb[0].mxu0
        %v8528 = vadd.f32 %v8367, %v8527
        %v8529 = vpop.f32.mrb[0].mxu0
        %v8530 = vpop.f32.mrb[0].mxu0
        %v8531 = vadd.f32 %v8370, %v8530
        %v8532 = vpop.f32.mrb[0].mxu0
        %8533 = vmatprep.mubr.bf16.mxu0 0
        %8534 = vmatmul.mubr.bf16.gmra.mrb[0].mxu0 %v7491
        %v8535 = vpop.f32.mrb[0].mxu0
        %v8536 = vadd.f32 %v8375, %v8535
        %v8537 = vpop.f32.mrb[0].mxu0
        %v8538 = vpop.f32.mrb[0].mxu0
        %v8539 = vadd.f32 %v8378, %v8538
        %v8540 = vpop.f32.mrb[0].mxu0
        %8541 = vmatprep.mubr.bf16.mxu0 0
        %8542 = vmatmul.mubr.bf16.gmra.mrb[0].mxu0 %v7499
        %v8543 = vpop.f32.mrb[0].mxu0
        %v8544 = vadd.f32 %v8383, %v8543
        %v8545 = vpop.f32.mrb[0].mxu0
        %v8546 = vpop.f32.mrb[0].mxu0
        %v8547 = vadd.f32 %v8386, %v8546
        %v8548 = vpop.f32.mrb[0].mxu0
        %8549 = vmatprep.mubr.bf16.mxu0 0
        %8550 = vmatmul.mubr.bf16.gmra.mrb[0].mxu0 %v7507
        %v8551 = vpop.f32.mrb[0].mxu0
        %v8552 = vadd.f32 %v8391, %v8551
        %v8553 = vpop.f32.mrb[0].mxu0
        %v8554 = vpop.f32.mrb[0].mxu0
        %v8555 = vadd.f32 %v8394, %v8554
        %v8556 = vpop.f32.mrb[0].mxu0
        %8557 = vmatprep.mubr.bf16.mxu0 0
        %8558 = vmatmul.mubr.bf16.gmra.mrb[0].mxu0 %v7515
        %v8559 = vpop.f32.mrb[0].mxu0
        %v8560 = vadd.f32 %v8399, %v8559
        %v8561 = vpop.f32.mrb[0].mxu0
        %v8562 = vpop.f32.mrb[0].mxu0
        %v8563 = vadd.f32 %v8402, %v8562
        %v8564 = vpop.f32.mrb[0].mxu0
        %8565 = vmatprep.mubr.bf16.mxu0 0
        %8566 = vmatmul.mubr.bf16.gmra.mrb[0].mxu0 %v7523
        %v8567 = vpop.f32.mrb[0].mxu0
        %v8568 = vadd.f32 %v8407, %v8567
        %v8569 = vpop.f32.mrb[0].mxu0
        %v8570 = vpop.f32.mrb[0].mxu0
        %v8571 = vadd.f32 %v8410, %v8570
        %v8572 = vpop.f32.mrb[0].mxu0
        %8573 = vmatprep.mubr.bf16.mxu0 0
        %8574 = vmatmul.mubr.bf16.gmra.mrb[0].mxu0 %v7531
        %v8575 = vpop.f32.mrb[0].mxu0
        %v8576 = vadd.f32 %v8415, %v8575
        %v8577 = vpop.f32.mrb[0].mxu0
        %v8578 = vpop.f32.mrb[0].mxu0
        %v8579 = vadd.f32 %v8418, %v8578
        %v8580 = vpop.f32.mrb[0].mxu0
        %8581 = vmatprep.mubr.bf16.mxu0 0
        %8582 = vmatmul.mubr.bf16.gmra.mrb[0].mxu0 %v7539
        %v8583 = vpop.f32.mrb[0].mxu0
        %v8584 = vadd.f32 %v8423, %v8583
        %v8585 = vpop.f32.mrb[0].mxu0
        %v8586 = vpop.f32.mrb[0].mxu0
        %v8587 = vadd.f32 %v8426, %v8586
        %v8588 = vpop.f32.mrb[0].mxu0
        %8589 = vmatprep.mubr.bf16.mxu0 0
        %8590 = vmatmul.mubr.bf16.gmra.mrb[0].mxu0 %v7547
        %v8591 = vpop.f32.mrb[0].mxu0
        %v8592 = vadd.f32 %v8431, %v8591
        %v8593 = vpop.f32.mrb[0].mxu0
        %v8594 = vpop.f32.mrb[0].mxu0
        %v8595 = vadd.f32 %v8434, %v8594
        %v8596 = vpop.f32.mrb[0].mxu0
        %8597 = vmatprep.mubr.bf16.mxu0 0
        %8598 = vmatmul.mubr.bf16.gmra.mrb[0].mxu0 %v7555
        %v8599 = vpop.f32.mrb[0].mxu0
        %v8600 = vadd.f32 %v8439, %v8599
        %v8601 = vpop.f32.mrb[0].mxu0
        %v8602 = vpop.f32.mrb[0].mxu0
        %v8603 = vadd.f32 %v8442, %v8602
        %v8604 = vpop.f32.mrb[0].mxu0
        %8605 = vmatprep.mubr.bf16.mxu0 0
        %8606 = vmatmul.mubr.bf16.gmra.mrb[0].mxu0 %v7563
        %v8607 = vpop.f32.mrb[0].mxu0
        %v8608 = vadd.f32 %v8447, %v8607
        %v8609 = vpop.f32.mrb[0].mxu0
        %v8610 = vpop.f32.mrb[0].mxu0
        %v8611 = vadd.f32 %v8450, %v8610
        %v8612 = vpop.f32.mrb[0].mxu0
        %8613 = vmatprep.mubr.bf16.mxu0 0
        %8614 = vmatmul.mubr.bf16.gmra.mrb[0].mxu0 %v7571
        %v8615 = vpop.f32.mrb[0].mxu0
        %v8616 = vadd.f32 %v8455, %v8615
        %v8617 = vpop.f32.mrb[0].mxu0
        %v8618 = vpop.f32.mrb[0].mxu0
        %v8619 = vadd.f32 %v8458, %v8618
        %v8620 = vpop.f32.mrb[0].mxu0
        %8621 = vmatprep.mubr.bf16.mxu0 0
        %8622 = vmatmul.mubr.bf16.gmra.mrb[0].mxu0 %v7579
        %v8623 = vpop.f32.mrb[0].mxu0
        %v8624 = vadd.f32 %v8463, %v8623
        %v8625 = vpop.f32.mrb[0].mxu0
        %v8626 = vpop.f32.mrb[0].mxu0
        %v8627 = vadd.f32 %v8466, %v8626
        %v8628 = vpop.f32.mrb[0].mxu0
        %8629 = vmatprep.mubr.bf16.mxu0 0
        %8630 = vmatmul.mubr.bf16.gmra.mrb[0].mxu0 %v7587
        %v8631 = vpop.f32.mrb[0].mxu0
        %v8632 = vadd.f32 %v8471, %v8631
        %v8633 = vpop.f32.mrb[0].mxu0
        %v8634 = vpop.f32.mrb[0].mxu0
        %v8635 = vadd.f32 %v8474, %v8634
        %v8636 = vpop.f32.mrb[0].mxu0
        %8637 = vmatprep.mubr.bf16.mxu0 0
        %8638 = vmatmul.mubr.bf16.gmra.mrb[0].mxu0 %v7595
        %v8639 = vpop.f32.mrb[0].mxu0
        %v8640 = vadd.f32 %v8479, %v8639
        %v8641 = vpop.f32.mrb[0].mxu0
        %v8642 = vpop.f32.mrb[0].mxu0
        %v8643 = vadd.f32 %v8482, %v8642
        %v8644 = vpop.f32.mrb[0].mxu0
        %8645 = vdwg.mxu0
        %v8646 = vld [vmem:[%s4068] sm:$0xf]
        %v8647 = vld [vmem:[%s4068 + $0x4] sm:$0xf]
        %v8648 = vld [vmem:[%s4068 + $0x8] sm:$0xf]
        %v8649 = vld [vmem:[%s4068 + $0xc] sm:$0xf]
        %v8650 = vld [vmem:[%s4068 + $0x10] sm:$0xf]
        %v8651 = vld [vmem:[%s4068 + $0x14] sm:$0xf]
        %v8652 = vld [vmem:[%s4068 + $0x18] sm:$0xf]
        %v8653 = vld [vmem:[%s4068 + $0x1c] sm:$0xf]
        %v8654 = vld [vmem:[%s4068 + $0x20] sm:$0xf]
        %v8655 = vld [vmem:[%s4068 + $0x24] sm:$0xf]
        %v8656 = vld [vmem:[%s4068 + $0x28] sm:$0xf]
        %v8657 = vld [vmem:[%s4068 + $0x2c] sm:$0xf]
        %v8658 = vld [vmem:[%s4068 + $0x30] sm:$0xf]
        %v8659 = vld [vmem:[%s4068 + $0x34] sm:$0xf]
        %v8660 = vld [vmem:[%s4068 + $0x38] sm:$0xf]
        %v8661 = vld [vmem:[%s4068 + $0x3c] sm:$0xf]
        %v8662 = vld [vmem:[%s4068 + $0x40] sm:$0xf]
        %v8663 = vld [vmem:[%s4068 + $0x44] sm:$0xf]
        %v8664 = vld [vmem:[%s4068 + $0x48] sm:$0xf]
        %v8665 = vld [vmem:[%s4068 + $0x4c] sm:$0xf]
        %v8666 = vld [vmem:[%s4068 + $0x50] sm:$0xf]
        %v8667 = vld [vmem:[%s4068 + $0x54] sm:$0xf]
        %v8668 = vld [vmem:[%s4068 + $0x58] sm:$0xf]
        %v8669 = vld [vmem:[%s4068 + $0x5c] sm:$0xf]
        %v8670 = vld [vmem:[%s4068 + $0x60] sm:$0xf]
        %v8671 = vld [vmem:[%s4068 + $0x64] sm:$0xf]
        %v8672 = vld [vmem:[%s4068 + $0x68] sm:$0xf]
        %v8673 = vld [vmem:[%s4068 + $0x6c] sm:$0xf]
        %v8674 = vld [vmem:[%s4068 + $0x70] sm:$0xf]
        %v8675 = vld [vmem:[%s4068 + $0x74] sm:$0xf]
        %v8676 = vld [vmem:[%s4068 + $0x78] sm:$0xf]
        %v8677 = vld [vmem:[%s4068 + $0x7c] sm:$0xf]
        %v8678 = vld [vmem:[%s4068 + $0x80] sm:$0xf]
        %v8679 = vld [vmem:[%s4068 + $0x84] sm:$0xf]
        %v8680 = vld [vmem:[%s4068 + $0x88] sm:$0xf]
        %v8681 = vld [vmem:[%s4068 + $0x8c] sm:$0xf]
        %v8682 = vld [vmem:[%s4068 + $0x90] sm:$0xf]
        %v8683 = vld [vmem:[%s4068 + $0x94] sm:$0xf]
        %v8684 = vld [vmem:[%s4068 + $0x98] sm:$0xf]
        %v8685 = vld [vmem:[%s4068 + $0x9c] sm:$0xf]
        %v8686 = vld [vmem:[%s4068 + $0xa0] sm:$0xf]
        %v8687 = vld [vmem:[%s4068 + $0xa4] sm:$0xf]
        %v8688 = vld [vmem:[%s4068 + $0xa8] sm:$0xf]
        %v8689 = vld [vmem:[%s4068 + $0xac] sm:$0xf]
        %v8690 = vld [vmem:[%s4068 + $0xb0] sm:$0xf]
        %v8691 = vld [vmem:[%s4068 + $0xb4] sm:$0xf]
        %v8692 = vld [vmem:[%s4068 + $0xb8] sm:$0xf]
        %v8693 = vld [vmem:[%s4068 + $0xbc] sm:$0xf]
        %v8742 = vunpack.c.l.b16 %v8646
        %v8743 = vunpack.c.l.b16 %v8647
        %v8744 = vunpack.c.l.b16 %v8648
        %v8745 = vunpack.c.l.b16 %v8649
        %v8746 = vunpack.c.l.b16 %v8650
        %v8747 = vunpack.c.l.b16 %v8651
        %v8748 = vunpack.c.l.b16 %v8652
        %v8749 = vunpack.c.l.b16 %v8653
        %v8750 = vunpack.c.l.b16 %v8654
        %v8751 = vunpack.c.l.b16 %v8655
        %v8752 = vunpack.c.l.b16 %v8656
        %v8753 = vunpack.c.l.b16 %v8657
        %v8754 = vunpack.c.l.b16 %v8658
        %v8755 = vunpack.c.l.b16 %v8659
        %v8756 = vunpack.c.l.b16 %v8660
        %v8757 = vunpack.c.l.b16 %v8661
        %v8758 = vunpack.c.l.b16 %v8662
        %v8759 = vunpack.c.l.b16 %v8663
        %v8760 = vunpack.c.l.b16 %v8664
        %v8761 = vunpack.c.l.b16 %v8665
        %v8762 = vunpack.c.l.b16 %v8666
        %v8763 = vunpack.c.l.b16 %v8667
        %v8764 = vunpack.c.l.b16 %v8668
        %v8765 = vunpack.c.l.b16 %v8669
        %v8766 = vunpack.c.l.b16 %v8670
        %v8767 = vunpack.c.l.b16 %v8671
        %v8768 = vunpack.c.l.b16 %v8672
        %v8769 = vunpack.c.l.b16 %v8673
        %v8770 = vunpack.c.l.b16 %v8674
        %v8771 = vunpack.c.l.b16 %v8675
        %v8772 = vunpack.c.l.b16 %v8676
        %v8773 = vunpack.c.l.b16 %v8677
        %v8774 = vunpack.c.l.b16 %v8678
        %v8775 = vunpack.c.l.b16 %v8679
        %v8776 = vunpack.c.l.b16 %v8680
        %v8777 = vunpack.c.l.b16 %v8681
        %v8778 = vunpack.c.l.b16 %v8682
        %v8779 = vunpack.c.l.b16 %v8683
        %v8780 = vunpack.c.l.b16 %v8684
        %v8781 = vunpack.c.l.b16 %v8685
        %v8782 = vunpack.c.l.b16 %v8686
        %v8783 = vunpack.c.l.b16 %v8687
        %v8784 = vunpack.c.l.b16 %v8688
        %v8785 = vunpack.c.l.b16 %v8689
        %v8786 = vunpack.c.l.b16 %v8690
        %v8787 = vunpack.c.l.b16 %v8691
        %v8788 = vunpack.c.l.b16 %v8692
        %v8789 = vunpack.c.l.b16 %v8693
        %v8790 = vpack.c.b16 %v8743, %v8742
        %v8791 = vpack.c.b16 %v8745, %v8744
        %v8792 = vpack.c.b16 %v8747, %v8746
        %v8793 = vpack.c.b16 %v8749, %v8748
        %v8794 = vpack.c.b16 %v8751, %v8750
        %v8795 = vpack.c.b16 %v8753, %v8752
        %v8796 = vpack.c.b16 %v8755, %v8754
        %v8797 = vpack.c.b16 %v8757, %v8756
        %v8798 = vpack.c.b16 %v8759, %v8758
        %v8799 = vpack.c.b16 %v8761, %v8760
        %v8800 = vpack.c.b16 %v8763, %v8762
        %v8801 = vpack.c.b16 %v8765, %v8764
        %v8802 = vpack.c.b16 %v8767, %v8766
        %v8803 = vpack.c.b16 %v8769, %v8768
        %v8804 = vpack.c.b16 %v8771, %v8770
        %v8805 = vpack.c.b16 %v8773, %v8772
        %v8806 = vpack.c.b16 %v8775, %v8774
        %v8807 = vpack.c.b16 %v8777, %v8776
        %v8808 = vpack.c.b16 %v8779, %v8778
        %v8809 = vpack.c.b16 %v8781, %v8780
        %v8810 = vpack.c.b16 %v8783, %v8782
        %v8811 = vpack.c.b16 %v8785, %v8784
        %v8812 = vpack.c.b16 %v8787, %v8786
        %v8813 = vpack.c.b16 %v8789, %v8788
        %8838 = vmatprep.subr.bf16.mxu0 0
        %8839 = vmatpush1.bf16.msra.mxu0 %v8790
        %8840 = vmatprep.subr.bf16.mxu0 0
        %8841 = vmatpush1.bf16.msra.mxu0 %v8791
        %8842 = vmatprep.subr.bf16.mxu0 0
        %8843 = vmatpush1.bf16.msra.mxu0 %v8792
        %8844 = vmatprep.subr.bf16.mxu0 0
        %8845 = vmatpush1.bf16.msra.mxu0 %v8793
        %8846 = vmatprep.subr.bf16.mxu0 0
        %8847 = vmatpush1.bf16.msra.mxu0 %v8794
        %8848 = vmatprep.subr.bf16.mxu0 0
        %8849 = vmatpush1.bf16.msra.mxu0 %v8795
        %8850 = vmatprep.subr.bf16.mxu0 0
        %8851 = vmatpush1.bf16.msra.mxu0 %v8796
        %8852 = vmatprep.subr.bf16.mxu0 0
        %8853 = vmatpush1.bf16.msra.mxu0 %v8797
        %8854 = vmatprep.subr.bf16.mxu0 0
        %8855 = vmatpush1.bf16.msra.mxu0 %v8798
        %8856 = vmatprep.subr.bf16.mxu0 0
        %8857 = vmatpush1.bf16.msra.mxu0 %v8799
        %8858 = vmatprep.subr.bf16.mxu0 0
        %8859 = vmatpush1.bf16.msra.mxu0 %v8800
        %8860 = vmatprep.subr.bf16.mxu0 0
        %8861 = vmatpush1.bf16.msra.mxu0 %v8801
        %8862 = vmatprep.subr.bf16.mxu0 0
        %8863 = vmatpush1.bf16.msra.mxu0 %v8802
        %8864 = vmatprep.subr.bf16.mxu0 0
        %8865 = vmatpush1.bf16.msra.mxu0 %v8803
        %8866 = vmatprep.subr.bf16.mxu0 0
        %8867 = vmatpush1.bf16.msra.mxu0 %v8804
        %8868 = vmatprep.subr.bf16.mxu0 0
        %8869 = vmatpush1.bf16.msra.mxu0 %v8805
        %8870 = vmatprep.mubr.bf16.mxu0 %v7279
        %8871 = vmatmul.mubr.bf16.gmra.mrb[0].mxu0 %v7340
        %v8872 = vpop.f32.mrb[0].mxu0
        %v8873 = vadd.f32 0.0, %v8872
        %v8874 = vpop.f32.mrb[0].mxu0
        %v8875 = vpop.f32.mrb[0].mxu0
        %v8876 = vadd.f32 0.0, %v8875
        %v8877 = vpop.f32.mrb[0].mxu0
        %8878 = vmatprep.mubr.bf16.mxu0 %v7280
        %8879 = vmatmul.mubr.bf16.gmra.mrb[0].mxu0 %v7348
        %v8880 = vpop.f32.mrb[0].mxu0
        %v8881 = vadd.f32 0.0, %v8880
        %v8882 = vpop.f32.mrb[0].mxu0
        %v8883 = vpop.f32.mrb[0].mxu0
        %v8884 = vadd.f32 0.0, %v8883
        %v8885 = vpop.f32.mrb[0].mxu0
        %8886 = vmatprep.mubr.bf16.mxu0 %v7281
        %8887 = vmatmul.mubr.bf16.gmra.mrb[0].mxu0 %v7356
        %v8888 = vpop.f32.mrb[0].mxu0
        %v8889 = vadd.f32 0.0, %v8888
        %v8890 = vpop.f32.mrb[0].mxu0
        %v8891 = vpop.f32.mrb[0].mxu0
        %v8892 = vadd.f32 0.0, %v8891
        %v8893 = vpop.f32.mrb[0].mxu0
        %8894 = vmatprep.mubr.bf16.mxu0 %v7282
        %8895 = vmatmul.mubr.bf16.gmra.mrb[0].mxu0 %v7364
        %v8896 = vpop.f32.mrb[0].mxu0
        %v8897 = vadd.f32 0.0, %v8896
        %v8898 = vpop.f32.mrb[0].mxu0
        %v8899 = vpop.f32.mrb[0].mxu0
        %v8900 = vadd.f32 0.0, %v8899
        %v8901 = vpop.f32.mrb[0].mxu0
        %8902 = vmatprep.mubr.bf16.mxu0 %v7283
        %8903 = vmatmul.mubr.bf16.gmra.mrb[0].mxu0 %v7372
        %v8904 = vpop.f32.mrb[0].mxu0
        %v8905 = vadd.f32 0.0, %v8904
        %v8906 = vpop.f32.mrb[0].mxu0
        %v8907 = vpop.f32.mrb[0].mxu0
        %v8908 = vadd.f32 0.0, %v8907
        %v8909 = vpop.f32.mrb[0].mxu0
        %8910 = vmatprep.mubr.bf16.mxu0 %v7284
        %8911 = vmatmul.mubr.bf16.gmra.mrb[0].mxu0 %v7380
        %v8912 = vpop.f32.mrb[0].mxu0
        %v8913 = vadd.f32 0.0, %v8912
        %v8914 = vpop.f32.mrb[0].mxu0
        %v8915 = vpop.f32.mrb[0].mxu0
        %v8916 = vadd.f32 0.0, %v8915
        %v8917 = vpop.f32.mrb[0].mxu0
        %8918 = vmatprep.mubr.bf16.mxu0 %v7285
        %8919 = vmatmul.mubr.bf16.gmra.mrb[0].mxu0 %v7388
        %v8920 = vpop.f32.mrb[0].mxu0
        %v8921 = vadd.f32 0.0, %v8920
        %v8922 = vpop.f32.mrb[0].mxu0
        %v8923 = vpop.f32.mrb[0].mxu0
        %v8924 = vadd.f32 0.0, %v8923
        %v8925 = vpop.f32.mrb[0].mxu0
        %8926 = vmatprep.mubr.bf16.mxu0 %v7286
        %8927 = vmatmul.mubr.bf16.gmra.mrb[0].mxu0 %v7396
        %v8928 = vpop.f32.mrb[0].mxu0
        %v8929 = vadd.f32 0.0, %v8928
        %v8930 = vpop.f32.mrb[0].mxu0
        %v8931 = vpop.f32.mrb[0].mxu0
        %v8932 = vadd.f32 0.0, %v8931
        %v8933 = vpop.f32.mrb[0].mxu0
        %8934 = vmatprep.mubr.bf16.mxu0 %v7287
        %8935 = vmatmul.mubr.bf16.gmra.mrb[0].mxu0 %v7404
        %v8936 = vpop.f32.mrb[0].mxu0
        %v8937 = vadd.f32 0.0, %v8936
        %v8938 = vpop.f32.mrb[0].mxu0
        %v8939 = vpop.f32.mrb[0].mxu0
        %v8940 = vadd.f32 0.0, %v8939
        %v8941 = vpop.f32.mrb[0].mxu0
        %8942 = vmatprep.mubr.bf16.mxu0 %v7288
        %8943 = vmatmul.mubr.bf16.gmra.mrb[0].mxu0 %v7412
        %v8944 = vpop.f32.mrb[0].mxu0
        %v8945 = vadd.f32 0.0, %v8944
        %v8946 = vpop.f32.mrb[0].mxu0
        %v8947 = vpop.f32.mrb[0].mxu0
        %v8948 = vadd.f32 0.0, %v8947
        %v8949 = vpop.f32.mrb[0].mxu0
        %8950 = vmatprep.mubr.bf16.mxu0 %v7289
        %8951 = vmatmul.mubr.bf16.gmra.mrb[0].mxu0 %v7420
        %v8952 = vpop.f32.mrb[0].mxu0
        %v8953 = vadd.f32 0.0, %v8952
        %v8954 = vpop.f32.mrb[0].mxu0
        %v8955 = vpop.f32.mrb[0].mxu0
        %v8956 = vadd.f32 0.0, %v8955
        %v8957 = vpop.f32.mrb[0].mxu0
        %8958 = vmatprep.mubr.bf16.mxu0 %v7290
        %8959 = vmatmul.mubr.bf16.gmra.mrb[0].mxu0 %v7428
        %v8960 = vpop.f32.mrb[0].mxu0
        %v8961 = vadd.f32 0.0, %v8960
        %v8962 = vpop.f32.mrb[0].mxu0
        %v8963 = vpop.f32.mrb[0].mxu0
        %v8964 = vadd.f32 0.0, %v8963
        %v8965 = vpop.f32.mrb[0].mxu0
        %8966 = vmatprep.mubr.bf16.mxu0 %v7291
        %8967 = vmatmul.mubr.bf16.gmra.mrb[0].mxu0 %v7436
        %v8968 = vpop.f32.mrb[0].mxu0
        %v8969 = vadd.f32 0.0, %v8968
        %v8970 = vpop.f32.mrb[0].mxu0
        %v8971 = vpop.f32.mrb[0].mxu0
        %v8972 = vadd.f32 0.0, %v8971
        %v8973 = vpop.f32.mrb[0].mxu0
        %8974 = vmatprep.mubr.bf16.mxu0 %v7292
        %8975 = vmatmul.mubr.bf16.gmra.mrb[0].mxu0 %v7444
        %v8976 = vpop.f32.mrb[0].mxu0
        %v8977 = vadd.f32 0.0, %v8976
        %v8978 = vpop.f32.mrb[0].mxu0
        %v8979 = vpop.f32.mrb[0].mxu0
        %v8980 = vadd.f32 0.0, %v8979
        %v8981 = vpop.f32.mrb[0].mxu0
        %8982 = vmatprep.mubr.bf16.mxu0 %v7293
        %8983 = vmatmul.mubr.bf16.gmra.mrb[0].mxu0 %v7452
        %v8984 = vpop.f32.mrb[0].mxu0
        %v8985 = vadd.f32 0.0, %v8984
        %v8986 = vpop.f32.mrb[0].mxu0
        %v8987 = vpop.f32.mrb[0].mxu0
        %v8988 = vadd.f32 0.0, %v8987
        %v8989 = vpop.f32.mrb[0].mxu0
        %8990 = vmatprep.mubr.bf16.mxu0 0
        %8991 = vmatmul.mubr.bf16.gmra.mrb[0].mxu0 %v7471
        %v8992 = vpop.f32.mrb[0].mxu0
        %v8993 = vadd.f32 0.0, %v8992
        %v8994 = vpop.f32.mrb[0].mxu0
        %v8995 = vpop.f32.mrb[0].mxu0
        %v8996 = vadd.f32 0.0, %v8995
        %v8997 = vpop.f32.mrb[0].mxu0
        %8998 = vdwg.mxu0
        %8999 = vmatprep.subr.bf16.mxu0 0
        %9000 = vmatpush1.bf16.msra.mxu0 %v8806
        %9001 = vmatprep.subr.bf16.mxu0 0
        %9002 = vmatpush1.bf16.msra.mxu0 %v8807
        %9003 = vmatprep.subr.bf16.mxu0 0
        %9004 = vmatpush1.bf16.msra.mxu0 %v8808
        %9005 = vmatprep.subr.bf16.mxu0 0
        %9006 = vmatpush1.bf16.msra.mxu0 %v8809
        %9007 = vmatprep.subr.bf16.mxu0 0
        %9008 = vmatpush1.bf16.msra.mxu0 %v8810
        %9009 = vmatprep.subr.bf16.mxu0 0
        %9010 = vmatpush1.bf16.msra.mxu0 %v8811
        %9011 = vmatprep.subr.bf16.mxu0 0
        %9012 = vmatpush1.bf16.msra.mxu0 %v8812
        %9013 = vmatprep.subr.bf16.mxu0 0
        %9014 = vmatpush1.bf16.msra.mxu0 %v8813
        %9015 = vmatprep.subr.bf16.mxu0 0
        %9016 = vmatpush1.bf16.msra.mxu0 0
        %9017 = vmatprep.subr.bf16.mxu0 0
        %9018 = vmatpush1.bf16.msra.mxu0 0
        %9019 = vmatprep.subr.bf16.mxu0 0
        %9020 = vmatpush1.bf16.msra.mxu0 0
        %9021 = vmatprep.subr.bf16.mxu0 0
        %9022 = vmatpush1.bf16.msra.mxu0 0
        %9023 = vmatprep.subr.bf16.mxu0 0
        %9024 = vmatpush1.bf16.msra.mxu0 0
        %9025 = vmatprep.subr.bf16.mxu0 0
        %9026 = vmatpush1.bf16.msra.mxu0 0
        %9027 = vmatprep.subr.bf16.mxu0 0
        %9028 = vmatpush1.bf16.msra.mxu0 0
        %9029 = vmatprep.subr.bf16.mxu0 0
        %9030 = vmatpush1.bf16.msra.mxu0 0
        %9031 = vmatprep.mubr.bf16.mxu0 0
        %9032 = vmatmul.mubr.bf16.gmra.mrb[0].mxu0 %v7491
        %v9033 = vpop.f32.mrb[0].mxu0
        %v9034 = vadd.f32 %v8873, %v9033
        %v9035 = vpop.f32.mrb[0].mxu0
        %v9036 = vpop.f32.mrb[0].mxu0
        %v9037 = vadd.f32 %v8876, %v9036
        %v9038 = vpop.f32.mrb[0].mxu0
        %9039 = vmatprep.mubr.bf16.mxu0 0
        %9040 = vmatmul.mubr.bf16.gmra.mrb[0].mxu0 %v7499
        %v9041 = vpop.f32.mrb[0].mxu0
        %v9042 = vadd.f32 %v8881, %v9041
        %v9043 = vpop.f32.mrb[0].mxu0
        %v9044 = vpop.f32.mrb[0].mxu0
        %v9045 = vadd.f32 %v8884, %v9044
        %v9046 = vpop.f32.mrb[0].mxu0
        %9047 = vmatprep.mubr.bf16.mxu0 0
        %9048 = vmatmul.mubr.bf16.gmra.mrb[0].mxu0 %v7507
        %v9049 = vpop.f32.mrb[0].mxu0
        %v9050 = vadd.f32 %v8889, %v9049
        %v9051 = vpop.f32.mrb[0].mxu0
        %v9052 = vpop.f32.mrb[0].mxu0
        %v9053 = vadd.f32 %v8892, %v9052
        %v9054 = vpop.f32.mrb[0].mxu0
        %9055 = vmatprep.mubr.bf16.mxu0 0
        %9056 = vmatmul.mubr.bf16.gmra.mrb[0].mxu0 %v7515
        %v9057 = vpop.f32.mrb[0].mxu0
        %v9058 = vadd.f32 %v8897, %v9057
        %v9059 = vpop.f32.mrb[0].mxu0
        %v9060 = vpop.f32.mrb[0].mxu0
        %v9061 = vadd.f32 %v8900, %v9060
        %v9062 = vpop.f32.mrb[0].mxu0
        %9063 = vmatprep.mubr.bf16.mxu0 0
        %9064 = vmatmul.mubr.bf16.gmra.mrb[0].mxu0 %v7523
        %v9065 = vpop.f32.mrb[0].mxu0
        %v9066 = vadd.f32 %v8905, %v9065
        %v9067 = vpop.f32.mrb[0].mxu0
        %v9068 = vpop.f32.mrb[0].mxu0
        %v9069 = vadd.f32 %v8908, %v9068
        %v9070 = vpop.f32.mrb[0].mxu0
        %9071 = vmatprep.mubr.bf16.mxu0 0
        %9072 = vmatmul.mubr.bf16.gmra.mrb[0].mxu0 %v7531
        %v9073 = vpop.f32.mrb[0].mxu0
        %v9074 = vadd.f32 %v8913, %v9073
        %v9075 = vpop.f32.mrb[0].mxu0
        %v9076 = vpop.f32.mrb[0].mxu0
        %v9077 = vadd.f32 %v8916, %v9076
        %v9078 = vpop.f32.mrb[0].mxu0
        %9079 = vmatprep.mubr.bf16.mxu0 0
        %9080 = vmatmul.mubr.bf16.gmra.mrb[0].mxu0 %v7539
        %v9081 = vpop.f32.mrb[0].mxu0
        %v9082 = vadd.f32 %v8921, %v9081
        %v9083 = vpop.f32.mrb[0].mxu0
        %v9084 = vpop.f32.mrb[0].mxu0
        %v9085 = vadd.f32 %v8924, %v9084
        %v9086 = vpop.f32.mrb[0].mxu0
        %9087 = vmatprep.mubr.bf16.mxu0 0
        %9088 = vmatmul.mubr.bf16.gmra.mrb[0].mxu0 %v7547
        %v9089 = vpop.f32.mrb[0].mxu0
        %v9090 = vadd.f32 %v8929, %v9089
        %v9091 = vpop.f32.mrb[0].mxu0
        %v9092 = vpop.f32.mrb[0].mxu0
        %v9093 = vadd.f32 %v8932, %v9092
        %v9094 = vpop.f32.mrb[0].mxu0
        %9095 = vmatprep.mubr.bf16.mxu0 0
        %9096 = vmatmul.mubr.bf16.gmra.mrb[0].mxu0 %v7555
        %v9097 = vpop.f32.mrb[0].mxu0
        %v9098 = vadd.f32 %v8937, %v9097
        %v9099 = vpop.f32.mrb[0].mxu0
        %v9100 = vpop.f32.mrb[0].mxu0
        %v9101 = vadd.f32 %v8940, %v9100
        %v9102 = vpop.f32.mrb[0].mxu0
        %9103 = vmatprep.mubr.bf16.mxu0 0
        %9104 = vmatmul.mubr.bf16.gmra.mrb[0].mxu0 %v7563
        %v9105 = vpop.f32.mrb[0].mxu0
        %v9106 = vadd.f32 %v8945, %v9105
        %v9107 = vpop.f32.mrb[0].mxu0
        %v9108 = vpop.f32.mrb[0].mxu0
        %v9109 = vadd.f32 %v8948, %v9108
        %v9110 = vpop.f32.mrb[0].mxu0
        %9111 = vmatprep.mubr.bf16.mxu0 0
        %9112 = vmatmul.mubr.bf16.gmra.mrb[0].mxu0 %v7571
        %v9113 = vpop.f32.mrb[0].mxu0
        %v9114 = vadd.f32 %v8953, %v9113
        %v9115 = vpop.f32.mrb[0].mxu0
        %v9116 = vpop.f32.mrb[0].mxu0
        %v9117 = vadd.f32 %v8956, %v9116
        %v9118 = vpop.f32.mrb[0].mxu0
        %9119 = vmatprep.mubr.bf16.mxu0 0
        %9120 = vmatmul.mubr.bf16.gmra.mrb[0].mxu0 %v7579
        %v9121 = vpop.f32.mrb[0].mxu0
        %v9122 = vadd.f32 %v8961, %v9121
        %v9123 = vpop.f32.mrb[0].mxu0
        %v9124 = vpop.f32.mrb[0].mxu0
        %v9125 = vadd.f32 %v8964, %v9124
        %v9126 = vpop.f32.mrb[0].mxu0
        %9127 = vmatprep.mubr.bf16.mxu0 0
        %9128 = vmatmul.mubr.bf16.gmra.mrb[0].mxu0 %v7587
        %v9129 = vpop.f32.mrb[0].mxu0
        %v9130 = vadd.f32 %v8969, %v9129
        %v9131 = vpop.f32.mrb[0].mxu0
        %v9132 = vpop.f32.mrb[0].mxu0
        %v9133 = vadd.f32 %v8972, %v9132
        %v9134 = vpop.f32.mrb[0].mxu0
        %9135 = vmatprep.mubr.bf16.mxu0 0
        %9136 = vmatmul.mubr.bf16.gmra.mrb[0].mxu0 %v7595
        %v9137 = vpop.f32.mrb[0].mxu0
        %v9138 = vadd.f32 %v8977, %v9137
        %v9139 = vpop.f32.mrb[0].mxu0
        %v9140 = vpop.f32.mrb[0].mxu0
        %v9141 = vadd.f32 %v8980, %v9140
        %v9142 = vpop.f32.mrb[0].mxu0
        %9143 = vmatprep.mubr.bf16.mxu0 0
        %9144 = vmatmul.mubr.bf16.gmra.mrb[0].mxu0 %v7617
        %v9145 = vpop.f32.mrb[0].mxu0
        %v9146 = vadd.f32 %v8985, %v9145
        %v9147 = vpop.f32.mrb[0].mxu0
        %v9148 = vpop.f32.mrb[0].mxu0
        %v9149 = vadd.f32 %v8988, %v9148
        %v9150 = vpop.f32.mrb[0].mxu0
        %9151 = vmatprep.mubr.bf16.mxu0 0
        %9152 = vmatmul.mubr.bf16.gmra.mrb[0].mxu0 0
        %v9153 = vpop.f32.mrb[0].mxu0
        %v9154 = vadd.f32 %v8993, %v9153
        %v9155 = vpop.f32.mrb[0].mxu0
        %v9156 = vpop.f32.mrb[0].mxu0
        %v9157 = vadd.f32 %v8996, %v9156
        %v9158 = vpop.f32.mrb[0].mxu0
        %9159 = vdwg.mxu0
        %v9160 = vadd.f32 %v8520, %v9034
        %v9161 = vadd.f32 %v8523, %v9037
        %v9162 = vadd.f32 %v8528, %v9042
        %v9163 = vadd.f32 %v8531, %v9045
        %v9164 = vadd.f32 %v8536, %v9050
        %v9165 = vadd.f32 %v8539, %v9053
        %v9166 = vadd.f32 %v8544, %v9058
        %v9167 = vadd.f32 %v8547, %v9061
        %v9168 = vadd.f32 %v8552, %v9066
        %v9169 = vadd.f32 %v8555, %v9069
        %v9170 = vadd.f32 %v8560, %v9074
        %v9171 = vadd.f32 %v8563, %v9077
        %v9172 = vadd.f32 %v8568, %v9082
        %v9173 = vadd.f32 %v8571, %v9085
        %v9174 = vadd.f32 %v8576, %v9090
        %v9175 = vadd.f32 %v8579, %v9093
        %v9176 = vadd.f32 %v8584, %v9098
        %v9177 = vadd.f32 %v8587, %v9101
        %v9178 = vadd.f32 %v8592, %v9106
        %v9179 = vadd.f32 %v8595, %v9109
        %v9180 = vadd.f32 %v8600, %v9114
        %v9181 = vadd.f32 %v8603, %v9117
        %v9182 = vadd.f32 %v8608, %v9122
        %v9183 = vadd.f32 %v8611, %v9125
        %v9184 = vadd.f32 %v8616, %v9130
        %v9185 = vadd.f32 %v8619, %v9133
        %v9186 = vadd.f32 %v8624, %v9138
        %v9187 = vadd.f32 %v8627, %v9141
        %v9188 = vadd.f32 %v8632, %v9146
        %v9189 = vadd.f32 %v8635, %v9149
        %v9190 = vadd.f32 %v8640, %v9154
        %v9191 = vadd.f32 %v8643, %v9157
        %v9192 = vld [vmem:[%s5] sm:$0x1]
        %v9194 = vlaneseq
        %v9195 = vshrl.u32 %v9194, 7
        %v9196 = vsub.s32 0, %v9195
        %v9197 = vrot.slane %v9192, %v9196
        %v9199 = vmul.f32 %v9160, %v9197
        %v9200 = vmul.f32 %v9161, %v9197
        %v9201 = vmul.f32 %v9162, %v9197
        %v9202 = vmul.f32 %v9163, %v9197
        %v9203 = vmul.f32 %v9164, %v9197
        %v9204 = vmul.f32 %v9165, %v9197
        %v9205 = vmul.f32 %v9166, %v9197
        %v9206 = vmul.f32 %v9167, %v9197
        %v9207 = vmul.f32 %v9168, %v9197
        %v9208 = vmul.f32 %v9169, %v9197
        %v9209 = vmul.f32 %v9170, %v9197
        %v9210 = vmul.f32 %v9171, %v9197
        %v9211 = vmul.f32 %v9172, %v9197
        %v9212 = vmul.f32 %v9173, %v9197
        %v9213 = vmul.f32 %v9174, %v9197
        %v9214 = vmul.f32 %v9175, %v9197
        %v9215 = vmul.f32 %v9176, %v9197
        %v9216 = vmul.f32 %v9177, %v9197
        %v9217 = vmul.f32 %v9178, %v9197
        %v9218 = vmul.f32 %v9179, %v9197
        %v9219 = vmul.f32 %v9180, %v9197
        %v9220 = vmul.f32 %v9181, %v9197
        %v9221 = vmul.f32 %v9182, %v9197
        %v9222 = vmul.f32 %v9183, %v9197
        %v9223 = vmul.f32 %v9184, %v9197
        %v9224 = vmul.f32 %v9185, %v9197
        %v9225 = vmul.f32 %v9186, %v9197
        %v9226 = vmul.f32 %v9187, %v9197
        %v9227 = vmul.f32 %v9188, %v9197
        %v9228 = vmul.f32 %v9189, %v9197
        %v9229 = vmul.f32 %v9190, %v9197
        %v9230 = vmul.f32 %v9191, %v9197
        %v9231 = vld [vmem:[%s6] sm:$0x1]
        %v9233 = vlaneseq
        %v9234 = vshrl.u32 %v9233, 7
        %v9235 = vsub.s32 0, %v9234
        %v9236 = vrot.slane %v9231, %v9235
        %v9238 = vadd.f32 %v9199, %v9236
        %v9239 = vadd.f32 %v9200, %v9236
        %v9240 = vadd.f32 %v9201, %v9236
        %v9241 = vadd.f32 %v9202, %v9236
        %v9242 = vadd.f32 %v9203, %v9236
        %v9243 = vadd.f32 %v9204, %v9236
        %v9244 = vadd.f32 %v9205, %v9236
        %v9245 = vadd.f32 %v9206, %v9236
        %v9246 = vadd.f32 %v9207, %v9236
        %v9247 = vadd.f32 %v9208, %v9236
        %v9248 = vadd.f32 %v9209, %v9236
        %v9249 = vadd.f32 %v9210, %v9236
        %v9250 = vadd.f32 %v9211, %v9236
        %v9251 = vadd.f32 %v9212, %v9236
        %v9252 = vadd.f32 %v9213, %v9236
        %v9253 = vadd.f32 %v9214, %v9236
        %v9254 = vadd.f32 %v9215, %v9236
        %v9255 = vadd.f32 %v9216, %v9236
        %v9256 = vadd.f32 %v9217, %v9236
        %v9257 = vadd.f32 %v9218, %v9236
        %v9258 = vadd.f32 %v9219, %v9236
        %v9259 = vadd.f32 %v9220, %v9236
        %v9260 = vadd.f32 %v9221, %v9236
        %v9261 = vadd.f32 %v9222, %v9236
        %v9262 = vadd.f32 %v9223, %v9236
        %v9263 = vadd.f32 %v9224, %v9236
        %v9264 = vadd.f32 %v9225, %v9236
        %v9265 = vadd.f32 %v9226, %v9236
        %v9266 = vadd.f32 %v9227, %v9236
        %v9267 = vadd.f32 %v9228, %v9236
        %v9268 = vadd.f32 %v9229, %v9236
        %v9269 = vadd.f32 %v9230, %v9236
        %v9270 = vunpack.c.l.bf16 %v4950
        %v9271 = vunpack.c.l.bf16 %v4951
        %v9272 = vunpack.c.l.bf16 %v4952
        %v9273 = vunpack.c.l.bf16 %v4953
        %v9274 = vunpack.c.l.bf16 %v4954
        %v9275 = vunpack.c.l.bf16 %v4955
        %v9276 = vunpack.c.l.bf16 %v4956
        %v9277 = vunpack.c.l.bf16 %v4957
        %v9278 = vunpack.c.l.bf16 %v4958
        %v9279 = vunpack.c.l.bf16 %v4959
        %v9280 = vunpack.c.l.bf16 %v4960
        %v9281 = vunpack.c.l.bf16 %v4961
        %v9282 = vunpack.c.l.bf16 %v4962
        %v9283 = vunpack.c.l.bf16 %v4963
        %v9284 = vunpack.c.l.bf16 %v4964
        %v9285 = vunpack.c.l.bf16 %v4965
        %v9286 = vunpack.c.l.bf16 %v4966
        %v9287 = vunpack.c.l.bf16 %v4967
        %v9288 = vunpack.c.l.bf16 %v4968
        %v9289 = vunpack.c.l.bf16 %v4969
        %v9290 = vunpack.c.l.bf16 %v4970
        %v9291 = vunpack.c.l.bf16 %v4971
        %v9292 = vunpack.c.l.bf16 %v4972
        %v9293 = vunpack.c.l.bf16 %v4973
        %v9294 = vunpack.c.l.bf16 %v4974
        %v9295 = vunpack.c.l.bf16 %v4975
        %v9296 = vunpack.c.l.bf16 %v4976
        %v9297 = vunpack.c.l.bf16 %v4977
        %v9298 = vunpack.c.l.bf16 %v4978
        %v9299 = vunpack.c.l.bf16 %v4979
        %v9300 = vunpack.c.l.bf16 %v4980
        %v9301 = vunpack.c.l.bf16 %v4981
        %v9302 = vadd.f32 %v9238, %v9270
        %v9303 = vadd.f32 %v9239, %v9271
        %v9304 = vadd.f32 %v9240, %v9272
        %v9305 = vadd.f32 %v9241, %v9273
        %v9306 = vadd.f32 %v9242, %v9274
        %v9307 = vadd.f32 %v9243, %v9275
        %v9308 = vadd.f32 %v9244, %v9276
        %v9309 = vadd.f32 %v9245, %v9277
        %v9310 = vadd.f32 %v9246, %v9278
        %v9311 = vadd.f32 %v9247, %v9279
        %v9312 = vadd.f32 %v9248, %v9280
        %v9313 = vadd.f32 %v9249, %v9281
        %v9314 = vadd.f32 %v9250, %v9282
        %v9315 = vadd.f32 %v9251, %v9283
        %v9316 = vadd.f32 %v9252, %v9284
        %v9317 = vadd.f32 %v9253, %v9285
        %v9318 = vadd.f32 %v9254, %v9286
        %v9319 = vadd.f32 %v9255, %v9287
        %v9320 = vadd.f32 %v9256, %v9288
        %v9321 = vadd.f32 %v9257, %v9289
        %v9322 = vadd.f32 %v9258, %v9290
        %v9323 = vadd.f32 %v9259, %v9291
        %v9324 = vadd.f32 %v9260, %v9292
        %v9325 = vadd.f32 %v9261, %v9293
        %v9326 = vadd.f32 %v9262, %v9294
        %v9327 = vadd.f32 %v9263, %v9295
        %v9328 = vadd.f32 %v9264, %v9296
        %v9329 = vadd.f32 %v9265, %v9297
        %v9330 = vadd.f32 %v9266, %v9298
        %v9331 = vadd.f32 %v9267, %v9299
        %v9332 = vadd.f32 %v9268, %v9300
        %v9333 = vadd.f32 %v9269, %v9301
        %v9334 = vmax.f32 %v9302, 0.0
        %v9335 = vmax.f32 %v9303, 0.0
        %v9336 = vmax.f32 %v9304, 0.0
        %v9337 = vmax.f32 %v9305, 0.0
        %v9338 = vmax.f32 %v9306, 0.0
        %v9339 = vmax.f32 %v9307, 0.0
        %v9340 = vmax.f32 %v9308, 0.0
        %v9341 = vmax.f32 %v9309, 0.0
        %v9342 = vmax.f32 %v9310, 0.0
        %v9343 = vmax.f32 %v9311, 0.0
        %v9344 = vmax.f32 %v9312, 0.0
        %v9345 = vmax.f32 %v9313, 0.0
        %v9346 = vmax.f32 %v9314, 0.0
        %v9347 = vmax.f32 %v9315, 0.0
        %v9348 = vmax.f32 %v9316, 0.0
        %v9349 = vmax.f32 %v9317, 0.0
        %v9350 = vmax.f32 %v9318, 0.0
        %v9351 = vmax.f32 %v9319, 0.0
        %v9352 = vmax.f32 %v9320, 0.0
        %v9353 = vmax.f32 %v9321, 0.0
        %v9354 = vmax.f32 %v9322, 0.0
        %v9355 = vmax.f32 %v9323, 0.0
        %v9356 = vmax.f32 %v9324, 0.0
        %v9357 = vmax.f32 %v9325, 0.0
        %v9358 = vmax.f32 %v9326, 0.0
        %v9359 = vmax.f32 %v9327, 0.0
        %v9360 = vmax.f32 %v9328, 0.0
        %v9361 = vmax.f32 %v9329, 0.0
        %v9362 = vmax.f32 %v9330, 0.0
        %v9363 = vmax.f32 %v9331, 0.0
        %v9364 = vmax.f32 %v9332, 0.0
        %v9365 = vmax.f32 %v9333, 0.0
        %v9366 = vpack.c.bf16 %v9335, %v9334
        %v9367 = vpack.c.bf16 %v9337, %v9336
        %v9368 = vpack.c.bf16 %v9339, %v9338
        %v9369 = vpack.c.bf16 %v9341, %v9340
        %v9370 = vpack.c.bf16 %v9343, %v9342
        %v9371 = vpack.c.bf16 %v9345, %v9344
        %v9372 = vpack.c.bf16 %v9347, %v9346
        %v9373 = vpack.c.bf16 %v9349, %v9348
        %v9374 = vpack.c.bf16 %v9351, %v9350
        %v9375 = vpack.c.bf16 %v9353, %v9352
        %v9376 = vpack.c.bf16 %v9355, %v9354
        %v9377 = vpack.c.bf16 %v9357, %v9356
        %v9378 = vpack.c.bf16 %v9359, %v9358
        %v9379 = vpack.c.bf16 %v9361, %v9360
        %v9380 = vpack.c.bf16 %v9363, %v9362
        %v9381 = vpack.c.bf16 %v9365, %v9364
        %v9398 = vunpack.c.l.b16 %v9366
        %v9399 = vunpack.c.h.b16 %v9366
        %v9400 = vunpack.c.l.b16 %v9367
        %v9401 = vunpack.c.h.b16 %v9367
        %v9402 = vunpack.c.l.b16 %v9368
        %v9403 = vunpack.c.h.b16 %v9368
        %v9404 = vunpack.c.l.b16 %v9369
        %v9405 = vunpack.c.h.b16 %v9369
        %v9406 = vunpack.c.l.b16 %v9370
        %v9407 = vunpack.c.h.b16 %v9370
        %v9408 = vunpack.c.l.b16 %v9371
        %v9409 = vunpack.c.h.b16 %v9371
        %v9410 = vunpack.c.l.b16 %v9372
        %v9411 = vunpack.c.h.b16 %v9372
        %v9412 = vunpack.c.l.b16 %v9373
        %v9413 = vunpack.c.h.b16 %v9373
        %v9414 = vunpack.c.l.b16 %v9374
        %v9415 = vunpack.c.h.b16 %v9374
        %v9416 = vunpack.c.l.b16 %v9375
        %v9417 = vunpack.c.h.b16 %v9375
        %v9418 = vunpack.c.l.b16 %v9376
        %v9419 = vunpack.c.h.b16 %v9376
        %v9420 = vunpack.c.l.b16 %v9377
        %v9421 = vunpack.c.h.b16 %v9377
        %v9422 = vunpack.c.l.b16 %v9378
        %v9423 = vunpack.c.h.b16 %v9378
        %v9424 = vunpack.c.l.b16 %v9379
        %v9425 = vunpack.c.h.b16 %v9379
        %v9426 = vunpack.c.l.b16 %v9380
        %v9427 = vunpack.c.h.b16 %v9380
        %v9428 = vunpack.c.l.b16 %v9381
        %v9429 = vunpack.c.h.b16 %v9381
        %v9430 = vpack.c.b16 %v9398, %v9398
        %v9431 = vpack.c.b16 %v9399, %v9399
        %v9432 = vpack.c.b16 %v9400, %v9400
        %v9433 = vpack.c.b16 %v9401, %v9401
        %v9434 = vpack.c.b16 %v9402, %v9402
        %v9435 = vpack.c.b16 %v9403, %v9403
        %v9436 = vpack.c.b16 %v9404, %v9404
        %v9437 = vpack.c.b16 %v9405, %v9405
        %v9438 = vpack.c.b16 %v9406, %v9406
        %v9439 = vpack.c.b16 %v9407, %v9407
        %v9440 = vpack.c.b16 %v9408, %v9408
        %v9441 = vpack.c.b16 %v9409, %v9409
        %v9442 = vpack.c.b16 %v9410, %v9410
        %v9443 = vpack.c.b16 %v9411, %v9411
        %v9444 = vpack.c.b16 %v9412, %v9412
        %v9445 = vpack.c.b16 %v9413, %v9413
        %v9446 = vpack.c.b16 %v9414, %v9414
        %v9447 = vpack.c.b16 %v9415, %v9415
        %v9448 = vpack.c.b16 %v9416, %v9416
        %v9449 = vpack.c.b16 %v9417, %v9417
        %v9450 = vpack.c.b16 %v9418, %v9418
        %v9451 = vpack.c.b16 %v9419, %v9419
        %v9452 = vpack.c.b16 %v9420, %v9420
        %v9453 = vpack.c.b16 %v9421, %v9421
        %v9454 = vpack.c.b16 %v9422, %v9422
        %v9455 = vpack.c.b16 %v9423, %v9423
        %v9456 = vpack.c.b16 %v9424, %v9424
        %v9457 = vpack.c.b16 %v9425, %v9425
        %v9458 = vpack.c.b16 %v9426, %v9426
        %v9459 = vpack.c.b16 %v9427, %v9427
        %v9460 = vpack.c.b16 %v9428, %v9428
        %v9461 = vpack.c.b16 %v9429, %v9429
        %s9494 = scalar_lea.vmem %s326, 128 [#allocation8]
        %9495 = vst [vmem:[%s9494] sm:$0xf] %v9430
        %9496 = vst [vmem:[%s9494 + $0x4] sm:$0xf] %v9431
        %9497 = vst [vmem:[%s9494 + $0x8] sm:$0xf] %v9432
        %9498 = vst [vmem:[%s9494 + $0xc] sm:$0xf] %v9433
        %9499 = vst [vmem:[%s9494 + $0x10] sm:$0xf] %v9434
        %9500 = vst [vmem:[%s9494 + $0x14] sm:$0xf] %v9435
        %9501 = vst [vmem:[%s9494 + $0x18] sm:$0xf] %v9436
        %9502 = vst [vmem:[%s9494 + $0x1c] sm:$0xf] %v9437
        %9503 = vst [vmem:[%s9494 + $0x20] sm:$0xf] %v9438
        %9504 = vst [vmem:[%s9494 + $0x24] sm:$0xf] %v9439
        %9505 = vst [vmem:[%s9494 + $0x28] sm:$0xf] %v9440
        %9506 = vst [vmem:[%s9494 + $0x2c] sm:$0xf] %v9441
        %9507 = vst [vmem:[%s9494 + $0x30] sm:$0xf] %v9442
        %9508 = vst [vmem:[%s9494 + $0x34] sm:$0xf] %v9443
        %9509 = vst [vmem:[%s9494 + $0x38] sm:$0xf] %v9444
        %9510 = vst [vmem:[%s9494 + $0x3c] sm:$0xf] %v9445
        %9511 = vst [vmem:[%s9494 + $0x40] sm:$0xf] %v9446
        %9512 = vst [vmem:[%s9494 + $0x44] sm:$0xf] %v9447
        %9513 = vst [vmem:[%s9494 + $0x48] sm:$0xf] %v9448
        %9514 = vst [vmem:[%s9494 + $0x4c] sm:$0xf] %v9449
        %9515 = vst [vmem:[%s9494 + $0x50] sm:$0xf] %v9450
        %9516 = vst [vmem:[%s9494 + $0x54] sm:$0xf] %v9451
        %9517 = vst [vmem:[%s9494 + $0x58] sm:$0xf] %v9452
        %9518 = vst [vmem:[%s9494 + $0x5c] sm:$0xf] %v9453
        %9519 = vst [vmem:[%s9494 + $0x60] sm:$0xf] %v9454
        %9520 = vst [vmem:[%s9494 + $0x64] sm:$0xf] %v9455
        %9521 = vst [vmem:[%s9494 + $0x68] sm:$0xf] %v9456
        %9522 = vst [vmem:[%s9494 + $0x6c] sm:$0xf] %v9457
        %9523 = vst [vmem:[%s9494 + $0x70] sm:$0xf] %v9458
        %9524 = vst [vmem:[%s9494 + $0x74] sm:$0xf] %v9459
        %9525 = vst [vmem:[%s9494 + $0x78] sm:$0xf] %v9460
        %9526 = vst [vmem:[%s9494 + $0x7c] sm:$0xf] %v9461
        %s9527 = sand.u32 %s185, 1
        %s9528 = scalar_lea.sflag [#allocation4], %s9527
        %s9529 = sand.u32 %s185, 1
        %s9530 = smul.addr %s9529, 256
        %s9531 = scalar_lea.vmem [#allocation8], %s9530
        // Predicated region
        $region61: #{basic_block_forward_nhwc.1} parent=47 // pred_check
          %p9532 = pneg %p195
        $region62: #{basic_block_forward_nhwc.1} parent=47 // pred_check_branch
          %9534 = sbr.rel (%p9532) target = $region64
        $region63: #{basic_block_forward_nhwc.1} parent=47 // pred_region
          %s9535 = smul.u32 2, %s25
          %s9537 = ssub.s32 4096, 4096
          %9538 = vsyncadd %s9528, %s9537
          %s9539 = smul.addr %s9535, 32
          %s9540 = smul.addr %s9539, 64
          %s9541 = scalar_lea.hbm %s7, %s9540
          %s9542 = sshll.u32 %s9531, 4
          %s9543 = int_to_ptr.vmem [resolvable:$true] %s9542
          %9548 = dma.vmem_to_hbm [thread:$0]  %s9543, 4096, %s9541, %s9528, 64, 64, 4
        $region64: #{basic_block_forward_nhwc.1} parent=47 // pred_fallthru
          _
      $region48: #{basic_block_forward_nhwc.1} parent=5 // pred_fallthru
        _
      %p9549 = scmp.le.s32.totalorder 2, %s20
      // Predicated region
      $region65: #{basic_block_forward_nhwc.1} parent=5 // pred_check
        %p9550 = pneg %p9549
      $region66: #{basic_block_forward_nhwc.1} parent=5 // pred_check_branch
        %9552 = sbr.rel (%p9550) target = $region68
      $region67: #{basic_block_forward_nhwc.1} parent=5 // pred_region
        %s9553 = ssub.s32 %s20, 2
        // Predicated region
        $region69: #{basic_block_forward_nhwc.1} parent=67 // pred_check
          %p9554 = pneg %p201
        $region70: #{basic_block_forward_nhwc.1} parent=67 // pred_check_branch
          %9556 = sbr.rel (%p9554) target = $region72
        $region71: #{basic_block_forward_nhwc.1} parent=67 // pred_region
          %s9557 = sand.u32 %s186, 1
          %s9558 = scalar_lea.sflag [#allocation4], %s9557
          %s9559 = sand.u32 %s186, 1
          %s9560 = smul.addr %s9559, 256
          %s9561 = scalar_lea.vmem [#allocation8], %s9560
          %9562 = dma.done %s9558, 4096
        $region72: #{basic_block_forward_nhwc.1} parent=67 // pred_fallthru
          _
      $region68: #{basic_block_forward_nhwc.1} parent=5 // pred_fallthru
        _
    $region6: #{basic_block_forward_nhwc.1} parent=1 // loop_footer
      %s24 = sadd.s32 1, %s20
    $region7: #{basic_block_forward_nhwc.1} parent=1 // loop_footer_branch
      %19 = sbr.rel target = $region3
    $region8: #{basic_block_forward_nhwc.1} parent=1 // loop_exit
      _
    %9563 = vsyncpa [#allocation3], 1
    %s9564 = scalar_lea.sflag [#allocation3], 1
    %9565 = vsyncpa %s9564, 1
    %9566 = vsyncpa [#allocation6], 1
    %9567 = vsyncpa [#allocation4], 1
    %s9568 = scalar_lea.sflag [#allocation4], 1
    %9569 = vsyncpa %s9568, 1

</llo_original>
